<compile_context>
chip_gen: v7x
topology: tpu7x:2x2x1
jax: 0.10.0
libtpu: 0.0.40
codegen_flags: <defaults>
</compile_context>

<pallas_src>
import jax
import jax.numpy as jnp
from jax.experimental import pallas as pl
from jax.experimental.pallas import tpu as pltpu

SWIN_F = 768
BEIT_F = 1024
MEDVIT_F = 2048
TOTAL_F = SWIN_F + BEIT_F + MEDVIT_F   # 3840
HIDDEN = 512
NUM_CLASSES = 2
OUT_PAD = 128                          # lane-dense padded classifier width


def _fused_head_kernel(swin_ref, beit_ref, med_ref, w_ref, b_ref, out_ref):
    # cat([swin, beit, med], dim=1) @ W_eff implemented as three partial
    # matmuls against static, sublane-aligned slices (768 / 1792 are multiples
    # of 16) of the VMEM-resident folded bf16 weight.  Activations arrive as
    # f32 tiles and are cast to bf16 in VMEM (no standalone HBM convert pass).
    acc = jnp.dot(swin_ref[...].astype(jnp.bfloat16),
                  w_ref[:SWIN_F, :],
                  preferred_element_type=jnp.float32)
    acc += jnp.dot(beit_ref[...].astype(jnp.bfloat16),
                   w_ref[SWIN_F:SWIN_F + BEIT_F, :],
                   preferred_element_type=jnp.float32)
    acc += jnp.dot(med_ref[...].astype(jnp.bfloat16),
                   w_ref[SWIN_F + BEIT_F:, :],
                   preferred_element_type=jnp.float32)
    out_ref[...] = acc + b_ref[...]          # f32 folded bias, broadcast over rows


def multi_model_fracture_detector(swin_out, beit_out, medvit_out, params):
    """params: dict with w_fc (3840,512), b_fc (512,), w_cls (512,2), b_cls (2,)."""
    batch = swin_out.shape[0]

    # Tile choice: 256 fills the 256-wide MXU (v6e/v7x) and still leaves >= 2
    # grid steps for v7x's two TensorCores once batch >= 512; 128 otherwise
    # (also matches v5e's 128x128 MXU and its tighter scoped-VMEM default).
    tm = 256 if batch >= 512 else 128
    grid = (pl.cdiv(batch, tm),)

    # Fold the classifier into the fc (exact in f32 -- the module has no
    # nonlinearity between the two Linears), zero-pad to a lane-dense 128-wide
    # output, and cast the folded weight to bf16 for the MXU.
    w_fc = params["w_fc"].astype(jnp.float32)
    w_cls = params["w_cls"].astype(jnp.float32)
    w_eff = w_fc @ w_cls                                           # (3840, 2)
    b_eff = params["b_fc"].astype(jnp.float32) @ w_cls \
        + params["b_cls"].astype(jnp.float32)                      # (2,)
    w_pad = (jnp.zeros((TOTAL_F, OUT_PAD), jnp.float32)
             .at[:, :NUM_CLASSES].set(w_eff)
             .astype(jnp.bfloat16))                                # (3840, 128) bf16
    b_pad = (jnp.zeros((1, OUT_PAD), jnp.float32)
             .at[:, :NUM_CLASSES].set(b_eff.reshape(1, NUM_CLASSES)))

    cost = pl.CostEstimate(
        flops=2 * batch * TOTAL_F * OUT_PAD,
        transcendentals=0,
        bytes_accessed=(batch * TOTAL_F * 4            # f32 activations, read once
                        + w_pad.size * 2 + b_pad.size * 4
                        + batch * OUT_PAD * 4),
    )

    out = pl.pallas_call(
        _fused_head_kernel,
        out_shape=jax.ShapeDtypeStruct((batch, OUT_PAD), jnp.float32),
        grid=grid,
        in_specs=[
            pl.BlockSpec((tm, SWIN_F), lambda i: (i, 0)),
            pl.BlockSpec((tm, BEIT_F), lambda i: (i, 0)),
            pl.BlockSpec((tm, MEDVIT_F), lambda i: (i, 0)),
            pl.BlockSpec((TOTAL_F, OUT_PAD), lambda i: (0, 0)),   # VMEM-resident
            pl.BlockSpec((1, OUT_PAD), lambda i: (0, 0)),         # VMEM-resident
        ],
        out_specs=pl.BlockSpec((tm, OUT_PAD), lambda i: (i, 0)),
        compiler_params=pltpu.CompilerParams(
            dimension_semantics=("parallel",),
            # ~10 MiB working set at tm=256 with f32 activation tiles; give
            # v5e's 16 MiB scoped default some headroom (no-op on v6e/v7x).
            vmem_limit_bytes=28 * 1024 * 1024,
        ),
        cost_estimate=cost,
    )(swin_out.astype(jnp.float32), beit_out.astype(jnp.float32),
      medvit_out.astype(jnp.float32), w_pad, b_pad)

    # Drop the zero-padded classifier lanes (padded columns are exactly zero).
    return out[:, :NUM_CLASSES]


def init_params(key):
    """Deterministic synthetic init mirroring nn.Linear shapes (stored transposed)."""
    k1, k2, k3, k4 = jax.random.split(key, 4)
    bound_fc = 1.0 / jnp.sqrt(TOTAL_F)
    bound_cls = 1.0 / jnp.sqrt(HIDDEN)
    return {
        "w_fc": jax.random.uniform(k1, (TOTAL_F, HIDDEN), jnp.float32,
                                   -bound_fc, bound_fc),
        "b_fc": jax.random.uniform(k2, (HIDDEN,), jnp.float32,
                                   -bound_fc, bound_fc),
        "w_cls": jax.random.uniform(k3, (HIDDEN, NUM_CLASSES), jnp.float32,
                                    -bound_cls, bound_cls),
        "b_cls": jax.random.uniform(k4, (NUM_CLASSES,), jnp.float32,
                                    -bound_cls, bound_cls),
    }


def reference(swin_out, beit_out, medvit_out, params):
    # Exact f32 math of the original PyTorch module (two separate Linears).
    fused = jnp.concatenate([swin_out, beit_out, medvit_out], axis=1)
    h = fused @ params["w_fc"] + params["b_fc"]
    return h @ params["w_cls"] + params["b_cls"]


if __name__ == "__main__":
    key = jax.random.PRNGKey(0)
    k_params, k_swin, k_beit, k_med = jax.random.split(key, 4)

    batch = 2
    params = init_params(k_params)
    swin_out = jax.random.normal(k_swin, (batch, SWIN_F), jnp.float32)
    beit_out = jax.random.normal(k_beit, (batch, BEIT_F), jnp.float32)
    medvit_out = jax.random.normal(k_med, (batch, MEDVIT_F), jnp.float32)

    out = multi_model_fracture_detector(swin_out, beit_out, medvit_out, params)
    out = jax.block_until_ready(out)

    ref = reference(swin_out, beit_out, medvit_out, params)
    assert out.shape == (batch, NUM_CLASSES), out.shape
    assert jnp.allclose(out, ref, atol=1e-2, rtol=1e-2), (out, ref)

    print("KERNEL_OK")
</pallas_src>

<mosaic_0001>
module attributes {stable_mosaic.version = 11 : i64} {
  func.func @_fused_head_kernel(%arg0: i32, %arg1: memref<128x768xf32, #tpu.memory_space<vmem>>, %arg2: memref<128x1024xf32, #tpu.memory_space<vmem>>, %arg3: memref<128x2048xf32, #tpu.memory_space<vmem>>, %arg4: memref<3840x128xbf16, #tpu.memory_space<vmem>>, %arg5: memref<1x128xf32, #tpu.memory_space<vmem>>, %arg6: memref<128x128xf32, #tpu.memory_space<vmem>>) attributes {dimension_semantics = [#tpu.dimension_semantics<parallel>], iteration_bounds = array<i64: 1>, scalar_prefetch = 0 : i64, scratch_operands = 0 : i64, tpu.core_type = #tpu.core_type<tc>, window_params = [{transform_indices = @transform_0, window_bounds = array<i64: 128, 768>}, {transform_indices = @transform_1, window_bounds = array<i64: 128, 1024>}, {transform_indices = @transform_2, window_bounds = array<i64: 128, 2048>}, {pipeline_mode = #tpu.pipeline_mode<synchronous>, transform_indices = @transform_3, window_bounds = array<i64: 3840, 128>}, {pipeline_mode = #tpu.pipeline_mode<synchronous>, transform_indices = @transform_4, window_bounds = array<i64: 1, 128>}, {transform_indices = @transform_5, window_bounds = array<i64: 128, 128>}]} {
    %c0 = arith.constant 0 : index
    %c0_0 = arith.constant 0 : index
    %0 = vector.load %arg1[%c0, %c0_0] : memref<128x768xf32, #tpu.memory_space<vmem>>, vector<128x768xf32>
    %1 = arith.truncf %0 : vector<128x768xf32> to vector<128x768xbf16>
    %c0_1 = arith.constant 0 : index
    %c0_2 = arith.constant 0 : index
    %2 = vector.load %arg4[%c0_1, %c0_2] : memref<3840x128xbf16, #tpu.memory_space<vmem>>, vector<768x128xbf16>
    %cst = arith.constant dense<0.000000e+00> : vector<128x128xf32>
    %3 = tpu.matmul %1, %2, %cst {dimension_numbers = #tpu.dot_dimension_numbers<[1], [0], [0], [1], [0, 0, 1, 1], [], []>} : vector<128x768xbf16>, vector<768x128xbf16>, vector<128x128xf32> -> vector<128x128xf32>
    %c0_3 = arith.constant 0 : index
    %c0_4 = arith.constant 0 : index
    %4 = vector.load %arg2[%c0_3, %c0_4] : memref<128x1024xf32, #tpu.memory_space<vmem>>, vector<128x1024xf32>
    %5 = arith.truncf %4 : vector<128x1024xf32> to vector<128x1024xbf16>
    %c768 = arith.constant 768 : index
    %c0_5 = arith.constant 0 : index
    %6 = vector.load %arg4[%c768, %c0_5] : memref<3840x128xbf16, #tpu.memory_space<vmem>>, vector<1024x128xbf16>
    %cst_6 = arith.constant dense<0.000000e+00> : vector<128x128xf32>
    %7 = tpu.matmul %5, %6, %cst_6 {dimension_numbers = #tpu.dot_dimension_numbers<[1], [0], [0], [1], [0, 0, 1, 1], [], []>} : vector<128x1024xbf16>, vector<1024x128xbf16>, vector<128x128xf32> -> vector<128x128xf32>
    %8 = arith.addf %3, %7 : vector<128x128xf32>
    %c0_7 = arith.constant 0 : index
    %c0_8 = arith.constant 0 : index
    %9 = vector.load %arg3[%c0_7, %c0_8] : memref<128x2048xf32, #tpu.memory_space<vmem>>, vector<128x2048xf32>
    %10 = arith.truncf %9 : vector<128x2048xf32> to vector<128x2048xbf16>
    %c1792 = arith.constant 1792 : index
    %c0_9 = arith.constant 0 : index
    %11 = vector.load %arg4[%c1792, %c0_9] : memref<3840x128xbf16, #tpu.memory_space<vmem>>, vector<2048x128xbf16>
    %cst_10 = arith.constant dense<0.000000e+00> : vector<128x128xf32>
    %12 = tpu.matmul %10, %11, %cst_10 {dimension_numbers = #tpu.dot_dimension_numbers<[1], [0], [0], [1], [0, 0, 1, 1], [], []>} : vector<128x2048xbf16>, vector<2048x128xbf16>, vector<128x128xf32> -> vector<128x128xf32>
    %13 = arith.addf %8, %12 : vector<128x128xf32>
    %c0_11 = arith.constant 0 : index
    %c0_12 = arith.constant 0 : index
    %14 = vector.load %arg5[%c0_11, %c0_12] : memref<1x128xf32, #tpu.memory_space<vmem>>, vector<1x128xf32>
    %15 = vector.broadcast %14 : vector<1x128xf32> to vector<128x128xf32>
    %16 = arith.addf %13, %15 : vector<128x128xf32>
    %c0_13 = arith.constant 0 : index
    %c0_14 = arith.constant 0 : index
    %17 = vector.load %arg6[%c0_13, %c0_14] : memref<128x128xf32, #tpu.memory_space<vmem>>, vector<128x128xf32>
    tpu.vector_store %arg6[%c0_13, %c0_14], %16 {strides = array<i32>} : memref<128x128xf32, #tpu.memory_space<vmem>>, vector<128x128xf32>,
    return
  }
  func.func @transform_0(%arg0: i32) -> (i32, i32) {
    %c0_i32 = arith.constant 0 : i32
    %c0_i32_0 = arith.constant 0 : i32
    return %arg0, %c0_i32 : i32, i32
  }
  func.func @transform_1(%arg0: i32) -> (i32, i32) {
    %c0_i32 = arith.constant 0 : i32
    %c0_i32_0 = arith.constant 0 : i32
    return %arg0, %c0_i32 : i32, i32
  }
  func.func @transform_2(%arg0: i32) -> (i32, i32) {
    %c0_i32 = arith.constant 0 : i32
    %c0_i32_0 = arith.constant 0 : i32
    return %arg0, %c0_i32 : i32, i32
  }
  func.func @transform_3(%arg0: i32) -> (i32, i32) {
    %c0_i32 = arith.constant 0 : i32
    %c0_i32_0 = arith.constant 0 : i32
    %c0_i32_1 = arith.constant 0 : i32
    return %c0_i32, %c0_i32_0 : i32, i32
  }
  func.func @transform_4(%arg0: i32) -> (i32, i32) {
    %c0_i32 = arith.constant 0 : i32
    %c0_i32_0 = arith.constant 0 : i32
    %c0_i32_1 = arith.constant 0 : i32
    return %c0_i32, %c0_i32_0 : i32, i32
  }
  func.func @transform_5(%arg0: i32) -> (i32, i32) {
    %c0_i32 = arith.constant 0 : i32
    %c0_i32_0 = arith.constant 0 : i32
    return %arg0, %c0_i32 : i32, i32
  }
}

</mosaic_0001>

<llo_original>
// kernel: tpu_custom_call.1
$region0: #{tpu_custom_call.1}
  #allocation0 [shape = 'u32[]', space=smem, size = 0x4, offset = 0x4, fixed_abs, tag = 'smem constant byte address 0x4 - core index']
  #allocation1 [shape = 'u32[144,128]{1,0:T(1,128)}', space=vmem, size = 0x12000, scoped, tag = 'internal scratch']
  %s0 = inlined_call_operand.hbm [shape: f32[2,768], index: 0, kind: input, shape index: {}]
  %s1 = inlined_call_operand.hbm [shape: f32[2,1024], index: 1, kind: input, shape index: {}]
  %s2 = inlined_call_operand.hbm [shape: f32[2,2048], index: 2, kind: input, shape index: {}]
  %s3 = inlined_call_operand.hbm [shape: bf16[3840,128], index: 3, kind: input, shape index: {}]
  %s4 = inlined_call_operand.vmem [shape: f32[1,128], index: 4, kind: input, shape index: {}]
  %s5 = inlined_call_operand.hbm [shape: f32[2,128], index: 5, kind: output, shape index: {}]
  %s6 = sld [smem:[#allocation0]]
  $region46: #{tpu_custom_call.1} parent=0
    _
  %s8 = ssub.s32 1, %s6
  %s9 = scalar_select 0, %s8, %s6
  $region1: #{tpu_custom_call.1} parent=0
    #allocation2 [shape = 'u8[393216]{0}', space=vmem, size = 0x60000, scoped, tag = 'input window, operand 0, single buffered']
    #allocation3 [shape = 's32[1]{0}', space=sflag, size = 0x4, scoped, tag = 'scoped memory for tpu_custom_call.1']
    #allocation4 [shape = 's32[1]{0}', space=sflag, size = 0x4, scoped, tag = 'scoped memory for tpu_custom_call.1']
    #allocation5 [shape = 'u8[524288]{0}', space=vmem, size = 0x80000, scoped, tag = 'input window, operand 1, single buffered']
    #allocation6 [shape = 's32[1]{0}', space=sflag, size = 0x4, scoped, tag = 'scoped memory for tpu_custom_call.1']
    #allocation7 [shape = 'u8[1048576]{0}', space=vmem, size = 0x100000, scoped, tag = 'input window, operand 2, single buffered']
    #allocation8 [shape = 'u8[983040]{0}', space=vmem, size = 0xf0000, scoped, tag = 'input window, operand 3, single buffered']
    #allocation9 [shape = 's32[1]{0}', space=sflag, size = 0x4, scoped, tag = 'scoped memory for tpu_custom_call.1']
    #allocation10 [shape = 'u8[65536]{0}', space=vmem, size = 0x10000, scoped, tag = 'output window, operand 0, single buffered']
    %10 = vsyncpa [#allocation3], 0
    %11 = vsyncpa [#allocation6], 0
    %12 = vsyncpa [#allocation9], 0
    %13 = vsyncpa [#allocation4], 0
    // Predicated region
    $region2: #{tpu_custom_call.1} parent=1 // pred_check
      _
    $region3: #{tpu_custom_call.1} parent=1 // pred_check_branch
      %15 = sbr.rel (0) target = $region5
    $region4: #{tpu_custom_call.1} parent=1 // pred_region
      %s17 = ssub.s32 12288, 192
      %18 = vsyncadd [#allocation3], %s17
      %s19 = sshll.u32 [#allocation2], 4
      %s20 = int_to_ptr.vmem [resolvable:$true] %s19
      %25 = dma.hbm_to_vmem [thread:$0]  %s0, 192, %s20, [#allocation3], 192, 192, 12
    $region5: #{tpu_custom_call.1} parent=1 // pred_fallthru
      _
    // Predicated region
    $region6: #{tpu_custom_call.1} parent=1 // pred_check
      _
    $region7: #{tpu_custom_call.1} parent=1 // pred_check_branch
      %27 = sbr.rel (0) target = $region9
    $region8: #{tpu_custom_call.1} parent=1 // pred_region
      %s29 = ssub.s32 16384, 256
      %30 = vsyncadd [#allocation6], %s29
      %s31 = sshll.u32 [#allocation5], 4
      %s32 = int_to_ptr.vmem [resolvable:$true] %s31
      %37 = dma.hbm_to_vmem [thread:$0]  %s1, 256, %s32, [#allocation6], 256, 256, 16
    $region9: #{tpu_custom_call.1} parent=1 // pred_fallthru
      _
    // Predicated region
    $region10: #{tpu_custom_call.1} parent=1 // pred_check
      _
    $region11: #{tpu_custom_call.1} parent=1 // pred_check_branch
      %39 = sbr.rel (0) target = $region13
    $region12: #{tpu_custom_call.1} parent=1 // pred_region
      %s41 = ssub.s32 32768, 512
      %42 = vsyncadd [#allocation6], %s41
      %s43 = sshll.u32 [#allocation7], 4
      %s44 = int_to_ptr.vmem [resolvable:$true] %s43
      %49 = dma.hbm_to_vmem [thread:$0]  %s2, 512, %s44, [#allocation6], 512, 512, 32
    $region13: #{tpu_custom_call.1} parent=1 // pred_fallthru
      _
    // Predicated region
    $region14: #{tpu_custom_call.1} parent=1 // pred_check
      _
    $region15: #{tpu_custom_call.1} parent=1 // pred_check_branch
      %51 = sbr.rel (0) target = $region17
    $region16: #{tpu_custom_call.1} parent=1 // pred_region
      %s53 = ssub.s32 30720, 30720
      %54 = vsyncadd [#allocation9], %s53
      %s55 = sshll.u32 [#allocation8], 4
      %s56 = int_to_ptr.vmem [resolvable:$true] %s55
      %61 = dma.hbm_to_vmem [thread:$0]  %s3, 30720, %s56, [#allocation9], 64, 64, 4
    $region17: #{tpu_custom_call.1} parent=1 // pred_fallthru
      _
    // Predicated region
    $region18: #{tpu_custom_call.1} parent=1 // pred_check
      _
    $region19: #{tpu_custom_call.1} parent=1 // pred_check_branch
      %63 = sbr.rel (0) target = $region21
    $region20: #{tpu_custom_call.1} parent=1 // pred_region
      _
    $region21: #{tpu_custom_call.1} parent=1 // pred_fallthru
      _
    // Predicated region
    $region22: #{tpu_custom_call.1} parent=1 // pred_check
      _
    $region23: #{tpu_custom_call.1} parent=1 // pred_check_branch
      %65 = sbr.rel (0) target = $region25
    $region24: #{tpu_custom_call.1} parent=1 // pred_region
      %66 = dma.done [#allocation3], 12288
    $region25: #{tpu_custom_call.1} parent=1 // pred_fallthru
      _
    // Predicated region
    $region26: #{tpu_custom_call.1} parent=1 // pred_check
      _
    $region27: #{tpu_custom_call.1} parent=1 // pred_check_branch
      %68 = sbr.rel (0) target = $region29
    $region28: #{tpu_custom_call.1} parent=1 // pred_region
      %69 = dma.done [#allocation6], 16384
    $region29: #{tpu_custom_call.1} parent=1 // pred_fallthru
      _
    // Predicated region
    $region30: #{tpu_custom_call.1} parent=1 // pred_check
      _
    $region31: #{tpu_custom_call.1} parent=1 // pred_check_branch
      %71 = sbr.rel (0) target = $region33
    $region32: #{tpu_custom_call.1} parent=1 // pred_region
      %72 = dma.done [#allocation6], 32768
    $region33: #{tpu_custom_call.1} parent=1 // pred_fallthru
      _
    // Predicated region
    $region34: #{tpu_custom_call.1} parent=1 // pred_check
      _
    $region35: #{tpu_custom_call.1} parent=1 // pred_check_branch
      %74 = sbr.rel (0) target = $region37
    $region36: #{tpu_custom_call.1} parent=1 // pred_region
      %75 = dma.done [#allocation9], 30720
    $region37: #{tpu_custom_call.1} parent=1 // pred_fallthru
      _
    %v77 = vld [vmem:[#allocation2] sm:$0xff]
    %v78 = vld [vmem:[#allocation2 + $0x8] sm:$0xf]
    %v79 = vld [vmem:[#allocation2 + $0xc] sm:$0xff]
    %v80 = vld [vmem:[#allocation2 + $0x14] sm:$0xf]
    %v81 = vld [vmem:[#allocation2 + $0x18] sm:$0xff]
    %v82 = vld [vmem:[#allocation2 + $0x20] sm:$0xf]
    %v83 = vld [vmem:[#allocation2 + $0x24] sm:$0xff]
    %v84 = vld [vmem:[#allocation2 + $0x2c] sm:$0xf]
    %v85 = vld [vmem:[#allocation2 + $0x30] sm:$0xff]
    %v86 = vld [vmem:[#allocation2 + $0x38] sm:$0xf]
    %v87 = vld [vmem:[#allocation2 + $0x3c] sm:$0xff]
    %v88 = vld [vmem:[#allocation2 + $0x44] sm:$0xf]
    %v89 = vld [vmem:[#allocation2 + $0x48] sm:$0xff]
    %v90 = vld [vmem:[#allocation2 + $0x50] sm:$0xf]
    %v91 = vld [vmem:[#allocation2 + $0x54] sm:$0xff]
    %v92 = vld [vmem:[#allocation2 + $0x5c] sm:$0xf]
    %v93 = vld [vmem:[#allocation2 + $0x60] sm:$0xff]
    %v94 = vld [vmem:[#allocation2 + $0x68] sm:$0xf]
    %v95 = vld [vmem:[#allocation2 + $0x6c] sm:$0xff]
    %v96 = vld [vmem:[#allocation2 + $0x74] sm:$0xf]
    %v97 = vld [vmem:[#allocation2 + $0x78] sm:$0xff]
    %v98 = vld [vmem:[#allocation2 + $0x80] sm:$0xf]
    %v99 = vld [vmem:[#allocation2 + $0x84] sm:$0xff]
    %v100 = vld [vmem:[#allocation2 + $0x8c] sm:$0xf]
    %v101 = vld [vmem:[#allocation2 + $0x90] sm:$0xff]
    %v102 = vld [vmem:[#allocation2 + $0x98] sm:$0xf]
    %v103 = vld [vmem:[#allocation2 + $0x9c] sm:$0xff]
    %v104 = vld [vmem:[#allocation2 + $0xa4] sm:$0xf]
    %v105 = vld [vmem:[#allocation2 + $0xa8] sm:$0xff]
    %v106 = vld [vmem:[#allocation2 + $0xb0] sm:$0xf]
    %v107 = vld [vmem:[#allocation2 + $0xb4] sm:$0xff]
    %v108 = vld [vmem:[#allocation2 + $0xbc] sm:$0xf]
    %v109 = vld [vmem:[#allocation2 + $0xc0] sm:$0xff]
    %v110 = vld [vmem:[#allocation2 + $0xc8] sm:$0xf]
    %v111 = vld [vmem:[#allocation2 + $0xcc] sm:$0xff]
    %v112 = vld [vmem:[#allocation2 + $0xd4] sm:$0xf]
    %v113 = vld [vmem:[#allocation2 + $0xd8] sm:$0xff]
    %v114 = vld [vmem:[#allocation2 + $0xe0] sm:$0xf]
    %v115 = vld [vmem:[#allocation2 + $0xe4] sm:$0xff]
    %v116 = vld [vmem:[#allocation2 + $0xec] sm:$0xf]
    %v117 = vld [vmem:[#allocation2 + $0xf0] sm:$0xff]
    %v118 = vld [vmem:[#allocation2 + $0xf8] sm:$0xf]
    %v119 = vld [vmem:[#allocation2 + $0xfc] sm:$0xff]
    %v120 = vld [vmem:[#allocation2 + $0x104] sm:$0xf]
    %v121 = vld [vmem:[#allocation2 + $0x108] sm:$0xff]
    %v122 = vld [vmem:[#allocation2 + $0x110] sm:$0xf]
    %v123 = vld [vmem:[#allocation2 + $0x114] sm:$0xff]
    %v124 = vld [vmem:[#allocation2 + $0x11c] sm:$0xf]
    %v125 = vld [vmem:[#allocation2 + $0x120] sm:$0xff]
    %v126 = vld [vmem:[#allocation2 + $0x128] sm:$0xf]
    %v127 = vld [vmem:[#allocation2 + $0x12c] sm:$0xff]
    %v128 = vld [vmem:[#allocation2 + $0x134] sm:$0xf]
    %v129 = vld [vmem:[#allocation2 + $0x138] sm:$0xff]
    %v130 = vld [vmem:[#allocation2 + $0x140] sm:$0xf]
    %v131 = vld [vmem:[#allocation2 + $0x144] sm:$0xff]
    %v132 = vld [vmem:[#allocation2 + $0x14c] sm:$0xf]
    %v133 = vld [vmem:[#allocation2 + $0x150] sm:$0xff]
    %v134 = vld [vmem:[#allocation2 + $0x158] sm:$0xf]
    %v135 = vld [vmem:[#allocation2 + $0x15c] sm:$0xff]
    %v136 = vld [vmem:[#allocation2 + $0x164] sm:$0xf]
    %v137 = vld [vmem:[#allocation2 + $0x168] sm:$0xff]
    %v138 = vld [vmem:[#allocation2 + $0x170] sm:$0xf]
    %v139 = vld [vmem:[#allocation2 + $0x174] sm:$0xff]
    %v140 = vld [vmem:[#allocation2 + $0x17c] sm:$0xf]
    %v141 = vld [vmem:[#allocation2 + $0x180] sm:$0xff]
    %v142 = vld [vmem:[#allocation2 + $0x188] sm:$0xf]
    %v143 = vld [vmem:[#allocation2 + $0x18c] sm:$0xff]
    %v144 = vld [vmem:[#allocation2 + $0x194] sm:$0xf]
    %v145 = vld [vmem:[#allocation2 + $0x198] sm:$0xff]
    %v146 = vld [vmem:[#allocation2 + $0x1a0] sm:$0xf]
    %v147 = vld [vmem:[#allocation2 + $0x1a4] sm:$0xff]
    %v148 = vld [vmem:[#allocation2 + $0x1ac] sm:$0xf]
    %v149 = vld [vmem:[#allocation2 + $0x1b0] sm:$0xff]
    %v150 = vld [vmem:[#allocation2 + $0x1b8] sm:$0xf]
    %v151 = vld [vmem:[#allocation2 + $0x1bc] sm:$0xff]
    %v152 = vld [vmem:[#allocation2 + $0x1c4] sm:$0xf]
    %v153 = vld [vmem:[#allocation2 + $0x1c8] sm:$0xff]
    %v154 = vld [vmem:[#allocation2 + $0x1d0] sm:$0xf]
    %v155 = vld [vmem:[#allocation2 + $0x1d4] sm:$0xff]
    %v156 = vld [vmem:[#allocation2 + $0x1dc] sm:$0xf]
    %v157 = vld [vmem:[#allocation2 + $0x1e0] sm:$0xff]
    %v158 = vld [vmem:[#allocation2 + $0x1e8] sm:$0xf]
    %v159 = vld [vmem:[#allocation2 + $0x1ec] sm:$0xff]
    %v160 = vld [vmem:[#allocation2 + $0x1f4] sm:$0xf]
    %v161 = vld [vmem:[#allocation2 + $0x1f8] sm:$0xff]
    %v162 = vld [vmem:[#allocation2 + $0x200] sm:$0xf]
    %v163 = vld [vmem:[#allocation2 + $0x204] sm:$0xff]
    %v164 = vld [vmem:[#allocation2 + $0x20c] sm:$0xf]
    %v165 = vld [vmem:[#allocation2 + $0x210] sm:$0xff]
    %v166 = vld [vmem:[#allocation2 + $0x218] sm:$0xf]
    %v167 = vld [vmem:[#allocation2 + $0x21c] sm:$0xff]
    %v168 = vld [vmem:[#allocation2 + $0x224] sm:$0xf]
    %v169 = vld [vmem:[#allocation2 + $0x228] sm:$0xff]
    %v170 = vld [vmem:[#allocation2 + $0x230] sm:$0xf]
    %v171 = vld [vmem:[#allocation2 + $0x234] sm:$0xff]
    %v172 = vld [vmem:[#allocation2 + $0x23c] sm:$0xf]
    %v173 = vld [vmem:[#allocation2 + $0x240] sm:$0xff]
    %v174 = vld [vmem:[#allocation2 + $0x248] sm:$0xf]
    %v175 = vld [vmem:[#allocation2 + $0x24c] sm:$0xff]
    %v176 = vld [vmem:[#allocation2 + $0x254] sm:$0xf]
    %v177 = vld [vmem:[#allocation2 + $0x258] sm:$0xff]
    %v178 = vld [vmem:[#allocation2 + $0x260] sm:$0xf]
    %v179 = vld [vmem:[#allocation2 + $0x264] sm:$0xff]
    %v180 = vld [vmem:[#allocation2 + $0x26c] sm:$0xf]
    %v181 = vld [vmem:[#allocation2 + $0x270] sm:$0xff]
    %v182 = vld [vmem:[#allocation2 + $0x278] sm:$0xf]
    %v183 = vld [vmem:[#allocation2 + $0x27c] sm:$0xff]
    %v184 = vld [vmem:[#allocation2 + $0x284] sm:$0xf]
    %v185 = vld [vmem:[#allocation2 + $0x288] sm:$0xff]
    %v186 = vld [vmem:[#allocation2 + $0x290] sm:$0xf]
    %v187 = vld [vmem:[#allocation2 + $0x294] sm:$0xff]
    %v188 = vld [vmem:[#allocation2 + $0x29c] sm:$0xf]
    %v189 = vld [vmem:[#allocation2 + $0x2a0] sm:$0xff]
    %v190 = vld [vmem:[#allocation2 + $0x2a8] sm:$0xf]
    %v191 = vld [vmem:[#allocation2 + $0x2ac] sm:$0xff]
    %v192 = vld [vmem:[#allocation2 + $0x2b4] sm:$0xf]
    %v193 = vld [vmem:[#allocation2 + $0x2b8] sm:$0xff]
    %v194 = vld [vmem:[#allocation2 + $0x2c0] sm:$0xf]
    %v195 = vld [vmem:[#allocation2 + $0x2c4] sm:$0xff]
    %v196 = vld [vmem:[#allocation2 + $0x2cc] sm:$0xf]
    %v197 = vld [vmem:[#allocation2 + $0x2d0] sm:$0xff]
    %v198 = vld [vmem:[#allocation2 + $0x2d8] sm:$0xf]
    %v199 = vld [vmem:[#allocation2 + $0x2dc] sm:$0xff]
    %v200 = vld [vmem:[#allocation2 + $0x2e4] sm:$0xf]
    %v201 = vld [vmem:[#allocation2 + $0x2e8] sm:$0xff]
    %v202 = vld [vmem:[#allocation2 + $0x2f0] sm:$0xf]
    %v203 = vld [vmem:[#allocation2 + $0x2f4] sm:$0xff]
    %v204 = vld [vmem:[#allocation2 + $0x2fc] sm:$0xf]
    %v333 = vcombine.low %v77, %v79
    %v334 = vcombine.high %v77, %v79
    %v335 = vcombine.low %v81, %v83
    %v336 = vcombine.high %v81, %v83
    %v338 = vunpack.c.l.s4 1983009808
    %v339 = vunpack.c.0.s8 %v338
    %v340 = vlaneseq
    %v341 = vshrl.u32 %v340, 7
    %v342 = vsub.s32 %v339, %v341
    %v343 = vrot.slane %v333, %v342
    %v345 = vunpack.c.l.s4 1983009808
    %v346 = vunpack.c.0.s8 %v345
    %v347 = vlaneseq
    %v348 = vshrl.u32 %v347, 7
    %v349 = vsub.s32 %v346, %v348
    %v350 = vrot.slane %v334, %v349
    %v352 = vunpack.c.l.s4 1983009808
    %v353 = vunpack.c.0.s8 %v352
    %v354 = vlaneseq
    %v355 = vshrl.u32 %v354, 7
    %v356 = vsub.s32 %v353, %v355
    %v357 = vrot.slane %v335, %v356
    %v359 = vunpack.c.l.s4 1983009808
    %v360 = vunpack.c.0.s8 %v359
    %v361 = vlaneseq
    %v362 = vshrl.u32 %v361, 7
    %v363 = vsub.s32 %v360, %v362
    %v364 = vrot.slane %v336, %v363
    %v365 = vcombine.low %v343, %v357
    %v366 = vcombine.high %v343, %v357
    %v367 = vcombine.low %v350, %v364
    %v368 = vcombine.high %v350, %v364
    %v369 = vcombine.low %v78, %v80
    %v370 = vcombine.low %v82, %v84
    %v372 = vunpack.c.l.s4 1983009808
    %v373 = vunpack.c.0.s8 %v372
    %v374 = vlaneseq
    %v375 = vshrl.u32 %v374, 7
    %v376 = vsub.s32 %v373, %v375
    %v377 = vrot.slane %v369, %v376
    %v379 = vunpack.c.l.s4 1983009808
    %v380 = vunpack.c.0.s8 %v379
    %v381 = vlaneseq
    %v382 = vshrl.u32 %v381, 7
    %v383 = vsub.s32 %v380, %v382
    %v384 = vrot.slane %v370, %v383
    %v385 = vcombine.low %v377, %v384
    %v386 = vcombine.high %v377, %v384
    %v387 = vcombine.low %v85, %v87
    %v388 = vcombine.high %v85, %v87
    %v389 = vcombine.low %v89, %v91
    %v390 = vcombine.high %v89, %v91
    %v392 = vunpack.c.l.s4 1983009808
    %v393 = vunpack.c.0.s8 %v392
    %v394 = vlaneseq
    %v395 = vshrl.u32 %v394, 7
    %v396 = vsub.s32 %v393, %v395
    %v397 = vrot.slane %v387, %v396
    %v399 = vunpack.c.l.s4 1983009808
    %v400 = vunpack.c.0.s8 %v399
    %v401 = vlaneseq
    %v402 = vshrl.u32 %v401, 7
    %v403 = vsub.s32 %v400, %v402
    %v404 = vrot.slane %v388, %v403
    %v406 = vunpack.c.l.s4 1983009808
    %v407 = vunpack.c.0.s8 %v406
    %v408 = vlaneseq
    %v409 = vshrl.u32 %v408, 7
    %v410 = vsub.s32 %v407, %v409
    %v411 = vrot.slane %v389, %v410
    %v413 = vunpack.c.l.s4 1983009808
    %v414 = vunpack.c.0.s8 %v413
    %v415 = vlaneseq
    %v416 = vshrl.u32 %v415, 7
    %v417 = vsub.s32 %v414, %v416
    %v418 = vrot.slane %v390, %v417
    %v419 = vcombine.low %v397, %v411
    %v420 = vcombine.high %v397, %v411
    %v421 = vcombine.low %v404, %v418
    %v422 = vcombine.high %v404, %v418
    %v423 = vcombine.low %v86, %v88
    %v424 = vcombine.low %v90, %v92
    %v426 = vunpack.c.l.s4 1983009808
    %v427 = vunpack.c.0.s8 %v426
    %v428 = vlaneseq
    %v429 = vshrl.u32 %v428, 7
    %v430 = vsub.s32 %v427, %v429
    %v431 = vrot.slane %v423, %v430
    %v433 = vunpack.c.l.s4 1983009808
    %v434 = vunpack.c.0.s8 %v433
    %v435 = vlaneseq
    %v436 = vshrl.u32 %v435, 7
    %v437 = vsub.s32 %v434, %v436
    %v438 = vrot.slane %v424, %v437
    %v439 = vcombine.low %v431, %v438
    %v440 = vcombine.high %v431, %v438
    %v441 = vcombine.low %v93, %v95
    %v442 = vcombine.high %v93, %v95
    %v443 = vcombine.low %v97, %v99
    %v444 = vcombine.high %v97, %v99
    %v446 = vunpack.c.l.s4 1983009808
    %v447 = vunpack.c.0.s8 %v446
    %v448 = vlaneseq
    %v449 = vshrl.u32 %v448, 7
    %v450 = vsub.s32 %v447, %v449
    %v451 = vrot.slane %v441, %v450
    %v453 = vunpack.c.l.s4 1983009808
    %v454 = vunpack.c.0.s8 %v453
    %v455 = vlaneseq
    %v456 = vshrl.u32 %v455, 7
    %v457 = vsub.s32 %v454, %v456
    %v458 = vrot.slane %v442, %v457
    %v460 = vunpack.c.l.s4 1983009808
    %v461 = vunpack.c.0.s8 %v460
    %v462 = vlaneseq
    %v463 = vshrl.u32 %v462, 7
    %v464 = vsub.s32 %v461, %v463
    %v465 = vrot.slane %v443, %v464
    %v467 = vunpack.c.l.s4 1983009808
    %v468 = vunpack.c.0.s8 %v467
    %v469 = vlaneseq
    %v470 = vshrl.u32 %v469, 7
    %v471 = vsub.s32 %v468, %v470
    %v472 = vrot.slane %v444, %v471
    %v473 = vcombine.low %v451, %v465
    %v474 = vcombine.high %v451, %v465
    %v475 = vcombine.low %v458, %v472
    %v476 = vcombine.high %v458, %v472
    %v477 = vcombine.low %v94, %v96
    %v478 = vcombine.low %v98, %v100
    %v480 = vunpack.c.l.s4 1983009808
    %v481 = vunpack.c.0.s8 %v480
    %v482 = vlaneseq
    %v483 = vshrl.u32 %v482, 7
    %v484 = vsub.s32 %v481, %v483
    %v485 = vrot.slane %v477, %v484
    %v487 = vunpack.c.l.s4 1983009808
    %v488 = vunpack.c.0.s8 %v487
    %v489 = vlaneseq
    %v490 = vshrl.u32 %v489, 7
    %v491 = vsub.s32 %v488, %v490
    %v492 = vrot.slane %v478, %v491
    %v493 = vcombine.low %v485, %v492
    %v494 = vcombine.high %v485, %v492
    %v495 = vcombine.low %v101, %v103
    %v496 = vcombine.high %v101, %v103
    %v497 = vcombine.low %v105, %v107
    %v498 = vcombine.high %v105, %v107
    %v500 = vunpack.c.l.s4 1983009808
    %v501 = vunpack.c.0.s8 %v500
    %v502 = vlaneseq
    %v503 = vshrl.u32 %v502, 7
    %v504 = vsub.s32 %v501, %v503
    %v505 = vrot.slane %v495, %v504
    %v507 = vunpack.c.l.s4 1983009808
    %v508 = vunpack.c.0.s8 %v507
    %v509 = vlaneseq
    %v510 = vshrl.u32 %v509, 7
    %v511 = vsub.s32 %v508, %v510
    %v512 = vrot.slane %v496, %v511
    %v514 = vunpack.c.l.s4 1983009808
    %v515 = vunpack.c.0.s8 %v514
    %v516 = vlaneseq
    %v517 = vshrl.u32 %v516, 7
    %v518 = vsub.s32 %v515, %v517
    %v519 = vrot.slane %v497, %v518
    %v521 = vunpack.c.l.s4 1983009808
    %v522 = vunpack.c.0.s8 %v521
    %v523 = vlaneseq
    %v524 = vshrl.u32 %v523, 7
    %v525 = vsub.s32 %v522, %v524
    %v526 = vrot.slane %v498, %v525
    %v527 = vcombine.low %v505, %v519
    %v528 = vcombine.high %v505, %v519
    %v529 = vcombine.low %v512, %v526
    %v530 = vcombine.high %v512, %v526
    %v531 = vcombine.low %v102, %v104
    %v532 = vcombine.low %v106, %v108
    %v534 = vunpack.c.l.s4 1983009808
    %v535 = vunpack.c.0.s8 %v534
    %v536 = vlaneseq
    %v537 = vshrl.u32 %v536, 7
    %v538 = vsub.s32 %v535, %v537
    %v539 = vrot.slane %v531, %v538
    %v541 = vunpack.c.l.s4 1983009808
    %v542 = vunpack.c.0.s8 %v541
    %v543 = vlaneseq
    %v544 = vshrl.u32 %v543, 7
    %v545 = vsub.s32 %v542, %v544
    %v546 = vrot.slane %v532, %v545
    %v547 = vcombine.low %v539, %v546
    %v548 = vcombine.high %v539, %v546
    %v549 = vcombine.low %v109, %v111
    %v550 = vcombine.high %v109, %v111
    %v551 = vcombine.low %v113, %v115
    %v552 = vcombine.high %v113, %v115
    %v554 = vunpack.c.l.s4 1983009808
    %v555 = vunpack.c.0.s8 %v554
    %v556 = vlaneseq
    %v557 = vshrl.u32 %v556, 7
    %v558 = vsub.s32 %v555, %v557
    %v559 = vrot.slane %v549, %v558
    %v561 = vunpack.c.l.s4 1983009808
    %v562 = vunpack.c.0.s8 %v561
    %v563 = vlaneseq
    %v564 = vshrl.u32 %v563, 7
    %v565 = vsub.s32 %v562, %v564
    %v566 = vrot.slane %v550, %v565
    %v568 = vunpack.c.l.s4 1983009808
    %v569 = vunpack.c.0.s8 %v568
    %v570 = vlaneseq
    %v571 = vshrl.u32 %v570, 7
    %v572 = vsub.s32 %v569, %v571
    %v573 = vrot.slane %v551, %v572
    %v575 = vunpack.c.l.s4 1983009808
    %v576 = vunpack.c.0.s8 %v575
    %v577 = vlaneseq
    %v578 = vshrl.u32 %v577, 7
    %v579 = vsub.s32 %v576, %v578
    %v580 = vrot.slane %v552, %v579
    %v581 = vcombine.low %v559, %v573
    %v582 = vcombine.high %v559, %v573
    %v583 = vcombine.low %v566, %v580
    %v584 = vcombine.high %v566, %v580
    %v585 = vcombine.low %v110, %v112
    %v586 = vcombine.low %v114, %v116
    %v588 = vunpack.c.l.s4 1983009808
    %v589 = vunpack.c.0.s8 %v588
    %v590 = vlaneseq
    %v591 = vshrl.u32 %v590, 7
    %v592 = vsub.s32 %v589, %v591
    %v593 = vrot.slane %v585, %v592
    %v595 = vunpack.c.l.s4 1983009808
    %v596 = vunpack.c.0.s8 %v595
    %v597 = vlaneseq
    %v598 = vshrl.u32 %v597, 7
    %v599 = vsub.s32 %v596, %v598
    %v600 = vrot.slane %v586, %v599
    %v601 = vcombine.low %v593, %v600
    %v602 = vcombine.high %v593, %v600
    %v603 = vcombine.low %v117, %v119
    %v604 = vcombine.high %v117, %v119
    %v605 = vcombine.low %v121, %v123
    %v606 = vcombine.high %v121, %v123
    %v608 = vunpack.c.l.s4 1983009808
    %v609 = vunpack.c.0.s8 %v608
    %v610 = vlaneseq
    %v611 = vshrl.u32 %v610, 7
    %v612 = vsub.s32 %v609, %v611
    %v613 = vrot.slane %v603, %v612
    %v615 = vunpack.c.l.s4 1983009808
    %v616 = vunpack.c.0.s8 %v615
    %v617 = vlaneseq
    %v618 = vshrl.u32 %v617, 7
    %v619 = vsub.s32 %v616, %v618
    %v620 = vrot.slane %v604, %v619
    %v622 = vunpack.c.l.s4 1983009808
    %v623 = vunpack.c.0.s8 %v622
    %v624 = vlaneseq
    %v625 = vshrl.u32 %v624, 7
    %v626 = vsub.s32 %v623, %v625
    %v627 = vrot.slane %v605, %v626
    %v629 = vunpack.c.l.s4 1983009808
    %v630 = vunpack.c.0.s8 %v629
    %v631 = vlaneseq
    %v632 = vshrl.u32 %v631, 7
    %v633 = vsub.s32 %v630, %v632
    %v634 = vrot.slane %v606, %v633
    %v635 = vcombine.low %v613, %v627
    %v636 = vcombine.high %v613, %v627
    %v637 = vcombine.low %v620, %v634
    %v638 = vcombine.high %v620, %v634
    %v639 = vcombine.low %v118, %v120
    %v640 = vcombine.low %v122, %v124
    %v642 = vunpack.c.l.s4 1983009808
    %v643 = vunpack.c.0.s8 %v642
    %v644 = vlaneseq
    %v645 = vshrl.u32 %v644, 7
    %v646 = vsub.s32 %v643, %v645
    %v647 = vrot.slane %v639, %v646
    %v649 = vunpack.c.l.s4 1983009808
    %v650 = vunpack.c.0.s8 %v649
    %v651 = vlaneseq
    %v652 = vshrl.u32 %v651, 7
    %v653 = vsub.s32 %v650, %v652
    %v654 = vrot.slane %v640, %v653
    %v655 = vcombine.low %v647, %v654
    %v656 = vcombine.high %v647, %v654
    %v657 = vcombine.low %v125, %v127
    %v658 = vcombine.high %v125, %v127
    %v659 = vcombine.low %v129, %v131
    %v660 = vcombine.high %v129, %v131
    %v662 = vunpack.c.l.s4 1983009808
    %v663 = vunpack.c.0.s8 %v662
    %v664 = vlaneseq
    %v665 = vshrl.u32 %v664, 7
    %v666 = vsub.s32 %v663, %v665
    %v667 = vrot.slane %v657, %v666
    %v669 = vunpack.c.l.s4 1983009808
    %v670 = vunpack.c.0.s8 %v669
    %v671 = vlaneseq
    %v672 = vshrl.u32 %v671, 7
    %v673 = vsub.s32 %v670, %v672
    %v674 = vrot.slane %v658, %v673
    %v676 = vunpack.c.l.s4 1983009808
    %v677 = vunpack.c.0.s8 %v676
    %v678 = vlaneseq
    %v679 = vshrl.u32 %v678, 7
    %v680 = vsub.s32 %v677, %v679
    %v681 = vrot.slane %v659, %v680
    %v683 = vunpack.c.l.s4 1983009808
    %v684 = vunpack.c.0.s8 %v683
    %v685 = vlaneseq
    %v686 = vshrl.u32 %v685, 7
    %v687 = vsub.s32 %v684, %v686
    %v688 = vrot.slane %v660, %v687
    %v689 = vcombine.low %v667, %v681
    %v690 = vcombine.high %v667, %v681
    %v691 = vcombine.low %v674, %v688
    %v692 = vcombine.high %v674, %v688
    %v693 = vcombine.low %v126, %v128
    %v694 = vcombine.low %v130, %v132
    %v696 = vunpack.c.l.s4 1983009808
    %v697 = vunpack.c.0.s8 %v696
    %v698 = vlaneseq
    %v699 = vshrl.u32 %v698, 7
    %v700 = vsub.s32 %v697, %v699
    %v701 = vrot.slane %v693, %v700
    %v703 = vunpack.c.l.s4 1983009808
    %v704 = vunpack.c.0.s8 %v703
    %v705 = vlaneseq
    %v706 = vshrl.u32 %v705, 7
    %v707 = vsub.s32 %v704, %v706
    %v708 = vrot.slane %v694, %v707
    %v709 = vcombine.low %v701, %v708
    %v710 = vcombine.high %v701, %v708
    %v711 = vcombine.low %v133, %v135
    %v712 = vcombine.high %v133, %v135
    %v713 = vcombine.low %v137, %v139
    %v714 = vcombine.high %v137, %v139
    %v716 = vunpack.c.l.s4 1983009808
    %v717 = vunpack.c.0.s8 %v716
    %v718 = vlaneseq
    %v719 = vshrl.u32 %v718, 7
    %v720 = vsub.s32 %v717, %v719
    %v721 = vrot.slane %v711, %v720
    %v723 = vunpack.c.l.s4 1983009808
    %v724 = vunpack.c.0.s8 %v723
    %v725 = vlaneseq
    %v726 = vshrl.u32 %v725, 7
    %v727 = vsub.s32 %v724, %v726
    %v728 = vrot.slane %v712, %v727
    %v730 = vunpack.c.l.s4 1983009808
    %v731 = vunpack.c.0.s8 %v730
    %v732 = vlaneseq
    %v733 = vshrl.u32 %v732, 7
    %v734 = vsub.s32 %v731, %v733
    %v735 = vrot.slane %v713, %v734
    %v737 = vunpack.c.l.s4 1983009808
    %v738 = vunpack.c.0.s8 %v737
    %v739 = vlaneseq
    %v740 = vshrl.u32 %v739, 7
    %v741 = vsub.s32 %v738, %v740
    %v742 = vrot.slane %v714, %v741
    %v743 = vcombine.low %v721, %v735
    %v744 = vcombine.high %v721, %v735
    %v745 = vcombine.low %v728, %v742
    %v746 = vcombine.high %v728, %v742
    %v747 = vcombine.low %v134, %v136
    %v748 = vcombine.low %v138, %v140
    %v750 = vunpack.c.l.s4 1983009808
    %v751 = vunpack.c.0.s8 %v750
    %v752 = vlaneseq
    %v753 = vshrl.u32 %v752, 7
    %v754 = vsub.s32 %v751, %v753
    %v755 = vrot.slane %v747, %v754
    %v757 = vunpack.c.l.s4 1983009808
    %v758 = vunpack.c.0.s8 %v757
    %v759 = vlaneseq
    %v760 = vshrl.u32 %v759, 7
    %v761 = vsub.s32 %v758, %v760
    %v762 = vrot.slane %v748, %v761
    %v763 = vcombine.low %v755, %v762
    %v764 = vcombine.high %v755, %v762
    %v765 = vcombine.low %v141, %v143
    %v766 = vcombine.high %v141, %v143
    %v767 = vcombine.low %v145, %v147
    %v768 = vcombine.high %v145, %v147
    %v770 = vunpack.c.l.s4 1983009808
    %v771 = vunpack.c.0.s8 %v770
    %v772 = vlaneseq
    %v773 = vshrl.u32 %v772, 7
    %v774 = vsub.s32 %v771, %v773
    %v775 = vrot.slane %v765, %v774
    %v777 = vunpack.c.l.s4 1983009808
    %v778 = vunpack.c.0.s8 %v777
    %v779 = vlaneseq
    %v780 = vshrl.u32 %v779, 7
    %v781 = vsub.s32 %v778, %v780
    %v782 = vrot.slane %v766, %v781
    %v784 = vunpack.c.l.s4 1983009808
    %v785 = vunpack.c.0.s8 %v784
    %v786 = vlaneseq
    %v787 = vshrl.u32 %v786, 7
    %v788 = vsub.s32 %v785, %v787
    %v789 = vrot.slane %v767, %v788
    %v791 = vunpack.c.l.s4 1983009808
    %v792 = vunpack.c.0.s8 %v791
    %v793 = vlaneseq
    %v794 = vshrl.u32 %v793, 7
    %v795 = vsub.s32 %v792, %v794
    %v796 = vrot.slane %v768, %v795
    %v797 = vcombine.low %v775, %v789
    %v798 = vcombine.high %v775, %v789
    %v799 = vcombine.low %v782, %v796
    %v800 = vcombine.high %v782, %v796
    %v801 = vcombine.low %v142, %v144
    %v802 = vcombine.low %v146, %v148
    %v804 = vunpack.c.l.s4 1983009808
    %v805 = vunpack.c.0.s8 %v804
    %v806 = vlaneseq
    %v807 = vshrl.u32 %v806, 7
    %v808 = vsub.s32 %v805, %v807
    %v809 = vrot.slane %v801, %v808
    %v811 = vunpack.c.l.s4 1983009808
    %v812 = vunpack.c.0.s8 %v811
    %v813 = vlaneseq
    %v814 = vshrl.u32 %v813, 7
    %v815 = vsub.s32 %v812, %v814
    %v816 = vrot.slane %v802, %v815
    %v817 = vcombine.low %v809, %v816
    %v818 = vcombine.high %v809, %v816
    %v819 = vcombine.low %v149, %v151
    %v820 = vcombine.high %v149, %v151
    %v821 = vcombine.low %v153, %v155
    %v822 = vcombine.high %v153, %v155
    %v824 = vunpack.c.l.s4 1983009808
    %v825 = vunpack.c.0.s8 %v824
    %v826 = vlaneseq
    %v827 = vshrl.u32 %v826, 7
    %v828 = vsub.s32 %v825, %v827
    %v829 = vrot.slane %v819, %v828
    %v831 = vunpack.c.l.s4 1983009808
    %v832 = vunpack.c.0.s8 %v831
    %v833 = vlaneseq
    %v834 = vshrl.u32 %v833, 7
    %v835 = vsub.s32 %v832, %v834
    %v836 = vrot.slane %v820, %v835
    %v838 = vunpack.c.l.s4 1983009808
    %v839 = vunpack.c.0.s8 %v838
    %v840 = vlaneseq
    %v841 = vshrl.u32 %v840, 7
    %v842 = vsub.s32 %v839, %v841
    %v843 = vrot.slane %v821, %v842
    %v845 = vunpack.c.l.s4 1983009808
    %v846 = vunpack.c.0.s8 %v845
    %v847 = vlaneseq
    %v848 = vshrl.u32 %v847, 7
    %v849 = vsub.s32 %v846, %v848
    %v850 = vrot.slane %v822, %v849
    %v851 = vcombine.low %v829, %v843
    %v852 = vcombine.high %v829, %v843
    %v853 = vcombine.low %v836, %v850
    %v854 = vcombine.high %v836, %v850
    %v855 = vcombine.low %v150, %v152
    %v856 = vcombine.low %v154, %v156
    %v858 = vunpack.c.l.s4 1983009808
    %v859 = vunpack.c.0.s8 %v858
    %v860 = vlaneseq
    %v861 = vshrl.u32 %v860, 7
    %v862 = vsub.s32 %v859, %v861
    %v863 = vrot.slane %v855, %v862
    %v865 = vunpack.c.l.s4 1983009808
    %v866 = vunpack.c.0.s8 %v865
    %v867 = vlaneseq
    %v868 = vshrl.u32 %v867, 7
    %v869 = vsub.s32 %v866, %v868
    %v870 = vrot.slane %v856, %v869
    %v871 = vcombine.low %v863, %v870
    %v872 = vcombine.high %v863, %v870
    %v873 = vcombine.low %v157, %v159
    %v874 = vcombine.high %v157, %v159
    %v875 = vcombine.low %v161, %v163
    %v876 = vcombine.high %v161, %v163
    %v878 = vunpack.c.l.s4 1983009808
    %v879 = vunpack.c.0.s8 %v878
    %v880 = vlaneseq
    %v881 = vshrl.u32 %v880, 7
    %v882 = vsub.s32 %v879, %v881
    %v883 = vrot.slane %v873, %v882
    %v885 = vunpack.c.l.s4 1983009808
    %v886 = vunpack.c.0.s8 %v885
    %v887 = vlaneseq
    %v888 = vshrl.u32 %v887, 7
    %v889 = vsub.s32 %v886, %v888
    %v890 = vrot.slane %v874, %v889
    %v892 = vunpack.c.l.s4 1983009808
    %v893 = vunpack.c.0.s8 %v892
    %v894 = vlaneseq
    %v895 = vshrl.u32 %v894, 7
    %v896 = vsub.s32 %v893, %v895
    %v897 = vrot.slane %v875, %v896
    %v899 = vunpack.c.l.s4 1983009808
    %v900 = vunpack.c.0.s8 %v899
    %v901 = vlaneseq
    %v902 = vshrl.u32 %v901, 7
    %v903 = vsub.s32 %v900, %v902
    %v904 = vrot.slane %v876, %v903
    %v905 = vcombine.low %v883, %v897
    %v906 = vcombine.high %v883, %v897
    %v907 = vcombine.low %v890, %v904
    %v908 = vcombine.high %v890, %v904
    %v909 = vcombine.low %v158, %v160
    %v910 = vcombine.low %v162, %v164
    %v912 = vunpack.c.l.s4 1983009808
    %v913 = vunpack.c.0.s8 %v912
    %v914 = vlaneseq
    %v915 = vshrl.u32 %v914, 7
    %v916 = vsub.s32 %v913, %v915
    %v917 = vrot.slane %v909, %v916
    %v919 = vunpack.c.l.s4 1983009808
    %v920 = vunpack.c.0.s8 %v919
    %v921 = vlaneseq
    %v922 = vshrl.u32 %v921, 7
    %v923 = vsub.s32 %v920, %v922
    %v924 = vrot.slane %v910, %v923
    %v925 = vcombine.low %v917, %v924
    %v926 = vcombine.high %v917, %v924
    %v927 = vcombine.low %v165, %v167
    %v928 = vcombine.high %v165, %v167
    %v929 = vcombine.low %v169, %v171
    %v930 = vcombine.high %v169, %v171
    %v932 = vunpack.c.l.s4 1983009808
    %v933 = vunpack.c.0.s8 %v932
    %v934 = vlaneseq
    %v935 = vshrl.u32 %v934, 7
    %v936 = vsub.s32 %v933, %v935
    %v937 = vrot.slane %v927, %v936
    %v939 = vunpack.c.l.s4 1983009808
    %v940 = vunpack.c.0.s8 %v939
    %v941 = vlaneseq
    %v942 = vshrl.u32 %v941, 7
    %v943 = vsub.s32 %v940, %v942
    %v944 = vrot.slane %v928, %v943
    %v946 = vunpack.c.l.s4 1983009808
    %v947 = vunpack.c.0.s8 %v946
    %v948 = vlaneseq
    %v949 = vshrl.u32 %v948, 7
    %v950 = vsub.s32 %v947, %v949
    %v951 = vrot.slane %v929, %v950
    %v953 = vunpack.c.l.s4 1983009808
    %v954 = vunpack.c.0.s8 %v953
    %v955 = vlaneseq
    %v956 = vshrl.u32 %v955, 7
    %v957 = vsub.s32 %v954, %v956
    %v958 = vrot.slane %v930, %v957
    %v959 = vcombine.low %v937, %v951
    %v960 = vcombine.high %v937, %v951
    %v961 = vcombine.low %v944, %v958
    %v962 = vcombine.high %v944, %v958
    %v963 = vcombine.low %v166, %v168
    %v964 = vcombine.low %v170, %v172
    %v966 = vunpack.c.l.s4 1983009808
    %v967 = vunpack.c.0.s8 %v966
    %v968 = vlaneseq
    %v969 = vshrl.u32 %v968, 7
    %v970 = vsub.s32 %v967, %v969
    %v971 = vrot.slane %v963, %v970
    %v973 = vunpack.c.l.s4 1983009808
    %v974 = vunpack.c.0.s8 %v973
    %v975 = vlaneseq
    %v976 = vshrl.u32 %v975, 7
    %v977 = vsub.s32 %v974, %v976
    %v978 = vrot.slane %v964, %v977
    %v979 = vcombine.low %v971, %v978
    %v980 = vcombine.high %v971, %v978
    %v981 = vcombine.low %v173, %v175
    %v982 = vcombine.high %v173, %v175
    %v983 = vcombine.low %v177, %v179
    %v984 = vcombine.high %v177, %v179
    %v986 = vunpack.c.l.s4 1983009808
    %v987 = vunpack.c.0.s8 %v986
    %v988 = vlaneseq
    %v989 = vshrl.u32 %v988, 7
    %v990 = vsub.s32 %v987, %v989
    %v991 = vrot.slane %v981, %v990
    %v993 = vunpack.c.l.s4 1983009808
    %v994 = vunpack.c.0.s8 %v993
    %v995 = vlaneseq
    %v996 = vshrl.u32 %v995, 7
    %v997 = vsub.s32 %v994, %v996
    %v998 = vrot.slane %v982, %v997
    %v1000 = vunpack.c.l.s4 1983009808
    %v1001 = vunpack.c.0.s8 %v1000
    %v1002 = vlaneseq
    %v1003 = vshrl.u32 %v1002, 7
    %v1004 = vsub.s32 %v1001, %v1003
    %v1005 = vrot.slane %v983, %v1004
    %v1007 = vunpack.c.l.s4 1983009808
    %v1008 = vunpack.c.0.s8 %v1007
    %v1009 = vlaneseq
    %v1010 = vshrl.u32 %v1009, 7
    %v1011 = vsub.s32 %v1008, %v1010
    %v1012 = vrot.slane %v984, %v1011
    %v1013 = vcombine.low %v991, %v1005
    %v1014 = vcombine.high %v991, %v1005
    %v1015 = vcombine.low %v998, %v1012
    %v1016 = vcombine.high %v998, %v1012
    %v1017 = vcombine.low %v174, %v176
    %v1018 = vcombine.low %v178, %v180
    %v1020 = vunpack.c.l.s4 1983009808
    %v1021 = vunpack.c.0.s8 %v1020
    %v1022 = vlaneseq
    %v1023 = vshrl.u32 %v1022, 7
    %v1024 = vsub.s32 %v1021, %v1023
    %v1025 = vrot.slane %v1017, %v1024
    %v1027 = vunpack.c.l.s4 1983009808
    %v1028 = vunpack.c.0.s8 %v1027
    %v1029 = vlaneseq
    %v1030 = vshrl.u32 %v1029, 7
    %v1031 = vsub.s32 %v1028, %v1030
    %v1032 = vrot.slane %v1018, %v1031
    %v1033 = vcombine.low %v1025, %v1032
    %v1034 = vcombine.high %v1025, %v1032
    %v1035 = vcombine.low %v181, %v183
    %v1036 = vcombine.high %v181, %v183
    %v1037 = vcombine.low %v185, %v187
    %v1038 = vcombine.high %v185, %v187
    %v1040 = vunpack.c.l.s4 1983009808
    %v1041 = vunpack.c.0.s8 %v1040
    %v1042 = vlaneseq
    %v1043 = vshrl.u32 %v1042, 7
    %v1044 = vsub.s32 %v1041, %v1043
    %v1045 = vrot.slane %v1035, %v1044
    %v1047 = vunpack.c.l.s4 1983009808
    %v1048 = vunpack.c.0.s8 %v1047
    %v1049 = vlaneseq
    %v1050 = vshrl.u32 %v1049, 7
    %v1051 = vsub.s32 %v1048, %v1050
    %v1052 = vrot.slane %v1036, %v1051
    %v1054 = vunpack.c.l.s4 1983009808
    %v1055 = vunpack.c.0.s8 %v1054
    %v1056 = vlaneseq
    %v1057 = vshrl.u32 %v1056, 7
    %v1058 = vsub.s32 %v1055, %v1057
    %v1059 = vrot.slane %v1037, %v1058
    %v1061 = vunpack.c.l.s4 1983009808
    %v1062 = vunpack.c.0.s8 %v1061
    %v1063 = vlaneseq
    %v1064 = vshrl.u32 %v1063, 7
    %v1065 = vsub.s32 %v1062, %v1064
    %v1066 = vrot.slane %v1038, %v1065
    %v1067 = vcombine.low %v1045, %v1059
    %v1068 = vcombine.high %v1045, %v1059
    %v1069 = vcombine.low %v1052, %v1066
    %v1070 = vcombine.high %v1052, %v1066
    %v1071 = vcombine.low %v182, %v184
    %v1072 = vcombine.low %v186, %v188
    %v1074 = vunpack.c.l.s4 1983009808
    %v1075 = vunpack.c.0.s8 %v1074
    %v1076 = vlaneseq
    %v1077 = vshrl.u32 %v1076, 7
    %v1078 = vsub.s32 %v1075, %v1077
    %v1079 = vrot.slane %v1071, %v1078
    %v1081 = vunpack.c.l.s4 1983009808
    %v1082 = vunpack.c.0.s8 %v1081
    %v1083 = vlaneseq
    %v1084 = vshrl.u32 %v1083, 7
    %v1085 = vsub.s32 %v1082, %v1084
    %v1086 = vrot.slane %v1072, %v1085
    %v1087 = vcombine.low %v1079, %v1086
    %v1088 = vcombine.high %v1079, %v1086
    %v1089 = vcombine.low %v189, %v191
    %v1090 = vcombine.high %v189, %v191
    %v1091 = vcombine.low %v193, %v195
    %v1092 = vcombine.high %v193, %v195
    %v1094 = vunpack.c.l.s4 1983009808
    %v1095 = vunpack.c.0.s8 %v1094
    %v1096 = vlaneseq
    %v1097 = vshrl.u32 %v1096, 7
    %v1098 = vsub.s32 %v1095, %v1097
    %v1099 = vrot.slane %v1089, %v1098
    %v1101 = vunpack.c.l.s4 1983009808
    %v1102 = vunpack.c.0.s8 %v1101
    %v1103 = vlaneseq
    %v1104 = vshrl.u32 %v1103, 7
    %v1105 = vsub.s32 %v1102, %v1104
    %v1106 = vrot.slane %v1090, %v1105
    %v1108 = vunpack.c.l.s4 1983009808
    %v1109 = vunpack.c.0.s8 %v1108
    %v1110 = vlaneseq
    %v1111 = vshrl.u32 %v1110, 7
    %v1112 = vsub.s32 %v1109, %v1111
    %v1113 = vrot.slane %v1091, %v1112
    %v1115 = vunpack.c.l.s4 1983009808
    %v1116 = vunpack.c.0.s8 %v1115
    %v1117 = vlaneseq
    %v1118 = vshrl.u32 %v1117, 7
    %v1119 = vsub.s32 %v1116, %v1118
    %v1120 = vrot.slane %v1092, %v1119
    %v1121 = vcombine.low %v1099, %v1113
    %v1122 = vcombine.high %v1099, %v1113
    %v1123 = vcombine.low %v1106, %v1120
    %v1124 = vcombine.high %v1106, %v1120
    %v1125 = vcombine.low %v190, %v192
    %v1126 = vcombine.low %v194, %v196
    %v1128 = vunpack.c.l.s4 1983009808
    %v1129 = vunpack.c.0.s8 %v1128
    %v1130 = vlaneseq
    %v1131 = vshrl.u32 %v1130, 7
    %v1132 = vsub.s32 %v1129, %v1131
    %v1133 = vrot.slane %v1125, %v1132
    %v1135 = vunpack.c.l.s4 1983009808
    %v1136 = vunpack.c.0.s8 %v1135
    %v1137 = vlaneseq
    %v1138 = vshrl.u32 %v1137, 7
    %v1139 = vsub.s32 %v1136, %v1138
    %v1140 = vrot.slane %v1126, %v1139
    %v1141 = vcombine.low %v1133, %v1140
    %v1142 = vcombine.high %v1133, %v1140
    %v1143 = vcombine.low %v197, %v199
    %v1144 = vcombine.high %v197, %v199
    %v1145 = vcombine.low %v201, %v203
    %v1146 = vcombine.high %v201, %v203
    %v1148 = vunpack.c.l.s4 1983009808
    %v1149 = vunpack.c.0.s8 %v1148
    %v1150 = vlaneseq
    %v1151 = vshrl.u32 %v1150, 7
    %v1152 = vsub.s32 %v1149, %v1151
    %v1153 = vrot.slane %v1143, %v1152
    %v1155 = vunpack.c.l.s4 1983009808
    %v1156 = vunpack.c.0.s8 %v1155
    %v1157 = vlaneseq
    %v1158 = vshrl.u32 %v1157, 7
    %v1159 = vsub.s32 %v1156, %v1158
    %v1160 = vrot.slane %v1144, %v1159
    %v1162 = vunpack.c.l.s4 1983009808
    %v1163 = vunpack.c.0.s8 %v1162
    %v1164 = vlaneseq
    %v1165 = vshrl.u32 %v1164, 7
    %v1166 = vsub.s32 %v1163, %v1165
    %v1167 = vrot.slane %v1145, %v1166
    %v1169 = vunpack.c.l.s4 1983009808
    %v1170 = vunpack.c.0.s8 %v1169
    %v1171 = vlaneseq
    %v1172 = vshrl.u32 %v1171, 7
    %v1173 = vsub.s32 %v1170, %v1172
    %v1174 = vrot.slane %v1146, %v1173
    %v1175 = vcombine.low %v1153, %v1167
    %v1176 = vcombine.high %v1153, %v1167
    %v1177 = vcombine.low %v1160, %v1174
    %v1178 = vcombine.high %v1160, %v1174
    %v1179 = vcombine.low %v198, %v200
    %v1180 = vcombine.low %v202, %v204
    %v1182 = vunpack.c.l.s4 1983009808
    %v1183 = vunpack.c.0.s8 %v1182
    %v1184 = vlaneseq
    %v1185 = vshrl.u32 %v1184, 7
    %v1186 = vsub.s32 %v1183, %v1185
    %v1187 = vrot.slane %v1179, %v1186
    %v1189 = vunpack.c.l.s4 1983009808
    %v1190 = vunpack.c.0.s8 %v1189
    %v1191 = vlaneseq
    %v1192 = vshrl.u32 %v1191, 7
    %v1193 = vsub.s32 %v1190, %v1192
    %v1194 = vrot.slane %v1180, %v1193
    %v1195 = vcombine.low %v1187, %v1194
    %v1196 = vcombine.high %v1187, %v1194
    %v1293 = vpack.c.bf16 %v419, %v365
    %v1294 = vpack.c.bf16 %v420, %v366
    %v1295 = vpack.c.bf16 %v421, %v367
    %v1296 = vpack.c.bf16 %v422, %v368
    %v1297 = vpack.c.bf16 %v439, %v385
    %v1298 = vpack.c.bf16 %v440, %v386
    %v1299 = vpack.c.bf16 %v527, %v473
    %v1300 = vpack.c.bf16 %v528, %v474
    %v1301 = vpack.c.bf16 %v529, %v475
    %v1302 = vpack.c.bf16 %v530, %v476
    %v1303 = vpack.c.bf16 %v547, %v493
    %v1304 = vpack.c.bf16 %v548, %v494
    %v1305 = vpack.c.bf16 %v635, %v581
    %v1306 = vpack.c.bf16 %v636, %v582
    %v1307 = vpack.c.bf16 %v637, %v583
    %v1308 = vpack.c.bf16 %v638, %v584
    %v1309 = vpack.c.bf16 %v655, %v601
    %v1310 = vpack.c.bf16 %v656, %v602
    %v1311 = vpack.c.bf16 %v743, %v689
    %v1312 = vpack.c.bf16 %v744, %v690
    %v1313 = vpack.c.bf16 %v745, %v691
    %v1314 = vpack.c.bf16 %v746, %v692
    %v1315 = vpack.c.bf16 %v763, %v709
    %v1316 = vpack.c.bf16 %v764, %v710
    %v1317 = vpack.c.bf16 %v851, %v797
    %v1318 = vpack.c.bf16 %v852, %v798
    %v1319 = vpack.c.bf16 %v853, %v799
    %v1320 = vpack.c.bf16 %v854, %v800
    %v1321 = vpack.c.bf16 %v871, %v817
    %v1322 = vpack.c.bf16 %v872, %v818
    %v1323 = vpack.c.bf16 %v959, %v905
    %v1324 = vpack.c.bf16 %v960, %v906
    %v1325 = vpack.c.bf16 %v961, %v907
    %v1326 = vpack.c.bf16 %v962, %v908
    %v1327 = vpack.c.bf16 %v979, %v925
    %v1328 = vpack.c.bf16 %v980, %v926
    %v1329 = vpack.c.bf16 %v1067, %v1013
    %v1330 = vpack.c.bf16 %v1068, %v1014
    %v1331 = vpack.c.bf16 %v1069, %v1015
    %v1332 = vpack.c.bf16 %v1070, %v1016
    %v1333 = vpack.c.bf16 %v1087, %v1033
    %v1334 = vpack.c.bf16 %v1088, %v1034
    %v1335 = vpack.c.bf16 %v1175, %v1121
    %v1336 = vpack.c.bf16 %v1176, %v1122
    %v1337 = vpack.c.bf16 %v1177, %v1123
    %v1338 = vpack.c.bf16 %v1178, %v1124
    %v1339 = vpack.c.bf16 %v1195, %v1141
    %v1340 = vpack.c.bf16 %v1196, %v1142
    %v1341 = vld [vmem:[#allocation8] sm:$0xf]
    %v1342 = vld [vmem:[#allocation8 + $0x4] sm:$0xf]
    %v1343 = vld [vmem:[#allocation8 + $0x8] sm:$0xf]
    %v1344 = vld [vmem:[#allocation8 + $0xc] sm:$0xf]
    %v1345 = vld [vmem:[#allocation8 + $0x10] sm:$0xf]
    %v1346 = vld [vmem:[#allocation8 + $0x14] sm:$0xf]
    %v1347 = vld [vmem:[#allocation8 + $0x18] sm:$0xf]
    %v1348 = vld [vmem:[#allocation8 + $0x1c] sm:$0xf]
    %v1349 = vld [vmem:[#allocation8 + $0x20] sm:$0xf]
    %v1350 = vld [vmem:[#allocation8 + $0x24] sm:$0xf]
    %v1351 = vld [vmem:[#allocation8 + $0x28] sm:$0xf]
    %v1352 = vld [vmem:[#allocation8 + $0x2c] sm:$0xf]
    %v1353 = vld [vmem:[#allocation8 + $0x30] sm:$0xf]
    %v1354 = vld [vmem:[#allocation8 + $0x34] sm:$0xf]
    %v1355 = vld [vmem:[#allocation8 + $0x38] sm:$0xf]
    %v1356 = vld [vmem:[#allocation8 + $0x3c] sm:$0xf]
    %v1357 = vld [vmem:[#allocation8 + $0x40] sm:$0xf]
    %v1358 = vld [vmem:[#allocation8 + $0x44] sm:$0xf]
    %v1359 = vld [vmem:[#allocation8 + $0x48] sm:$0xf]
    %v1360 = vld [vmem:[#allocation8 + $0x4c] sm:$0xf]
    %v1361 = vld [vmem:[#allocation8 + $0x50] sm:$0xf]
    %v1362 = vld [vmem:[#allocation8 + $0x54] sm:$0xf]
    %v1363 = vld [vmem:[#allocation8 + $0x58] sm:$0xf]
    %v1364 = vld [vmem:[#allocation8 + $0x5c] sm:$0xf]
    %v1365 = vld [vmem:[#allocation8 + $0x60] sm:$0xf]
    %v1366 = vld [vmem:[#allocation8 + $0x64] sm:$0xf]
    %v1367 = vld [vmem:[#allocation8 + $0x68] sm:$0xf]
    %v1368 = vld [vmem:[#allocation8 + $0x6c] sm:$0xf]
    %v1369 = vld [vmem:[#allocation8 + $0x70] sm:$0xf]
    %v1370 = vld [vmem:[#allocation8 + $0x74] sm:$0xf]
    %v1371 = vld [vmem:[#allocation8 + $0x78] sm:$0xf]
    %v1372 = vld [vmem:[#allocation8 + $0x7c] sm:$0xf]
    %v1373 = vld [vmem:[#allocation8 + $0x80] sm:$0xf]
    %v1374 = vld [vmem:[#allocation8 + $0x84] sm:$0xf]
    %v1375 = vld [vmem:[#allocation8 + $0x88] sm:$0xf]
    %v1376 = vld [vmem:[#allocation8 + $0x8c] sm:$0xf]
    %v1377 = vld [vmem:[#allocation8 + $0x90] sm:$0xf]
    %v1378 = vld [vmem:[#allocation8 + $0x94] sm:$0xf]
    %v1379 = vld [vmem:[#allocation8 + $0x98] sm:$0xf]
    %v1380 = vld [vmem:[#allocation8 + $0x9c] sm:$0xf]
    %v1381 = vld [vmem:[#allocation8 + $0xa0] sm:$0xf]
    %v1382 = vld [vmem:[#allocation8 + $0xa4] sm:$0xf]
    %v1383 = vld [vmem:[#allocation8 + $0xa8] sm:$0xf]
    %v1384 = vld [vmem:[#allocation8 + $0xac] sm:$0xf]
    %v1385 = vld [vmem:[#allocation8 + $0xb0] sm:$0xf]
    %v1386 = vld [vmem:[#allocation8 + $0xb4] sm:$0xf]
    %v1387 = vld [vmem:[#allocation8 + $0xb8] sm:$0xf]
    %v1388 = vld [vmem:[#allocation8 + $0xbc] sm:$0xf]
    %v1389 = vld [vmem:[#allocation8 + $0xc0] sm:$0xf]
    %v1390 = vld [vmem:[#allocation8 + $0xc4] sm:$0xf]
    %v1391 = vld [vmem:[#allocation8 + $0xc8] sm:$0xf]
    %v1392 = vld [vmem:[#allocation8 + $0xcc] sm:$0xf]
    %v1393 = vld [vmem:[#allocation8 + $0xd0] sm:$0xf]
    %v1394 = vld [vmem:[#allocation8 + $0xd4] sm:$0xf]
    %v1395 = vld [vmem:[#allocation8 + $0xd8] sm:$0xf]
    %v1396 = vld [vmem:[#allocation8 + $0xdc] sm:$0xf]
    %v1397 = vld [vmem:[#allocation8 + $0xe0] sm:$0xf]
    %v1398 = vld [vmem:[#allocation8 + $0xe4] sm:$0xf]
    %v1399 = vld [vmem:[#allocation8 + $0xe8] sm:$0xf]
    %v1400 = vld [vmem:[#allocation8 + $0xec] sm:$0xf]
    %v1401 = vld [vmem:[#allocation8 + $0xf0] sm:$0xf]
    %v1402 = vld [vmem:[#allocation8 + $0xf4] sm:$0xf]
    %v1403 = vld [vmem:[#allocation8 + $0xf8] sm:$0xf]
    %v1404 = vld [vmem:[#allocation8 + $0xfc] sm:$0xf]
    %v1405 = vld [vmem:[#allocation8 + $0x100] sm:$0xf]
    %v1406 = vld [vmem:[#allocation8 + $0x104] sm:$0xf]
    %v1407 = vld [vmem:[#allocation8 + $0x108] sm:$0xf]
    %v1408 = vld [vmem:[#allocation8 + $0x10c] sm:$0xf]
    %v1409 = vld [vmem:[#allocation8 + $0x110] sm:$0xf]
    %v1410 = vld [vmem:[#allocation8 + $0x114] sm:$0xf]
    %v1411 = vld [vmem:[#allocation8 + $0x118] sm:$0xf]
    %v1412 = vld [vmem:[#allocation8 + $0x11c] sm:$0xf]
    %v1413 = vld [vmem:[#allocation8 + $0x120] sm:$0xf]
    %v1414 = vld [vmem:[#allocation8 + $0x124] sm:$0xf]
    %v1415 = vld [vmem:[#allocation8 + $0x128] sm:$0xf]
    %v1416 = vld [vmem:[#allocation8 + $0x12c] sm:$0xf]
    %v1417 = vld [vmem:[#allocation8 + $0x130] sm:$0xf]
    %v1418 = vld [vmem:[#allocation8 + $0x134] sm:$0xf]
    %v1419 = vld [vmem:[#allocation8 + $0x138] sm:$0xf]
    %v1420 = vld [vmem:[#allocation8 + $0x13c] sm:$0xf]
    %v1421 = vld [vmem:[#allocation8 + $0x140] sm:$0xf]
    %v1422 = vld [vmem:[#allocation8 + $0x144] sm:$0xf]
    %v1423 = vld [vmem:[#allocation8 + $0x148] sm:$0xf]
    %v1424 = vld [vmem:[#allocation8 + $0x14c] sm:$0xf]
    %v1425 = vld [vmem:[#allocation8 + $0x150] sm:$0xf]
    %v1426 = vld [vmem:[#allocation8 + $0x154] sm:$0xf]
    %v1427 = vld [vmem:[#allocation8 + $0x158] sm:$0xf]
    %v1428 = vld [vmem:[#allocation8 + $0x15c] sm:$0xf]
    %v1429 = vld [vmem:[#allocation8 + $0x160] sm:$0xf]
    %v1430 = vld [vmem:[#allocation8 + $0x164] sm:$0xf]
    %v1431 = vld [vmem:[#allocation8 + $0x168] sm:$0xf]
    %v1432 = vld [vmem:[#allocation8 + $0x16c] sm:$0xf]
    %v1433 = vld [vmem:[#allocation8 + $0x170] sm:$0xf]
    %v1434 = vld [vmem:[#allocation8 + $0x174] sm:$0xf]
    %v1435 = vld [vmem:[#allocation8 + $0x178] sm:$0xf]
    %v1436 = vld [vmem:[#allocation8 + $0x17c] sm:$0xf]
    %v1437 = vld [vmem:[#allocation5] sm:$0xff]
    %v1438 = vld [vmem:[#allocation5 + $0x8] sm:$0xff]
    %v1439 = vld [vmem:[#allocation5 + $0x10] sm:$0xff]
    %v1440 = vld [vmem:[#allocation5 + $0x18] sm:$0xff]
    %v1441 = vld [vmem:[#allocation5 + $0x20] sm:$0xff]
    %v1442 = vld [vmem:[#allocation5 + $0x28] sm:$0xff]
    %v1443 = vld [vmem:[#allocation5 + $0x30] sm:$0xff]
    %v1444 = vld [vmem:[#allocation5 + $0x38] sm:$0xff]
    %v1445 = vld [vmem:[#allocation5 + $0x40] sm:$0xff]
    %v1446 = vld [vmem:[#allocation5 + $0x48] sm:$0xff]
    %v1447 = vld [vmem:[#allocation5 + $0x50] sm:$0xff]
    %v1448 = vld [vmem:[#allocation5 + $0x58] sm:$0xff]
    %v1449 = vld [vmem:[#allocation5 + $0x60] sm:$0xff]
    %v1450 = vld [vmem:[#allocation5 + $0x68] sm:$0xff]
    %v1451 = vld [vmem:[#allocation5 + $0x70] sm:$0xff]
    %v1452 = vld [vmem:[#allocation5 + $0x78] sm:$0xff]
    %v1453 = vld [vmem:[#allocation5 + $0x80] sm:$0xff]
    %v1454 = vld [vmem:[#allocation5 + $0x88] sm:$0xff]
    %v1455 = vld [vmem:[#allocation5 + $0x90] sm:$0xff]
    %v1456 = vld [vmem:[#allocation5 + $0x98] sm:$0xff]
    %v1457 = vld [vmem:[#allocation5 + $0xa0] sm:$0xff]
    %v1458 = vld [vmem:[#allocation5 + $0xa8] sm:$0xff]
    %v1459 = vld [vmem:[#allocation5 + $0xb0] sm:$0xff]
    %v1460 = vld [vmem:[#allocation5 + $0xb8] sm:$0xff]
    %v1461 = vld [vmem:[#allocation5 + $0xc0] sm:$0xff]
    %v1462 = vld [vmem:[#allocation5 + $0xc8] sm:$0xff]
    %v1463 = vld [vmem:[#allocation5 + $0xd0] sm:$0xff]
    %v1464 = vld [vmem:[#allocation5 + $0xd8] sm:$0xff]
    %v1465 = vld [vmem:[#allocation5 + $0xe0] sm:$0xff]
    %v1466 = vld [vmem:[#allocation5 + $0xe8] sm:$0xff]
    %v1467 = vld [vmem:[#allocation5 + $0xf0] sm:$0xff]
    %v1468 = vld [vmem:[#allocation5 + $0xf8] sm:$0xff]
    %v1469 = vld [vmem:[#allocation5 + $0x100] sm:$0xff]
    %v1470 = vld [vmem:[#allocation5 + $0x108] sm:$0xff]
    %v1471 = vld [vmem:[#allocation5 + $0x110] sm:$0xff]
    %v1472 = vld [vmem:[#allocation5 + $0x118] sm:$0xff]
    %v1473 = vld [vmem:[#allocation5 + $0x120] sm:$0xff]
    %v1474 = vld [vmem:[#allocation5 + $0x128] sm:$0xff]
    %v1475 = vld [vmem:[#allocation5 + $0x130] sm:$0xff]
    %v1476 = vld [vmem:[#allocation5 + $0x138] sm:$0xff]
    %v1477 = vld [vmem:[#allocation5 + $0x140] sm:$0xff]
    %v1478 = vld [vmem:[#allocation5 + $0x148] sm:$0xff]
    %v1479 = vld [vmem:[#allocation5 + $0x150] sm:$0xff]
    %v1480 = vld [vmem:[#allocation5 + $0x158] sm:$0xff]
    %v1481 = vld [vmem:[#allocation5 + $0x160] sm:$0xff]
    %v1482 = vld [vmem:[#allocation5 + $0x168] sm:$0xff]
    %v1483 = vld [vmem:[#allocation5 + $0x170] sm:$0xff]
    %v1484 = vld [vmem:[#allocation5 + $0x178] sm:$0xff]
    %v1485 = vld [vmem:[#allocation5 + $0x180] sm:$0xff]
    %v1486 = vld [vmem:[#allocation5 + $0x188] sm:$0xff]
    %v1487 = vld [vmem:[#allocation5 + $0x190] sm:$0xff]
    %v1488 = vld [vmem:[#allocation5 + $0x198] sm:$0xff]
    %v1489 = vld [vmem:[#allocation5 + $0x1a0] sm:$0xff]
    %v1490 = vld [vmem:[#allocation5 + $0x1a8] sm:$0xff]
    %v1491 = vld [vmem:[#allocation5 + $0x1b0] sm:$0xff]
    %v1492 = vld [vmem:[#allocation5 + $0x1b8] sm:$0xff]
    %v1493 = vld [vmem:[#allocation5 + $0x1c0] sm:$0xff]
    %v1494 = vld [vmem:[#allocation5 + $0x1c8] sm:$0xff]
    %v1495 = vld [vmem:[#allocation5 + $0x1d0] sm:$0xff]
    %v1496 = vld [vmem:[#allocation5 + $0x1d8] sm:$0xff]
    %v1497 = vld [vmem:[#allocation5 + $0x1e0] sm:$0xff]
    %v1498 = vld [vmem:[#allocation5 + $0x1e8] sm:$0xff]
    %v1499 = vld [vmem:[#allocation5 + $0x1f0] sm:$0xff]
    %v1500 = vld [vmem:[#allocation5 + $0x1f8] sm:$0xff]
    %v1501 = vld [vmem:[#allocation5 + $0x200] sm:$0xff]
    %v1502 = vld [vmem:[#allocation5 + $0x208] sm:$0xff]
    %v1503 = vld [vmem:[#allocation5 + $0x210] sm:$0xff]
    %v1504 = vld [vmem:[#allocation5 + $0x218] sm:$0xff]
    %v1505 = vld [vmem:[#allocation5 + $0x220] sm:$0xff]
    %v1506 = vld [vmem:[#allocation5 + $0x228] sm:$0xff]
    %v1507 = vld [vmem:[#allocation5 + $0x230] sm:$0xff]
    %v1508 = vld [vmem:[#allocation5 + $0x238] sm:$0xff]
    %v1509 = vld [vmem:[#allocation5 + $0x240] sm:$0xff]
    %v1510 = vld [vmem:[#allocation5 + $0x248] sm:$0xff]
    %v1511 = vld [vmem:[#allocation5 + $0x250] sm:$0xff]
    %v1512 = vld [vmem:[#allocation5 + $0x258] sm:$0xff]
    %v1513 = vld [vmem:[#allocation5 + $0x260] sm:$0xff]
    %v1514 = vld [vmem:[#allocation5 + $0x268] sm:$0xff]
    %v1515 = vld [vmem:[#allocation5 + $0x270] sm:$0xff]
    %v1516 = vld [vmem:[#allocation5 + $0x278] sm:$0xff]
    %v1517 = vld [vmem:[#allocation5 + $0x280] sm:$0xff]
    %v1518 = vld [vmem:[#allocation5 + $0x288] sm:$0xff]
    %v1519 = vld [vmem:[#allocation5 + $0x290] sm:$0xff]
    %v1520 = vld [vmem:[#allocation5 + $0x298] sm:$0xff]
    %v1521 = vld [vmem:[#allocation5 + $0x2a0] sm:$0xff]
    %v1522 = vld [vmem:[#allocation5 + $0x2a8] sm:$0xff]
    %v1523 = vld [vmem:[#allocation5 + $0x2b0] sm:$0xff]
    %v1524 = vld [vmem:[#allocation5 + $0x2b8] sm:$0xff]
    %v1525 = vld [vmem:[#allocation5 + $0x2c0] sm:$0xff]
    %v1526 = vld [vmem:[#allocation5 + $0x2c8] sm:$0xff]
    %v1527 = vld [vmem:[#allocation5 + $0x2d0] sm:$0xff]
    %v1528 = vld [vmem:[#allocation5 + $0x2d8] sm:$0xff]
    %v1529 = vld [vmem:[#allocation5 + $0x2e0] sm:$0xff]
    %v1530 = vld [vmem:[#allocation5 + $0x2e8] sm:$0xff]
    %v1531 = vld [vmem:[#allocation5 + $0x2f0] sm:$0xff]
    %v1532 = vld [vmem:[#allocation5 + $0x2f8] sm:$0xff]
    %v1533 = vld [vmem:[#allocation5 + $0x300] sm:$0xff]
    %v1534 = vld [vmem:[#allocation5 + $0x308] sm:$0xff]
    %v1535 = vld [vmem:[#allocation5 + $0x310] sm:$0xff]
    %v1536 = vld [vmem:[#allocation5 + $0x318] sm:$0xff]
    %v1537 = vld [vmem:[#allocation5 + $0x320] sm:$0xff]
    %v1538 = vld [vmem:[#allocation5 + $0x328] sm:$0xff]
    %v1539 = vld [vmem:[#allocation5 + $0x330] sm:$0xff]
    %v1540 = vld [vmem:[#allocation5 + $0x338] sm:$0xff]
    %v1541 = vld [vmem:[#allocation5 + $0x340] sm:$0xff]
    %v1542 = vld [vmem:[#allocation5 + $0x348] sm:$0xff]
    %v1543 = vld [vmem:[#allocation5 + $0x350] sm:$0xff]
    %v1544 = vld [vmem:[#allocation5 + $0x358] sm:$0xff]
    %v1545 = vld [vmem:[#allocation5 + $0x360] sm:$0xff]
    %v1546 = vld [vmem:[#allocation5 + $0x368] sm:$0xff]
    %v1547 = vld [vmem:[#allocation5 + $0x370] sm:$0xff]
    %v1548 = vld [vmem:[#allocation5 + $0x378] sm:$0xff]
    %v1549 = vld [vmem:[#allocation5 + $0x380] sm:$0xff]
    %v1550 = vld [vmem:[#allocation5 + $0x388] sm:$0xff]
    %v1551 = vld [vmem:[#allocation5 + $0x390] sm:$0xff]
    %v1552 = vld [vmem:[#allocation5 + $0x398] sm:$0xff]
    %v1553 = vld [vmem:[#allocation5 + $0x3a0] sm:$0xff]
    %v1554 = vld [vmem:[#allocation5 + $0x3a8] sm:$0xff]
    %v1555 = vld [vmem:[#allocation5 + $0x3b0] sm:$0xff]
    %v1556 = vld [vmem:[#allocation5 + $0x3b8] sm:$0xff]
    %v1557 = vld [vmem:[#allocation5 + $0x3c0] sm:$0xff]
    %v1558 = vld [vmem:[#allocation5 + $0x3c8] sm:$0xff]
    %v1559 = vld [vmem:[#allocation5 + $0x3d0] sm:$0xff]
    %v1560 = vld [vmem:[#allocation5 + $0x3d8] sm:$0xff]
    %v1561 = vld [vmem:[#allocation5 + $0x3e0] sm:$0xff]
    %v1562 = vld [vmem:[#allocation5 + $0x3e8] sm:$0xff]
    %v1563 = vld [vmem:[#allocation5 + $0x3f0] sm:$0xff]
    %v1564 = vld [vmem:[#allocation5 + $0x3f8] sm:$0xff]
    %v1693 = vcombine.low %v1437, %v1439
    %v1694 = vcombine.high %v1437, %v1439
    %v1695 = vcombine.low %v1441, %v1443
    %v1696 = vcombine.high %v1441, %v1443
    %v1698 = vunpack.c.l.s4 1983009808
    %v1699 = vunpack.c.0.s8 %v1698
    %v1700 = vlaneseq
    %v1701 = vshrl.u32 %v1700, 7
    %v1702 = vsub.s32 %v1699, %v1701
    %v1703 = vrot.slane %v1693, %v1702
    %v1705 = vunpack.c.l.s4 1983009808
    %v1706 = vunpack.c.0.s8 %v1705
    %v1707 = vlaneseq
    %v1708 = vshrl.u32 %v1707, 7
    %v1709 = vsub.s32 %v1706, %v1708
    %v1710 = vrot.slane %v1694, %v1709
    %v1712 = vunpack.c.l.s4 1983009808
    %v1713 = vunpack.c.0.s8 %v1712
    %v1714 = vlaneseq
    %v1715 = vshrl.u32 %v1714, 7
    %v1716 = vsub.s32 %v1713, %v1715
    %v1717 = vrot.slane %v1695, %v1716
    %v1719 = vunpack.c.l.s4 1983009808
    %v1720 = vunpack.c.0.s8 %v1719
    %v1721 = vlaneseq
    %v1722 = vshrl.u32 %v1721, 7
    %v1723 = vsub.s32 %v1720, %v1722
    %v1724 = vrot.slane %v1696, %v1723
    %v1725 = vcombine.low %v1703, %v1717
    %v1726 = vcombine.high %v1703, %v1717
    %v1727 = vcombine.low %v1710, %v1724
    %v1728 = vcombine.high %v1710, %v1724
    %v1729 = vcombine.low %v1438, %v1440
    %v1730 = vcombine.high %v1438, %v1440
    %v1731 = vcombine.low %v1442, %v1444
    %v1732 = vcombine.high %v1442, %v1444
    %v1734 = vunpack.c.l.s4 1983009808
    %v1735 = vunpack.c.0.s8 %v1734
    %v1736 = vlaneseq
    %v1737 = vshrl.u32 %v1736, 7
    %v1738 = vsub.s32 %v1735, %v1737
    %v1739 = vrot.slane %v1729, %v1738
    %v1741 = vunpack.c.l.s4 1983009808
    %v1742 = vunpack.c.0.s8 %v1741
    %v1743 = vlaneseq
    %v1744 = vshrl.u32 %v1743, 7
    %v1745 = vsub.s32 %v1742, %v1744
    %v1746 = vrot.slane %v1730, %v1745
    %v1748 = vunpack.c.l.s4 1983009808
    %v1749 = vunpack.c.0.s8 %v1748
    %v1750 = vlaneseq
    %v1751 = vshrl.u32 %v1750, 7
    %v1752 = vsub.s32 %v1749, %v1751
    %v1753 = vrot.slane %v1731, %v1752
    %v1755 = vunpack.c.l.s4 1983009808
    %v1756 = vunpack.c.0.s8 %v1755
    %v1757 = vlaneseq
    %v1758 = vshrl.u32 %v1757, 7
    %v1759 = vsub.s32 %v1756, %v1758
    %v1760 = vrot.slane %v1732, %v1759
    %v1761 = vcombine.low %v1739, %v1753
    %v1762 = vcombine.high %v1739, %v1753
    %v1763 = vcombine.low %v1746, %v1760
    %v1764 = vcombine.high %v1746, %v1760
    %v1765 = vcombine.low %v1445, %v1447
    %v1766 = vcombine.high %v1445, %v1447
    %v1767 = vcombine.low %v1449, %v1451
    %v1768 = vcombine.high %v1449, %v1451
    %v1770 = vunpack.c.l.s4 1983009808
    %v1771 = vunpack.c.0.s8 %v1770
    %v1772 = vlaneseq
    %v1773 = vshrl.u32 %v1772, 7
    %v1774 = vsub.s32 %v1771, %v1773
    %v1775 = vrot.slane %v1765, %v1774
    %v1777 = vunpack.c.l.s4 1983009808
    %v1778 = vunpack.c.0.s8 %v1777
    %v1779 = vlaneseq
    %v1780 = vshrl.u32 %v1779, 7
    %v1781 = vsub.s32 %v1778, %v1780
    %v1782 = vrot.slane %v1766, %v1781
    %v1784 = vunpack.c.l.s4 1983009808
    %v1785 = vunpack.c.0.s8 %v1784
    %v1786 = vlaneseq
    %v1787 = vshrl.u32 %v1786, 7
    %v1788 = vsub.s32 %v1785, %v1787
    %v1789 = vrot.slane %v1767, %v1788
    %v1791 = vunpack.c.l.s4 1983009808
    %v1792 = vunpack.c.0.s8 %v1791
    %v1793 = vlaneseq
    %v1794 = vshrl.u32 %v1793, 7
    %v1795 = vsub.s32 %v1792, %v1794
    %v1796 = vrot.slane %v1768, %v1795
    %v1797 = vcombine.low %v1775, %v1789
    %v1798 = vcombine.high %v1775, %v1789
    %v1799 = vcombine.low %v1782, %v1796
    %v1800 = vcombine.high %v1782, %v1796
    %v1801 = vcombine.low %v1446, %v1448
    %v1802 = vcombine.high %v1446, %v1448
    %v1803 = vcombine.low %v1450, %v1452
    %v1804 = vcombine.high %v1450, %v1452
    %v1806 = vunpack.c.l.s4 1983009808
    %v1807 = vunpack.c.0.s8 %v1806
    %v1808 = vlaneseq
    %v1809 = vshrl.u32 %v1808, 7
    %v1810 = vsub.s32 %v1807, %v1809
    %v1811 = vrot.slane %v1801, %v1810
    %v1813 = vunpack.c.l.s4 1983009808
    %v1814 = vunpack.c.0.s8 %v1813
    %v1815 = vlaneseq
    %v1816 = vshrl.u32 %v1815, 7
    %v1817 = vsub.s32 %v1814, %v1816
    %v1818 = vrot.slane %v1802, %v1817
    %v1820 = vunpack.c.l.s4 1983009808
    %v1821 = vunpack.c.0.s8 %v1820
    %v1822 = vlaneseq
    %v1823 = vshrl.u32 %v1822, 7
    %v1824 = vsub.s32 %v1821, %v1823
    %v1825 = vrot.slane %v1803, %v1824
    %v1827 = vunpack.c.l.s4 1983009808
    %v1828 = vunpack.c.0.s8 %v1827
    %v1829 = vlaneseq
    %v1830 = vshrl.u32 %v1829, 7
    %v1831 = vsub.s32 %v1828, %v1830
    %v1832 = vrot.slane %v1804, %v1831
    %v1833 = vcombine.low %v1811, %v1825
    %v1834 = vcombine.high %v1811, %v1825
    %v1835 = vcombine.low %v1818, %v1832
    %v1836 = vcombine.high %v1818, %v1832
    %v1837 = vcombine.low %v1453, %v1455
    %v1838 = vcombine.high %v1453, %v1455
    %v1839 = vcombine.low %v1457, %v1459
    %v1840 = vcombine.high %v1457, %v1459
    %v1842 = vunpack.c.l.s4 1983009808
    %v1843 = vunpack.c.0.s8 %v1842
    %v1844 = vlaneseq
    %v1845 = vshrl.u32 %v1844, 7
    %v1846 = vsub.s32 %v1843, %v1845
    %v1847 = vrot.slane %v1837, %v1846
    %v1849 = vunpack.c.l.s4 1983009808
    %v1850 = vunpack.c.0.s8 %v1849
    %v1851 = vlaneseq
    %v1852 = vshrl.u32 %v1851, 7
    %v1853 = vsub.s32 %v1850, %v1852
    %v1854 = vrot.slane %v1838, %v1853
    %v1856 = vunpack.c.l.s4 1983009808
    %v1857 = vunpack.c.0.s8 %v1856
    %v1858 = vlaneseq
    %v1859 = vshrl.u32 %v1858, 7
    %v1860 = vsub.s32 %v1857, %v1859
    %v1861 = vrot.slane %v1839, %v1860
    %v1863 = vunpack.c.l.s4 1983009808
    %v1864 = vunpack.c.0.s8 %v1863
    %v1865 = vlaneseq
    %v1866 = vshrl.u32 %v1865, 7
    %v1867 = vsub.s32 %v1864, %v1866
    %v1868 = vrot.slane %v1840, %v1867
    %v1869 = vcombine.low %v1847, %v1861
    %v1870 = vcombine.high %v1847, %v1861
    %v1871 = vcombine.low %v1854, %v1868
    %v1872 = vcombine.high %v1854, %v1868
    %v1873 = vcombine.low %v1454, %v1456
    %v1874 = vcombine.high %v1454, %v1456
    %v1875 = vcombine.low %v1458, %v1460
    %v1876 = vcombine.high %v1458, %v1460
    %v1878 = vunpack.c.l.s4 1983009808
    %v1879 = vunpack.c.0.s8 %v1878
    %v1880 = vlaneseq
    %v1881 = vshrl.u32 %v1880, 7
    %v1882 = vsub.s32 %v1879, %v1881
    %v1883 = vrot.slane %v1873, %v1882
    %v1885 = vunpack.c.l.s4 1983009808
    %v1886 = vunpack.c.0.s8 %v1885
    %v1887 = vlaneseq
    %v1888 = vshrl.u32 %v1887, 7
    %v1889 = vsub.s32 %v1886, %v1888
    %v1890 = vrot.slane %v1874, %v1889
    %v1892 = vunpack.c.l.s4 1983009808
    %v1893 = vunpack.c.0.s8 %v1892
    %v1894 = vlaneseq
    %v1895 = vshrl.u32 %v1894, 7
    %v1896 = vsub.s32 %v1893, %v1895
    %v1897 = vrot.slane %v1875, %v1896
    %v1899 = vunpack.c.l.s4 1983009808
    %v1900 = vunpack.c.0.s8 %v1899
    %v1901 = vlaneseq
    %v1902 = vshrl.u32 %v1901, 7
    %v1903 = vsub.s32 %v1900, %v1902
    %v1904 = vrot.slane %v1876, %v1903
    %v1905 = vcombine.low %v1883, %v1897
    %v1906 = vcombine.high %v1883, %v1897
    %v1907 = vcombine.low %v1890, %v1904
    %v1908 = vcombine.high %v1890, %v1904
    %v1909 = vcombine.low %v1461, %v1463
    %v1910 = vcombine.high %v1461, %v1463
    %v1911 = vcombine.low %v1465, %v1467
    %v1912 = vcombine.high %v1465, %v1467
    %v1914 = vunpack.c.l.s4 1983009808
    %v1915 = vunpack.c.0.s8 %v1914
    %v1916 = vlaneseq
    %v1917 = vshrl.u32 %v1916, 7
    %v1918 = vsub.s32 %v1915, %v1917
    %v1919 = vrot.slane %v1909, %v1918
    %v1921 = vunpack.c.l.s4 1983009808
    %v1922 = vunpack.c.0.s8 %v1921
    %v1923 = vlaneseq
    %v1924 = vshrl.u32 %v1923, 7
    %v1925 = vsub.s32 %v1922, %v1924
    %v1926 = vrot.slane %v1910, %v1925
    %v1928 = vunpack.c.l.s4 1983009808
    %v1929 = vunpack.c.0.s8 %v1928
    %v1930 = vlaneseq
    %v1931 = vshrl.u32 %v1930, 7
    %v1932 = vsub.s32 %v1929, %v1931
    %v1933 = vrot.slane %v1911, %v1932
    %v1935 = vunpack.c.l.s4 1983009808
    %v1936 = vunpack.c.0.s8 %v1935
    %v1937 = vlaneseq
    %v1938 = vshrl.u32 %v1937, 7
    %v1939 = vsub.s32 %v1936, %v1938
    %v1940 = vrot.slane %v1912, %v1939
    %v1941 = vcombine.low %v1919, %v1933
    %v1942 = vcombine.high %v1919, %v1933
    %v1943 = vcombine.low %v1926, %v1940
    %v1944 = vcombine.high %v1926, %v1940
    %v1945 = vcombine.low %v1462, %v1464
    %v1946 = vcombine.high %v1462, %v1464
    %v1947 = vcombine.low %v1466, %v1468
    %v1948 = vcombine.high %v1466, %v1468
    %v1950 = vunpack.c.l.s4 1983009808
    %v1951 = vunpack.c.0.s8 %v1950
    %v1952 = vlaneseq
    %v1953 = vshrl.u32 %v1952, 7
    %v1954 = vsub.s32 %v1951, %v1953
    %v1955 = vrot.slane %v1945, %v1954
    %v1957 = vunpack.c.l.s4 1983009808
    %v1958 = vunpack.c.0.s8 %v1957
    %v1959 = vlaneseq
    %v1960 = vshrl.u32 %v1959, 7
    %v1961 = vsub.s32 %v1958, %v1960
    %v1962 = vrot.slane %v1946, %v1961
    %v1964 = vunpack.c.l.s4 1983009808
    %v1965 = vunpack.c.0.s8 %v1964
    %v1966 = vlaneseq
    %v1967 = vshrl.u32 %v1966, 7
    %v1968 = vsub.s32 %v1965, %v1967
    %v1969 = vrot.slane %v1947, %v1968
    %v1971 = vunpack.c.l.s4 1983009808
    %v1972 = vunpack.c.0.s8 %v1971
    %v1973 = vlaneseq
    %v1974 = vshrl.u32 %v1973, 7
    %v1975 = vsub.s32 %v1972, %v1974
    %v1976 = vrot.slane %v1948, %v1975
    %v1977 = vcombine.low %v1955, %v1969
    %v1978 = vcombine.high %v1955, %v1969
    %v1979 = vcombine.low %v1962, %v1976
    %v1980 = vcombine.high %v1962, %v1976
    %v1981 = vcombine.low %v1469, %v1471
    %v1982 = vcombine.high %v1469, %v1471
    %v1983 = vcombine.low %v1473, %v1475
    %v1984 = vcombine.high %v1473, %v1475
    %v1986 = vunpack.c.l.s4 1983009808
    %v1987 = vunpack.c.0.s8 %v1986
    %v1988 = vlaneseq
    %v1989 = vshrl.u32 %v1988, 7
    %v1990 = vsub.s32 %v1987, %v1989
    %v1991 = vrot.slane %v1981, %v1990
    %v1993 = vunpack.c.l.s4 1983009808
    %v1994 = vunpack.c.0.s8 %v1993
    %v1995 = vlaneseq
    %v1996 = vshrl.u32 %v1995, 7
    %v1997 = vsub.s32 %v1994, %v1996
    %v1998 = vrot.slane %v1982, %v1997
    %v2000 = vunpack.c.l.s4 1983009808
    %v2001 = vunpack.c.0.s8 %v2000
    %v2002 = vlaneseq
    %v2003 = vshrl.u32 %v2002, 7
    %v2004 = vsub.s32 %v2001, %v2003
    %v2005 = vrot.slane %v1983, %v2004
    %v2007 = vunpack.c.l.s4 1983009808
    %v2008 = vunpack.c.0.s8 %v2007
    %v2009 = vlaneseq
    %v2010 = vshrl.u32 %v2009, 7
    %v2011 = vsub.s32 %v2008, %v2010
    %v2012 = vrot.slane %v1984, %v2011
    %v2013 = vcombine.low %v1991, %v2005
    %v2014 = vcombine.high %v1991, %v2005
    %v2015 = vcombine.low %v1998, %v2012
    %v2016 = vcombine.high %v1998, %v2012
    %v2017 = vcombine.low %v1470, %v1472
    %v2018 = vcombine.high %v1470, %v1472
    %v2019 = vcombine.low %v1474, %v1476
    %v2020 = vcombine.high %v1474, %v1476
    %v2022 = vunpack.c.l.s4 1983009808
    %v2023 = vunpack.c.0.s8 %v2022
    %v2024 = vlaneseq
    %v2025 = vshrl.u32 %v2024, 7
    %v2026 = vsub.s32 %v2023, %v2025
    %v2027 = vrot.slane %v2017, %v2026
    %v2029 = vunpack.c.l.s4 1983009808
    %v2030 = vunpack.c.0.s8 %v2029
    %v2031 = vlaneseq
    %v2032 = vshrl.u32 %v2031, 7
    %v2033 = vsub.s32 %v2030, %v2032
    %v2034 = vrot.slane %v2018, %v2033
    %v2036 = vunpack.c.l.s4 1983009808
    %v2037 = vunpack.c.0.s8 %v2036
    %v2038 = vlaneseq
    %v2039 = vshrl.u32 %v2038, 7
    %v2040 = vsub.s32 %v2037, %v2039
    %v2041 = vrot.slane %v2019, %v2040
    %v2043 = vunpack.c.l.s4 1983009808
    %v2044 = vunpack.c.0.s8 %v2043
    %v2045 = vlaneseq
    %v2046 = vshrl.u32 %v2045, 7
    %v2047 = vsub.s32 %v2044, %v2046
    %v2048 = vrot.slane %v2020, %v2047
    %v2049 = vcombine.low %v2027, %v2041
    %v2050 = vcombine.high %v2027, %v2041
    %v2051 = vcombine.low %v2034, %v2048
    %v2052 = vcombine.high %v2034, %v2048
    %v2053 = vcombine.low %v1477, %v1479
    %v2054 = vcombine.high %v1477, %v1479
    %v2055 = vcombine.low %v1481, %v1483
    %v2056 = vcombine.high %v1481, %v1483
    %v2058 = vunpack.c.l.s4 1983009808
    %v2059 = vunpack.c.0.s8 %v2058
    %v2060 = vlaneseq
    %v2061 = vshrl.u32 %v2060, 7
    %v2062 = vsub.s32 %v2059, %v2061
    %v2063 = vrot.slane %v2053, %v2062
    %v2065 = vunpack.c.l.s4 1983009808
    %v2066 = vunpack.c.0.s8 %v2065
    %v2067 = vlaneseq
    %v2068 = vshrl.u32 %v2067, 7
    %v2069 = vsub.s32 %v2066, %v2068
    %v2070 = vrot.slane %v2054, %v2069
    %v2072 = vunpack.c.l.s4 1983009808
    %v2073 = vunpack.c.0.s8 %v2072
    %v2074 = vlaneseq
    %v2075 = vshrl.u32 %v2074, 7
    %v2076 = vsub.s32 %v2073, %v2075
    %v2077 = vrot.slane %v2055, %v2076
    %v2079 = vunpack.c.l.s4 1983009808
    %v2080 = vunpack.c.0.s8 %v2079
    %v2081 = vlaneseq
    %v2082 = vshrl.u32 %v2081, 7
    %v2083 = vsub.s32 %v2080, %v2082
    %v2084 = vrot.slane %v2056, %v2083
    %v2085 = vcombine.low %v2063, %v2077
    %v2086 = vcombine.high %v2063, %v2077
    %v2087 = vcombine.low %v2070, %v2084
    %v2088 = vcombine.high %v2070, %v2084
    %v2089 = vcombine.low %v1478, %v1480
    %v2090 = vcombine.high %v1478, %v1480
    %v2091 = vcombine.low %v1482, %v1484
    %v2092 = vcombine.high %v1482, %v1484
    %v2094 = vunpack.c.l.s4 1983009808
    %v2095 = vunpack.c.0.s8 %v2094
    %v2096 = vlaneseq
    %v2097 = vshrl.u32 %v2096, 7
    %v2098 = vsub.s32 %v2095, %v2097
    %v2099 = vrot.slane %v2089, %v2098
    %v2101 = vunpack.c.l.s4 1983009808
    %v2102 = vunpack.c.0.s8 %v2101
    %v2103 = vlaneseq
    %v2104 = vshrl.u32 %v2103, 7
    %v2105 = vsub.s32 %v2102, %v2104
    %v2106 = vrot.slane %v2090, %v2105
    %v2108 = vunpack.c.l.s4 1983009808
    %v2109 = vunpack.c.0.s8 %v2108
    %v2110 = vlaneseq
    %v2111 = vshrl.u32 %v2110, 7
    %v2112 = vsub.s32 %v2109, %v2111
    %v2113 = vrot.slane %v2091, %v2112
    %v2115 = vunpack.c.l.s4 1983009808
    %v2116 = vunpack.c.0.s8 %v2115
    %v2117 = vlaneseq
    %v2118 = vshrl.u32 %v2117, 7
    %v2119 = vsub.s32 %v2116, %v2118
    %v2120 = vrot.slane %v2092, %v2119
    %v2121 = vcombine.low %v2099, %v2113
    %v2122 = vcombine.high %v2099, %v2113
    %v2123 = vcombine.low %v2106, %v2120
    %v2124 = vcombine.high %v2106, %v2120
    %v2125 = vcombine.low %v1485, %v1487
    %v2126 = vcombine.high %v1485, %v1487
    %v2127 = vcombine.low %v1489, %v1491
    %v2128 = vcombine.high %v1489, %v1491
    %v2130 = vunpack.c.l.s4 1983009808
    %v2131 = vunpack.c.0.s8 %v2130
    %v2132 = vlaneseq
    %v2133 = vshrl.u32 %v2132, 7
    %v2134 = vsub.s32 %v2131, %v2133
    %v2135 = vrot.slane %v2125, %v2134
    %v2137 = vunpack.c.l.s4 1983009808
    %v2138 = vunpack.c.0.s8 %v2137
    %v2139 = vlaneseq
    %v2140 = vshrl.u32 %v2139, 7
    %v2141 = vsub.s32 %v2138, %v2140
    %v2142 = vrot.slane %v2126, %v2141
    %v2144 = vunpack.c.l.s4 1983009808
    %v2145 = vunpack.c.0.s8 %v2144
    %v2146 = vlaneseq
    %v2147 = vshrl.u32 %v2146, 7
    %v2148 = vsub.s32 %v2145, %v2147
    %v2149 = vrot.slane %v2127, %v2148
    %v2151 = vunpack.c.l.s4 1983009808
    %v2152 = vunpack.c.0.s8 %v2151
    %v2153 = vlaneseq
    %v2154 = vshrl.u32 %v2153, 7
    %v2155 = vsub.s32 %v2152, %v2154
    %v2156 = vrot.slane %v2128, %v2155
    %v2157 = vcombine.low %v2135, %v2149
    %v2158 = vcombine.high %v2135, %v2149
    %v2159 = vcombine.low %v2142, %v2156
    %v2160 = vcombine.high %v2142, %v2156
    %v2161 = vcombine.low %v1486, %v1488
    %v2162 = vcombine.high %v1486, %v1488
    %v2163 = vcombine.low %v1490, %v1492
    %v2164 = vcombine.high %v1490, %v1492
    %v2166 = vunpack.c.l.s4 1983009808
    %v2167 = vunpack.c.0.s8 %v2166
    %v2168 = vlaneseq
    %v2169 = vshrl.u32 %v2168, 7
    %v2170 = vsub.s32 %v2167, %v2169
    %v2171 = vrot.slane %v2161, %v2170
    %v2173 = vunpack.c.l.s4 1983009808
    %v2174 = vunpack.c.0.s8 %v2173
    %v2175 = vlaneseq
    %v2176 = vshrl.u32 %v2175, 7
    %v2177 = vsub.s32 %v2174, %v2176
    %v2178 = vrot.slane %v2162, %v2177
    %v2180 = vunpack.c.l.s4 1983009808
    %v2181 = vunpack.c.0.s8 %v2180
    %v2182 = vlaneseq
    %v2183 = vshrl.u32 %v2182, 7
    %v2184 = vsub.s32 %v2181, %v2183
    %v2185 = vrot.slane %v2163, %v2184
    %v2187 = vunpack.c.l.s4 1983009808
    %v2188 = vunpack.c.0.s8 %v2187
    %v2189 = vlaneseq
    %v2190 = vshrl.u32 %v2189, 7
    %v2191 = vsub.s32 %v2188, %v2190
    %v2192 = vrot.slane %v2164, %v2191
    %v2193 = vcombine.low %v2171, %v2185
    %v2194 = vcombine.high %v2171, %v2185
    %v2195 = vcombine.low %v2178, %v2192
    %v2196 = vcombine.high %v2178, %v2192
    %v2197 = vcombine.low %v1493, %v1495
    %v2198 = vcombine.high %v1493, %v1495
    %v2199 = vcombine.low %v1497, %v1499
    %v2200 = vcombine.high %v1497, %v1499
    %v2202 = vunpack.c.l.s4 1983009808
    %v2203 = vunpack.c.0.s8 %v2202
    %v2204 = vlaneseq
    %v2205 = vshrl.u32 %v2204, 7
    %v2206 = vsub.s32 %v2203, %v2205
    %v2207 = vrot.slane %v2197, %v2206
    %v2209 = vunpack.c.l.s4 1983009808
    %v2210 = vunpack.c.0.s8 %v2209
    %v2211 = vlaneseq
    %v2212 = vshrl.u32 %v2211, 7
    %v2213 = vsub.s32 %v2210, %v2212
    %v2214 = vrot.slane %v2198, %v2213
    %v2216 = vunpack.c.l.s4 1983009808
    %v2217 = vunpack.c.0.s8 %v2216
    %v2218 = vlaneseq
    %v2219 = vshrl.u32 %v2218, 7
    %v2220 = vsub.s32 %v2217, %v2219
    %v2221 = vrot.slane %v2199, %v2220
    %v2223 = vunpack.c.l.s4 1983009808
    %v2224 = vunpack.c.0.s8 %v2223
    %v2225 = vlaneseq
    %v2226 = vshrl.u32 %v2225, 7
    %v2227 = vsub.s32 %v2224, %v2226
    %v2228 = vrot.slane %v2200, %v2227
    %v2229 = vcombine.low %v2207, %v2221
    %v2230 = vcombine.high %v2207, %v2221
    %v2231 = vcombine.low %v2214, %v2228
    %v2232 = vcombine.high %v2214, %v2228
    %v2233 = vcombine.low %v1494, %v1496
    %v2234 = vcombine.high %v1494, %v1496
    %v2235 = vcombine.low %v1498, %v1500
    %v2236 = vcombine.high %v1498, %v1500
    %v2238 = vunpack.c.l.s4 1983009808
    %v2239 = vunpack.c.0.s8 %v2238
    %v2240 = vlaneseq
    %v2241 = vshrl.u32 %v2240, 7
    %v2242 = vsub.s32 %v2239, %v2241
    %v2243 = vrot.slane %v2233, %v2242
    %v2245 = vunpack.c.l.s4 1983009808
    %v2246 = vunpack.c.0.s8 %v2245
    %v2247 = vlaneseq
    %v2248 = vshrl.u32 %v2247, 7
    %v2249 = vsub.s32 %v2246, %v2248
    %v2250 = vrot.slane %v2234, %v2249
    %v2252 = vunpack.c.l.s4 1983009808
    %v2253 = vunpack.c.0.s8 %v2252
    %v2254 = vlaneseq
    %v2255 = vshrl.u32 %v2254, 7
    %v2256 = vsub.s32 %v2253, %v2255
    %v2257 = vrot.slane %v2235, %v2256
    %v2259 = vunpack.c.l.s4 1983009808
    %v2260 = vunpack.c.0.s8 %v2259
    %v2261 = vlaneseq
    %v2262 = vshrl.u32 %v2261, 7
    %v2263 = vsub.s32 %v2260, %v2262
    %v2264 = vrot.slane %v2236, %v2263
    %v2265 = vcombine.low %v2243, %v2257
    %v2266 = vcombine.high %v2243, %v2257
    %v2267 = vcombine.low %v2250, %v2264
    %v2268 = vcombine.high %v2250, %v2264
    %v2269 = vcombine.low %v1501, %v1503
    %v2270 = vcombine.high %v1501, %v1503
    %v2271 = vcombine.low %v1505, %v1507
    %v2272 = vcombine.high %v1505, %v1507
    %v2274 = vunpack.c.l.s4 1983009808
    %v2275 = vunpack.c.0.s8 %v2274
    %v2276 = vlaneseq
    %v2277 = vshrl.u32 %v2276, 7
    %v2278 = vsub.s32 %v2275, %v2277
    %v2279 = vrot.slane %v2269, %v2278
    %v2281 = vunpack.c.l.s4 1983009808
    %v2282 = vunpack.c.0.s8 %v2281
    %v2283 = vlaneseq
    %v2284 = vshrl.u32 %v2283, 7
    %v2285 = vsub.s32 %v2282, %v2284
    %v2286 = vrot.slane %v2270, %v2285
    %v2288 = vunpack.c.l.s4 1983009808
    %v2289 = vunpack.c.0.s8 %v2288
    %v2290 = vlaneseq
    %v2291 = vshrl.u32 %v2290, 7
    %v2292 = vsub.s32 %v2289, %v2291
    %v2293 = vrot.slane %v2271, %v2292
    %v2295 = vunpack.c.l.s4 1983009808
    %v2296 = vunpack.c.0.s8 %v2295
    %v2297 = vlaneseq
    %v2298 = vshrl.u32 %v2297, 7
    %v2299 = vsub.s32 %v2296, %v2298
    %v2300 = vrot.slane %v2272, %v2299
    %v2301 = vcombine.low %v2279, %v2293
    %v2302 = vcombine.high %v2279, %v2293
    %v2303 = vcombine.low %v2286, %v2300
    %v2304 = vcombine.high %v2286, %v2300
    %v2305 = vcombine.low %v1502, %v1504
    %v2306 = vcombine.high %v1502, %v1504
    %v2307 = vcombine.low %v1506, %v1508
    %v2308 = vcombine.high %v1506, %v1508
    %v2310 = vunpack.c.l.s4 1983009808
    %v2311 = vunpack.c.0.s8 %v2310
    %v2312 = vlaneseq
    %v2313 = vshrl.u32 %v2312, 7
    %v2314 = vsub.s32 %v2311, %v2313
    %v2315 = vrot.slane %v2305, %v2314
    %v2317 = vunpack.c.l.s4 1983009808
    %v2318 = vunpack.c.0.s8 %v2317
    %v2319 = vlaneseq
    %v2320 = vshrl.u32 %v2319, 7
    %v2321 = vsub.s32 %v2318, %v2320
    %v2322 = vrot.slane %v2306, %v2321
    %v2324 = vunpack.c.l.s4 1983009808
    %v2325 = vunpack.c.0.s8 %v2324
    %v2326 = vlaneseq
    %v2327 = vshrl.u32 %v2326, 7
    %v2328 = vsub.s32 %v2325, %v2327
    %v2329 = vrot.slane %v2307, %v2328
    %v2331 = vunpack.c.l.s4 1983009808
    %v2332 = vunpack.c.0.s8 %v2331
    %v2333 = vlaneseq
    %v2334 = vshrl.u32 %v2333, 7
    %v2335 = vsub.s32 %v2332, %v2334
    %v2336 = vrot.slane %v2308, %v2335
    %v2337 = vcombine.low %v2315, %v2329
    %v2338 = vcombine.high %v2315, %v2329
    %v2339 = vcombine.low %v2322, %v2336
    %v2340 = vcombine.high %v2322, %v2336
    %v2341 = vcombine.low %v1509, %v1511
    %v2342 = vcombine.high %v1509, %v1511
    %v2343 = vcombine.low %v1513, %v1515
    %v2344 = vcombine.high %v1513, %v1515
    %v2346 = vunpack.c.l.s4 1983009808
    %v2347 = vunpack.c.0.s8 %v2346
    %v2348 = vlaneseq
    %v2349 = vshrl.u32 %v2348, 7
    %v2350 = vsub.s32 %v2347, %v2349
    %v2351 = vrot.slane %v2341, %v2350
    %v2353 = vunpack.c.l.s4 1983009808
    %v2354 = vunpack.c.0.s8 %v2353
    %v2355 = vlaneseq
    %v2356 = vshrl.u32 %v2355, 7
    %v2357 = vsub.s32 %v2354, %v2356
    %v2358 = vrot.slane %v2342, %v2357
    %v2360 = vunpack.c.l.s4 1983009808
    %v2361 = vunpack.c.0.s8 %v2360
    %v2362 = vlaneseq
    %v2363 = vshrl.u32 %v2362, 7
    %v2364 = vsub.s32 %v2361, %v2363
    %v2365 = vrot.slane %v2343, %v2364
    %v2367 = vunpack.c.l.s4 1983009808
    %v2368 = vunpack.c.0.s8 %v2367
    %v2369 = vlaneseq
    %v2370 = vshrl.u32 %v2369, 7
    %v2371 = vsub.s32 %v2368, %v2370
    %v2372 = vrot.slane %v2344, %v2371
    %v2373 = vcombine.low %v2351, %v2365
    %v2374 = vcombine.high %v2351, %v2365
    %v2375 = vcombine.low %v2358, %v2372
    %v2376 = vcombine.high %v2358, %v2372
    %v2377 = vcombine.low %v1510, %v1512
    %v2378 = vcombine.high %v1510, %v1512
    %v2379 = vcombine.low %v1514, %v1516
    %v2380 = vcombine.high %v1514, %v1516
    %v2382 = vunpack.c.l.s4 1983009808
    %v2383 = vunpack.c.0.s8 %v2382
    %v2384 = vlaneseq
    %v2385 = vshrl.u32 %v2384, 7
    %v2386 = vsub.s32 %v2383, %v2385
    %v2387 = vrot.slane %v2377, %v2386
    %v2389 = vunpack.c.l.s4 1983009808
    %v2390 = vunpack.c.0.s8 %v2389
    %v2391 = vlaneseq
    %v2392 = vshrl.u32 %v2391, 7
    %v2393 = vsub.s32 %v2390, %v2392
    %v2394 = vrot.slane %v2378, %v2393
    %v2396 = vunpack.c.l.s4 1983009808
    %v2397 = vunpack.c.0.s8 %v2396
    %v2398 = vlaneseq
    %v2399 = vshrl.u32 %v2398, 7
    %v2400 = vsub.s32 %v2397, %v2399
    %v2401 = vrot.slane %v2379, %v2400
    %v2403 = vunpack.c.l.s4 1983009808
    %v2404 = vunpack.c.0.s8 %v2403
    %v2405 = vlaneseq
    %v2406 = vshrl.u32 %v2405, 7
    %v2407 = vsub.s32 %v2404, %v2406
    %v2408 = vrot.slane %v2380, %v2407
    %v2409 = vcombine.low %v2387, %v2401
    %v2410 = vcombine.high %v2387, %v2401
    %v2411 = vcombine.low %v2394, %v2408
    %v2412 = vcombine.high %v2394, %v2408
    %v2413 = vcombine.low %v1517, %v1519
    %v2414 = vcombine.high %v1517, %v1519
    %v2415 = vcombine.low %v1521, %v1523
    %v2416 = vcombine.high %v1521, %v1523
    %v2418 = vunpack.c.l.s4 1983009808
    %v2419 = vunpack.c.0.s8 %v2418
    %v2420 = vlaneseq
    %v2421 = vshrl.u32 %v2420, 7
    %v2422 = vsub.s32 %v2419, %v2421
    %v2423 = vrot.slane %v2413, %v2422
    %v2425 = vunpack.c.l.s4 1983009808
    %v2426 = vunpack.c.0.s8 %v2425
    %v2427 = vlaneseq
    %v2428 = vshrl.u32 %v2427, 7
    %v2429 = vsub.s32 %v2426, %v2428
    %v2430 = vrot.slane %v2414, %v2429
    %v2432 = vunpack.c.l.s4 1983009808
    %v2433 = vunpack.c.0.s8 %v2432
    %v2434 = vlaneseq
    %v2435 = vshrl.u32 %v2434, 7
    %v2436 = vsub.s32 %v2433, %v2435
    %v2437 = vrot.slane %v2415, %v2436
    %v2439 = vunpack.c.l.s4 1983009808
    %v2440 = vunpack.c.0.s8 %v2439
    %v2441 = vlaneseq
    %v2442 = vshrl.u32 %v2441, 7
    %v2443 = vsub.s32 %v2440, %v2442
    %v2444 = vrot.slane %v2416, %v2443
    %v2445 = vcombine.low %v2423, %v2437
    %v2446 = vcombine.high %v2423, %v2437
    %v2447 = vcombine.low %v2430, %v2444
    %v2448 = vcombine.high %v2430, %v2444
    %v2449 = vcombine.low %v1518, %v1520
    %v2450 = vcombine.high %v1518, %v1520
    %v2451 = vcombine.low %v1522, %v1524
    %v2452 = vcombine.high %v1522, %v1524
    %v2454 = vunpack.c.l.s4 1983009808
    %v2455 = vunpack.c.0.s8 %v2454
    %v2456 = vlaneseq
    %v2457 = vshrl.u32 %v2456, 7
    %v2458 = vsub.s32 %v2455, %v2457
    %v2459 = vrot.slane %v2449, %v2458
    %v2461 = vunpack.c.l.s4 1983009808
    %v2462 = vunpack.c.0.s8 %v2461
    %v2463 = vlaneseq
    %v2464 = vshrl.u32 %v2463, 7
    %v2465 = vsub.s32 %v2462, %v2464
    %v2466 = vrot.slane %v2450, %v2465
    %v2468 = vunpack.c.l.s4 1983009808
    %v2469 = vunpack.c.0.s8 %v2468
    %v2470 = vlaneseq
    %v2471 = vshrl.u32 %v2470, 7
    %v2472 = vsub.s32 %v2469, %v2471
    %v2473 = vrot.slane %v2451, %v2472
    %v2475 = vunpack.c.l.s4 1983009808
    %v2476 = vunpack.c.0.s8 %v2475
    %v2477 = vlaneseq
    %v2478 = vshrl.u32 %v2477, 7
    %v2479 = vsub.s32 %v2476, %v2478
    %v2480 = vrot.slane %v2452, %v2479
    %v2481 = vcombine.low %v2459, %v2473
    %v2482 = vcombine.high %v2459, %v2473
    %v2483 = vcombine.low %v2466, %v2480
    %v2484 = vcombine.high %v2466, %v2480
    %v2485 = vcombine.low %v1525, %v1527
    %v2486 = vcombine.high %v1525, %v1527
    %v2487 = vcombine.low %v1529, %v1531
    %v2488 = vcombine.high %v1529, %v1531
    %v2490 = vunpack.c.l.s4 1983009808
    %v2491 = vunpack.c.0.s8 %v2490
    %v2492 = vlaneseq
    %v2493 = vshrl.u32 %v2492, 7
    %v2494 = vsub.s32 %v2491, %v2493
    %v2495 = vrot.slane %v2485, %v2494
    %v2497 = vunpack.c.l.s4 1983009808
    %v2498 = vunpack.c.0.s8 %v2497
    %v2499 = vlaneseq
    %v2500 = vshrl.u32 %v2499, 7
    %v2501 = vsub.s32 %v2498, %v2500
    %v2502 = vrot.slane %v2486, %v2501
    %v2504 = vunpack.c.l.s4 1983009808
    %v2505 = vunpack.c.0.s8 %v2504
    %v2506 = vlaneseq
    %v2507 = vshrl.u32 %v2506, 7
    %v2508 = vsub.s32 %v2505, %v2507
    %v2509 = vrot.slane %v2487, %v2508
    %v2511 = vunpack.c.l.s4 1983009808
    %v2512 = vunpack.c.0.s8 %v2511
    %v2513 = vlaneseq
    %v2514 = vshrl.u32 %v2513, 7
    %v2515 = vsub.s32 %v2512, %v2514
    %v2516 = vrot.slane %v2488, %v2515
    %v2517 = vcombine.low %v2495, %v2509
    %v2518 = vcombine.high %v2495, %v2509
    %v2519 = vcombine.low %v2502, %v2516
    %v2520 = vcombine.high %v2502, %v2516
    %v2521 = vcombine.low %v1526, %v1528
    %v2522 = vcombine.high %v1526, %v1528
    %v2523 = vcombine.low %v1530, %v1532
    %v2524 = vcombine.high %v1530, %v1532
    %v2526 = vunpack.c.l.s4 1983009808
    %v2527 = vunpack.c.0.s8 %v2526
    %v2528 = vlaneseq
    %v2529 = vshrl.u32 %v2528, 7
    %v2530 = vsub.s32 %v2527, %v2529
    %v2531 = vrot.slane %v2521, %v2530
    %v2533 = vunpack.c.l.s4 1983009808
    %v2534 = vunpack.c.0.s8 %v2533
    %v2535 = vlaneseq
    %v2536 = vshrl.u32 %v2535, 7
    %v2537 = vsub.s32 %v2534, %v2536
    %v2538 = vrot.slane %v2522, %v2537
    %v2540 = vunpack.c.l.s4 1983009808
    %v2541 = vunpack.c.0.s8 %v2540
    %v2542 = vlaneseq
    %v2543 = vshrl.u32 %v2542, 7
    %v2544 = vsub.s32 %v2541, %v2543
    %v2545 = vrot.slane %v2523, %v2544
    %v2547 = vunpack.c.l.s4 1983009808
    %v2548 = vunpack.c.0.s8 %v2547
    %v2549 = vlaneseq
    %v2550 = vshrl.u32 %v2549, 7
    %v2551 = vsub.s32 %v2548, %v2550
    %v2552 = vrot.slane %v2524, %v2551
    %v2553 = vcombine.low %v2531, %v2545
    %v2554 = vcombine.high %v2531, %v2545
    %v2555 = vcombine.low %v2538, %v2552
    %v2556 = vcombine.high %v2538, %v2552
    %v2557 = vcombine.low %v1533, %v1535
    %v2558 = vcombine.high %v1533, %v1535
    %v2559 = vcombine.low %v1537, %v1539
    %v2560 = vcombine.high %v1537, %v1539
    %v2562 = vunpack.c.l.s4 1983009808
    %v2563 = vunpack.c.0.s8 %v2562
    %v2564 = vlaneseq
    %v2565 = vshrl.u32 %v2564, 7
    %v2566 = vsub.s32 %v2563, %v2565
    %v2567 = vrot.slane %v2557, %v2566
    %v2569 = vunpack.c.l.s4 1983009808
    %v2570 = vunpack.c.0.s8 %v2569
    %v2571 = vlaneseq
    %v2572 = vshrl.u32 %v2571, 7
    %v2573 = vsub.s32 %v2570, %v2572
    %v2574 = vrot.slane %v2558, %v2573
    %v2576 = vunpack.c.l.s4 1983009808
    %v2577 = vunpack.c.0.s8 %v2576
    %v2578 = vlaneseq
    %v2579 = vshrl.u32 %v2578, 7
    %v2580 = vsub.s32 %v2577, %v2579
    %v2581 = vrot.slane %v2559, %v2580
    %v2583 = vunpack.c.l.s4 1983009808
    %v2584 = vunpack.c.0.s8 %v2583
    %v2585 = vlaneseq
    %v2586 = vshrl.u32 %v2585, 7
    %v2587 = vsub.s32 %v2584, %v2586
    %v2588 = vrot.slane %v2560, %v2587
    %v2589 = vcombine.low %v2567, %v2581
    %v2590 = vcombine.high %v2567, %v2581
    %v2591 = vcombine.low %v2574, %v2588
    %v2592 = vcombine.high %v2574, %v2588
    %v2593 = vcombine.low %v1534, %v1536
    %v2594 = vcombine.high %v1534, %v1536
    %v2595 = vcombine.low %v1538, %v1540
    %v2596 = vcombine.high %v1538, %v1540
    %v2598 = vunpack.c.l.s4 1983009808
    %v2599 = vunpack.c.0.s8 %v2598
    %v2600 = vlaneseq
    %v2601 = vshrl.u32 %v2600, 7
    %v2602 = vsub.s32 %v2599, %v2601
    %v2603 = vrot.slane %v2593, %v2602
    %v2605 = vunpack.c.l.s4 1983009808
    %v2606 = vunpack.c.0.s8 %v2605
    %v2607 = vlaneseq
    %v2608 = vshrl.u32 %v2607, 7
    %v2609 = vsub.s32 %v2606, %v2608
    %v2610 = vrot.slane %v2594, %v2609
    %v2612 = vunpack.c.l.s4 1983009808
    %v2613 = vunpack.c.0.s8 %v2612
    %v2614 = vlaneseq
    %v2615 = vshrl.u32 %v2614, 7
    %v2616 = vsub.s32 %v2613, %v2615
    %v2617 = vrot.slane %v2595, %v2616
    %v2619 = vunpack.c.l.s4 1983009808
    %v2620 = vunpack.c.0.s8 %v2619
    %v2621 = vlaneseq
    %v2622 = vshrl.u32 %v2621, 7
    %v2623 = vsub.s32 %v2620, %v2622
    %v2624 = vrot.slane %v2596, %v2623
    %v2625 = vcombine.low %v2603, %v2617
    %v2626 = vcombine.high %v2603, %v2617
    %v2627 = vcombine.low %v2610, %v2624
    %v2628 = vcombine.high %v2610, %v2624
    %v2629 = vcombine.low %v1541, %v1543
    %v2630 = vcombine.high %v1541, %v1543
    %v2631 = vcombine.low %v1545, %v1547
    %v2632 = vcombine.high %v1545, %v1547
    %v2634 = vunpack.c.l.s4 1983009808
    %v2635 = vunpack.c.0.s8 %v2634
    %v2636 = vlaneseq
    %v2637 = vshrl.u32 %v2636, 7
    %v2638 = vsub.s32 %v2635, %v2637
    %v2639 = vrot.slane %v2629, %v2638
    %v2641 = vunpack.c.l.s4 1983009808
    %v2642 = vunpack.c.0.s8 %v2641
    %v2643 = vlaneseq
    %v2644 = vshrl.u32 %v2643, 7
    %v2645 = vsub.s32 %v2642, %v2644
    %v2646 = vrot.slane %v2630, %v2645
    %v2648 = vunpack.c.l.s4 1983009808
    %v2649 = vunpack.c.0.s8 %v2648
    %v2650 = vlaneseq
    %v2651 = vshrl.u32 %v2650, 7
    %v2652 = vsub.s32 %v2649, %v2651
    %v2653 = vrot.slane %v2631, %v2652
    %v2655 = vunpack.c.l.s4 1983009808
    %v2656 = vunpack.c.0.s8 %v2655
    %v2657 = vlaneseq
    %v2658 = vshrl.u32 %v2657, 7
    %v2659 = vsub.s32 %v2656, %v2658
    %v2660 = vrot.slane %v2632, %v2659
    %v2661 = vcombine.low %v2639, %v2653
    %v2662 = vcombine.high %v2639, %v2653
    %v2663 = vcombine.low %v2646, %v2660
    %v2664 = vcombine.high %v2646, %v2660
    %v2665 = vcombine.low %v1542, %v1544
    %v2666 = vcombine.high %v1542, %v1544
    %v2667 = vcombine.low %v1546, %v1548
    %v2668 = vcombine.high %v1546, %v1548
    %v2670 = vunpack.c.l.s4 1983009808
    %v2671 = vunpack.c.0.s8 %v2670
    %v2672 = vlaneseq
    %v2673 = vshrl.u32 %v2672, 7
    %v2674 = vsub.s32 %v2671, %v2673
    %v2675 = vrot.slane %v2665, %v2674
    %v2677 = vunpack.c.l.s4 1983009808
    %v2678 = vunpack.c.0.s8 %v2677
    %v2679 = vlaneseq
    %v2680 = vshrl.u32 %v2679, 7
    %v2681 = vsub.s32 %v2678, %v2680
    %v2682 = vrot.slane %v2666, %v2681
    %v2684 = vunpack.c.l.s4 1983009808
    %v2685 = vunpack.c.0.s8 %v2684
    %v2686 = vlaneseq
    %v2687 = vshrl.u32 %v2686, 7
    %v2688 = vsub.s32 %v2685, %v2687
    %v2689 = vrot.slane %v2667, %v2688
    %v2691 = vunpack.c.l.s4 1983009808
    %v2692 = vunpack.c.0.s8 %v2691
    %v2693 = vlaneseq
    %v2694 = vshrl.u32 %v2693, 7
    %v2695 = vsub.s32 %v2692, %v2694
    %v2696 = vrot.slane %v2668, %v2695
    %v2697 = vcombine.low %v2675, %v2689
    %v2698 = vcombine.high %v2675, %v2689
    %v2699 = vcombine.low %v2682, %v2696
    %v2700 = vcombine.high %v2682, %v2696
    %v2701 = vcombine.low %v1549, %v1551
    %v2702 = vcombine.high %v1549, %v1551
    %v2703 = vcombine.low %v1553, %v1555
    %v2704 = vcombine.high %v1553, %v1555
    %v2706 = vunpack.c.l.s4 1983009808
    %v2707 = vunpack.c.0.s8 %v2706
    %v2708 = vlaneseq
    %v2709 = vshrl.u32 %v2708, 7
    %v2710 = vsub.s32 %v2707, %v2709
    %v2711 = vrot.slane %v2701, %v2710
    %v2713 = vunpack.c.l.s4 1983009808
    %v2714 = vunpack.c.0.s8 %v2713
    %v2715 = vlaneseq
    %v2716 = vshrl.u32 %v2715, 7
    %v2717 = vsub.s32 %v2714, %v2716
    %v2718 = vrot.slane %v2702, %v2717
    %v2720 = vunpack.c.l.s4 1983009808
    %v2721 = vunpack.c.0.s8 %v2720
    %v2722 = vlaneseq
    %v2723 = vshrl.u32 %v2722, 7
    %v2724 = vsub.s32 %v2721, %v2723
    %v2725 = vrot.slane %v2703, %v2724
    %v2727 = vunpack.c.l.s4 1983009808
    %v2728 = vunpack.c.0.s8 %v2727
    %v2729 = vlaneseq
    %v2730 = vshrl.u32 %v2729, 7
    %v2731 = vsub.s32 %v2728, %v2730
    %v2732 = vrot.slane %v2704, %v2731
    %v2733 = vcombine.low %v2711, %v2725
    %v2734 = vcombine.high %v2711, %v2725
    %v2735 = vcombine.low %v2718, %v2732
    %v2736 = vcombine.high %v2718, %v2732
    %v2737 = vcombine.low %v1550, %v1552
    %v2738 = vcombine.high %v1550, %v1552
    %v2739 = vcombine.low %v1554, %v1556
    %v2740 = vcombine.high %v1554, %v1556
    %v2742 = vunpack.c.l.s4 1983009808
    %v2743 = vunpack.c.0.s8 %v2742
    %v2744 = vlaneseq
    %v2745 = vshrl.u32 %v2744, 7
    %v2746 = vsub.s32 %v2743, %v2745
    %v2747 = vrot.slane %v2737, %v2746
    %v2749 = vunpack.c.l.s4 1983009808
    %v2750 = vunpack.c.0.s8 %v2749
    %v2751 = vlaneseq
    %v2752 = vshrl.u32 %v2751, 7
    %v2753 = vsub.s32 %v2750, %v2752
    %v2754 = vrot.slane %v2738, %v2753
    %v2756 = vunpack.c.l.s4 1983009808
    %v2757 = vunpack.c.0.s8 %v2756
    %v2758 = vlaneseq
    %v2759 = vshrl.u32 %v2758, 7
    %v2760 = vsub.s32 %v2757, %v2759
    %v2761 = vrot.slane %v2739, %v2760
    %v2763 = vunpack.c.l.s4 1983009808
    %v2764 = vunpack.c.0.s8 %v2763
    %v2765 = vlaneseq
    %v2766 = vshrl.u32 %v2765, 7
    %v2767 = vsub.s32 %v2764, %v2766
    %v2768 = vrot.slane %v2740, %v2767
    %v2769 = vcombine.low %v2747, %v2761
    %v2770 = vcombine.high %v2747, %v2761
    %v2771 = vcombine.low %v2754, %v2768
    %v2772 = vcombine.high %v2754, %v2768
    %v2773 = vcombine.low %v1557, %v1559
    %v2774 = vcombine.high %v1557, %v1559
    %v2775 = vcombine.low %v1561, %v1563
    %v2776 = vcombine.high %v1561, %v1563
    %v2778 = vunpack.c.l.s4 1983009808
    %v2779 = vunpack.c.0.s8 %v2778
    %v2780 = vlaneseq
    %v2781 = vshrl.u32 %v2780, 7
    %v2782 = vsub.s32 %v2779, %v2781
    %v2783 = vrot.slane %v2773, %v2782
    %v2785 = vunpack.c.l.s4 1983009808
    %v2786 = vunpack.c.0.s8 %v2785
    %v2787 = vlaneseq
    %v2788 = vshrl.u32 %v2787, 7
    %v2789 = vsub.s32 %v2786, %v2788
    %v2790 = vrot.slane %v2774, %v2789
    %v2792 = vunpack.c.l.s4 1983009808
    %v2793 = vunpack.c.0.s8 %v2792
    %v2794 = vlaneseq
    %v2795 = vshrl.u32 %v2794, 7
    %v2796 = vsub.s32 %v2793, %v2795
    %v2797 = vrot.slane %v2775, %v2796
    %v2799 = vunpack.c.l.s4 1983009808
    %v2800 = vunpack.c.0.s8 %v2799
    %v2801 = vlaneseq
    %v2802 = vshrl.u32 %v2801, 7
    %v2803 = vsub.s32 %v2800, %v2802
    %v2804 = vrot.slane %v2776, %v2803
    %v2805 = vcombine.low %v2783, %v2797
    %v2806 = vcombine.high %v2783, %v2797
    %v2807 = vcombine.low %v2790, %v2804
    %v2808 = vcombine.high %v2790, %v2804
    %v2809 = vcombine.low %v1558, %v1560
    %v2810 = vcombine.high %v1558, %v1560
    %v2811 = vcombine.low %v1562, %v1564
    %v2812 = vcombine.high %v1562, %v1564
    %v2814 = vunpack.c.l.s4 1983009808
    %v2815 = vunpack.c.0.s8 %v2814
    %v2816 = vlaneseq
    %v2817 = vshrl.u32 %v2816, 7
    %v2818 = vsub.s32 %v2815, %v2817
    %v2819 = vrot.slane %v2809, %v2818
    %v2821 = vunpack.c.l.s4 1983009808
    %v2822 = vunpack.c.0.s8 %v2821
    %v2823 = vlaneseq
    %v2824 = vshrl.u32 %v2823, 7
    %v2825 = vsub.s32 %v2822, %v2824
    %v2826 = vrot.slane %v2810, %v2825
    %v2828 = vunpack.c.l.s4 1983009808
    %v2829 = vunpack.c.0.s8 %v2828
    %v2830 = vlaneseq
    %v2831 = vshrl.u32 %v2830, 7
    %v2832 = vsub.s32 %v2829, %v2831
    %v2833 = vrot.slane %v2811, %v2832
    %v2835 = vunpack.c.l.s4 1983009808
    %v2836 = vunpack.c.0.s8 %v2835
    %v2837 = vlaneseq
    %v2838 = vshrl.u32 %v2837, 7
    %v2839 = vsub.s32 %v2836, %v2838
    %v2840 = vrot.slane %v2812, %v2839
    %v2841 = vcombine.low %v2819, %v2833
    %v2842 = vcombine.high %v2819, %v2833
    %v2843 = vcombine.low %v2826, %v2840
    %v2844 = vcombine.high %v2826, %v2840
    %v2973 = vpack.c.bf16 %v1797, %v1725
    %v2974 = vpack.c.bf16 %v1798, %v1726
    %v2975 = vpack.c.bf16 %v1799, %v1727
    %v2976 = vpack.c.bf16 %v1800, %v1728
    %v2977 = vpack.c.bf16 %v1833, %v1761
    %v2978 = vpack.c.bf16 %v1834, %v1762
    %v2979 = vpack.c.bf16 %v1835, %v1763
    %v2980 = vpack.c.bf16 %v1836, %v1764
    %v2981 = vpack.c.bf16 %v1941, %v1869
    %v2982 = vpack.c.bf16 %v1942, %v1870
    %v2983 = vpack.c.bf16 %v1943, %v1871
    %v2984 = vpack.c.bf16 %v1944, %v1872
    %v2985 = vpack.c.bf16 %v1977, %v1905
    %v2986 = vpack.c.bf16 %v1978, %v1906
    %v2987 = vpack.c.bf16 %v1979, %v1907
    %v2988 = vpack.c.bf16 %v1980, %v1908
    %v2989 = vpack.c.bf16 %v2085, %v2013
    %v2990 = vpack.c.bf16 %v2086, %v2014
    %v2991 = vpack.c.bf16 %v2087, %v2015
    %v2992 = vpack.c.bf16 %v2088, %v2016
    %v2993 = vpack.c.bf16 %v2121, %v2049
    %v2994 = vpack.c.bf16 %v2122, %v2050
    %v2995 = vpack.c.bf16 %v2123, %v2051
    %v2996 = vpack.c.bf16 %v2124, %v2052
    %v2997 = vpack.c.bf16 %v2229, %v2157
    %v2998 = vpack.c.bf16 %v2230, %v2158
    %v2999 = vpack.c.bf16 %v2231, %v2159
    %v3000 = vpack.c.bf16 %v2232, %v2160
    %v3001 = vpack.c.bf16 %v2265, %v2193
    %v3002 = vpack.c.bf16 %v2266, %v2194
    %v3003 = vpack.c.bf16 %v2267, %v2195
    %v3004 = vpack.c.bf16 %v2268, %v2196
    %v3005 = vpack.c.bf16 %v2373, %v2301
    %v3006 = vpack.c.bf16 %v2374, %v2302
    %v3007 = vpack.c.bf16 %v2375, %v2303
    %v3008 = vpack.c.bf16 %v2376, %v2304
    %v3009 = vpack.c.bf16 %v2409, %v2337
    %v3010 = vpack.c.bf16 %v2410, %v2338
    %v3011 = vpack.c.bf16 %v2411, %v2339
    %v3012 = vpack.c.bf16 %v2412, %v2340
    %v3013 = vpack.c.bf16 %v2517, %v2445
    %v3014 = vpack.c.bf16 %v2518, %v2446
    %v3015 = vpack.c.bf16 %v2519, %v2447
    %v3016 = vpack.c.bf16 %v2520, %v2448
    %v3017 = vpack.c.bf16 %v2553, %v2481
    %v3018 = vpack.c.bf16 %v2554, %v2482
    %v3019 = vpack.c.bf16 %v2555, %v2483
    %v3020 = vpack.c.bf16 %v2556, %v2484
    %v3021 = vpack.c.bf16 %v2661, %v2589
    %v3022 = vpack.c.bf16 %v2662, %v2590
    %v3023 = vpack.c.bf16 %v2663, %v2591
    %v3024 = vpack.c.bf16 %v2664, %v2592
    %v3025 = vpack.c.bf16 %v2697, %v2625
    %v3026 = vpack.c.bf16 %v2698, %v2626
    %v3027 = vpack.c.bf16 %v2699, %v2627
    %v3028 = vpack.c.bf16 %v2700, %v2628
    %v3029 = vpack.c.bf16 %v2805, %v2733
    %v3030 = vpack.c.bf16 %v2806, %v2734
    %v3031 = vpack.c.bf16 %v2807, %v2735
    %v3032 = vpack.c.bf16 %v2808, %v2736
    %v3033 = vpack.c.bf16 %v2841, %v2769
    %v3034 = vpack.c.bf16 %v2842, %v2770
    %v3035 = vpack.c.bf16 %v2843, %v2771
    %v3036 = vpack.c.bf16 %v2844, %v2772
    %v3037 = vld [vmem:[#allocation8 + $0x180] sm:$0xf]
    %v3038 = vld [vmem:[#allocation8 + $0x184] sm:$0xf]
    %v3039 = vld [vmem:[#allocation8 + $0x188] sm:$0xf]
    %v3040 = vld [vmem:[#allocation8 + $0x18c] sm:$0xf]
    %v3041 = vld [vmem:[#allocation8 + $0x190] sm:$0xf]
    %v3042 = vld [vmem:[#allocation8 + $0x194] sm:$0xf]
    %v3043 = vld [vmem:[#allocation8 + $0x198] sm:$0xf]
    %v3044 = vld [vmem:[#allocation8 + $0x19c] sm:$0xf]
    %v3045 = vld [vmem:[#allocation8 + $0x1a0] sm:$0xf]
    %v3046 = vld [vmem:[#allocation8 + $0x1a4] sm:$0xf]
    %v3047 = vld [vmem:[#allocation8 + $0x1a8] sm:$0xf]
    %v3048 = vld [vmem:[#allocation8 + $0x1ac] sm:$0xf]
    %v3049 = vld [vmem:[#allocation8 + $0x1b0] sm:$0xf]
    %v3050 = vld [vmem:[#allocation8 + $0x1b4] sm:$0xf]
    %v3051 = vld [vmem:[#allocation8 + $0x1b8] sm:$0xf]
    %v3052 = vld [vmem:[#allocation8 + $0x1bc] sm:$0xf]
    %v3053 = vld [vmem:[#allocation8 + $0x1c0] sm:$0xf]
    %v3054 = vld [vmem:[#allocation8 + $0x1c4] sm:$0xf]
    %v3055 = vld [vmem:[#allocation8 + $0x1c8] sm:$0xf]
    %v3056 = vld [vmem:[#allocation8 + $0x1cc] sm:$0xf]
    %v3057 = vld [vmem:[#allocation8 + $0x1d0] sm:$0xf]
    %v3058 = vld [vmem:[#allocation8 + $0x1d4] sm:$0xf]
    %v3059 = vld [vmem:[#allocation8 + $0x1d8] sm:$0xf]
    %v3060 = vld [vmem:[#allocation8 + $0x1dc] sm:$0xf]
    %v3061 = vld [vmem:[#allocation8 + $0x1e0] sm:$0xf]
    %v3062 = vld [vmem:[#allocation8 + $0x1e4] sm:$0xf]
    %v3063 = vld [vmem:[#allocation8 + $0x1e8] sm:$0xf]
    %v3064 = vld [vmem:[#allocation8 + $0x1ec] sm:$0xf]
    %v3065 = vld [vmem:[#allocation8 + $0x1f0] sm:$0xf]
    %v3066 = vld [vmem:[#allocation8 + $0x1f4] sm:$0xf]
    %v3067 = vld [vmem:[#allocation8 + $0x1f8] sm:$0xf]
    %v3068 = vld [vmem:[#allocation8 + $0x1fc] sm:$0xf]
    %v3069 = vld [vmem:[#allocation8 + $0x200] sm:$0xf]
    %v3070 = vld [vmem:[#allocation8 + $0x204] sm:$0xf]
    %v3071 = vld [vmem:[#allocation8 + $0x208] sm:$0xf]
    %v3072 = vld [vmem:[#allocation8 + $0x20c] sm:$0xf]
    %v3073 = vld [vmem:[#allocation8 + $0x210] sm:$0xf]
    %v3074 = vld [vmem:[#allocation8 + $0x214] sm:$0xf]
    %v3075 = vld [vmem:[#allocation8 + $0x218] sm:$0xf]
    %v3076 = vld [vmem:[#allocation8 + $0x21c] sm:$0xf]
    %v3077 = vld [vmem:[#allocation8 + $0x220] sm:$0xf]
    %v3078 = vld [vmem:[#allocation8 + $0x224] sm:$0xf]
    %v3079 = vld [vmem:[#allocation8 + $0x228] sm:$0xf]
    %v3080 = vld [vmem:[#allocation8 + $0x22c] sm:$0xf]
    %v3081 = vld [vmem:[#allocation8 + $0x230] sm:$0xf]
    %v3082 = vld [vmem:[#allocation8 + $0x234] sm:$0xf]
    %v3083 = vld [vmem:[#allocation8 + $0x238] sm:$0xf]
    %v3084 = vld [vmem:[#allocation8 + $0x23c] sm:$0xf]
    %v3085 = vld [vmem:[#allocation8 + $0x240] sm:$0xf]
    %v3086 = vld [vmem:[#allocation8 + $0x244] sm:$0xf]
    %v3087 = vld [vmem:[#allocation8 + $0x248] sm:$0xf]
    %v3088 = vld [vmem:[#allocation8 + $0x24c] sm:$0xf]
    %v3089 = vld [vmem:[#allocation8 + $0x250] sm:$0xf]
    %v3090 = vld [vmem:[#allocation8 + $0x254] sm:$0xf]
    %v3091 = vld [vmem:[#allocation8 + $0x258] sm:$0xf]
    %v3092 = vld [vmem:[#allocation8 + $0x25c] sm:$0xf]
    %v3093 = vld [vmem:[#allocation8 + $0x260] sm:$0xf]
    %v3094 = vld [vmem:[#allocation8 + $0x264] sm:$0xf]
    %v3095 = vld [vmem:[#allocation8 + $0x268] sm:$0xf]
    %v3096 = vld [vmem:[#allocation8 + $0x26c] sm:$0xf]
    %v3097 = vld [vmem:[#allocation8 + $0x270] sm:$0xf]
    %v3098 = vld [vmem:[#allocation8 + $0x274] sm:$0xf]
    %v3099 = vld [vmem:[#allocation8 + $0x278] sm:$0xf]
    %v3100 = vld [vmem:[#allocation8 + $0x27c] sm:$0xf]
    %v3101 = vld [vmem:[#allocation8 + $0x280] sm:$0xf]
    %v3102 = vld [vmem:[#allocation8 + $0x284] sm:$0xf]
    %v3103 = vld [vmem:[#allocation8 + $0x288] sm:$0xf]
    %v3104 = vld [vmem:[#allocation8 + $0x28c] sm:$0xf]
    %v3105 = vld [vmem:[#allocation8 + $0x290] sm:$0xf]
    %v3106 = vld [vmem:[#allocation8 + $0x294] sm:$0xf]
    %v3107 = vld [vmem:[#allocation8 + $0x298] sm:$0xf]
    %v3108 = vld [vmem:[#allocation8 + $0x29c] sm:$0xf]
    %v3109 = vld [vmem:[#allocation8 + $0x2a0] sm:$0xf]
    %v3110 = vld [vmem:[#allocation8 + $0x2a4] sm:$0xf]
    %v3111 = vld [vmem:[#allocation8 + $0x2a8] sm:$0xf]
    %v3112 = vld [vmem:[#allocation8 + $0x2ac] sm:$0xf]
    %v3113 = vld [vmem:[#allocation8 + $0x2b0] sm:$0xf]
    %v3114 = vld [vmem:[#allocation8 + $0x2b4] sm:$0xf]
    %v3115 = vld [vmem:[#allocation8 + $0x2b8] sm:$0xf]
    %v3116 = vld [vmem:[#allocation8 + $0x2bc] sm:$0xf]
    %v3117 = vld [vmem:[#allocation8 + $0x2c0] sm:$0xf]
    %v3118 = vld [vmem:[#allocation8 + $0x2c4] sm:$0xf]
    %v3119 = vld [vmem:[#allocation8 + $0x2c8] sm:$0xf]
    %v3120 = vld [vmem:[#allocation8 + $0x2cc] sm:$0xf]
    %v3121 = vld [vmem:[#allocation8 + $0x2d0] sm:$0xf]
    %v3122 = vld [vmem:[#allocation8 + $0x2d4] sm:$0xf]
    %v3123 = vld [vmem:[#allocation8 + $0x2d8] sm:$0xf]
    %v3124 = vld [vmem:[#allocation8 + $0x2dc] sm:$0xf]
    %v3125 = vld [vmem:[#allocation8 + $0x2e0] sm:$0xf]
    %v3126 = vld [vmem:[#allocation8 + $0x2e4] sm:$0xf]
    %v3127 = vld [vmem:[#allocation8 + $0x2e8] sm:$0xf]
    %v3128 = vld [vmem:[#allocation8 + $0x2ec] sm:$0xf]
    %v3129 = vld [vmem:[#allocation8 + $0x2f0] sm:$0xf]
    %v3130 = vld [vmem:[#allocation8 + $0x2f4] sm:$0xf]
    %v3131 = vld [vmem:[#allocation8 + $0x2f8] sm:$0xf]
    %v3132 = vld [vmem:[#allocation8 + $0x2fc] sm:$0xf]
    %v3133 = vld [vmem:[#allocation8 + $0x300] sm:$0xf]
    %v3134 = vld [vmem:[#allocation8 + $0x304] sm:$0xf]
    %v3135 = vld [vmem:[#allocation8 + $0x308] sm:$0xf]
    %v3136 = vld [vmem:[#allocation8 + $0x30c] sm:$0xf]
    %v3137 = vld [vmem:[#allocation8 + $0x310] sm:$0xf]
    %v3138 = vld [vmem:[#allocation8 + $0x314] sm:$0xf]
    %v3139 = vld [vmem:[#allocation8 + $0x318] sm:$0xf]
    %v3140 = vld [vmem:[#allocation8 + $0x31c] sm:$0xf]
    %v3141 = vld [vmem:[#allocation8 + $0x320] sm:$0xf]
    %v3142 = vld [vmem:[#allocation8 + $0x324] sm:$0xf]
    %v3143 = vld [vmem:[#allocation8 + $0x328] sm:$0xf]
    %v3144 = vld [vmem:[#allocation8 + $0x32c] sm:$0xf]
    %v3145 = vld [vmem:[#allocation8 + $0x330] sm:$0xf]
    %v3146 = vld [vmem:[#allocation8 + $0x334] sm:$0xf]
    %v3147 = vld [vmem:[#allocation8 + $0x338] sm:$0xf]
    %v3148 = vld [vmem:[#allocation8 + $0x33c] sm:$0xf]
    %v3149 = vld [vmem:[#allocation8 + $0x340] sm:$0xf]
    %v3150 = vld [vmem:[#allocation8 + $0x344] sm:$0xf]
    %v3151 = vld [vmem:[#allocation8 + $0x348] sm:$0xf]
    %v3152 = vld [vmem:[#allocation8 + $0x34c] sm:$0xf]
    %v3153 = vld [vmem:[#allocation8 + $0x350] sm:$0xf]
    %v3154 = vld [vmem:[#allocation8 + $0x354] sm:$0xf]
    %v3155 = vld [vmem:[#allocation8 + $0x358] sm:$0xf]
    %v3156 = vld [vmem:[#allocation8 + $0x35c] sm:$0xf]
    %v3157 = vld [vmem:[#allocation8 + $0x360] sm:$0xf]
    %v3158 = vld [vmem:[#allocation8 + $0x364] sm:$0xf]
    %v3159 = vld [vmem:[#allocation8 + $0x368] sm:$0xf]
    %v3160 = vld [vmem:[#allocation8 + $0x36c] sm:$0xf]
    %v3161 = vld [vmem:[#allocation8 + $0x370] sm:$0xf]
    %v3162 = vld [vmem:[#allocation8 + $0x374] sm:$0xf]
    %v3163 = vld [vmem:[#allocation8 + $0x378] sm:$0xf]
    %v3164 = vld [vmem:[#allocation8 + $0x37c] sm:$0xf]
    %v3293 = vunpack.c.l.b16 %v3037
    %v3294 = vunpack.c.l.b16 %v3038
    %v3295 = vunpack.c.l.b16 %v3039
    %v3296 = vunpack.c.l.b16 %v3040
    %v3297 = vunpack.c.l.b16 %v3041
    %v3298 = vunpack.c.l.b16 %v3042
    %v3299 = vunpack.c.l.b16 %v3043
    %v3300 = vunpack.c.l.b16 %v3044
    %v3301 = vunpack.c.l.b16 %v3045
    %v3302 = vunpack.c.l.b16 %v3046
    %v3303 = vunpack.c.l.b16 %v3047
    %v3304 = vunpack.c.l.b16 %v3048
    %v3305 = vunpack.c.l.b16 %v3049
    %v3306 = vunpack.c.l.b16 %v3050
    %v3307 = vunpack.c.l.b16 %v3051
    %v3308 = vunpack.c.l.b16 %v3052
    %v3309 = vunpack.c.l.b16 %v3053
    %v3310 = vunpack.c.l.b16 %v3054
    %v3311 = vunpack.c.l.b16 %v3055
    %v3312 = vunpack.c.l.b16 %v3056
    %v3313 = vunpack.c.l.b16 %v3057
    %v3314 = vunpack.c.l.b16 %v3058
    %v3315 = vunpack.c.l.b16 %v3059
    %v3316 = vunpack.c.l.b16 %v3060
    %v3317 = vunpack.c.l.b16 %v3061
    %v3318 = vunpack.c.l.b16 %v3062
    %v3319 = vunpack.c.l.b16 %v3063
    %v3320 = vunpack.c.l.b16 %v3064
    %v3321 = vunpack.c.l.b16 %v3065
    %v3322 = vunpack.c.l.b16 %v3066
    %v3323 = vunpack.c.l.b16 %v3067
    %v3324 = vunpack.c.l.b16 %v3068
    %v3325 = vunpack.c.l.b16 %v3069
    %v3326 = vunpack.c.l.b16 %v3070
    %v3327 = vunpack.c.l.b16 %v3071
    %v3328 = vunpack.c.l.b16 %v3072
    %v3329 = vunpack.c.l.b16 %v3073
    %v3330 = vunpack.c.l.b16 %v3074
    %v3331 = vunpack.c.l.b16 %v3075
    %v3332 = vunpack.c.l.b16 %v3076
    %v3333 = vunpack.c.l.b16 %v3077
    %v3334 = vunpack.c.l.b16 %v3078
    %v3335 = vunpack.c.l.b16 %v3079
    %v3336 = vunpack.c.l.b16 %v3080
    %v3337 = vunpack.c.l.b16 %v3081
    %v3338 = vunpack.c.l.b16 %v3082
    %v3339 = vunpack.c.l.b16 %v3083
    %v3340 = vunpack.c.l.b16 %v3084
    %v3341 = vunpack.c.l.b16 %v3085
    %v3342 = vunpack.c.l.b16 %v3086
    %v3343 = vunpack.c.l.b16 %v3087
    %v3344 = vunpack.c.l.b16 %v3088
    %v3345 = vunpack.c.l.b16 %v3089
    %v3346 = vunpack.c.l.b16 %v3090
    %v3347 = vunpack.c.l.b16 %v3091
    %v3348 = vunpack.c.l.b16 %v3092
    %v3349 = vunpack.c.l.b16 %v3093
    %v3350 = vunpack.c.l.b16 %v3094
    %v3351 = vunpack.c.l.b16 %v3095
    %v3352 = vunpack.c.l.b16 %v3096
    %v3353 = vunpack.c.l.b16 %v3097
    %v3354 = vunpack.c.l.b16 %v3098
    %v3355 = vunpack.c.l.b16 %v3099
    %v3356 = vunpack.c.l.b16 %v3100
    %v3357 = vunpack.c.l.b16 %v3101
    %v3358 = vunpack.c.l.b16 %v3102
    %v3359 = vunpack.c.l.b16 %v3103
    %v3360 = vunpack.c.l.b16 %v3104
    %v3361 = vunpack.c.l.b16 %v3105
    %v3362 = vunpack.c.l.b16 %v3106
    %v3363 = vunpack.c.l.b16 %v3107
    %v3364 = vunpack.c.l.b16 %v3108
    %v3365 = vunpack.c.l.b16 %v3109
    %v3366 = vunpack.c.l.b16 %v3110
    %v3367 = vunpack.c.l.b16 %v3111
    %v3368 = vunpack.c.l.b16 %v3112
    %v3369 = vunpack.c.l.b16 %v3113
    %v3370 = vunpack.c.l.b16 %v3114
    %v3371 = vunpack.c.l.b16 %v3115
    %v3372 = vunpack.c.l.b16 %v3116
    %v3373 = vunpack.c.l.b16 %v3117
    %v3374 = vunpack.c.l.b16 %v3118
    %v3375 = vunpack.c.l.b16 %v3119
    %v3376 = vunpack.c.l.b16 %v3120
    %v3377 = vunpack.c.l.b16 %v3121
    %v3378 = vunpack.c.l.b16 %v3122
    %v3379 = vunpack.c.l.b16 %v3123
    %v3380 = vunpack.c.l.b16 %v3124
    %v3381 = vunpack.c.l.b16 %v3125
    %v3382 = vunpack.c.l.b16 %v3126
    %v3383 = vunpack.c.l.b16 %v3127
    %v3384 = vunpack.c.l.b16 %v3128
    %v3385 = vunpack.c.l.b16 %v3129
    %v3386 = vunpack.c.l.b16 %v3130
    %v3387 = vunpack.c.l.b16 %v3131
    %v3388 = vunpack.c.l.b16 %v3132
    %v3389 = vunpack.c.l.b16 %v3133
    %v3390 = vunpack.c.l.b16 %v3134
    %v3391 = vunpack.c.l.b16 %v3135
    %v3392 = vunpack.c.l.b16 %v3136
    %v3393 = vunpack.c.l.b16 %v3137
    %v3394 = vunpack.c.l.b16 %v3138
    %v3395 = vunpack.c.l.b16 %v3139
    %v3396 = vunpack.c.l.b16 %v3140
    %v3397 = vunpack.c.l.b16 %v3141
    %v3398 = vunpack.c.l.b16 %v3142
    %v3399 = vunpack.c.l.b16 %v3143
    %v3400 = vunpack.c.l.b16 %v3144
    %v3401 = vunpack.c.l.b16 %v3145
    %v3402 = vunpack.c.l.b16 %v3146
    %v3403 = vunpack.c.l.b16 %v3147
    %v3404 = vunpack.c.l.b16 %v3148
    %v3405 = vunpack.c.l.b16 %v3149
    %v3406 = vunpack.c.l.b16 %v3150
    %v3407 = vunpack.c.l.b16 %v3151
    %v3408 = vunpack.c.l.b16 %v3152
    %v3409 = vunpack.c.l.b16 %v3153
    %v3410 = vunpack.c.l.b16 %v3154
    %v3411 = vunpack.c.l.b16 %v3155
    %v3412 = vunpack.c.l.b16 %v3156
    %v3413 = vunpack.c.l.b16 %v3157
    %v3414 = vunpack.c.l.b16 %v3158
    %v3415 = vunpack.c.l.b16 %v3159
    %v3416 = vunpack.c.l.b16 %v3160
    %v3417 = vunpack.c.l.b16 %v3161
    %v3418 = vunpack.c.l.b16 %v3162
    %v3419 = vunpack.c.l.b16 %v3163
    %v3420 = vunpack.c.l.b16 %v3164
    %v3421 = vpack.c.b16 %v3294, %v3293
    %v3422 = vpack.c.b16 %v3296, %v3295
    %v3423 = vpack.c.b16 %v3298, %v3297
    %v3424 = vpack.c.b16 %v3300, %v3299
    %v3425 = vpack.c.b16 %v3302, %v3301
    %v3426 = vpack.c.b16 %v3304, %v3303
    %v3427 = vpack.c.b16 %v3306, %v3305
    %v3428 = vpack.c.b16 %v3308, %v3307
    %v3429 = vpack.c.b16 %v3310, %v3309
    %v3430 = vpack.c.b16 %v3312, %v3311
    %v3431 = vpack.c.b16 %v3314, %v3313
    %v3432 = vpack.c.b16 %v3316, %v3315
    %v3433 = vpack.c.b16 %v3318, %v3317
    %v3434 = vpack.c.b16 %v3320, %v3319
    %v3435 = vpack.c.b16 %v3322, %v3321
    %v3436 = vpack.c.b16 %v3324, %v3323
    %v3437 = vpack.c.b16 %v3326, %v3325
    %v3438 = vpack.c.b16 %v3328, %v3327
    %v3439 = vpack.c.b16 %v3330, %v3329
    %v3440 = vpack.c.b16 %v3332, %v3331
    %v3441 = vpack.c.b16 %v3334, %v3333
    %v3442 = vpack.c.b16 %v3336, %v3335
    %v3443 = vpack.c.b16 %v3338, %v3337
    %v3444 = vpack.c.b16 %v3340, %v3339
    %v3445 = vpack.c.b16 %v3342, %v3341
    %v3446 = vpack.c.b16 %v3344, %v3343
    %v3447 = vpack.c.b16 %v3346, %v3345
    %v3448 = vpack.c.b16 %v3348, %v3347
    %v3449 = vpack.c.b16 %v3350, %v3349
    %v3450 = vpack.c.b16 %v3352, %v3351
    %v3451 = vpack.c.b16 %v3354, %v3353
    %v3452 = vpack.c.b16 %v3356, %v3355
    %v3453 = vpack.c.b16 %v3358, %v3357
    %v3454 = vpack.c.b16 %v3360, %v3359
    %v3455 = vpack.c.b16 %v3362, %v3361
    %v3456 = vpack.c.b16 %v3364, %v3363
    %v3457 = vpack.c.b16 %v3366, %v3365
    %v3458 = vpack.c.b16 %v3368, %v3367
    %v3459 = vpack.c.b16 %v3370, %v3369
    %v3460 = vpack.c.b16 %v3372, %v3371
    %v3461 = vpack.c.b16 %v3374, %v3373
    %v3462 = vpack.c.b16 %v3376, %v3375
    %v3463 = vpack.c.b16 %v3378, %v3377
    %v3464 = vpack.c.b16 %v3380, %v3379
    %v3465 = vpack.c.b16 %v3382, %v3381
    %v3466 = vpack.c.b16 %v3384, %v3383
    %v3467 = vpack.c.b16 %v3386, %v3385
    %v3468 = vpack.c.b16 %v3388, %v3387
    %v3469 = vpack.c.b16 %v3390, %v3389
    %v3470 = vpack.c.b16 %v3392, %v3391
    %v3471 = vpack.c.b16 %v3394, %v3393
    %v3472 = vpack.c.b16 %v3396, %v3395
    %v3473 = vpack.c.b16 %v3398, %v3397
    %v3474 = vpack.c.b16 %v3400, %v3399
    %v3475 = vpack.c.b16 %v3402, %v3401
    %v3476 = vpack.c.b16 %v3404, %v3403
    %v3477 = vpack.c.b16 %v3406, %v3405
    %v3478 = vpack.c.b16 %v3408, %v3407
    %v3479 = vpack.c.b16 %v3410, %v3409
    %v3480 = vpack.c.b16 %v3412, %v3411
    %v3481 = vpack.c.b16 %v3414, %v3413
    %v3482 = vpack.c.b16 %v3416, %v3415
    %v3483 = vpack.c.b16 %v3418, %v3417
    %v3484 = vpack.c.b16 %v3420, %v3419
    %3549 = vmatprep.subr.bf16.mxu0 0
    %3550 = vmatpush1.bf16.msra.mxu0 %v3421
    %3551 = vmatprep.subr.bf16.mxu0 0
    %3552 = vmatpush1.bf16.msra.mxu0 %v3422
    %3553 = vmatprep.subr.bf16.mxu0 0
    %3554 = vmatpush1.bf16.msra.mxu0 %v3423
    %3555 = vmatprep.subr.bf16.mxu0 0
    %3556 = vmatpush1.bf16.msra.mxu0 %v3424
    %3557 = vmatprep.subr.bf16.mxu0 0
    %3558 = vmatpush1.bf16.msra.mxu0 %v3425
    %3559 = vmatprep.subr.bf16.mxu0 0
    %3560 = vmatpush1.bf16.msra.mxu0 %v3426
    %3561 = vmatprep.subr.bf16.mxu0 0
    %3562 = vmatpush1.bf16.msra.mxu0 %v3427
    %3563 = vmatprep.subr.bf16.mxu0 0
    %3564 = vmatpush1.bf16.msra.mxu0 %v3428
    %3565 = vmatprep.subr.bf16.mxu0 0
    %3566 = vmatpush1.bf16.msra.mxu0 %v3429
    %3567 = vmatprep.subr.bf16.mxu0 0
    %3568 = vmatpush1.bf16.msra.mxu0 %v3430
    %3569 = vmatprep.subr.bf16.mxu0 0
    %3570 = vmatpush1.bf16.msra.mxu0 %v3431
    %3571 = vmatprep.subr.bf16.mxu0 0
    %3572 = vmatpush1.bf16.msra.mxu0 %v3432
    %3573 = vmatprep.subr.bf16.mxu0 0
    %3574 = vmatpush1.bf16.msra.mxu0 %v3433
    %3575 = vmatprep.subr.bf16.mxu0 0
    %3576 = vmatpush1.bf16.msra.mxu0 %v3434
    %3577 = vmatprep.subr.bf16.mxu0 0
    %3578 = vmatpush1.bf16.msra.mxu0 %v3435
    %3579 = vmatprep.subr.bf16.mxu0 0
    %3580 = vmatpush1.bf16.msra.mxu0 %v3436
    %3581 = vmatprep.mubr.bf16.mxu0 %v2974
    %3582 = vmatmul.mubr.bf16.gmra.mrb[0].mxu0 %v2973
    %v3583 = vpop.f32.mrb[0].mxu0
    %v3584 = vadd.f32 0.0, %v3583
    %v3585 = vpop.f32.mrb[0].mxu0
    %v3586 = vpop.f32.mrb[0].mxu0
    %v3587 = vadd.f32 0.0, %v3586
    %v3588 = vpop.f32.mrb[0].mxu0
    %3589 = vmatprep.mubr.bf16.mxu0 %v2982
    %3590 = vmatmul.mubr.bf16.gmra.mrb[0].mxu0 %v2981
    %v3591 = vpop.f32.mrb[0].mxu0
    %v3592 = vadd.f32 0.0, %v3591
    %v3593 = vpop.f32.mrb[0].mxu0
    %v3594 = vpop.f32.mrb[0].mxu0
    %v3595 = vadd.f32 0.0, %v3594
    %v3596 = vpop.f32.mrb[0].mxu0
    %3597 = vmatprep.mubr.bf16.mxu0 %v2990
    %3598 = vmatmul.mubr.bf16.gmra.mrb[0].mxu0 %v2989
    %v3599 = vpop.f32.mrb[0].mxu0
    %v3600 = vadd.f32 0.0, %v3599
    %v3601 = vpop.f32.mrb[0].mxu0
    %v3602 = vpop.f32.mrb[0].mxu0
    %v3603 = vadd.f32 0.0, %v3602
    %v3604 = vpop.f32.mrb[0].mxu0
    %3605 = vmatprep.mubr.bf16.mxu0 %v2998
    %3606 = vmatmul.mubr.bf16.gmra.mrb[0].mxu0 %v2997
    %v3607 = vpop.f32.mrb[0].mxu0
    %v3608 = vadd.f32 0.0, %v3607
    %v3609 = vpop.f32.mrb[0].mxu0
    %v3610 = vpop.f32.mrb[0].mxu0
    %v3611 = vadd.f32 0.0, %v3610
    %v3612 = vpop.f32.mrb[0].mxu0
    %3613 = vmatprep.mubr.bf16.mxu0 %v3006
    %3614 = vmatmul.mubr.bf16.gmra.mrb[0].mxu0 %v3005
    %v3615 = vpop.f32.mrb[0].mxu0
    %v3616 = vadd.f32 0.0, %v3615
    %v3617 = vpop.f32.mrb[0].mxu0
    %v3618 = vpop.f32.mrb[0].mxu0
    %v3619 = vadd.f32 0.0, %v3618
    %v3620 = vpop.f32.mrb[0].mxu0
    %3621 = vmatprep.mubr.bf16.mxu0 %v3014
    %3622 = vmatmul.mubr.bf16.gmra.mrb[0].mxu0 %v3013
    %v3623 = vpop.f32.mrb[0].mxu0
    %v3624 = vadd.f32 0.0, %v3623
    %v3625 = vpop.f32.mrb[0].mxu0
    %v3626 = vpop.f32.mrb[0].mxu0
    %v3627 = vadd.f32 0.0, %v3626
    %v3628 = vpop.f32.mrb[0].mxu0
    %3629 = vmatprep.mubr.bf16.mxu0 %v3022
    %3630 = vmatmul.mubr.bf16.gmra.mrb[0].mxu0 %v3021
    %v3631 = vpop.f32.mrb[0].mxu0
    %v3632 = vadd.f32 0.0, %v3631
    %v3633 = vpop.f32.mrb[0].mxu0
    %v3634 = vpop.f32.mrb[0].mxu0
    %v3635 = vadd.f32 0.0, %v3634
    %v3636 = vpop.f32.mrb[0].mxu0
    %3637 = vmatprep.mubr.bf16.mxu0 %v3030
    %3638 = vmatmul.mubr.bf16.gmra.mrb[0].mxu0 %v3029
    %v3639 = vpop.f32.mrb[0].mxu0
    %v3640 = vadd.f32 0.0, %v3639
    %v3641 = vpop.f32.mrb[0].mxu0
    %v3642 = vpop.f32.mrb[0].mxu0
    %v3643 = vadd.f32 0.0, %v3642
    %v3644 = vpop.f32.mrb[0].mxu0
    %3645 = vdwg.mxu0
    %3646 = vmatprep.subr.bf16.mxu0 0
    %3647 = vmatpush1.bf16.msra.mxu0 %v3437
    %3648 = vmatprep.subr.bf16.mxu0 0
    %3649 = vmatpush1.bf16.msra.mxu0 %v3438
    %3650 = vmatprep.subr.bf16.mxu0 0
    %3651 = vmatpush1.bf16.msra.mxu0 %v3439
    %3652 = vmatprep.subr.bf16.mxu0 0
    %3653 = vmatpush1.bf16.msra.mxu0 %v3440
    %3654 = vmatprep.subr.bf16.mxu0 0
    %3655 = vmatpush1.bf16.msra.mxu0 %v3441
    %3656 = vmatprep.subr.bf16.mxu0 0
    %3657 = vmatpush1.bf16.msra.mxu0 %v3442
    %3658 = vmatprep.subr.bf16.mxu0 0
    %3659 = vmatpush1.bf16.msra.mxu0 %v3443
    %3660 = vmatprep.subr.bf16.mxu0 0
    %3661 = vmatpush1.bf16.msra.mxu0 %v3444
    %3662 = vmatprep.subr.bf16.mxu0 0
    %3663 = vmatpush1.bf16.msra.mxu0 %v3445
    %3664 = vmatprep.subr.bf16.mxu0 0
    %3665 = vmatpush1.bf16.msra.mxu0 %v3446
    %3666 = vmatprep.subr.bf16.mxu0 0
    %3667 = vmatpush1.bf16.msra.mxu0 %v3447
    %3668 = vmatprep.subr.bf16.mxu0 0
    %3669 = vmatpush1.bf16.msra.mxu0 %v3448
    %3670 = vmatprep.subr.bf16.mxu0 0
    %3671 = vmatpush1.bf16.msra.mxu0 %v3449
    %3672 = vmatprep.subr.bf16.mxu0 0
    %3673 = vmatpush1.bf16.msra.mxu0 %v3450
    %3674 = vmatprep.subr.bf16.mxu0 0
    %3675 = vmatpush1.bf16.msra.mxu0 %v3451
    %3676 = vmatprep.subr.bf16.mxu0 0
    %3677 = vmatpush1.bf16.msra.mxu0 %v3452
    %3678 = vmatprep.mubr.bf16.mxu0 %v2976
    %3679 = vmatmul.mubr.bf16.gmra.mrb[0].mxu0 %v2975
    %v3680 = vpop.f32.mrb[0].mxu0
    %v3681 = vadd.f32 %v3584, %v3680
    %v3682 = vpop.f32.mrb[0].mxu0
    %v3683 = vpop.f32.mrb[0].mxu0
    %v3684 = vadd.f32 %v3587, %v3683
    %v3685 = vpop.f32.mrb[0].mxu0
    %3686 = vmatprep.mubr.bf16.mxu0 %v2984
    %3687 = vmatmul.mubr.bf16.gmra.mrb[0].mxu0 %v2983
    %v3688 = vpop.f32.mrb[0].mxu0
    %v3689 = vadd.f32 %v3592, %v3688
    %v3690 = vpop.f32.mrb[0].mxu0
    %v3691 = vpop.f32.mrb[0].mxu0
    %v3692 = vadd.f32 %v3595, %v3691
    %v3693 = vpop.f32.mrb[0].mxu0
    %3694 = vmatprep.mubr.bf16.mxu0 %v2992
    %3695 = vmatmul.mubr.bf16.gmra.mrb[0].mxu0 %v2991
    %v3696 = vpop.f32.mrb[0].mxu0
    %v3697 = vadd.f32 %v3600, %v3696
    %v3698 = vpop.f32.mrb[0].mxu0
    %v3699 = vpop.f32.mrb[0].mxu0
    %v3700 = vadd.f32 %v3603, %v3699
    %v3701 = vpop.f32.mrb[0].mxu0
    %3702 = vmatprep.mubr.bf16.mxu0 %v3000
    %3703 = vmatmul.mubr.bf16.gmra.mrb[0].mxu0 %v2999
    %v3704 = vpop.f32.mrb[0].mxu0
    %v3705 = vadd.f32 %v3608, %v3704
    %v3706 = vpop.f32.mrb[0].mxu0
    %v3707 = vpop.f32.mrb[0].mxu0
    %v3708 = vadd.f32 %v3611, %v3707
    %v3709 = vpop.f32.mrb[0].mxu0
    %3710 = vmatprep.mubr.bf16.mxu0 %v3008
    %3711 = vmatmul.mubr.bf16.gmra.mrb[0].mxu0 %v3007
    %v3712 = vpop.f32.mrb[0].mxu0
    %v3713 = vadd.f32 %v3616, %v3712
    %v3714 = vpop.f32.mrb[0].mxu0
    %v3715 = vpop.f32.mrb[0].mxu0
    %v3716 = vadd.f32 %v3619, %v3715
    %v3717 = vpop.f32.mrb[0].mxu0
    %3718 = vmatprep.mubr.bf16.mxu0 %v3016
    %3719 = vmatmul.mubr.bf16.gmra.mrb[0].mxu0 %v3015
    %v3720 = vpop.f32.mrb[0].mxu0
    %v3721 = vadd.f32 %v3624, %v3720
    %v3722 = vpop.f32.mrb[0].mxu0
    %v3723 = vpop.f32.mrb[0].mxu0
    %v3724 = vadd.f32 %v3627, %v3723
    %v3725 = vpop.f32.mrb[0].mxu0
    %3726 = vmatprep.mubr.bf16.mxu0 %v3024
    %3727 = vmatmul.mubr.bf16.gmra.mrb[0].mxu0 %v3023
    %v3728 = vpop.f32.mrb[0].mxu0
    %v3729 = vadd.f32 %v3632, %v3728
    %v3730 = vpop.f32.mrb[0].mxu0
    %v3731 = vpop.f32.mrb[0].mxu0
    %v3732 = vadd.f32 %v3635, %v3731
    %v3733 = vpop.f32.mrb[0].mxu0
    %3734 = vmatprep.mubr.bf16.mxu0 %v3032
    %3735 = vmatmul.mubr.bf16.gmra.mrb[0].mxu0 %v3031
    %v3736 = vpop.f32.mrb[0].mxu0
    %v3737 = vadd.f32 %v3640, %v3736
    %v3738 = vpop.f32.mrb[0].mxu0
    %v3739 = vpop.f32.mrb[0].mxu0
    %v3740 = vadd.f32 %v3643, %v3739
    %v3741 = vpop.f32.mrb[0].mxu0
    %3742 = vdwg.mxu0
    %3743 = vmatprep.subr.bf16.mxu0 0
    %3744 = vmatpush1.bf16.msra.mxu0 %v3453
    %3745 = vmatprep.subr.bf16.mxu0 0
    %3746 = vmatpush1.bf16.msra.mxu0 %v3454
    %3747 = vmatprep.subr.bf16.mxu0 0
    %3748 = vmatpush1.bf16.msra.mxu0 %v3455
    %3749 = vmatprep.subr.bf16.mxu0 0
    %3750 = vmatpush1.bf16.msra.mxu0 %v3456
    %3751 = vmatprep.subr.bf16.mxu0 0
    %3752 = vmatpush1.bf16.msra.mxu0 %v3457
    %3753 = vmatprep.subr.bf16.mxu0 0
    %3754 = vmatpush1.bf16.msra.mxu0 %v3458
    %3755 = vmatprep.subr.bf16.mxu0 0
    %3756 = vmatpush1.bf16.msra.mxu0 %v3459
    %3757 = vmatprep.subr.bf16.mxu0 0
    %3758 = vmatpush1.bf16.msra.mxu0 %v3460
    %3759 = vmatprep.subr.bf16.mxu0 0
    %3760 = vmatpush1.bf16.msra.mxu0 %v3461
    %3761 = vmatprep.subr.bf16.mxu0 0
    %3762 = vmatpush1.bf16.msra.mxu0 %v3462
    %3763 = vmatprep.subr.bf16.mxu0 0
    %3764 = vmatpush1.bf16.msra.mxu0 %v3463
    %3765 = vmatprep.subr.bf16.mxu0 0
    %3766 = vmatpush1.bf16.msra.mxu0 %v3464
    %3767 = vmatprep.subr.bf16.mxu0 0
    %3768 = vmatpush1.bf16.msra.mxu0 %v3465
    %3769 = vmatprep.subr.bf16.mxu0 0
    %3770 = vmatpush1.bf16.msra.mxu0 %v3466
    %3771 = vmatprep.subr.bf16.mxu0 0
    %3772 = vmatpush1.bf16.msra.mxu0 %v3467
    %3773 = vmatprep.subr.bf16.mxu0 0
    %3774 = vmatpush1.bf16.msra.mxu0 %v3468
    %3775 = vmatprep.mubr.bf16.mxu0 %v2978
    %3776 = vmatmul.mubr.bf16.gmra.mrb[0].mxu0 %v2977
    %v3777 = vpop.f32.mrb[0].mxu0
    %v3778 = vadd.f32 %v3681, %v3777
    %v3779 = vpop.f32.mrb[0].mxu0
    %v3780 = vpop.f32.mrb[0].mxu0
    %v3781 = vadd.f32 %v3684, %v3780
    %v3782 = vpop.f32.mrb[0].mxu0
    %3783 = vmatprep.mubr.bf16.mxu0 %v2986
    %3784 = vmatmul.mubr.bf16.gmra.mrb[0].mxu0 %v2985
    %v3785 = vpop.f32.mrb[0].mxu0
    %v3786 = vadd.f32 %v3689, %v3785
    %v3787 = vpop.f32.mrb[0].mxu0
    %v3788 = vpop.f32.mrb[0].mxu0
    %v3789 = vadd.f32 %v3692, %v3788
    %v3790 = vpop.f32.mrb[0].mxu0
    %3791 = vmatprep.mubr.bf16.mxu0 %v2994
    %3792 = vmatmul.mubr.bf16.gmra.mrb[0].mxu0 %v2993
    %v3793 = vpop.f32.mrb[0].mxu0
    %v3794 = vadd.f32 %v3697, %v3793
    %v3795 = vpop.f32.mrb[0].mxu0
    %v3796 = vpop.f32.mrb[0].mxu0
    %v3797 = vadd.f32 %v3700, %v3796
    %v3798 = vpop.f32.mrb[0].mxu0
    %3799 = vmatprep.mubr.bf16.mxu0 %v3002
    %3800 = vmatmul.mubr.bf16.gmra.mrb[0].mxu0 %v3001
    %v3801 = vpop.f32.mrb[0].mxu0
    %v3802 = vadd.f32 %v3705, %v3801
    %v3803 = vpop.f32.mrb[0].mxu0
    %v3804 = vpop.f32.mrb[0].mxu0
    %v3805 = vadd.f32 %v3708, %v3804
    %v3806 = vpop.f32.mrb[0].mxu0
    %3807 = vmatprep.mubr.bf16.mxu0 %v3010
    %3808 = vmatmul.mubr.bf16.gmra.mrb[0].mxu0 %v3009
    %v3809 = vpop.f32.mrb[0].mxu0
    %v3810 = vadd.f32 %v3713, %v3809
    %v3811 = vpop.f32.mrb[0].mxu0
    %v3812 = vpop.f32.mrb[0].mxu0
    %v3813 = vadd.f32 %v3716, %v3812
    %v3814 = vpop.f32.mrb[0].mxu0
    %3815 = vmatprep.mubr.bf16.mxu0 %v3018
    %3816 = vmatmul.mubr.bf16.gmra.mrb[0].mxu0 %v3017
    %v3817 = vpop.f32.mrb[0].mxu0
    %v3818 = vadd.f32 %v3721, %v3817
    %v3819 = vpop.f32.mrb[0].mxu0
    %v3820 = vpop.f32.mrb[0].mxu0
    %v3821 = vadd.f32 %v3724, %v3820
    %v3822 = vpop.f32.mrb[0].mxu0
    %3823 = vmatprep.mubr.bf16.mxu0 %v3026
    %3824 = vmatmul.mubr.bf16.gmra.mrb[0].mxu0 %v3025
    %v3825 = vpop.f32.mrb[0].mxu0
    %v3826 = vadd.f32 %v3729, %v3825
    %v3827 = vpop.f32.mrb[0].mxu0
    %v3828 = vpop.f32.mrb[0].mxu0
    %v3829 = vadd.f32 %v3732, %v3828
    %v3830 = vpop.f32.mrb[0].mxu0
    %3831 = vmatprep.mubr.bf16.mxu0 %v3034
    %3832 = vmatmul.mubr.bf16.gmra.mrb[0].mxu0 %v3033
    %v3833 = vpop.f32.mrb[0].mxu0
    %v3834 = vadd.f32 %v3737, %v3833
    %v3835 = vpop.f32.mrb[0].mxu0
    %v3836 = vpop.f32.mrb[0].mxu0
    %v3837 = vadd.f32 %v3740, %v3836
    %v3838 = vpop.f32.mrb[0].mxu0
    %3839 = vdwg.mxu0
    %3840 = vmatprep.subr.bf16.mxu0 0
    %3841 = vmatpush1.bf16.msra.mxu0 %v3469
    %3842 = vmatprep.subr.bf16.mxu0 0
    %3843 = vmatpush1.bf16.msra.mxu0 %v3470
    %3844 = vmatprep.subr.bf16.mxu0 0
    %3845 = vmatpush1.bf16.msra.mxu0 %v3471
    %3846 = vmatprep.subr.bf16.mxu0 0
    %3847 = vmatpush1.bf16.msra.mxu0 %v3472
    %3848 = vmatprep.subr.bf16.mxu0 0
    %3849 = vmatpush1.bf16.msra.mxu0 %v3473
    %3850 = vmatprep.subr.bf16.mxu0 0
    %3851 = vmatpush1.bf16.msra.mxu0 %v3474
    %3852 = vmatprep.subr.bf16.mxu0 0
    %3853 = vmatpush1.bf16.msra.mxu0 %v3475
    %3854 = vmatprep.subr.bf16.mxu0 0
    %3855 = vmatpush1.bf16.msra.mxu0 %v3476
    %3856 = vmatprep.subr.bf16.mxu0 0
    %3857 = vmatpush1.bf16.msra.mxu0 %v3477
    %3858 = vmatprep.subr.bf16.mxu0 0
    %3859 = vmatpush1.bf16.msra.mxu0 %v3478
    %3860 = vmatprep.subr.bf16.mxu0 0
    %3861 = vmatpush1.bf16.msra.mxu0 %v3479
    %3862 = vmatprep.subr.bf16.mxu0 0
    %3863 = vmatpush1.bf16.msra.mxu0 %v3480
    %3864 = vmatprep.subr.bf16.mxu0 0
    %3865 = vmatpush1.bf16.msra.mxu0 %v3481
    %3866 = vmatprep.subr.bf16.mxu0 0
    %3867 = vmatpush1.bf16.msra.mxu0 %v3482
    %3868 = vmatprep.subr.bf16.mxu0 0
    %3869 = vmatpush1.bf16.msra.mxu0 %v3483
    %3870 = vmatprep.subr.bf16.mxu0 0
    %3871 = vmatpush1.bf16.msra.mxu0 %v3484
    %3872 = vmatprep.mubr.bf16.mxu0 %v2980
    %3873 = vmatmul.mubr.bf16.gmra.mrb[0].mxu0 %v2979
    %v3874 = vpop.f32.mrb[0].mxu0
    %v3875 = vadd.f32 %v3778, %v3874
    %v3876 = vpop.f32.mrb[0].mxu0
    %v3877 = vpop.f32.mrb[0].mxu0
    %v3878 = vadd.f32 %v3781, %v3877
    %v3879 = vpop.f32.mrb[0].mxu0
    %3880 = vmatprep.mubr.bf16.mxu0 %v2988
    %3881 = vmatmul.mubr.bf16.gmra.mrb[0].mxu0 %v2987
    %v3882 = vpop.f32.mrb[0].mxu0
    %v3883 = vadd.f32 %v3786, %v3882
    %v3884 = vpop.f32.mrb[0].mxu0
    %v3885 = vpop.f32.mrb[0].mxu0
    %v3886 = vadd.f32 %v3789, %v3885
    %v3887 = vpop.f32.mrb[0].mxu0
    %3888 = vmatprep.mubr.bf16.mxu0 %v2996
    %3889 = vmatmul.mubr.bf16.gmra.mrb[0].mxu0 %v2995
    %v3890 = vpop.f32.mrb[0].mxu0
    %v3891 = vadd.f32 %v3794, %v3890
    %v3892 = vpop.f32.mrb[0].mxu0
    %v3893 = vpop.f32.mrb[0].mxu0
    %v3894 = vadd.f32 %v3797, %v3893
    %v3895 = vpop.f32.mrb[0].mxu0
    %3896 = vmatprep.mubr.bf16.mxu0 %v3004
    %3897 = vmatmul.mubr.bf16.gmra.mrb[0].mxu0 %v3003
    %v3898 = vpop.f32.mrb[0].mxu0
    %v3899 = vadd.f32 %v3802, %v3898
    %v3900 = vpop.f32.mrb[0].mxu0
    %v3901 = vpop.f32.mrb[0].mxu0
    %v3902 = vadd.f32 %v3805, %v3901
    %v3903 = vpop.f32.mrb[0].mxu0
    %3904 = vmatprep.mubr.bf16.mxu0 %v3012
    %3905 = vmatmul.mubr.bf16.gmra.mrb[0].mxu0 %v3011
    %v3906 = vpop.f32.mrb[0].mxu0
    %v3907 = vadd.f32 %v3810, %v3906
    %v3908 = vpop.f32.mrb[0].mxu0
    %v3909 = vpop.f32.mrb[0].mxu0
    %v3910 = vadd.f32 %v3813, %v3909
    %v3911 = vpop.f32.mrb[0].mxu0
    %3912 = vmatprep.mubr.bf16.mxu0 %v3020
    %3913 = vmatmul.mubr.bf16.gmra.mrb[0].mxu0 %v3019
    %v3914 = vpop.f32.mrb[0].mxu0
    %v3915 = vadd.f32 %v3818, %v3914
    %v3916 = vpop.f32.mrb[0].mxu0
    %v3917 = vpop.f32.mrb[0].mxu0
    %v3918 = vadd.f32 %v3821, %v3917
    %v3919 = vpop.f32.mrb[0].mxu0
    %3920 = vmatprep.mubr.bf16.mxu0 %v3028
    %3921 = vmatmul.mubr.bf16.gmra.mrb[0].mxu0 %v3027
    %v3922 = vpop.f32.mrb[0].mxu0
    %v3923 = vadd.f32 %v3826, %v3922
    %v3924 = vpop.f32.mrb[0].mxu0
    %v3925 = vpop.f32.mrb[0].mxu0
    %v3926 = vadd.f32 %v3829, %v3925
    %v3927 = vpop.f32.mrb[0].mxu0
    %3928 = vmatprep.mubr.bf16.mxu0 %v3036
    %3929 = vmatmul.mubr.bf16.gmra.mrb[0].mxu0 %v3035
    %v3930 = vpop.f32.mrb[0].mxu0
    %v3931 = vadd.f32 %v3834, %v3930
    %v3932 = vpop.f32.mrb[0].mxu0
    %v3933 = vpop.f32.mrb[0].mxu0
    %v3934 = vadd.f32 %v3837, %v3933
    %v3935 = vpop.f32.mrb[0].mxu0
    %3936 = vdwg.mxu0
    %v4033 = vunpack.c.l.b16 %v1341
    %v4034 = vunpack.c.l.b16 %v1342
    %v4035 = vunpack.c.l.b16 %v1343
    %v4036 = vunpack.c.l.b16 %v1344
    %v4037 = vunpack.c.l.b16 %v1345
    %v4038 = vunpack.c.l.b16 %v1346
    %v4039 = vunpack.c.l.b16 %v1347
    %v4040 = vunpack.c.l.b16 %v1348
    %v4041 = vunpack.c.l.b16 %v1349
    %v4042 = vunpack.c.l.b16 %v1350
    %v4043 = vunpack.c.l.b16 %v1351
    %v4044 = vunpack.c.l.b16 %v1352
    %v4045 = vunpack.c.l.b16 %v1353
    %v4046 = vunpack.c.l.b16 %v1354
    %v4047 = vunpack.c.l.b16 %v1355
    %v4048 = vunpack.c.l.b16 %v1356
    %v4049 = vunpack.c.l.b16 %v1357
    %v4050 = vunpack.c.l.b16 %v1358
    %v4051 = vunpack.c.l.b16 %v1359
    %v4052 = vunpack.c.l.b16 %v1360
    %v4053 = vunpack.c.l.b16 %v1361
    %v4054 = vunpack.c.l.b16 %v1362
    %v4055 = vunpack.c.l.b16 %v1363
    %v4056 = vunpack.c.l.b16 %v1364
    %v4057 = vunpack.c.l.b16 %v1365
    %v4058 = vunpack.c.l.b16 %v1366
    %v4059 = vunpack.c.l.b16 %v1367
    %v4060 = vunpack.c.l.b16 %v1368
    %v4061 = vunpack.c.l.b16 %v1369
    %v4062 = vunpack.c.l.b16 %v1370
    %v4063 = vunpack.c.l.b16 %v1371
    %v4064 = vunpack.c.l.b16 %v1372
    %v4065 = vunpack.c.l.b16 %v1373
    %v4066 = vunpack.c.l.b16 %v1374
    %v4067 = vunpack.c.l.b16 %v1375
    %v4068 = vunpack.c.l.b16 %v1376
    %v4069 = vunpack.c.l.b16 %v1377
    %v4070 = vunpack.c.l.b16 %v1378
    %v4071 = vunpack.c.l.b16 %v1379
    %v4072 = vunpack.c.l.b16 %v1380
    %v4073 = vunpack.c.l.b16 %v1381
    %v4074 = vunpack.c.l.b16 %v1382
    %v4075 = vunpack.c.l.b16 %v1383
    %v4076 = vunpack.c.l.b16 %v1384
    %v4077 = vunpack.c.l.b16 %v1385
    %v4078 = vunpack.c.l.b16 %v1386
    %v4079 = vunpack.c.l.b16 %v1387
    %v4080 = vunpack.c.l.b16 %v1388
    %v4081 = vunpack.c.l.b16 %v1389
    %v4082 = vunpack.c.l.b16 %v1390
    %v4083 = vunpack.c.l.b16 %v1391
    %v4084 = vunpack.c.l.b16 %v1392
    %v4085 = vunpack.c.l.b16 %v1393
    %v4086 = vunpack.c.l.b16 %v1394
    %v4087 = vunpack.c.l.b16 %v1395
    %v4088 = vunpack.c.l.b16 %v1396
    %v4089 = vunpack.c.l.b16 %v1397
    %v4090 = vunpack.c.l.b16 %v1398
    %v4091 = vunpack.c.l.b16 %v1399
    %v4092 = vunpack.c.l.b16 %v1400
    %v4093 = vunpack.c.l.b16 %v1401
    %v4094 = vunpack.c.l.b16 %v1402
    %v4095 = vunpack.c.l.b16 %v1403
    %v4096 = vunpack.c.l.b16 %v1404
    %v4097 = vunpack.c.l.b16 %v1405
    %v4098 = vunpack.c.l.b16 %v1406
    %v4099 = vunpack.c.l.b16 %v1407
    %v4100 = vunpack.c.l.b16 %v1408
    %v4101 = vunpack.c.l.b16 %v1409
    %v4102 = vunpack.c.l.b16 %v1410
    %v4103 = vunpack.c.l.b16 %v1411
    %v4104 = vunpack.c.l.b16 %v1412
    %v4105 = vunpack.c.l.b16 %v1413
    %v4106 = vunpack.c.l.b16 %v1414
    %v4107 = vunpack.c.l.b16 %v1415
    %v4108 = vunpack.c.l.b16 %v1416
    %v4109 = vunpack.c.l.b16 %v1417
    %v4110 = vunpack.c.l.b16 %v1418
    %v4111 = vunpack.c.l.b16 %v1419
    %v4112 = vunpack.c.l.b16 %v1420
    %v4113 = vunpack.c.l.b16 %v1421
    %v4114 = vunpack.c.l.b16 %v1422
    %v4115 = vunpack.c.l.b16 %v1423
    %v4116 = vunpack.c.l.b16 %v1424
    %v4117 = vunpack.c.l.b16 %v1425
    %v4118 = vunpack.c.l.b16 %v1426
    %v4119 = vunpack.c.l.b16 %v1427
    %v4120 = vunpack.c.l.b16 %v1428
    %v4121 = vunpack.c.l.b16 %v1429
    %v4122 = vunpack.c.l.b16 %v1430
    %v4123 = vunpack.c.l.b16 %v1431
    %v4124 = vunpack.c.l.b16 %v1432
    %v4125 = vunpack.c.l.b16 %v1433
    %v4126 = vunpack.c.l.b16 %v1434
    %v4127 = vunpack.c.l.b16 %v1435
    %v4128 = vunpack.c.l.b16 %v1436
    %v4129 = vpack.c.b16 %v4034, %v4033
    %v4130 = vpack.c.b16 %v4036, %v4035
    %v4131 = vpack.c.b16 %v4038, %v4037
    %v4132 = vpack.c.b16 %v4040, %v4039
    %v4133 = vpack.c.b16 %v4042, %v4041
    %v4134 = vpack.c.b16 %v4044, %v4043
    %v4135 = vpack.c.b16 %v4046, %v4045
    %v4136 = vpack.c.b16 %v4048, %v4047
    %v4137 = vpack.c.b16 %v4050, %v4049
    %v4138 = vpack.c.b16 %v4052, %v4051
    %v4139 = vpack.c.b16 %v4054, %v4053
    %v4140 = vpack.c.b16 %v4056, %v4055
    %v4141 = vpack.c.b16 %v4058, %v4057
    %v4142 = vpack.c.b16 %v4060, %v4059
    %v4143 = vpack.c.b16 %v4062, %v4061
    %v4144 = vpack.c.b16 %v4064, %v4063
    %v4145 = vpack.c.b16 %v4066, %v4065
    %v4146 = vpack.c.b16 %v4068, %v4067
    %v4147 = vpack.c.b16 %v4070, %v4069
    %v4148 = vpack.c.b16 %v4072, %v4071
    %v4149 = vpack.c.b16 %v4074, %v4073
    %v4150 = vpack.c.b16 %v4076, %v4075
    %v4151 = vpack.c.b16 %v4078, %v4077
    %v4152 = vpack.c.b16 %v4080, %v4079
    %v4153 = vpack.c.b16 %v4082, %v4081
    %v4154 = vpack.c.b16 %v4084, %v4083
    %v4155 = vpack.c.b16 %v4086, %v4085
    %v4156 = vpack.c.b16 %v4088, %v4087
    %v4157 = vpack.c.b16 %v4090, %v4089
    %v4158 = vpack.c.b16 %v4092, %v4091
    %v4159 = vpack.c.b16 %v4094, %v4093
    %v4160 = vpack.c.b16 %v4096, %v4095
    %v4161 = vpack.c.b16 %v4098, %v4097
    %v4162 = vpack.c.b16 %v4100, %v4099
    %v4163 = vpack.c.b16 %v4102, %v4101
    %v4164 = vpack.c.b16 %v4104, %v4103
    %v4165 = vpack.c.b16 %v4106, %v4105
    %v4166 = vpack.c.b16 %v4108, %v4107
    %v4167 = vpack.c.b16 %v4110, %v4109
    %v4168 = vpack.c.b16 %v4112, %v4111
    %v4169 = vpack.c.b16 %v4114, %v4113
    %v4170 = vpack.c.b16 %v4116, %v4115
    %v4171 = vpack.c.b16 %v4118, %v4117
    %v4172 = vpack.c.b16 %v4120, %v4119
    %v4173 = vpack.c.b16 %v4122, %v4121
    %v4174 = vpack.c.b16 %v4124, %v4123
    %v4175 = vpack.c.b16 %v4126, %v4125
    %v4176 = vpack.c.b16 %v4128, %v4127
    %4225 = vmatprep.subr.bf16.mxu0 0
    %4226 = vmatpush1.bf16.msra.mxu0 %v4129
    %4227 = vmatprep.subr.bf16.mxu0 0
    %4228 = vmatpush1.bf16.msra.mxu0 %v4130
    %4229 = vmatprep.subr.bf16.mxu0 0
    %4230 = vmatpush1.bf16.msra.mxu0 %v4131
    %4231 = vmatprep.subr.bf16.mxu0 0
    %4232 = vmatpush1.bf16.msra.mxu0 %v4132
    %4233 = vmatprep.subr.bf16.mxu0 0
    %4234 = vmatpush1.bf16.msra.mxu0 %v4133
    %4235 = vmatprep.subr.bf16.mxu0 0
    %4236 = vmatpush1.bf16.msra.mxu0 %v4134
    %4237 = vmatprep.subr.bf16.mxu0 0
    %4238 = vmatpush1.bf16.msra.mxu0 %v4135
    %4239 = vmatprep.subr.bf16.mxu0 0
    %4240 = vmatpush1.bf16.msra.mxu0 %v4136
    %4241 = vmatprep.subr.bf16.mxu0 0
    %4242 = vmatpush1.bf16.msra.mxu0 %v4137
    %4243 = vmatprep.subr.bf16.mxu0 0
    %4244 = vmatpush1.bf16.msra.mxu0 %v4138
    %4245 = vmatprep.subr.bf16.mxu0 0
    %4246 = vmatpush1.bf16.msra.mxu0 %v4139
    %4247 = vmatprep.subr.bf16.mxu0 0
    %4248 = vmatpush1.bf16.msra.mxu0 %v4140
    %4249 = vmatprep.subr.bf16.mxu0 0
    %4250 = vmatpush1.bf16.msra.mxu0 %v4141
    %4251 = vmatprep.subr.bf16.mxu0 0
    %4252 = vmatpush1.bf16.msra.mxu0 %v4142
    %4253 = vmatprep.subr.bf16.mxu0 0
    %4254 = vmatpush1.bf16.msra.mxu0 %v4143
    %4255 = vmatprep.subr.bf16.mxu0 0
    %4256 = vmatpush1.bf16.msra.mxu0 %v4144
    %4257 = vmatprep.mubr.bf16.mxu0 %v1294
    %4258 = vmatmul.mubr.bf16.gmra.mrb[0].mxu0 %v1293
    %v4259 = vpop.f32.mrb[0].mxu0
    %v4260 = vadd.f32 %v3875, %v4259
    %v4261 = vpop.f32.mrb[0].mxu0
    %v4262 = vpop.f32.mrb[0].mxu0
    %v4263 = vadd.f32 %v3878, %v4262
    %v4264 = vpop.f32.mrb[0].mxu0
    %4265 = vmatprep.mubr.bf16.mxu0 %v1300
    %4266 = vmatmul.mubr.bf16.gmra.mrb[0].mxu0 %v1299
    %v4267 = vpop.f32.mrb[0].mxu0
    %v4268 = vadd.f32 %v3883, %v4267
    %v4269 = vpop.f32.mrb[0].mxu0
    %v4270 = vpop.f32.mrb[0].mxu0
    %v4271 = vadd.f32 %v3886, %v4270
    %v4272 = vpop.f32.mrb[0].mxu0
    %4273 = vmatprep.mubr.bf16.mxu0 %v1306
    %4274 = vmatmul.mubr.bf16.gmra.mrb[0].mxu0 %v1305
    %v4275 = vpop.f32.mrb[0].mxu0
    %v4276 = vadd.f32 %v3891, %v4275
    %v4277 = vpop.f32.mrb[0].mxu0
    %v4278 = vpop.f32.mrb[0].mxu0
    %v4279 = vadd.f32 %v3894, %v4278
    %v4280 = vpop.f32.mrb[0].mxu0
    %4281 = vmatprep.mubr.bf16.mxu0 %v1312
    %4282 = vmatmul.mubr.bf16.gmra.mrb[0].mxu0 %v1311
    %v4283 = vpop.f32.mrb[0].mxu0
    %v4284 = vadd.f32 %v3899, %v4283
    %v4285 = vpop.f32.mrb[0].mxu0
    %v4286 = vpop.f32.mrb[0].mxu0
    %v4287 = vadd.f32 %v3902, %v4286
    %v4288 = vpop.f32.mrb[0].mxu0
    %4289 = vmatprep.mubr.bf16.mxu0 %v1318
    %4290 = vmatmul.mubr.bf16.gmra.mrb[0].mxu0 %v1317
    %v4291 = vpop.f32.mrb[0].mxu0
    %v4292 = vadd.f32 %v3907, %v4291
    %v4293 = vpop.f32.mrb[0].mxu0
    %v4294 = vpop.f32.mrb[0].mxu0
    %v4295 = vadd.f32 %v3910, %v4294
    %v4296 = vpop.f32.mrb[0].mxu0
    %4297 = vmatprep.mubr.bf16.mxu0 %v1324
    %4298 = vmatmul.mubr.bf16.gmra.mrb[0].mxu0 %v1323
    %v4299 = vpop.f32.mrb[0].mxu0
    %v4300 = vadd.f32 %v3915, %v4299
    %v4301 = vpop.f32.mrb[0].mxu0
    %v4302 = vpop.f32.mrb[0].mxu0
    %v4303 = vadd.f32 %v3918, %v4302
    %v4304 = vpop.f32.mrb[0].mxu0
    %4305 = vmatprep.mubr.bf16.mxu0 %v1330
    %4306 = vmatmul.mubr.bf16.gmra.mrb[0].mxu0 %v1329
    %v4307 = vpop.f32.mrb[0].mxu0
    %v4308 = vadd.f32 %v3923, %v4307
    %v4309 = vpop.f32.mrb[0].mxu0
    %v4310 = vpop.f32.mrb[0].mxu0
    %v4311 = vadd.f32 %v3926, %v4310
    %v4312 = vpop.f32.mrb[0].mxu0
    %4313 = vmatprep.mubr.bf16.mxu0 %v1336
    %4314 = vmatmul.mubr.bf16.gmra.mrb[0].mxu0 %v1335
    %v4315 = vpop.f32.mrb[0].mxu0
    %v4316 = vadd.f32 %v3931, %v4315
    %v4317 = vpop.f32.mrb[0].mxu0
    %v4318 = vpop.f32.mrb[0].mxu0
    %v4319 = vadd.f32 %v3934, %v4318
    %v4320 = vpop.f32.mrb[0].mxu0
    %4321 = vdwg.mxu0
    %4322 = vmatprep.subr.bf16.mxu0 0
    %4323 = vmatpush1.bf16.msra.mxu0 %v4145
    %4324 = vmatprep.subr.bf16.mxu0 0
    %4325 = vmatpush1.bf16.msra.mxu0 %v4146
    %4326 = vmatprep.subr.bf16.mxu0 0
    %4327 = vmatpush1.bf16.msra.mxu0 %v4147
    %4328 = vmatprep.subr.bf16.mxu0 0
    %4329 = vmatpush1.bf16.msra.mxu0 %v4148
    %4330 = vmatprep.subr.bf16.mxu0 0
    %4331 = vmatpush1.bf16.msra.mxu0 %v4149
    %4332 = vmatprep.subr.bf16.mxu0 0
    %4333 = vmatpush1.bf16.msra.mxu0 %v4150
    %4334 = vmatprep.subr.bf16.mxu0 0
    %4335 = vmatpush1.bf16.msra.mxu0 %v4151
    %4336 = vmatprep.subr.bf16.mxu0 0
    %4337 = vmatpush1.bf16.msra.mxu0 %v4152
    %4338 = vmatprep.subr.bf16.mxu0 0
    %4339 = vmatpush1.bf16.msra.mxu0 %v4153
    %4340 = vmatprep.subr.bf16.mxu0 0
    %4341 = vmatpush1.bf16.msra.mxu0 %v4154
    %4342 = vmatprep.subr.bf16.mxu0 0
    %4343 = vmatpush1.bf16.msra.mxu0 %v4155
    %4344 = vmatprep.subr.bf16.mxu0 0
    %4345 = vmatpush1.bf16.msra.mxu0 %v4156
    %4346 = vmatprep.subr.bf16.mxu0 0
    %4347 = vmatpush1.bf16.msra.mxu0 %v4157
    %4348 = vmatprep.subr.bf16.mxu0 0
    %4349 = vmatpush1.bf16.msra.mxu0 %v4158
    %4350 = vmatprep.subr.bf16.mxu0 0
    %4351 = vmatpush1.bf16.msra.mxu0 %v4159
    %4352 = vmatprep.subr.bf16.mxu0 0
    %4353 = vmatpush1.bf16.msra.mxu0 %v4160
    %4354 = vmatprep.mubr.bf16.mxu0 %v1296
    %4355 = vmatmul.mubr.bf16.gmra.mrb[0].mxu0 %v1295
    %v4356 = vpop.f32.mrb[0].mxu0
    %v4357 = vadd.f32 %v4260, %v4356
    %v4358 = vpop.f32.mrb[0].mxu0
    %v4359 = vpop.f32.mrb[0].mxu0
    %v4360 = vadd.f32 %v4263, %v4359
    %v4361 = vpop.f32.mrb[0].mxu0
    %4362 = vmatprep.mubr.bf16.mxu0 %v1302
    %4363 = vmatmul.mubr.bf16.gmra.mrb[0].mxu0 %v1301
    %v4364 = vpop.f32.mrb[0].mxu0
    %v4365 = vadd.f32 %v4268, %v4364
    %v4366 = vpop.f32.mrb[0].mxu0
    %v4367 = vpop.f32.mrb[0].mxu0
    %v4368 = vadd.f32 %v4271, %v4367
    %v4369 = vpop.f32.mrb[0].mxu0
    %4370 = vmatprep.mubr.bf16.mxu0 %v1308
    %4371 = vmatmul.mubr.bf16.gmra.mrb[0].mxu0 %v1307
    %v4372 = vpop.f32.mrb[0].mxu0
    %v4373 = vadd.f32 %v4276, %v4372
    %v4374 = vpop.f32.mrb[0].mxu0
    %v4375 = vpop.f32.mrb[0].mxu0
    %v4376 = vadd.f32 %v4279, %v4375
    %v4377 = vpop.f32.mrb[0].mxu0
    %4378 = vmatprep.mubr.bf16.mxu0 %v1314
    %4379 = vmatmul.mubr.bf16.gmra.mrb[0].mxu0 %v1313
    %v4380 = vpop.f32.mrb[0].mxu0
    %v4381 = vadd.f32 %v4284, %v4380
    %v4382 = vpop.f32.mrb[0].mxu0
    %v4383 = vpop.f32.mrb[0].mxu0
    %v4384 = vadd.f32 %v4287, %v4383
    %v4385 = vpop.f32.mrb[0].mxu0
    %4386 = vmatprep.mubr.bf16.mxu0 %v1320
    %4387 = vmatmul.mubr.bf16.gmra.mrb[0].mxu0 %v1319
    %v4388 = vpop.f32.mrb[0].mxu0
    %v4389 = vadd.f32 %v4292, %v4388
    %v4390 = vpop.f32.mrb[0].mxu0
    %v4391 = vpop.f32.mrb[0].mxu0
    %v4392 = vadd.f32 %v4295, %v4391
    %v4393 = vpop.f32.mrb[0].mxu0
    %4394 = vmatprep.mubr.bf16.mxu0 %v1326
    %4395 = vmatmul.mubr.bf16.gmra.mrb[0].mxu0 %v1325
    %v4396 = vpop.f32.mrb[0].mxu0
    %v4397 = vadd.f32 %v4300, %v4396
    %v4398 = vpop.f32.mrb[0].mxu0
    %v4399 = vpop.f32.mrb[0].mxu0
    %v4400 = vadd.f32 %v4303, %v4399
    %v4401 = vpop.f32.mrb[0].mxu0
    %4402 = vmatprep.mubr.bf16.mxu0 %v1332
    %4403 = vmatmul.mubr.bf16.gmra.mrb[0].mxu0 %v1331
    %v4404 = vpop.f32.mrb[0].mxu0
    %v4405 = vadd.f32 %v4308, %v4404
    %v4406 = vpop.f32.mrb[0].mxu0
    %v4407 = vpop.f32.mrb[0].mxu0
    %v4408 = vadd.f32 %v4311, %v4407
    %v4409 = vpop.f32.mrb[0].mxu0
    %4410 = vmatprep.mubr.bf16.mxu0 %v1338
    %4411 = vmatmul.mubr.bf16.gmra.mrb[0].mxu0 %v1337
    %v4412 = vpop.f32.mrb[0].mxu0
    %v4413 = vadd.f32 %v4316, %v4412
    %v4414 = vpop.f32.mrb[0].mxu0
    %v4415 = vpop.f32.mrb[0].mxu0
    %v4416 = vadd.f32 %v4319, %v4415
    %v4417 = vpop.f32.mrb[0].mxu0
    %4418 = vdwg.mxu0
    %4419 = vmatprep.subr.bf16.mxu0 0
    %4420 = vmatpush1.bf16.msra.mxu0 %v4161
    %4421 = vmatprep.subr.bf16.mxu0 0
    %4422 = vmatpush1.bf16.msra.mxu0 %v4162
    %4423 = vmatprep.subr.bf16.mxu0 0
    %4424 = vmatpush1.bf16.msra.mxu0 %v4163
    %4425 = vmatprep.subr.bf16.mxu0 0
    %4426 = vmatpush1.bf16.msra.mxu0 %v4164
    %4427 = vmatprep.subr.bf16.mxu0 0
    %4428 = vmatpush1.bf16.msra.mxu0 %v4165
    %4429 = vmatprep.subr.bf16.mxu0 0
    %4430 = vmatpush1.bf16.msra.mxu0 %v4166
    %4431 = vmatprep.subr.bf16.mxu0 0
    %4432 = vmatpush1.bf16.msra.mxu0 %v4167
    %4433 = vmatprep.subr.bf16.mxu0 0
    %4434 = vmatpush1.bf16.msra.mxu0 %v4168
    %4435 = vmatprep.subr.bf16.mxu0 0
    %4436 = vmatpush1.bf16.msra.mxu0 %v4169
    %4437 = vmatprep.subr.bf16.mxu0 0
    %4438 = vmatpush1.bf16.msra.mxu0 %v4170
    %4439 = vmatprep.subr.bf16.mxu0 0
    %4440 = vmatpush1.bf16.msra.mxu0 %v4171
    %4441 = vmatprep.subr.bf16.mxu0 0
    %4442 = vmatpush1.bf16.msra.mxu0 %v4172
    %4443 = vmatprep.subr.bf16.mxu0 0
    %4444 = vmatpush1.bf16.msra.mxu0 %v4173
    %4445 = vmatprep.subr.bf16.mxu0 0
    %4446 = vmatpush1.bf16.msra.mxu0 %v4174
    %4447 = vmatprep.subr.bf16.mxu0 0
    %4448 = vmatpush1.bf16.msra.mxu0 %v4175
    %4449 = vmatprep.subr.bf16.mxu0 0
    %4450 = vmatpush1.bf16.msra.mxu0 %v4176
    %4451 = vmatprep.mubr.bf16.mxu0 %v1298
    %4452 = vmatmul.mubr.bf16.gmra.mrb[0].mxu0 %v1297
    %v4453 = vpop.f32.mrb[0].mxu0
    %v4454 = vadd.f32 %v4357, %v4453
    %v4455 = vpop.f32.mrb[0].mxu0
    %v4456 = vpop.f32.mrb[0].mxu0
    %v4457 = vadd.f32 %v4360, %v4456
    %v4458 = vpop.f32.mrb[0].mxu0
    %4459 = vmatprep.mubr.bf16.mxu0 %v1304
    %4460 = vmatmul.mubr.bf16.gmra.mrb[0].mxu0 %v1303
    %v4461 = vpop.f32.mrb[0].mxu0
    %v4462 = vadd.f32 %v4365, %v4461
    %v4463 = vpop.f32.mrb[0].mxu0
    %v4464 = vpop.f32.mrb[0].mxu0
    %v4465 = vadd.f32 %v4368, %v4464
    %v4466 = vpop.f32.mrb[0].mxu0
    %4467 = vmatprep.mubr.bf16.mxu0 %v1310
    %4468 = vmatmul.mubr.bf16.gmra.mrb[0].mxu0 %v1309
    %v4469 = vpop.f32.mrb[0].mxu0
    %v4470 = vadd.f32 %v4373, %v4469
    %v4471 = vpop.f32.mrb[0].mxu0
    %v4472 = vpop.f32.mrb[0].mxu0
    %v4473 = vadd.f32 %v4376, %v4472
    %v4474 = vpop.f32.mrb[0].mxu0
    %4475 = vmatprep.mubr.bf16.mxu0 %v1316
    %4476 = vmatmul.mubr.bf16.gmra.mrb[0].mxu0 %v1315
    %v4477 = vpop.f32.mrb[0].mxu0
    %v4478 = vadd.f32 %v4381, %v4477
    %v4479 = vpop.f32.mrb[0].mxu0
    %v4480 = vpop.f32.mrb[0].mxu0
    %v4481 = vadd.f32 %v4384, %v4480
    %v4482 = vpop.f32.mrb[0].mxu0
    %4483 = vmatprep.mubr.bf16.mxu0 %v1322
    %4484 = vmatmul.mubr.bf16.gmra.mrb[0].mxu0 %v1321
    %v4485 = vpop.f32.mrb[0].mxu0
    %v4486 = vadd.f32 %v4389, %v4485
    %v4487 = vpop.f32.mrb[0].mxu0
    %v4488 = vpop.f32.mrb[0].mxu0
    %v4489 = vadd.f32 %v4392, %v4488
    %v4490 = vpop.f32.mrb[0].mxu0
    %4491 = vmatprep.mubr.bf16.mxu0 %v1328
    %4492 = vmatmul.mubr.bf16.gmra.mrb[0].mxu0 %v1327
    %v4493 = vpop.f32.mrb[0].mxu0
    %v4494 = vadd.f32 %v4397, %v4493
    %v4495 = vpop.f32.mrb[0].mxu0
    %v4496 = vpop.f32.mrb[0].mxu0
    %v4497 = vadd.f32 %v4400, %v4496
    %v4498 = vpop.f32.mrb[0].mxu0
    %4499 = vmatprep.mubr.bf16.mxu0 %v1334
    %4500 = vmatmul.mubr.bf16.gmra.mrb[0].mxu0 %v1333
    %v4501 = vpop.f32.mrb[0].mxu0
    %v4502 = vadd.f32 %v4405, %v4501
    %v4503 = vpop.f32.mrb[0].mxu0
    %v4504 = vpop.f32.mrb[0].mxu0
    %v4505 = vadd.f32 %v4408, %v4504
    %v4506 = vpop.f32.mrb[0].mxu0
    %4507 = vmatprep.mubr.bf16.mxu0 %v1340
    %4508 = vmatmul.mubr.bf16.gmra.mrb[0].mxu0 %v1339
    %v4509 = vpop.f32.mrb[0].mxu0
    %v4510 = vadd.f32 %v4413, %v4509
    %v4511 = vpop.f32.mrb[0].mxu0
    %v4512 = vpop.f32.mrb[0].mxu0
    %v4513 = vadd.f32 %v4416, %v4512
    %v4514 = vpop.f32.mrb[0].mxu0
    %4515 = vdwg.mxu0
    %v4516 = vld [vmem:[#allocation7] sm:$0xff]
    %v4517 = vld [vmem:[#allocation7 + $0x8] sm:$0xff]
    %v4518 = vld [vmem:[#allocation7 + $0x10] sm:$0xff]
    %v4519 = vld [vmem:[#allocation7 + $0x18] sm:$0xff]
    %v4520 = vld [vmem:[#allocation7 + $0x20] sm:$0xff]
    %v4521 = vld [vmem:[#allocation7 + $0x28] sm:$0xff]
    %v4522 = vld [vmem:[#allocation7 + $0x30] sm:$0xff]
    %v4523 = vld [vmem:[#allocation7 + $0x38] sm:$0xff]
    %v4524 = vld [vmem:[#allocation7 + $0x40] sm:$0xff]
    %v4525 = vld [vmem:[#allocation7 + $0x48] sm:$0xff]
    %v4526 = vld [vmem:[#allocation7 + $0x50] sm:$0xff]
    %v4527 = vld [vmem:[#allocation7 + $0x58] sm:$0xff]
    %v4528 = vld [vmem:[#allocation7 + $0x60] sm:$0xff]
    %v4529 = vld [vmem:[#allocation7 + $0x68] sm:$0xff]
    %v4530 = vld [vmem:[#allocation7 + $0x70] sm:$0xff]
    %v4531 = vld [vmem:[#allocation7 + $0x78] sm:$0xff]
    %v4532 = vld [vmem:[#allocation7 + $0x80] sm:$0xff]
    %v4533 = vld [vmem:[#allocation7 + $0x88] sm:$0xff]
    %v4534 = vld [vmem:[#allocation7 + $0x90] sm:$0xff]
    %v4535 = vld [vmem:[#allocation7 + $0x98] sm:$0xff]
    %v4536 = vld [vmem:[#allocation7 + $0xa0] sm:$0xff]
    %v4537 = vld [vmem:[#allocation7 + $0xa8] sm:$0xff]
    %v4538 = vld [vmem:[#allocation7 + $0xb0] sm:$0xff]
    %v4539 = vld [vmem:[#allocation7 + $0xb8] sm:$0xff]
    %v4540 = vld [vmem:[#allocation7 + $0xc0] sm:$0xff]
    %v4541 = vld [vmem:[#allocation7 + $0xc8] sm:$0xff]
    %v4542 = vld [vmem:[#allocation7 + $0xd0] sm:$0xff]
    %v4543 = vld [vmem:[#allocation7 + $0xd8] sm:$0xff]
    %v4544 = vld [vmem:[#allocation7 + $0xe0] sm:$0xff]
    %v4545 = vld [vmem:[#allocation7 + $0xe8] sm:$0xff]
    %v4546 = vld [vmem:[#allocation7 + $0xf0] sm:$0xff]
    %v4547 = vld [vmem:[#allocation7 + $0xf8] sm:$0xff]
    %v4548 = vld [vmem:[#allocation7 + $0x100] sm:$0xff]
    %v4549 = vld [vmem:[#allocation7 + $0x108] sm:$0xff]
    %v4550 = vld [vmem:[#allocation7 + $0x110] sm:$0xff]
    %v4551 = vld [vmem:[#allocation7 + $0x118] sm:$0xff]
    %v4552 = vld [vmem:[#allocation7 + $0x120] sm:$0xff]
    %v4553 = vld [vmem:[#allocation7 + $0x128] sm:$0xff]
    %v4554 = vld [vmem:[#allocation7 + $0x130] sm:$0xff]
    %v4555 = vld [vmem:[#allocation7 + $0x138] sm:$0xff]
    %v4556 = vld [vmem:[#allocation7 + $0x140] sm:$0xff]
    %v4557 = vld [vmem:[#allocation7 + $0x148] sm:$0xff]
    %v4558 = vld [vmem:[#allocation7 + $0x150] sm:$0xff]
    %v4559 = vld [vmem:[#allocation7 + $0x158] sm:$0xff]
    %v4560 = vld [vmem:[#allocation7 + $0x160] sm:$0xff]
    %v4561 = vld [vmem:[#allocation7 + $0x168] sm:$0xff]
    %v4562 = vld [vmem:[#allocation7 + $0x170] sm:$0xff]
    %v4563 = vld [vmem:[#allocation7 + $0x178] sm:$0xff]
    %v4564 = vld [vmem:[#allocation7 + $0x180] sm:$0xff]
    %v4565 = vld [vmem:[#allocation7 + $0x188] sm:$0xff]
    %v4566 = vld [vmem:[#allocation7 + $0x190] sm:$0xff]
    %v4567 = vld [vmem:[#allocation7 + $0x198] sm:$0xff]
    %v4568 = vld [vmem:[#allocation7 + $0x1a0] sm:$0xff]
    %v4569 = vld [vmem:[#allocation7 + $0x1a8] sm:$0xff]
    %v4570 = vld [vmem:[#allocation7 + $0x1b0] sm:$0xff]
    %v4571 = vld [vmem:[#allocation7 + $0x1b8] sm:$0xff]
    %v4572 = vld [vmem:[#allocation7 + $0x1c0] sm:$0xff]
    %v4573 = vld [vmem:[#allocation7 + $0x1c8] sm:$0xff]
    %v4574 = vld [vmem:[#allocation7 + $0x1d0] sm:$0xff]
    %v4575 = vld [vmem:[#allocation7 + $0x1d8] sm:$0xff]
    %v4576 = vld [vmem:[#allocation7 + $0x1e0] sm:$0xff]
    %v4577 = vld [vmem:[#allocation7 + $0x1e8] sm:$0xff]
    %v4578 = vld [vmem:[#allocation7 + $0x1f0] sm:$0xff]
    %v4579 = vld [vmem:[#allocation7 + $0x1f8] sm:$0xff]
    %v4580 = vld [vmem:[#allocation7 + $0x200] sm:$0xff]
    %v4581 = vld [vmem:[#allocation7 + $0x208] sm:$0xff]
    %v4582 = vld [vmem:[#allocation7 + $0x210] sm:$0xff]
    %v4583 = vld [vmem:[#allocation7 + $0x218] sm:$0xff]
    %v4584 = vld [vmem:[#allocation7 + $0x220] sm:$0xff]
    %v4585 = vld [vmem:[#allocation7 + $0x228] sm:$0xff]
    %v4586 = vld [vmem:[#allocation7 + $0x230] sm:$0xff]
    %v4587 = vld [vmem:[#allocation7 + $0x238] sm:$0xff]
    %v4588 = vld [vmem:[#allocation7 + $0x240] sm:$0xff]
    %v4589 = vld [vmem:[#allocation7 + $0x248] sm:$0xff]
    %v4590 = vld [vmem:[#allocation7 + $0x250] sm:$0xff]
    %v4591 = vld [vmem:[#allocation7 + $0x258] sm:$0xff]
    %v4592 = vld [vmem:[#allocation7 + $0x260] sm:$0xff]
    %v4593 = vld [vmem:[#allocation7 + $0x268] sm:$0xff]
    %v4594 = vld [vmem:[#allocation7 + $0x270] sm:$0xff]
    %v4595 = vld [vmem:[#allocation7 + $0x278] sm:$0xff]
    %v4596 = vld [vmem:[#allocation7 + $0x280] sm:$0xff]
    %v4597 = vld [vmem:[#allocation7 + $0x288] sm:$0xff]
    %v4598 = vld [vmem:[#allocation7 + $0x290] sm:$0xff]
    %v4599 = vld [vmem:[#allocation7 + $0x298] sm:$0xff]
    %v4600 = vld [vmem:[#allocation7 + $0x2a0] sm:$0xff]
    %v4601 = vld [vmem:[#allocation7 + $0x2a8] sm:$0xff]
    %v4602 = vld [vmem:[#allocation7 + $0x2b0] sm:$0xff]
    %v4603 = vld [vmem:[#allocation7 + $0x2b8] sm:$0xff]
    %v4604 = vld [vmem:[#allocation7 + $0x2c0] sm:$0xff]
    %v4605 = vld [vmem:[#allocation7 + $0x2c8] sm:$0xff]
    %v4606 = vld [vmem:[#allocation7 + $0x2d0] sm:$0xff]
    %v4607 = vld [vmem:[#allocation7 + $0x2d8] sm:$0xff]
    %v4608 = vld [vmem:[#allocation7 + $0x2e0] sm:$0xff]
    %v4609 = vld [vmem:[#allocation7 + $0x2e8] sm:$0xff]
    %v4610 = vld [vmem:[#allocation7 + $0x2f0] sm:$0xff]
    %v4611 = vld [vmem:[#allocation7 + $0x2f8] sm:$0xff]
    %v4612 = vld [vmem:[#allocation7 + $0x300] sm:$0xff]
    %v4613 = vld [vmem:[#allocation7 + $0x308] sm:$0xff]
    %v4614 = vld [vmem:[#allocation7 + $0x310] sm:$0xff]
    %v4615 = vld [vmem:[#allocation7 + $0x318] sm:$0xff]
    %v4616 = vld [vmem:[#allocation7 + $0x320] sm:$0xff]
    %v4617 = vld [vmem:[#allocation7 + $0x328] sm:$0xff]
    %v4618 = vld [vmem:[#allocation7 + $0x330] sm:$0xff]
    %v4619 = vld [vmem:[#allocation7 + $0x338] sm:$0xff]
    %v4620 = vld [vmem:[#allocation7 + $0x340] sm:$0xff]
    %v4621 = vld [vmem:[#allocation7 + $0x348] sm:$0xff]
    %v4622 = vld [vmem:[#allocation7 + $0x350] sm:$0xff]
    %v4623 = vld [vmem:[#allocation7 + $0x358] sm:$0xff]
    %v4624 = vld [vmem:[#allocation7 + $0x360] sm:$0xff]
    %v4625 = vld [vmem:[#allocation7 + $0x368] sm:$0xff]
    %v4626 = vld [vmem:[#allocation7 + $0x370] sm:$0xff]
    %v4627 = vld [vmem:[#allocation7 + $0x378] sm:$0xff]
    %v4628 = vld [vmem:[#allocation7 + $0x380] sm:$0xff]
    %v4629 = vld [vmem:[#allocation7 + $0x388] sm:$0xff]
    %v4630 = vld [vmem:[#allocation7 + $0x390] sm:$0xff]
    %v4631 = vld [vmem:[#allocation7 + $0x398] sm:$0xff]
    %v4632 = vld [vmem:[#allocation7 + $0x3a0] sm:$0xff]
    %v4633 = vld [vmem:[#allocation7 + $0x3a8] sm:$0xff]
    %v4634 = vld [vmem:[#allocation7 + $0x3b0] sm:$0xff]
    %v4635 = vld [vmem:[#allocation7 + $0x3b8] sm:$0xff]
    %v4636 = vld [vmem:[#allocation7 + $0x3c0] sm:$0xff]
    %v4637 = vld [vmem:[#allocation7 + $0x3c8] sm:$0xff]
    %v4638 = vld [vmem:[#allocation7 + $0x3d0] sm:$0xff]
    %v4639 = vld [vmem:[#allocation7 + $0x3d8] sm:$0xff]
    %v4640 = vld [vmem:[#allocation7 + $0x3e0] sm:$0xff]
    %v4641 = vld [vmem:[#allocation7 + $0x3e8] sm:$0xff]
    %v4642 = vld [vmem:[#allocation7 + $0x3f0] sm:$0xff]
    %v4643 = vld [vmem:[#allocation7 + $0x3f8] sm:$0xff]
    %v4644 = vld [vmem:[#allocation7 + $0x400] sm:$0xff]
    %v4645 = vld [vmem:[#allocation7 + $0x408] sm:$0xff]
    %v4646 = vld [vmem:[#allocation7 + $0x410] sm:$0xff]
    %v4647 = vld [vmem:[#allocation7 + $0x418] sm:$0xff]
    %v4648 = vld [vmem:[#allocation7 + $0x420] sm:$0xff]
    %v4649 = vld [vmem:[#allocation7 + $0x428] sm:$0xff]
    %v4650 = vld [vmem:[#allocation7 + $0x430] sm:$0xff]
    %v4651 = vld [vmem:[#allocation7 + $0x438] sm:$0xff]
    %v4652 = vld [vmem:[#allocation7 + $0x440] sm:$0xff]
    %v4653 = vld [vmem:[#allocation7 + $0x448] sm:$0xff]
    %v4654 = vld [vmem:[#allocation7 + $0x450] sm:$0xff]
    %v4655 = vld [vmem:[#allocation7 + $0x458] sm:$0xff]
    %v4656 = vld [vmem:[#allocation7 + $0x460] sm:$0xff]
    %v4657 = vld [vmem:[#allocation7 + $0x468] sm:$0xff]
    %v4658 = vld [vmem:[#allocation7 + $0x470] sm:$0xff]
    %v4659 = vld [vmem:[#allocation7 + $0x478] sm:$0xff]
    %v4660 = vld [vmem:[#allocation7 + $0x480] sm:$0xff]
    %v4661 = vld [vmem:[#allocation7 + $0x488] sm:$0xff]
    %v4662 = vld [vmem:[#allocation7 + $0x490] sm:$0xff]
    %v4663 = vld [vmem:[#allocation7 + $0x498] sm:$0xff]
    %v4664 = vld [vmem:[#allocation7 + $0x4a0] sm:$0xff]
    %v4665 = vld [vmem:[#allocation7 + $0x4a8] sm:$0xff]
    %v4666 = vld [vmem:[#allocation7 + $0x4b0] sm:$0xff]
    %v4667 = vld [vmem:[#allocation7 + $0x4b8] sm:$0xff]
    %v4668 = vld [vmem:[#allocation7 + $0x4c0] sm:$0xff]
    %v4669 = vld [vmem:[#allocation7 + $0x4c8] sm:$0xff]
    %v4670 = vld [vmem:[#allocation7 + $0x4d0] sm:$0xff]
    %v4671 = vld [vmem:[#allocation7 + $0x4d8] sm:$0xff]
    %v4672 = vld [vmem:[#allocation7 + $0x4e0] sm:$0xff]
    %v4673 = vld [vmem:[#allocation7 + $0x4e8] sm:$0xff]
    %v4674 = vld [vmem:[#allocation7 + $0x4f0] sm:$0xff]
    %v4675 = vld [vmem:[#allocation7 + $0x4f8] sm:$0xff]
    %v4676 = vld [vmem:[#allocation7 + $0x500] sm:$0xff]
    %v4677 = vld [vmem:[#allocation7 + $0x508] sm:$0xff]
    %v4678 = vld [vmem:[#allocation7 + $0x510] sm:$0xff]
    %v4679 = vld [vmem:[#allocation7 + $0x518] sm:$0xff]
    %v4680 = vld [vmem:[#allocation7 + $0x520] sm:$0xff]
    %v4681 = vld [vmem:[#allocation7 + $0x528] sm:$0xff]
    %v4682 = vld [vmem:[#allocation7 + $0x530] sm:$0xff]
    %v4683 = vld [vmem:[#allocation7 + $0x538] sm:$0xff]
    %v4684 = vld [vmem:[#allocation7 + $0x540] sm:$0xff]
    %v4685 = vld [vmem:[#allocation7 + $0x548] sm:$0xff]
    %v4686 = vld [vmem:[#allocation7 + $0x550] sm:$0xff]
    %v4687 = vld [vmem:[#allocation7 + $0x558] sm:$0xff]
    %v4688 = vld [vmem:[#allocation7 + $0x560] sm:$0xff]
    %v4689 = vld [vmem:[#allocation7 + $0x568] sm:$0xff]
    %v4690 = vld [vmem:[#allocation7 + $0x570] sm:$0xff]
    %v4691 = vld [vmem:[#allocation7 + $0x578] sm:$0xff]
    %v4692 = vld [vmem:[#allocation7 + $0x580] sm:$0xff]
    %v4693 = vld [vmem:[#allocation7 + $0x588] sm:$0xff]
    %v4694 = vld [vmem:[#allocation7 + $0x590] sm:$0xff]
    %v4695 = vld [vmem:[#allocation7 + $0x598] sm:$0xff]
    %v4696 = vld [vmem:[#allocation7 + $0x5a0] sm:$0xff]
    %v4697 = vld [vmem:[#allocation7 + $0x5a8] sm:$0xff]
    %v4698 = vld [vmem:[#allocation7 + $0x5b0] sm:$0xff]
    %v4699 = vld [vmem:[#allocation7 + $0x5b8] sm:$0xff]
    %v4700 = vld [vmem:[#allocation7 + $0x5c0] sm:$0xff]
    %v4701 = vld [vmem:[#allocation7 + $0x5c8] sm:$0xff]
    %v4702 = vld [vmem:[#allocation7 + $0x5d0] sm:$0xff]
    %v4703 = vld [vmem:[#allocation7 + $0x5d8] sm:$0xff]
    %v4704 = vld [vmem:[#allocation7 + $0x5e0] sm:$0xff]
    %v4705 = vld [vmem:[#allocation7 + $0x5e8] sm:$0xff]
    %v4706 = vld [vmem:[#allocation7 + $0x5f0] sm:$0xff]
    %v4707 = vld [vmem:[#allocation7 + $0x5f8] sm:$0xff]
    %v4708 = vld [vmem:[#allocation7 + $0x600] sm:$0xff]
    %v4709 = vld [vmem:[#allocation7 + $0x608] sm:$0xff]
    %v4710 = vld [vmem:[#allocation7 + $0x610] sm:$0xff]
    %v4711 = vld [vmem:[#allocation7 + $0x618] sm:$0xff]
    %v4712 = vld [vmem:[#allocation7 + $0x620] sm:$0xff]
    %v4713 = vld [vmem:[#allocation7 + $0x628] sm:$0xff]
    %v4714 = vld [vmem:[#allocation7 + $0x630] sm:$0xff]
    %v4715 = vld [vmem:[#allocation7 + $0x638] sm:$0xff]
    %v4716 = vld [vmem:[#allocation7 + $0x640] sm:$0xff]
    %v4717 = vld [vmem:[#allocation7 + $0x648] sm:$0xff]
    %v4718 = vld [vmem:[#allocation7 + $0x650] sm:$0xff]
    %v4719 = vld [vmem:[#allocation7 + $0x658] sm:$0xff]
    %v4720 = vld [vmem:[#allocation7 + $0x660] sm:$0xff]
    %v4721 = vld [vmem:[#allocation7 + $0x668] sm:$0xff]
    %v4722 = vld [vmem:[#allocation7 + $0x670] sm:$0xff]
    %v4723 = vld [vmem:[#allocation7 + $0x678] sm:$0xff]
    %v4724 = vld [vmem:[#allocation7 + $0x680] sm:$0xff]
    %v4725 = vld [vmem:[#allocation7 + $0x688] sm:$0xff]
    %v4726 = vld [vmem:[#allocation7 + $0x690] sm:$0xff]
    %v4727 = vld [vmem:[#allocation7 + $0x698] sm:$0xff]
    %v4728 = vld [vmem:[#allocation7 + $0x6a0] sm:$0xff]
    %v4729 = vld [vmem:[#allocation7 + $0x6a8] sm:$0xff]
    %v4730 = vld [vmem:[#allocation7 + $0x6b0] sm:$0xff]
    %v4731 = vld [vmem:[#allocation7 + $0x6b8] sm:$0xff]
    %v4732 = vld [vmem:[#allocation7 + $0x6c0] sm:$0xff]
    %v4733 = vld [vmem:[#allocation7 + $0x6c8] sm:$0xff]
    %v4734 = vld [vmem:[#allocation7 + $0x6d0] sm:$0xff]
    %v4735 = vld [vmem:[#allocation7 + $0x6d8] sm:$0xff]
    %v4736 = vld [vmem:[#allocation7 + $0x6e0] sm:$0xff]
    %v4737 = vld [vmem:[#allocation7 + $0x6e8] sm:$0xff]
    %v4738 = vld [vmem:[#allocation7 + $0x6f0] sm:$0xff]
    %v4739 = vld [vmem:[#allocation7 + $0x6f8] sm:$0xff]
    %v4740 = vld [vmem:[#allocation7 + $0x700] sm:$0xff]
    %v4741 = vld [vmem:[#allocation7 + $0x708] sm:$0xff]
    %v4742 = vld [vmem:[#allocation7 + $0x710] sm:$0xff]
    %v4743 = vld [vmem:[#allocation7 + $0x718] sm:$0xff]
    %v4744 = vld [vmem:[#allocation7 + $0x720] sm:$0xff]
    %v4745 = vld [vmem:[#allocation7 + $0x728] sm:$0xff]
    %v4746 = vld [vmem:[#allocation7 + $0x730] sm:$0xff]
    %v4747 = vld [vmem:[#allocation7 + $0x738] sm:$0xff]
    %v4748 = vld [vmem:[#allocation7 + $0x740] sm:$0xff]
    %v4749 = vld [vmem:[#allocation7 + $0x748] sm:$0xff]
    %v4750 = vld [vmem:[#allocation7 + $0x750] sm:$0xff]
    %v4751 = vld [vmem:[#allocation7 + $0x758] sm:$0xff]
    %v4752 = vld [vmem:[#allocation7 + $0x760] sm:$0xff]
    %v4753 = vld [vmem:[#allocation7 + $0x768] sm:$0xff]
    %v4754 = vld [vmem:[#allocation7 + $0x770] sm:$0xff]
    %v4755 = vld [vmem:[#allocation7 + $0x778] sm:$0xff]
    %v4756 = vld [vmem:[#allocation7 + $0x780] sm:$0xff]
    %v4757 = vld [vmem:[#allocation7 + $0x788] sm:$0xff]
    %v4758 = vld [vmem:[#allocation7 + $0x790] sm:$0xff]
    %v4759 = vld [vmem:[#allocation7 + $0x798] sm:$0xff]
    %v4760 = vld [vmem:[#allocation7 + $0x7a0] sm:$0xff]
    %v4761 = vld [vmem:[#allocation7 + $0x7a8] sm:$0xff]
    %v4762 = vld [vmem:[#allocation7 + $0x7b0] sm:$0xff]
    %v4763 = vld [vmem:[#allocation7 + $0x7b8] sm:$0xff]
    %v4764 = vld [vmem:[#allocation7 + $0x7c0] sm:$0xff]
    %v4765 = vld [vmem:[#allocation7 + $0x7c8] sm:$0xff]
    %v4766 = vld [vmem:[#allocation7 + $0x7d0] sm:$0xff]
    %v4767 = vld [vmem:[#allocation7 + $0x7d8] sm:$0xff]
    %v4768 = vld [vmem:[#allocation7 + $0x7e0] sm:$0xff]
    %v4769 = vld [vmem:[#allocation7 + $0x7e8] sm:$0xff]
    %v4770 = vld [vmem:[#allocation7 + $0x7f0] sm:$0xff]
    %v4771 = vld [vmem:[#allocation7 + $0x7f8] sm:$0xff]
    %v5028 = vcombine.low %v4516, %v4520
    %v5029 = vcombine.high %v4516, %v4520
    %v5030 = vcombine.low %v4524, %v4528
    %v5031 = vcombine.high %v4524, %v4528
    %v5033 = vunpack.c.l.s4 1983009808
    %v5034 = vunpack.c.0.s8 %v5033
    %v5035 = vlaneseq
    %v5036 = vshrl.u32 %v5035, 7
    %v5037 = vsub.s32 %v5034, %v5036
    %v5038 = vrot.slane %v5028, %v5037
    %v5040 = vunpack.c.l.s4 1983009808
    %v5041 = vunpack.c.0.s8 %v5040
    %v5042 = vlaneseq
    %v5043 = vshrl.u32 %v5042, 7
    %v5044 = vsub.s32 %v5041, %v5043
    %v5045 = vrot.slane %v5029, %v5044
    %v5047 = vunpack.c.l.s4 1983009808
    %v5048 = vunpack.c.0.s8 %v5047
    %v5049 = vlaneseq
    %v5050 = vshrl.u32 %v5049, 7
    %v5051 = vsub.s32 %v5048, %v5050
    %v5052 = vrot.slane %v5030, %v5051
    %v5054 = vunpack.c.l.s4 1983009808
    %v5055 = vunpack.c.0.s8 %v5054
    %v5056 = vlaneseq
    %v5057 = vshrl.u32 %v5056, 7
    %v5058 = vsub.s32 %v5055, %v5057
    %v5059 = vrot.slane %v5031, %v5058
    %v5060 = vcombine.low %v5038, %v5052
    %v5061 = vcombine.high %v5038, %v5052
    %v5062 = vcombine.low %v5045, %v5059
    %v5063 = vcombine.high %v5045, %v5059
    %v5064 = vcombine.low %v4517, %v4521
    %v5065 = vcombine.high %v4517, %v4521
    %v5066 = vcombine.low %v4525, %v4529
    %v5067 = vcombine.high %v4525, %v4529
    %v5069 = vunpack.c.l.s4 1983009808
    %v5070 = vunpack.c.0.s8 %v5069
    %v5071 = vlaneseq
    %v5072 = vshrl.u32 %v5071, 7
    %v5073 = vsub.s32 %v5070, %v5072
    %v5074 = vrot.slane %v5064, %v5073
    %v5076 = vunpack.c.l.s4 1983009808
    %v5077 = vunpack.c.0.s8 %v5076
    %v5078 = vlaneseq
    %v5079 = vshrl.u32 %v5078, 7
    %v5080 = vsub.s32 %v5077, %v5079
    %v5081 = vrot.slane %v5065, %v5080
    %v5083 = vunpack.c.l.s4 1983009808
    %v5084 = vunpack.c.0.s8 %v5083
    %v5085 = vlaneseq
    %v5086 = vshrl.u32 %v5085, 7
    %v5087 = vsub.s32 %v5084, %v5086
    %v5088 = vrot.slane %v5066, %v5087
    %v5090 = vunpack.c.l.s4 1983009808
    %v5091 = vunpack.c.0.s8 %v5090
    %v5092 = vlaneseq
    %v5093 = vshrl.u32 %v5092, 7
    %v5094 = vsub.s32 %v5091, %v5093
    %v5095 = vrot.slane %v5067, %v5094
    %v5096 = vcombine.low %v5074, %v5088
    %v5097 = vcombine.high %v5074, %v5088
    %v5098 = vcombine.low %v5081, %v5095
    %v5099 = vcombine.high %v5081, %v5095
    %v5100 = vcombine.low %v4518, %v4522
    %v5101 = vcombine.high %v4518, %v4522
    %v5102 = vcombine.low %v4526, %v4530
    %v5103 = vcombine.high %v4526, %v4530
    %v5105 = vunpack.c.l.s4 1983009808
    %v5106 = vunpack.c.0.s8 %v5105
    %v5107 = vlaneseq
    %v5108 = vshrl.u32 %v5107, 7
    %v5109 = vsub.s32 %v5106, %v5108
    %v5110 = vrot.slane %v5100, %v5109
    %v5112 = vunpack.c.l.s4 1983009808
    %v5113 = vunpack.c.0.s8 %v5112
    %v5114 = vlaneseq
    %v5115 = vshrl.u32 %v5114, 7
    %v5116 = vsub.s32 %v5113, %v5115
    %v5117 = vrot.slane %v5101, %v5116
    %v5119 = vunpack.c.l.s4 1983009808
    %v5120 = vunpack.c.0.s8 %v5119
    %v5121 = vlaneseq
    %v5122 = vshrl.u32 %v5121, 7
    %v5123 = vsub.s32 %v5120, %v5122
    %v5124 = vrot.slane %v5102, %v5123
    %v5126 = vunpack.c.l.s4 1983009808
    %v5127 = vunpack.c.0.s8 %v5126
    %v5128 = vlaneseq
    %v5129 = vshrl.u32 %v5128, 7
    %v5130 = vsub.s32 %v5127, %v5129
    %v5131 = vrot.slane %v5103, %v5130
    %v5132 = vcombine.low %v5110, %v5124
    %v5133 = vcombine.high %v5110, %v5124
    %v5134 = vcombine.low %v5117, %v5131
    %v5135 = vcombine.high %v5117, %v5131
    %v5136 = vcombine.low %v4519, %v4523
    %v5137 = vcombine.high %v4519, %v4523
    %v5138 = vcombine.low %v4527, %v4531
    %v5139 = vcombine.high %v4527, %v4531
    %v5141 = vunpack.c.l.s4 1983009808
    %v5142 = vunpack.c.0.s8 %v5141
    %v5143 = vlaneseq
    %v5144 = vshrl.u32 %v5143, 7
    %v5145 = vsub.s32 %v5142, %v5144
    %v5146 = vrot.slane %v5136, %v5145
    %v5148 = vunpack.c.l.s4 1983009808
    %v5149 = vunpack.c.0.s8 %v5148
    %v5150 = vlaneseq
    %v5151 = vshrl.u32 %v5150, 7
    %v5152 = vsub.s32 %v5149, %v5151
    %v5153 = vrot.slane %v5137, %v5152
    %v5155 = vunpack.c.l.s4 1983009808
    %v5156 = vunpack.c.0.s8 %v5155
    %v5157 = vlaneseq
    %v5158 = vshrl.u32 %v5157, 7
    %v5159 = vsub.s32 %v5156, %v5158
    %v5160 = vrot.slane %v5138, %v5159
    %v5162 = vunpack.c.l.s4 1983009808
    %v5163 = vunpack.c.0.s8 %v5162
    %v5164 = vlaneseq
    %v5165 = vshrl.u32 %v5164, 7
    %v5166 = vsub.s32 %v5163, %v5165
    %v5167 = vrot.slane %v5139, %v5166
    %v5168 = vcombine.low %v5146, %v5160
    %v5169 = vcombine.high %v5146, %v5160
    %v5170 = vcombine.low %v5153, %v5167
    %v5171 = vcombine.high %v5153, %v5167
    %v5172 = vcombine.low %v4532, %v4536
    %v5173 = vcombine.high %v4532, %v4536
    %v5174 = vcombine.low %v4540, %v4544
    %v5175 = vcombine.high %v4540, %v4544
    %v5177 = vunpack.c.l.s4 1983009808
    %v5178 = vunpack.c.0.s8 %v5177
    %v5179 = vlaneseq
    %v5180 = vshrl.u32 %v5179, 7
    %v5181 = vsub.s32 %v5178, %v5180
    %v5182 = vrot.slane %v5172, %v5181
    %v5184 = vunpack.c.l.s4 1983009808
    %v5185 = vunpack.c.0.s8 %v5184
    %v5186 = vlaneseq
    %v5187 = vshrl.u32 %v5186, 7
    %v5188 = vsub.s32 %v5185, %v5187
    %v5189 = vrot.slane %v5173, %v5188
    %v5191 = vunpack.c.l.s4 1983009808
    %v5192 = vunpack.c.0.s8 %v5191
    %v5193 = vlaneseq
    %v5194 = vshrl.u32 %v5193, 7
    %v5195 = vsub.s32 %v5192, %v5194
    %v5196 = vrot.slane %v5174, %v5195
    %v5198 = vunpack.c.l.s4 1983009808
    %v5199 = vunpack.c.0.s8 %v5198
    %v5200 = vlaneseq
    %v5201 = vshrl.u32 %v5200, 7
    %v5202 = vsub.s32 %v5199, %v5201
    %v5203 = vrot.slane %v5175, %v5202
    %v5204 = vcombine.low %v5182, %v5196
    %v5205 = vcombine.high %v5182, %v5196
    %v5206 = vcombine.low %v5189, %v5203
    %v5207 = vcombine.high %v5189, %v5203
    %v5208 = vcombine.low %v4533, %v4537
    %v5209 = vcombine.high %v4533, %v4537
    %v5210 = vcombine.low %v4541, %v4545
    %v5211 = vcombine.high %v4541, %v4545
    %v5213 = vunpack.c.l.s4 1983009808
    %v5214 = vunpack.c.0.s8 %v5213
    %v5215 = vlaneseq
    %v5216 = vshrl.u32 %v5215, 7
    %v5217 = vsub.s32 %v5214, %v5216
    %v5218 = vrot.slane %v5208, %v5217
    %v5220 = vunpack.c.l.s4 1983009808
    %v5221 = vunpack.c.0.s8 %v5220
    %v5222 = vlaneseq
    %v5223 = vshrl.u32 %v5222, 7
    %v5224 = vsub.s32 %v5221, %v5223
    %v5225 = vrot.slane %v5209, %v5224
    %v5227 = vunpack.c.l.s4 1983009808
    %v5228 = vunpack.c.0.s8 %v5227
    %v5229 = vlaneseq
    %v5230 = vshrl.u32 %v5229, 7
    %v5231 = vsub.s32 %v5228, %v5230
    %v5232 = vrot.slane %v5210, %v5231
    %v5234 = vunpack.c.l.s4 1983009808
    %v5235 = vunpack.c.0.s8 %v5234
    %v5236 = vlaneseq
    %v5237 = vshrl.u32 %v5236, 7
    %v5238 = vsub.s32 %v5235, %v5237
    %v5239 = vrot.slane %v5211, %v5238
    %v5240 = vcombine.low %v5218, %v5232
    %v5241 = vcombine.high %v5218, %v5232
    %v5242 = vcombine.low %v5225, %v5239
    %v5243 = vcombine.high %v5225, %v5239
    %v5244 = vcombine.low %v4534, %v4538
    %v5245 = vcombine.high %v4534, %v4538
    %v5246 = vcombine.low %v4542, %v4546
    %v5247 = vcombine.high %v4542, %v4546
    %v5249 = vunpack.c.l.s4 1983009808
    %v5250 = vunpack.c.0.s8 %v5249
    %v5251 = vlaneseq
    %v5252 = vshrl.u32 %v5251, 7
    %v5253 = vsub.s32 %v5250, %v5252
    %v5254 = vrot.slane %v5244, %v5253
    %v5256 = vunpack.c.l.s4 1983009808
    %v5257 = vunpack.c.0.s8 %v5256
    %v5258 = vlaneseq
    %v5259 = vshrl.u32 %v5258, 7
    %v5260 = vsub.s32 %v5257, %v5259
    %v5261 = vrot.slane %v5245, %v5260
    %v5263 = vunpack.c.l.s4 1983009808
    %v5264 = vunpack.c.0.s8 %v5263
    %v5265 = vlaneseq
    %v5266 = vshrl.u32 %v5265, 7
    %v5267 = vsub.s32 %v5264, %v5266
    %v5268 = vrot.slane %v5246, %v5267
    %v5270 = vunpack.c.l.s4 1983009808
    %v5271 = vunpack.c.0.s8 %v5270
    %v5272 = vlaneseq
    %v5273 = vshrl.u32 %v5272, 7
    %v5274 = vsub.s32 %v5271, %v5273
    %v5275 = vrot.slane %v5247, %v5274
    %v5276 = vcombine.low %v5254, %v5268
    %v5277 = vcombine.high %v5254, %v5268
    %v5278 = vcombine.low %v5261, %v5275
    %v5279 = vcombine.high %v5261, %v5275
    %v5280 = vcombine.low %v4535, %v4539
    %v5281 = vcombine.high %v4535, %v4539
    %v5282 = vcombine.low %v4543, %v4547
    %v5283 = vcombine.high %v4543, %v4547
    %v5285 = vunpack.c.l.s4 1983009808
    %v5286 = vunpack.c.0.s8 %v5285
    %v5287 = vlaneseq
    %v5288 = vshrl.u32 %v5287, 7
    %v5289 = vsub.s32 %v5286, %v5288
    %v5290 = vrot.slane %v5280, %v5289
    %v5292 = vunpack.c.l.s4 1983009808
    %v5293 = vunpack.c.0.s8 %v5292
    %v5294 = vlaneseq
    %v5295 = vshrl.u32 %v5294, 7
    %v5296 = vsub.s32 %v5293, %v5295
    %v5297 = vrot.slane %v5281, %v5296
    %v5299 = vunpack.c.l.s4 1983009808
    %v5300 = vunpack.c.0.s8 %v5299
    %v5301 = vlaneseq
    %v5302 = vshrl.u32 %v5301, 7
    %v5303 = vsub.s32 %v5300, %v5302
    %v5304 = vrot.slane %v5282, %v5303
    %v5306 = vunpack.c.l.s4 1983009808
    %v5307 = vunpack.c.0.s8 %v5306
    %v5308 = vlaneseq
    %v5309 = vshrl.u32 %v5308, 7
    %v5310 = vsub.s32 %v5307, %v5309
    %v5311 = vrot.slane %v5283, %v5310
    %v5312 = vcombine.low %v5290, %v5304
    %v5313 = vcombine.high %v5290, %v5304
    %v5314 = vcombine.low %v5297, %v5311
    %v5315 = vcombine.high %v5297, %v5311
    %v5316 = vcombine.low %v4548, %v4552
    %v5317 = vcombine.high %v4548, %v4552
    %v5318 = vcombine.low %v4556, %v4560
    %v5319 = vcombine.high %v4556, %v4560
    %v5321 = vunpack.c.l.s4 1983009808
    %v5322 = vunpack.c.0.s8 %v5321
    %v5323 = vlaneseq
    %v5324 = vshrl.u32 %v5323, 7
    %v5325 = vsub.s32 %v5322, %v5324
    %v5326 = vrot.slane %v5316, %v5325
    %v5328 = vunpack.c.l.s4 1983009808
    %v5329 = vunpack.c.0.s8 %v5328
    %v5330 = vlaneseq
    %v5331 = vshrl.u32 %v5330, 7
    %v5332 = vsub.s32 %v5329, %v5331
    %v5333 = vrot.slane %v5317, %v5332
    %v5335 = vunpack.c.l.s4 1983009808
    %v5336 = vunpack.c.0.s8 %v5335
    %v5337 = vlaneseq
    %v5338 = vshrl.u32 %v5337, 7
    %v5339 = vsub.s32 %v5336, %v5338
    %v5340 = vrot.slane %v5318, %v5339
    %v5342 = vunpack.c.l.s4 1983009808
    %v5343 = vunpack.c.0.s8 %v5342
    %v5344 = vlaneseq
    %v5345 = vshrl.u32 %v5344, 7
    %v5346 = vsub.s32 %v5343, %v5345
    %v5347 = vrot.slane %v5319, %v5346
    %v5348 = vcombine.low %v5326, %v5340
    %v5349 = vcombine.high %v5326, %v5340
    %v5350 = vcombine.low %v5333, %v5347
    %v5351 = vcombine.high %v5333, %v5347
    %v5352 = vcombine.low %v4549, %v4553
    %v5353 = vcombine.high %v4549, %v4553
    %v5354 = vcombine.low %v4557, %v4561
    %v5355 = vcombine.high %v4557, %v4561
    %v5357 = vunpack.c.l.s4 1983009808
    %v5358 = vunpack.c.0.s8 %v5357
    %v5359 = vlaneseq
    %v5360 = vshrl.u32 %v5359, 7
    %v5361 = vsub.s32 %v5358, %v5360
    %v5362 = vrot.slane %v5352, %v5361
    %v5364 = vunpack.c.l.s4 1983009808
    %v5365 = vunpack.c.0.s8 %v5364
    %v5366 = vlaneseq
    %v5367 = vshrl.u32 %v5366, 7
    %v5368 = vsub.s32 %v5365, %v5367
    %v5369 = vrot.slane %v5353, %v5368
    %v5371 = vunpack.c.l.s4 1983009808
    %v5372 = vunpack.c.0.s8 %v5371
    %v5373 = vlaneseq
    %v5374 = vshrl.u32 %v5373, 7
    %v5375 = vsub.s32 %v5372, %v5374
    %v5376 = vrot.slane %v5354, %v5375
    %v5378 = vunpack.c.l.s4 1983009808
    %v5379 = vunpack.c.0.s8 %v5378
    %v5380 = vlaneseq
    %v5381 = vshrl.u32 %v5380, 7
    %v5382 = vsub.s32 %v5379, %v5381
    %v5383 = vrot.slane %v5355, %v5382
    %v5384 = vcombine.low %v5362, %v5376
    %v5385 = vcombine.high %v5362, %v5376
    %v5386 = vcombine.low %v5369, %v5383
    %v5387 = vcombine.high %v5369, %v5383
    %v5388 = vcombine.low %v4550, %v4554
    %v5389 = vcombine.high %v4550, %v4554
    %v5390 = vcombine.low %v4558, %v4562
    %v5391 = vcombine.high %v4558, %v4562
    %v5393 = vunpack.c.l.s4 1983009808
    %v5394 = vunpack.c.0.s8 %v5393
    %v5395 = vlaneseq
    %v5396 = vshrl.u32 %v5395, 7
    %v5397 = vsub.s32 %v5394, %v5396
    %v5398 = vrot.slane %v5388, %v5397
    %v5400 = vunpack.c.l.s4 1983009808
    %v5401 = vunpack.c.0.s8 %v5400
    %v5402 = vlaneseq
    %v5403 = vshrl.u32 %v5402, 7
    %v5404 = vsub.s32 %v5401, %v5403
    %v5405 = vrot.slane %v5389, %v5404
    %v5407 = vunpack.c.l.s4 1983009808
    %v5408 = vunpack.c.0.s8 %v5407
    %v5409 = vlaneseq
    %v5410 = vshrl.u32 %v5409, 7
    %v5411 = vsub.s32 %v5408, %v5410
    %v5412 = vrot.slane %v5390, %v5411
    %v5414 = vunpack.c.l.s4 1983009808
    %v5415 = vunpack.c.0.s8 %v5414
    %v5416 = vlaneseq
    %v5417 = vshrl.u32 %v5416, 7
    %v5418 = vsub.s32 %v5415, %v5417
    %v5419 = vrot.slane %v5391, %v5418
    %v5420 = vcombine.low %v5398, %v5412
    %v5421 = vcombine.high %v5398, %v5412
    %v5422 = vcombine.low %v5405, %v5419
    %v5423 = vcombine.high %v5405, %v5419
    %v5424 = vcombine.low %v4551, %v4555
    %v5425 = vcombine.high %v4551, %v4555
    %v5426 = vcombine.low %v4559, %v4563
    %v5427 = vcombine.high %v4559, %v4563
    %v5429 = vunpack.c.l.s4 1983009808
    %v5430 = vunpack.c.0.s8 %v5429
    %v5431 = vlaneseq
    %v5432 = vshrl.u32 %v5431, 7
    %v5433 = vsub.s32 %v5430, %v5432
    %v5434 = vrot.slane %v5424, %v5433
    %v5436 = vunpack.c.l.s4 1983009808
    %v5437 = vunpack.c.0.s8 %v5436
    %v5438 = vlaneseq
    %v5439 = vshrl.u32 %v5438, 7
    %v5440 = vsub.s32 %v5437, %v5439
    %v5441 = vrot.slane %v5425, %v5440
    %v5443 = vunpack.c.l.s4 1983009808
    %v5444 = vunpack.c.0.s8 %v5443
    %v5445 = vlaneseq
    %v5446 = vshrl.u32 %v5445, 7
    %v5447 = vsub.s32 %v5444, %v5446
    %v5448 = vrot.slane %v5426, %v5447
    %v5450 = vunpack.c.l.s4 1983009808
    %v5451 = vunpack.c.0.s8 %v5450
    %v5452 = vlaneseq
    %v5453 = vshrl.u32 %v5452, 7
    %v5454 = vsub.s32 %v5451, %v5453
    %v5455 = vrot.slane %v5427, %v5454
    %v5456 = vcombine.low %v5434, %v5448
    %v5457 = vcombine.high %v5434, %v5448
    %v5458 = vcombine.low %v5441, %v5455
    %v5459 = vcombine.high %v5441, %v5455
    %v5460 = vcombine.low %v4564, %v4568
    %v5461 = vcombine.high %v4564, %v4568
    %v5462 = vcombine.low %v4572, %v4576
    %v5463 = vcombine.high %v4572, %v4576
    %v5465 = vunpack.c.l.s4 1983009808
    %v5466 = vunpack.c.0.s8 %v5465
    %v5467 = vlaneseq
    %v5468 = vshrl.u32 %v5467, 7
    %v5469 = vsub.s32 %v5466, %v5468
    %v5470 = vrot.slane %v5460, %v5469
    %v5472 = vunpack.c.l.s4 1983009808
    %v5473 = vunpack.c.0.s8 %v5472
    %v5474 = vlaneseq
    %v5475 = vshrl.u32 %v5474, 7
    %v5476 = vsub.s32 %v5473, %v5475
    %v5477 = vrot.slane %v5461, %v5476
    %v5479 = vunpack.c.l.s4 1983009808
    %v5480 = vunpack.c.0.s8 %v5479
    %v5481 = vlaneseq
    %v5482 = vshrl.u32 %v5481, 7
    %v5483 = vsub.s32 %v5480, %v5482
    %v5484 = vrot.slane %v5462, %v5483
    %v5486 = vunpack.c.l.s4 1983009808
    %v5487 = vunpack.c.0.s8 %v5486
    %v5488 = vlaneseq
    %v5489 = vshrl.u32 %v5488, 7
    %v5490 = vsub.s32 %v5487, %v5489
    %v5491 = vrot.slane %v5463, %v5490
    %v5492 = vcombine.low %v5470, %v5484
    %v5493 = vcombine.high %v5470, %v5484
    %v5494 = vcombine.low %v5477, %v5491
    %v5495 = vcombine.high %v5477, %v5491
    %v5496 = vcombine.low %v4565, %v4569
    %v5497 = vcombine.high %v4565, %v4569
    %v5498 = vcombine.low %v4573, %v4577
    %v5499 = vcombine.high %v4573, %v4577
    %v5501 = vunpack.c.l.s4 1983009808
    %v5502 = vunpack.c.0.s8 %v5501
    %v5503 = vlaneseq
    %v5504 = vshrl.u32 %v5503, 7
    %v5505 = vsub.s32 %v5502, %v5504
    %v5506 = vrot.slane %v5496, %v5505
    %v5508 = vunpack.c.l.s4 1983009808
    %v5509 = vunpack.c.0.s8 %v5508
    %v5510 = vlaneseq
    %v5511 = vshrl.u32 %v5510, 7
    %v5512 = vsub.s32 %v5509, %v5511
    %v5513 = vrot.slane %v5497, %v5512
    %v5515 = vunpack.c.l.s4 1983009808
    %v5516 = vunpack.c.0.s8 %v5515
    %v5517 = vlaneseq
    %v5518 = vshrl.u32 %v5517, 7
    %v5519 = vsub.s32 %v5516, %v5518
    %v5520 = vrot.slane %v5498, %v5519
    %v5522 = vunpack.c.l.s4 1983009808
    %v5523 = vunpack.c.0.s8 %v5522
    %v5524 = vlaneseq
    %v5525 = vshrl.u32 %v5524, 7
    %v5526 = vsub.s32 %v5523, %v5525
    %v5527 = vrot.slane %v5499, %v5526
    %v5528 = vcombine.low %v5506, %v5520
    %v5529 = vcombine.high %v5506, %v5520
    %v5530 = vcombine.low %v5513, %v5527
    %v5531 = vcombine.high %v5513, %v5527
    %v5532 = vcombine.low %v4566, %v4570
    %v5533 = vcombine.high %v4566, %v4570
    %v5534 = vcombine.low %v4574, %v4578
    %v5535 = vcombine.high %v4574, %v4578
    %v5537 = vunpack.c.l.s4 1983009808
    %v5538 = vunpack.c.0.s8 %v5537
    %v5539 = vlaneseq
    %v5540 = vshrl.u32 %v5539, 7
    %v5541 = vsub.s32 %v5538, %v5540
    %v5542 = vrot.slane %v5532, %v5541
    %v5544 = vunpack.c.l.s4 1983009808
    %v5545 = vunpack.c.0.s8 %v5544
    %v5546 = vlaneseq
    %v5547 = vshrl.u32 %v5546, 7
    %v5548 = vsub.s32 %v5545, %v5547
    %v5549 = vrot.slane %v5533, %v5548
    %v5551 = vunpack.c.l.s4 1983009808
    %v5552 = vunpack.c.0.s8 %v5551
    %v5553 = vlaneseq
    %v5554 = vshrl.u32 %v5553, 7
    %v5555 = vsub.s32 %v5552, %v5554
    %v5556 = vrot.slane %v5534, %v5555
    %v5558 = vunpack.c.l.s4 1983009808
    %v5559 = vunpack.c.0.s8 %v5558
    %v5560 = vlaneseq
    %v5561 = vshrl.u32 %v5560, 7
    %v5562 = vsub.s32 %v5559, %v5561
    %v5563 = vrot.slane %v5535, %v5562
    %v5564 = vcombine.low %v5542, %v5556
    %v5565 = vcombine.high %v5542, %v5556
    %v5566 = vcombine.low %v5549, %v5563
    %v5567 = vcombine.high %v5549, %v5563
    %v5568 = vcombine.low %v4567, %v4571
    %v5569 = vcombine.high %v4567, %v4571
    %v5570 = vcombine.low %v4575, %v4579
    %v5571 = vcombine.high %v4575, %v4579
    %v5573 = vunpack.c.l.s4 1983009808
    %v5574 = vunpack.c.0.s8 %v5573
    %v5575 = vlaneseq
    %v5576 = vshrl.u32 %v5575, 7
    %v5577 = vsub.s32 %v5574, %v5576
    %v5578 = vrot.slane %v5568, %v5577
    %v5580 = vunpack.c.l.s4 1983009808
    %v5581 = vunpack.c.0.s8 %v5580
    %v5582 = vlaneseq
    %v5583 = vshrl.u32 %v5582, 7
    %v5584 = vsub.s32 %v5581, %v5583
    %v5585 = vrot.slane %v5569, %v5584
    %v5587 = vunpack.c.l.s4 1983009808
    %v5588 = vunpack.c.0.s8 %v5587
    %v5589 = vlaneseq
    %v5590 = vshrl.u32 %v5589, 7
    %v5591 = vsub.s32 %v5588, %v5590
    %v5592 = vrot.slane %v5570, %v5591
    %v5594 = vunpack.c.l.s4 1983009808
    %v5595 = vunpack.c.0.s8 %v5594
    %v5596 = vlaneseq
    %v5597 = vshrl.u32 %v5596, 7
    %v5598 = vsub.s32 %v5595, %v5597
    %v5599 = vrot.slane %v5571, %v5598
    %v5600 = vcombine.low %v5578, %v5592
    %v5601 = vcombine.high %v5578, %v5592
    %v5602 = vcombine.low %v5585, %v5599
    %v5603 = vcombine.high %v5585, %v5599
    %v5604 = vcombine.low %v4580, %v4584
    %v5605 = vcombine.high %v4580, %v4584
    %v5606 = vcombine.low %v4588, %v4592
    %v5607 = vcombine.high %v4588, %v4592
    %v5609 = vunpack.c.l.s4 1983009808
    %v5610 = vunpack.c.0.s8 %v5609
    %v5611 = vlaneseq
    %v5612 = vshrl.u32 %v5611, 7
    %v5613 = vsub.s32 %v5610, %v5612
    %v5614 = vrot.slane %v5604, %v5613
    %v5616 = vunpack.c.l.s4 1983009808
    %v5617 = vunpack.c.0.s8 %v5616
    %v5618 = vlaneseq
    %v5619 = vshrl.u32 %v5618, 7
    %v5620 = vsub.s32 %v5617, %v5619
    %v5621 = vrot.slane %v5605, %v5620
    %v5623 = vunpack.c.l.s4 1983009808
    %v5624 = vunpack.c.0.s8 %v5623
    %v5625 = vlaneseq
    %v5626 = vshrl.u32 %v5625, 7
    %v5627 = vsub.s32 %v5624, %v5626
    %v5628 = vrot.slane %v5606, %v5627
    %v5630 = vunpack.c.l.s4 1983009808
    %v5631 = vunpack.c.0.s8 %v5630
    %v5632 = vlaneseq
    %v5633 = vshrl.u32 %v5632, 7
    %v5634 = vsub.s32 %v5631, %v5633
    %v5635 = vrot.slane %v5607, %v5634
    %v5636 = vcombine.low %v5614, %v5628
    %v5637 = vcombine.high %v5614, %v5628
    %v5638 = vcombine.low %v5621, %v5635
    %v5639 = vcombine.high %v5621, %v5635
    %v5640 = vcombine.low %v4581, %v4585
    %v5641 = vcombine.high %v4581, %v4585
    %v5642 = vcombine.low %v4589, %v4593
    %v5643 = vcombine.high %v4589, %v4593
    %v5645 = vunpack.c.l.s4 1983009808
    %v5646 = vunpack.c.0.s8 %v5645
    %v5647 = vlaneseq
    %v5648 = vshrl.u32 %v5647, 7
    %v5649 = vsub.s32 %v5646, %v5648
    %v5650 = vrot.slane %v5640, %v5649
    %v5652 = vunpack.c.l.s4 1983009808
    %v5653 = vunpack.c.0.s8 %v5652
    %v5654 = vlaneseq
    %v5655 = vshrl.u32 %v5654, 7
    %v5656 = vsub.s32 %v5653, %v5655
    %v5657 = vrot.slane %v5641, %v5656
    %v5659 = vunpack.c.l.s4 1983009808
    %v5660 = vunpack.c.0.s8 %v5659
    %v5661 = vlaneseq
    %v5662 = vshrl.u32 %v5661, 7
    %v5663 = vsub.s32 %v5660, %v5662
    %v5664 = vrot.slane %v5642, %v5663
    %v5666 = vunpack.c.l.s4 1983009808
    %v5667 = vunpack.c.0.s8 %v5666
    %v5668 = vlaneseq
    %v5669 = vshrl.u32 %v5668, 7
    %v5670 = vsub.s32 %v5667, %v5669
    %v5671 = vrot.slane %v5643, %v5670
    %v5672 = vcombine.low %v5650, %v5664
    %v5673 = vcombine.high %v5650, %v5664
    %v5674 = vcombine.low %v5657, %v5671
    %v5675 = vcombine.high %v5657, %v5671
    %v5676 = vcombine.low %v4582, %v4586
    %v5677 = vcombine.high %v4582, %v4586
    %v5678 = vcombine.low %v4590, %v4594
    %v5679 = vcombine.high %v4590, %v4594
    %v5681 = vunpack.c.l.s4 1983009808
    %v5682 = vunpack.c.0.s8 %v5681
    %v5683 = vlaneseq
    %v5684 = vshrl.u32 %v5683, 7
    %v5685 = vsub.s32 %v5682, %v5684
    %v5686 = vrot.slane %v5676, %v5685
    %v5688 = vunpack.c.l.s4 1983009808
    %v5689 = vunpack.c.0.s8 %v5688
    %v5690 = vlaneseq
    %v5691 = vshrl.u32 %v5690, 7
    %v5692 = vsub.s32 %v5689, %v5691
    %v5693 = vrot.slane %v5677, %v5692
    %v5695 = vunpack.c.l.s4 1983009808
    %v5696 = vunpack.c.0.s8 %v5695
    %v5697 = vlaneseq
    %v5698 = vshrl.u32 %v5697, 7
    %v5699 = vsub.s32 %v5696, %v5698
    %v5700 = vrot.slane %v5678, %v5699
    %v5702 = vunpack.c.l.s4 1983009808
    %v5703 = vunpack.c.0.s8 %v5702
    %v5704 = vlaneseq
    %v5705 = vshrl.u32 %v5704, 7
    %v5706 = vsub.s32 %v5703, %v5705
    %v5707 = vrot.slane %v5679, %v5706
    %v5708 = vcombine.low %v5686, %v5700
    %v5709 = vcombine.high %v5686, %v5700
    %v5710 = vcombine.low %v5693, %v5707
    %v5711 = vcombine.high %v5693, %v5707
    %v5712 = vcombine.low %v4583, %v4587
    %v5713 = vcombine.high %v4583, %v4587
    %v5714 = vcombine.low %v4591, %v4595
    %v5715 = vcombine.high %v4591, %v4595
    %v5717 = vunpack.c.l.s4 1983009808
    %v5718 = vunpack.c.0.s8 %v5717
    %v5719 = vlaneseq
    %v5720 = vshrl.u32 %v5719, 7
    %v5721 = vsub.s32 %v5718, %v5720
    %v5722 = vrot.slane %v5712, %v5721
    %v5724 = vunpack.c.l.s4 1983009808
    %v5725 = vunpack.c.0.s8 %v5724
    %v5726 = vlaneseq
    %v5727 = vshrl.u32 %v5726, 7
    %v5728 = vsub.s32 %v5725, %v5727
    %v5729 = vrot.slane %v5713, %v5728
    %v5731 = vunpack.c.l.s4 1983009808
    %v5732 = vunpack.c.0.s8 %v5731
    %v5733 = vlaneseq
    %v5734 = vshrl.u32 %v5733, 7
    %v5735 = vsub.s32 %v5732, %v5734
    %v5736 = vrot.slane %v5714, %v5735
    %v5738 = vunpack.c.l.s4 1983009808
    %v5739 = vunpack.c.0.s8 %v5738
    %v5740 = vlaneseq
    %v5741 = vshrl.u32 %v5740, 7
    %v5742 = vsub.s32 %v5739, %v5741
    %v5743 = vrot.slane %v5715, %v5742
    %v5744 = vcombine.low %v5722, %v5736
    %v5745 = vcombine.high %v5722, %v5736
    %v5746 = vcombine.low %v5729, %v5743
    %v5747 = vcombine.high %v5729, %v5743
    %v5748 = vcombine.low %v4596, %v4600
    %v5749 = vcombine.high %v4596, %v4600
    %v5750 = vcombine.low %v4604, %v4608
    %v5751 = vcombine.high %v4604, %v4608
    %v5753 = vunpack.c.l.s4 1983009808
    %v5754 = vunpack.c.0.s8 %v5753
    %v5755 = vlaneseq
    %v5756 = vshrl.u32 %v5755, 7
    %v5757 = vsub.s32 %v5754, %v5756
    %v5758 = vrot.slane %v5748, %v5757
    %v5760 = vunpack.c.l.s4 1983009808
    %v5761 = vunpack.c.0.s8 %v5760
    %v5762 = vlaneseq
    %v5763 = vshrl.u32 %v5762, 7
    %v5764 = vsub.s32 %v5761, %v5763
    %v5765 = vrot.slane %v5749, %v5764
    %v5767 = vunpack.c.l.s4 1983009808
    %v5768 = vunpack.c.0.s8 %v5767
    %v5769 = vlaneseq
    %v5770 = vshrl.u32 %v5769, 7
    %v5771 = vsub.s32 %v5768, %v5770
    %v5772 = vrot.slane %v5750, %v5771
    %v5774 = vunpack.c.l.s4 1983009808
    %v5775 = vunpack.c.0.s8 %v5774
    %v5776 = vlaneseq
    %v5777 = vshrl.u32 %v5776, 7
    %v5778 = vsub.s32 %v5775, %v5777
    %v5779 = vrot.slane %v5751, %v5778
    %v5780 = vcombine.low %v5758, %v5772
    %v5781 = vcombine.high %v5758, %v5772
    %v5782 = vcombine.low %v5765, %v5779
    %v5783 = vcombine.high %v5765, %v5779
    %v5784 = vcombine.low %v4597, %v4601
    %v5785 = vcombine.high %v4597, %v4601
    %v5786 = vcombine.low %v4605, %v4609
    %v5787 = vcombine.high %v4605, %v4609
    %v5789 = vunpack.c.l.s4 1983009808
    %v5790 = vunpack.c.0.s8 %v5789
    %v5791 = vlaneseq
    %v5792 = vshrl.u32 %v5791, 7
    %v5793 = vsub.s32 %v5790, %v5792
    %v5794 = vrot.slane %v5784, %v5793
    %v5796 = vunpack.c.l.s4 1983009808
    %v5797 = vunpack.c.0.s8 %v5796
    %v5798 = vlaneseq
    %v5799 = vshrl.u32 %v5798, 7
    %v5800 = vsub.s32 %v5797, %v5799
    %v5801 = vrot.slane %v5785, %v5800
    %v5803 = vunpack.c.l.s4 1983009808
    %v5804 = vunpack.c.0.s8 %v5803
    %v5805 = vlaneseq
    %v5806 = vshrl.u32 %v5805, 7
    %v5807 = vsub.s32 %v5804, %v5806
    %v5808 = vrot.slane %v5786, %v5807
    %v5810 = vunpack.c.l.s4 1983009808
    %v5811 = vunpack.c.0.s8 %v5810
    %v5812 = vlaneseq
    %v5813 = vshrl.u32 %v5812, 7
    %v5814 = vsub.s32 %v5811, %v5813
    %v5815 = vrot.slane %v5787, %v5814
    %v5816 = vcombine.low %v5794, %v5808
    %v5817 = vcombine.high %v5794, %v5808
    %v5818 = vcombine.low %v5801, %v5815
    %v5819 = vcombine.high %v5801, %v5815
    %v5820 = vcombine.low %v4598, %v4602
    %v5821 = vcombine.high %v4598, %v4602
    %v5822 = vcombine.low %v4606, %v4610
    %v5823 = vcombine.high %v4606, %v4610
    %v5825 = vunpack.c.l.s4 1983009808
    %v5826 = vunpack.c.0.s8 %v5825
    %v5827 = vlaneseq
    %v5828 = vshrl.u32 %v5827, 7
    %v5829 = vsub.s32 %v5826, %v5828
    %v5830 = vrot.slane %v5820, %v5829
    %v5832 = vunpack.c.l.s4 1983009808
    %v5833 = vunpack.c.0.s8 %v5832
    %v5834 = vlaneseq
    %v5835 = vshrl.u32 %v5834, 7
    %v5836 = vsub.s32 %v5833, %v5835
    %v5837 = vrot.slane %v5821, %v5836
    %v5839 = vunpack.c.l.s4 1983009808
    %v5840 = vunpack.c.0.s8 %v5839
    %v5841 = vlaneseq
    %v5842 = vshrl.u32 %v5841, 7
    %v5843 = vsub.s32 %v5840, %v5842
    %v5844 = vrot.slane %v5822, %v5843
    %v5846 = vunpack.c.l.s4 1983009808
    %v5847 = vunpack.c.0.s8 %v5846
    %v5848 = vlaneseq
    %v5849 = vshrl.u32 %v5848, 7
    %v5850 = vsub.s32 %v5847, %v5849
    %v5851 = vrot.slane %v5823, %v5850
    %v5852 = vcombine.low %v5830, %v5844
    %v5853 = vcombine.high %v5830, %v5844
    %v5854 = vcombine.low %v5837, %v5851
    %v5855 = vcombine.high %v5837, %v5851
    %v5856 = vcombine.low %v4599, %v4603
    %v5857 = vcombine.high %v4599, %v4603
    %v5858 = vcombine.low %v4607, %v4611
    %v5859 = vcombine.high %v4607, %v4611
    %v5861 = vunpack.c.l.s4 1983009808
    %v5862 = vunpack.c.0.s8 %v5861
    %v5863 = vlaneseq
    %v5864 = vshrl.u32 %v5863, 7
    %v5865 = vsub.s32 %v5862, %v5864
    %v5866 = vrot.slane %v5856, %v5865
    %v5868 = vunpack.c.l.s4 1983009808
    %v5869 = vunpack.c.0.s8 %v5868
    %v5870 = vlaneseq
    %v5871 = vshrl.u32 %v5870, 7
    %v5872 = vsub.s32 %v5869, %v5871
    %v5873 = vrot.slane %v5857, %v5872
    %v5875 = vunpack.c.l.s4 1983009808
    %v5876 = vunpack.c.0.s8 %v5875
    %v5877 = vlaneseq
    %v5878 = vshrl.u32 %v5877, 7
    %v5879 = vsub.s32 %v5876, %v5878
    %v5880 = vrot.slane %v5858, %v5879
    %v5882 = vunpack.c.l.s4 1983009808
    %v5883 = vunpack.c.0.s8 %v5882
    %v5884 = vlaneseq
    %v5885 = vshrl.u32 %v5884, 7
    %v5886 = vsub.s32 %v5883, %v5885
    %v5887 = vrot.slane %v5859, %v5886
    %v5888 = vcombine.low %v5866, %v5880
    %v5889 = vcombine.high %v5866, %v5880
    %v5890 = vcombine.low %v5873, %v5887
    %v5891 = vcombine.high %v5873, %v5887
    %v5892 = vcombine.low %v4612, %v4616
    %v5893 = vcombine.high %v4612, %v4616
    %v5894 = vcombine.low %v4620, %v4624
    %v5895 = vcombine.high %v4620, %v4624
    %v5897 = vunpack.c.l.s4 1983009808
    %v5898 = vunpack.c.0.s8 %v5897
    %v5899 = vlaneseq
    %v5900 = vshrl.u32 %v5899, 7
    %v5901 = vsub.s32 %v5898, %v5900
    %v5902 = vrot.slane %v5892, %v5901
    %v5904 = vunpack.c.l.s4 1983009808
    %v5905 = vunpack.c.0.s8 %v5904
    %v5906 = vlaneseq
    %v5907 = vshrl.u32 %v5906, 7
    %v5908 = vsub.s32 %v5905, %v5907
    %v5909 = vrot.slane %v5893, %v5908
    %v5911 = vunpack.c.l.s4 1983009808
    %v5912 = vunpack.c.0.s8 %v5911
    %v5913 = vlaneseq
    %v5914 = vshrl.u32 %v5913, 7
    %v5915 = vsub.s32 %v5912, %v5914
    %v5916 = vrot.slane %v5894, %v5915
    %v5918 = vunpack.c.l.s4 1983009808
    %v5919 = vunpack.c.0.s8 %v5918
    %v5920 = vlaneseq
    %v5921 = vshrl.u32 %v5920, 7
    %v5922 = vsub.s32 %v5919, %v5921
    %v5923 = vrot.slane %v5895, %v5922
    %v5924 = vcombine.low %v5902, %v5916
    %v5925 = vcombine.high %v5902, %v5916
    %v5926 = vcombine.low %v5909, %v5923
    %v5927 = vcombine.high %v5909, %v5923
    %v5928 = vcombine.low %v4613, %v4617
    %v5929 = vcombine.high %v4613, %v4617
    %v5930 = vcombine.low %v4621, %v4625
    %v5931 = vcombine.high %v4621, %v4625
    %v5933 = vunpack.c.l.s4 1983009808
    %v5934 = vunpack.c.0.s8 %v5933
    %v5935 = vlaneseq
    %v5936 = vshrl.u32 %v5935, 7
    %v5937 = vsub.s32 %v5934, %v5936
    %v5938 = vrot.slane %v5928, %v5937
    %v5940 = vunpack.c.l.s4 1983009808
    %v5941 = vunpack.c.0.s8 %v5940
    %v5942 = vlaneseq
    %v5943 = vshrl.u32 %v5942, 7
    %v5944 = vsub.s32 %v5941, %v5943
    %v5945 = vrot.slane %v5929, %v5944
    %v5947 = vunpack.c.l.s4 1983009808
    %v5948 = vunpack.c.0.s8 %v5947
    %v5949 = vlaneseq
    %v5950 = vshrl.u32 %v5949, 7
    %v5951 = vsub.s32 %v5948, %v5950
    %v5952 = vrot.slane %v5930, %v5951
    %v5954 = vunpack.c.l.s4 1983009808
    %v5955 = vunpack.c.0.s8 %v5954
    %v5956 = vlaneseq
    %v5957 = vshrl.u32 %v5956, 7
    %v5958 = vsub.s32 %v5955, %v5957
    %v5959 = vrot.slane %v5931, %v5958
    %v5960 = vcombine.low %v5938, %v5952
    %v5961 = vcombine.high %v5938, %v5952
    %v5962 = vcombine.low %v5945, %v5959
    %v5963 = vcombine.high %v5945, %v5959
    %v5964 = vcombine.low %v4614, %v4618
    %v5965 = vcombine.high %v4614, %v4618
    %v5966 = vcombine.low %v4622, %v4626
    %v5967 = vcombine.high %v4622, %v4626
    %v5969 = vunpack.c.l.s4 1983009808
    %v5970 = vunpack.c.0.s8 %v5969
    %v5971 = vlaneseq
    %v5972 = vshrl.u32 %v5971, 7
    %v5973 = vsub.s32 %v5970, %v5972
    %v5974 = vrot.slane %v5964, %v5973
    %v5976 = vunpack.c.l.s4 1983009808
    %v5977 = vunpack.c.0.s8 %v5976
    %v5978 = vlaneseq
    %v5979 = vshrl.u32 %v5978, 7
    %v5980 = vsub.s32 %v5977, %v5979
    %v5981 = vrot.slane %v5965, %v5980
    %v5983 = vunpack.c.l.s4 1983009808
    %v5984 = vunpack.c.0.s8 %v5983
    %v5985 = vlaneseq
    %v5986 = vshrl.u32 %v5985, 7
    %v5987 = vsub.s32 %v5984, %v5986
    %v5988 = vrot.slane %v5966, %v5987
    %v5990 = vunpack.c.l.s4 1983009808
    %v5991 = vunpack.c.0.s8 %v5990
    %v5992 = vlaneseq
    %v5993 = vshrl.u32 %v5992, 7
    %v5994 = vsub.s32 %v5991, %v5993
    %v5995 = vrot.slane %v5967, %v5994
    %v5996 = vcombine.low %v5974, %v5988
    %v5997 = vcombine.high %v5974, %v5988
    %v5998 = vcombine.low %v5981, %v5995
    %v5999 = vcombine.high %v5981, %v5995
    %v6000 = vcombine.low %v4615, %v4619
    %v6001 = vcombine.high %v4615, %v4619
    %v6002 = vcombine.low %v4623, %v4627
    %v6003 = vcombine.high %v4623, %v4627
    %v6005 = vunpack.c.l.s4 1983009808
    %v6006 = vunpack.c.0.s8 %v6005
    %v6007 = vlaneseq
    %v6008 = vshrl.u32 %v6007, 7
    %v6009 = vsub.s32 %v6006, %v6008
    %v6010 = vrot.slane %v6000, %v6009
    %v6012 = vunpack.c.l.s4 1983009808
    %v6013 = vunpack.c.0.s8 %v6012
    %v6014 = vlaneseq
    %v6015 = vshrl.u32 %v6014, 7
    %v6016 = vsub.s32 %v6013, %v6015
    %v6017 = vrot.slane %v6001, %v6016
    %v6019 = vunpack.c.l.s4 1983009808
    %v6020 = vunpack.c.0.s8 %v6019
    %v6021 = vlaneseq
    %v6022 = vshrl.u32 %v6021, 7
    %v6023 = vsub.s32 %v6020, %v6022
    %v6024 = vrot.slane %v6002, %v6023
    %v6026 = vunpack.c.l.s4 1983009808
    %v6027 = vunpack.c.0.s8 %v6026
    %v6028 = vlaneseq
    %v6029 = vshrl.u32 %v6028, 7
    %v6030 = vsub.s32 %v6027, %v6029
    %v6031 = vrot.slane %v6003, %v6030
    %v6032 = vcombine.low %v6010, %v6024
    %v6033 = vcombine.high %v6010, %v6024
    %v6034 = vcombine.low %v6017, %v6031
    %v6035 = vcombine.high %v6017, %v6031
    %v6036 = vcombine.low %v4628, %v4632
    %v6037 = vcombine.high %v4628, %v4632
    %v6038 = vcombine.low %v4636, %v4640
    %v6039 = vcombine.high %v4636, %v4640
    %v6041 = vunpack.c.l.s4 1983009808
    %v6042 = vunpack.c.0.s8 %v6041
    %v6043 = vlaneseq
    %v6044 = vshrl.u32 %v6043, 7
    %v6045 = vsub.s32 %v6042, %v6044
    %v6046 = vrot.slane %v6036, %v6045
    %v6048 = vunpack.c.l.s4 1983009808
    %v6049 = vunpack.c.0.s8 %v6048
    %v6050 = vlaneseq
    %v6051 = vshrl.u32 %v6050, 7
    %v6052 = vsub.s32 %v6049, %v6051
    %v6053 = vrot.slane %v6037, %v6052
    %v6055 = vunpack.c.l.s4 1983009808
    %v6056 = vunpack.c.0.s8 %v6055
    %v6057 = vlaneseq
    %v6058 = vshrl.u32 %v6057, 7
    %v6059 = vsub.s32 %v6056, %v6058
    %v6060 = vrot.slane %v6038, %v6059
    %v6062 = vunpack.c.l.s4 1983009808
    %v6063 = vunpack.c.0.s8 %v6062
    %v6064 = vlaneseq
    %v6065 = vshrl.u32 %v6064, 7
    %v6066 = vsub.s32 %v6063, %v6065
    %v6067 = vrot.slane %v6039, %v6066
    %v6068 = vcombine.low %v6046, %v6060
    %v6069 = vcombine.high %v6046, %v6060
    %v6070 = vcombine.low %v6053, %v6067
    %v6071 = vcombine.high %v6053, %v6067
    %v6072 = vcombine.low %v4629, %v4633
    %v6073 = vcombine.high %v4629, %v4633
    %v6074 = vcombine.low %v4637, %v4641
    %v6075 = vcombine.high %v4637, %v4641
    %v6077 = vunpack.c.l.s4 1983009808
    %v6078 = vunpack.c.0.s8 %v6077
    %v6079 = vlaneseq
    %v6080 = vshrl.u32 %v6079, 7
    %v6081 = vsub.s32 %v6078, %v6080
    %v6082 = vrot.slane %v6072, %v6081
    %v6084 = vunpack.c.l.s4 1983009808
    %v6085 = vunpack.c.0.s8 %v6084
    %v6086 = vlaneseq
    %v6087 = vshrl.u32 %v6086, 7
    %v6088 = vsub.s32 %v6085, %v6087
    %v6089 = vrot.slane %v6073, %v6088
    %v6091 = vunpack.c.l.s4 1983009808
    %v6092 = vunpack.c.0.s8 %v6091
    %v6093 = vlaneseq
    %v6094 = vshrl.u32 %v6093, 7
    %v6095 = vsub.s32 %v6092, %v6094
    %v6096 = vrot.slane %v6074, %v6095
    %v6098 = vunpack.c.l.s4 1983009808
    %v6099 = vunpack.c.0.s8 %v6098
    %v6100 = vlaneseq
    %v6101 = vshrl.u32 %v6100, 7
    %v6102 = vsub.s32 %v6099, %v6101
    %v6103 = vrot.slane %v6075, %v6102
    %v6104 = vcombine.low %v6082, %v6096
    %v6105 = vcombine.high %v6082, %v6096
    %v6106 = vcombine.low %v6089, %v6103
    %v6107 = vcombine.high %v6089, %v6103
    %v6108 = vcombine.low %v4630, %v4634
    %v6109 = vcombine.high %v4630, %v4634
    %v6110 = vcombine.low %v4638, %v4642
    %v6111 = vcombine.high %v4638, %v4642
    %v6113 = vunpack.c.l.s4 1983009808
    %v6114 = vunpack.c.0.s8 %v6113
    %v6115 = vlaneseq
    %v6116 = vshrl.u32 %v6115, 7
    %v6117 = vsub.s32 %v6114, %v6116
    %v6118 = vrot.slane %v6108, %v6117
    %v6120 = vunpack.c.l.s4 1983009808
    %v6121 = vunpack.c.0.s8 %v6120
    %v6122 = vlaneseq
    %v6123 = vshrl.u32 %v6122, 7
    %v6124 = vsub.s32 %v6121, %v6123
    %v6125 = vrot.slane %v6109, %v6124
    %v6127 = vunpack.c.l.s4 1983009808
    %v6128 = vunpack.c.0.s8 %v6127
    %v6129 = vlaneseq
    %v6130 = vshrl.u32 %v6129, 7
    %v6131 = vsub.s32 %v6128, %v6130
    %v6132 = vrot.slane %v6110, %v6131
    %v6134 = vunpack.c.l.s4 1983009808
    %v6135 = vunpack.c.0.s8 %v6134
    %v6136 = vlaneseq
    %v6137 = vshrl.u32 %v6136, 7
    %v6138 = vsub.s32 %v6135, %v6137
    %v6139 = vrot.slane %v6111, %v6138
    %v6140 = vcombine.low %v6118, %v6132
    %v6141 = vcombine.high %v6118, %v6132
    %v6142 = vcombine.low %v6125, %v6139
    %v6143 = vcombine.high %v6125, %v6139
    %v6144 = vcombine.low %v4631, %v4635
    %v6145 = vcombine.high %v4631, %v4635
    %v6146 = vcombine.low %v4639, %v4643
    %v6147 = vcombine.high %v4639, %v4643
    %v6149 = vunpack.c.l.s4 1983009808
    %v6150 = vunpack.c.0.s8 %v6149
    %v6151 = vlaneseq
    %v6152 = vshrl.u32 %v6151, 7
    %v6153 = vsub.s32 %v6150, %v6152
    %v6154 = vrot.slane %v6144, %v6153
    %v6156 = vunpack.c.l.s4 1983009808
    %v6157 = vunpack.c.0.s8 %v6156
    %v6158 = vlaneseq
    %v6159 = vshrl.u32 %v6158, 7
    %v6160 = vsub.s32 %v6157, %v6159
    %v6161 = vrot.slane %v6145, %v6160
    %v6163 = vunpack.c.l.s4 1983009808
    %v6164 = vunpack.c.0.s8 %v6163
    %v6165 = vlaneseq
    %v6166 = vshrl.u32 %v6165, 7
    %v6167 = vsub.s32 %v6164, %v6166
    %v6168 = vrot.slane %v6146, %v6167
    %v6170 = vunpack.c.l.s4 1983009808
    %v6171 = vunpack.c.0.s8 %v6170
    %v6172 = vlaneseq
    %v6173 = vshrl.u32 %v6172, 7
    %v6174 = vsub.s32 %v6171, %v6173
    %v6175 = vrot.slane %v6147, %v6174
    %v6176 = vcombine.low %v6154, %v6168
    %v6177 = vcombine.high %v6154, %v6168
    %v6178 = vcombine.low %v6161, %v6175
    %v6179 = vcombine.high %v6161, %v6175
    %v6180 = vcombine.low %v4644, %v4648
    %v6181 = vcombine.high %v4644, %v4648
    %v6182 = vcombine.low %v4652, %v4656
    %v6183 = vcombine.high %v4652, %v4656
    %v6185 = vunpack.c.l.s4 1983009808
    %v6186 = vunpack.c.0.s8 %v6185
    %v6187 = vlaneseq
    %v6188 = vshrl.u32 %v6187, 7
    %v6189 = vsub.s32 %v6186, %v6188
    %v6190 = vrot.slane %v6180, %v6189
    %v6192 = vunpack.c.l.s4 1983009808
    %v6193 = vunpack.c.0.s8 %v6192
    %v6194 = vlaneseq
    %v6195 = vshrl.u32 %v6194, 7
    %v6196 = vsub.s32 %v6193, %v6195
    %v6197 = vrot.slane %v6181, %v6196
    %v6199 = vunpack.c.l.s4 1983009808
    %v6200 = vunpack.c.0.s8 %v6199
    %v6201 = vlaneseq
    %v6202 = vshrl.u32 %v6201, 7
    %v6203 = vsub.s32 %v6200, %v6202
    %v6204 = vrot.slane %v6182, %v6203
    %v6206 = vunpack.c.l.s4 1983009808
    %v6207 = vunpack.c.0.s8 %v6206
    %v6208 = vlaneseq
    %v6209 = vshrl.u32 %v6208, 7
    %v6210 = vsub.s32 %v6207, %v6209
    %v6211 = vrot.slane %v6183, %v6210
    %v6212 = vcombine.low %v6190, %v6204
    %v6213 = vcombine.high %v6190, %v6204
    %v6214 = vcombine.low %v6197, %v6211
    %v6215 = vcombine.high %v6197, %v6211
    %v6216 = vcombine.low %v4645, %v4649
    %v6217 = vcombine.high %v4645, %v4649
    %v6218 = vcombine.low %v4653, %v4657
    %v6219 = vcombine.high %v4653, %v4657
    %v6221 = vunpack.c.l.s4 1983009808
    %v6222 = vunpack.c.0.s8 %v6221
    %v6223 = vlaneseq
    %v6224 = vshrl.u32 %v6223, 7
    %v6225 = vsub.s32 %v6222, %v6224
    %v6226 = vrot.slane %v6216, %v6225
    %v6228 = vunpack.c.l.s4 1983009808
    %v6229 = vunpack.c.0.s8 %v6228
    %v6230 = vlaneseq
    %v6231 = vshrl.u32 %v6230, 7
    %v6232 = vsub.s32 %v6229, %v6231
    %v6233 = vrot.slane %v6217, %v6232
    %v6235 = vunpack.c.l.s4 1983009808
    %v6236 = vunpack.c.0.s8 %v6235
    %v6237 = vlaneseq
    %v6238 = vshrl.u32 %v6237, 7
    %v6239 = vsub.s32 %v6236, %v6238
    %v6240 = vrot.slane %v6218, %v6239
    %v6242 = vunpack.c.l.s4 1983009808
    %v6243 = vunpack.c.0.s8 %v6242
    %v6244 = vlaneseq
    %v6245 = vshrl.u32 %v6244, 7
    %v6246 = vsub.s32 %v6243, %v6245
    %v6247 = vrot.slane %v6219, %v6246
    %v6248 = vcombine.low %v6226, %v6240
    %v6249 = vcombine.high %v6226, %v6240
    %v6250 = vcombine.low %v6233, %v6247
    %v6251 = vcombine.high %v6233, %v6247
    %v6252 = vcombine.low %v4646, %v4650
    %v6253 = vcombine.high %v4646, %v4650
    %v6254 = vcombine.low %v4654, %v4658
    %v6255 = vcombine.high %v4654, %v4658
    %v6257 = vunpack.c.l.s4 1983009808
    %v6258 = vunpack.c.0.s8 %v6257
    %v6259 = vlaneseq
    %v6260 = vshrl.u32 %v6259, 7
    %v6261 = vsub.s32 %v6258, %v6260
    %v6262 = vrot.slane %v6252, %v6261
    %v6264 = vunpack.c.l.s4 1983009808
    %v6265 = vunpack.c.0.s8 %v6264
    %v6266 = vlaneseq
    %v6267 = vshrl.u32 %v6266, 7
    %v6268 = vsub.s32 %v6265, %v6267
    %v6269 = vrot.slane %v6253, %v6268
    %v6271 = vunpack.c.l.s4 1983009808
    %v6272 = vunpack.c.0.s8 %v6271
    %v6273 = vlaneseq
    %v6274 = vshrl.u32 %v6273, 7
    %v6275 = vsub.s32 %v6272, %v6274
    %v6276 = vrot.slane %v6254, %v6275
    %v6278 = vunpack.c.l.s4 1983009808
    %v6279 = vunpack.c.0.s8 %v6278
    %v6280 = vlaneseq
    %v6281 = vshrl.u32 %v6280, 7
    %v6282 = vsub.s32 %v6279, %v6281
    %v6283 = vrot.slane %v6255, %v6282
    %v6284 = vcombine.low %v6262, %v6276
    %v6285 = vcombine.high %v6262, %v6276
    %v6286 = vcombine.low %v6269, %v6283
    %v6287 = vcombine.high %v6269, %v6283
    %v6288 = vcombine.low %v4647, %v4651
    %v6289 = vcombine.high %v4647, %v4651
    %v6290 = vcombine.low %v4655, %v4659
    %v6291 = vcombine.high %v4655, %v4659
    %v6293 = vunpack.c.l.s4 1983009808
    %v6294 = vunpack.c.0.s8 %v6293
    %v6295 = vlaneseq
    %v6296 = vshrl.u32 %v6295, 7
    %v6297 = vsub.s32 %v6294, %v6296
    %v6298 = vrot.slane %v6288, %v6297
    %v6300 = vunpack.c.l.s4 1983009808
    %v6301 = vunpack.c.0.s8 %v6300
    %v6302 = vlaneseq
    %v6303 = vshrl.u32 %v6302, 7
    %v6304 = vsub.s32 %v6301, %v6303
    %v6305 = vrot.slane %v6289, %v6304
    %v6307 = vunpack.c.l.s4 1983009808
    %v6308 = vunpack.c.0.s8 %v6307
    %v6309 = vlaneseq
    %v6310 = vshrl.u32 %v6309, 7
    %v6311 = vsub.s32 %v6308, %v6310
    %v6312 = vrot.slane %v6290, %v6311
    %v6314 = vunpack.c.l.s4 1983009808
    %v6315 = vunpack.c.0.s8 %v6314
    %v6316 = vlaneseq
    %v6317 = vshrl.u32 %v6316, 7
    %v6318 = vsub.s32 %v6315, %v6317
    %v6319 = vrot.slane %v6291, %v6318
    %v6320 = vcombine.low %v6298, %v6312
    %v6321 = vcombine.high %v6298, %v6312
    %v6322 = vcombine.low %v6305, %v6319
    %v6323 = vcombine.high %v6305, %v6319
    %v6324 = vcombine.low %v4660, %v4664
    %v6325 = vcombine.high %v4660, %v4664
    %v6326 = vcombine.low %v4668, %v4672
    %v6327 = vcombine.high %v4668, %v4672
    %v6329 = vunpack.c.l.s4 1983009808
    %v6330 = vunpack.c.0.s8 %v6329
    %v6331 = vlaneseq
    %v6332 = vshrl.u32 %v6331, 7
    %v6333 = vsub.s32 %v6330, %v6332
    %v6334 = vrot.slane %v6324, %v6333
    %v6336 = vunpack.c.l.s4 1983009808
    %v6337 = vunpack.c.0.s8 %v6336
    %v6338 = vlaneseq
    %v6339 = vshrl.u32 %v6338, 7
    %v6340 = vsub.s32 %v6337, %v6339
    %v6341 = vrot.slane %v6325, %v6340
    %v6343 = vunpack.c.l.s4 1983009808
    %v6344 = vunpack.c.0.s8 %v6343
    %v6345 = vlaneseq
    %v6346 = vshrl.u32 %v6345, 7
    %v6347 = vsub.s32 %v6344, %v6346
    %v6348 = vrot.slane %v6326, %v6347
    %v6350 = vunpack.c.l.s4 1983009808
    %v6351 = vunpack.c.0.s8 %v6350
    %v6352 = vlaneseq
    %v6353 = vshrl.u32 %v6352, 7
    %v6354 = vsub.s32 %v6351, %v6353
    %v6355 = vrot.slane %v6327, %v6354
    %v6356 = vcombine.low %v6334, %v6348
    %v6357 = vcombine.high %v6334, %v6348
    %v6358 = vcombine.low %v6341, %v6355
    %v6359 = vcombine.high %v6341, %v6355
    %v6360 = vcombine.low %v4661, %v4665
    %v6361 = vcombine.high %v4661, %v4665
    %v6362 = vcombine.low %v4669, %v4673
    %v6363 = vcombine.high %v4669, %v4673
    %v6365 = vunpack.c.l.s4 1983009808
    %v6366 = vunpack.c.0.s8 %v6365
    %v6367 = vlaneseq
    %v6368 = vshrl.u32 %v6367, 7
    %v6369 = vsub.s32 %v6366, %v6368
    %v6370 = vrot.slane %v6360, %v6369
    %v6372 = vunpack.c.l.s4 1983009808
    %v6373 = vunpack.c.0.s8 %v6372
    %v6374 = vlaneseq
    %v6375 = vshrl.u32 %v6374, 7
    %v6376 = vsub.s32 %v6373, %v6375
    %v6377 = vrot.slane %v6361, %v6376
    %v6379 = vunpack.c.l.s4 1983009808
    %v6380 = vunpack.c.0.s8 %v6379
    %v6381 = vlaneseq
    %v6382 = vshrl.u32 %v6381, 7
    %v6383 = vsub.s32 %v6380, %v6382
    %v6384 = vrot.slane %v6362, %v6383
    %v6386 = vunpack.c.l.s4 1983009808
    %v6387 = vunpack.c.0.s8 %v6386
    %v6388 = vlaneseq
    %v6389 = vshrl.u32 %v6388, 7
    %v6390 = vsub.s32 %v6387, %v6389
    %v6391 = vrot.slane %v6363, %v6390
    %v6392 = vcombine.low %v6370, %v6384
    %v6393 = vcombine.high %v6370, %v6384
    %v6394 = vcombine.low %v6377, %v6391
    %v6395 = vcombine.high %v6377, %v6391
    %v6396 = vcombine.low %v4662, %v4666
    %v6397 = vcombine.high %v4662, %v4666
    %v6398 = vcombine.low %v4670, %v4674
    %v6399 = vcombine.high %v4670, %v4674
    %v6401 = vunpack.c.l.s4 1983009808
    %v6402 = vunpack.c.0.s8 %v6401
    %v6403 = vlaneseq
    %v6404 = vshrl.u32 %v6403, 7
    %v6405 = vsub.s32 %v6402, %v6404
    %v6406 = vrot.slane %v6396, %v6405
    %v6408 = vunpack.c.l.s4 1983009808
    %v6409 = vunpack.c.0.s8 %v6408
    %v6410 = vlaneseq
    %v6411 = vshrl.u32 %v6410, 7
    %v6412 = vsub.s32 %v6409, %v6411
    %v6413 = vrot.slane %v6397, %v6412
    %v6415 = vunpack.c.l.s4 1983009808
    %v6416 = vunpack.c.0.s8 %v6415
    %v6417 = vlaneseq
    %v6418 = vshrl.u32 %v6417, 7
    %v6419 = vsub.s32 %v6416, %v6418
    %v6420 = vrot.slane %v6398, %v6419
    %v6422 = vunpack.c.l.s4 1983009808
    %v6423 = vunpack.c.0.s8 %v6422
    %v6424 = vlaneseq
    %v6425 = vshrl.u32 %v6424, 7
    %v6426 = vsub.s32 %v6423, %v6425
    %v6427 = vrot.slane %v6399, %v6426
    %v6428 = vcombine.low %v6406, %v6420
    %v6429 = vcombine.high %v6406, %v6420
    %v6430 = vcombine.low %v6413, %v6427
    %v6431 = vcombine.high %v6413, %v6427
    %v6432 = vcombine.low %v4663, %v4667
    %v6433 = vcombine.high %v4663, %v4667
    %v6434 = vcombine.low %v4671, %v4675
    %v6435 = vcombine.high %v4671, %v4675
    %v6437 = vunpack.c.l.s4 1983009808
    %v6438 = vunpack.c.0.s8 %v6437
    %v6439 = vlaneseq
    %v6440 = vshrl.u32 %v6439, 7
    %v6441 = vsub.s32 %v6438, %v6440
    %v6442 = vrot.slane %v6432, %v6441
    %v6444 = vunpack.c.l.s4 1983009808
    %v6445 = vunpack.c.0.s8 %v6444
    %v6446 = vlaneseq
    %v6447 = vshrl.u32 %v6446, 7
    %v6448 = vsub.s32 %v6445, %v6447
    %v6449 = vrot.slane %v6433, %v6448
    %v6451 = vunpack.c.l.s4 1983009808
    %v6452 = vunpack.c.0.s8 %v6451
    %v6453 = vlaneseq
    %v6454 = vshrl.u32 %v6453, 7
    %v6455 = vsub.s32 %v6452, %v6454
    %v6456 = vrot.slane %v6434, %v6455
    %v6458 = vunpack.c.l.s4 1983009808
    %v6459 = vunpack.c.0.s8 %v6458
    %v6460 = vlaneseq
    %v6461 = vshrl.u32 %v6460, 7
    %v6462 = vsub.s32 %v6459, %v6461
    %v6463 = vrot.slane %v6435, %v6462
    %v6464 = vcombine.low %v6442, %v6456
    %v6465 = vcombine.high %v6442, %v6456
    %v6466 = vcombine.low %v6449, %v6463
    %v6467 = vcombine.high %v6449, %v6463
    %v6468 = vcombine.low %v4676, %v4680
    %v6469 = vcombine.high %v4676, %v4680
    %v6470 = vcombine.low %v4684, %v4688
    %v6471 = vcombine.high %v4684, %v4688
    %v6473 = vunpack.c.l.s4 1983009808
    %v6474 = vunpack.c.0.s8 %v6473
    %v6475 = vlaneseq
    %v6476 = vshrl.u32 %v6475, 7
    %v6477 = vsub.s32 %v6474, %v6476
    %v6478 = vrot.slane %v6468, %v6477
    %v6480 = vunpack.c.l.s4 1983009808
    %v6481 = vunpack.c.0.s8 %v6480
    %v6482 = vlaneseq
    %v6483 = vshrl.u32 %v6482, 7
    %v6484 = vsub.s32 %v6481, %v6483
    %v6485 = vrot.slane %v6469, %v6484
    %v6487 = vunpack.c.l.s4 1983009808
    %v6488 = vunpack.c.0.s8 %v6487
    %v6489 = vlaneseq
    %v6490 = vshrl.u32 %v6489, 7
    %v6491 = vsub.s32 %v6488, %v6490
    %v6492 = vrot.slane %v6470, %v6491
    %v6494 = vunpack.c.l.s4 1983009808
    %v6495 = vunpack.c.0.s8 %v6494
    %v6496 = vlaneseq
    %v6497 = vshrl.u32 %v6496, 7
    %v6498 = vsub.s32 %v6495, %v6497
    %v6499 = vrot.slane %v6471, %v6498
    %v6500 = vcombine.low %v6478, %v6492
    %v6501 = vcombine.high %v6478, %v6492
    %v6502 = vcombine.low %v6485, %v6499
    %v6503 = vcombine.high %v6485, %v6499
    %v6504 = vcombine.low %v4677, %v4681
    %v6505 = vcombine.high %v4677, %v4681
    %v6506 = vcombine.low %v4685, %v4689
    %v6507 = vcombine.high %v4685, %v4689
    %v6509 = vunpack.c.l.s4 1983009808
    %v6510 = vunpack.c.0.s8 %v6509
    %v6511 = vlaneseq
    %v6512 = vshrl.u32 %v6511, 7
    %v6513 = vsub.s32 %v6510, %v6512
    %v6514 = vrot.slane %v6504, %v6513
    %v6516 = vunpack.c.l.s4 1983009808
    %v6517 = vunpack.c.0.s8 %v6516
    %v6518 = vlaneseq
    %v6519 = vshrl.u32 %v6518, 7
    %v6520 = vsub.s32 %v6517, %v6519
    %v6521 = vrot.slane %v6505, %v6520
    %v6523 = vunpack.c.l.s4 1983009808
    %v6524 = vunpack.c.0.s8 %v6523
    %v6525 = vlaneseq
    %v6526 = vshrl.u32 %v6525, 7
    %v6527 = vsub.s32 %v6524, %v6526
    %v6528 = vrot.slane %v6506, %v6527
    %v6530 = vunpack.c.l.s4 1983009808
    %v6531 = vunpack.c.0.s8 %v6530
    %v6532 = vlaneseq
    %v6533 = vshrl.u32 %v6532, 7
    %v6534 = vsub.s32 %v6531, %v6533
    %v6535 = vrot.slane %v6507, %v6534
    %v6536 = vcombine.low %v6514, %v6528
    %v6537 = vcombine.high %v6514, %v6528
    %v6538 = vcombine.low %v6521, %v6535
    %v6539 = vcombine.high %v6521, %v6535
    %v6540 = vcombine.low %v4678, %v4682
    %v6541 = vcombine.high %v4678, %v4682
    %v6542 = vcombine.low %v4686, %v4690
    %v6543 = vcombine.high %v4686, %v4690
    %v6545 = vunpack.c.l.s4 1983009808
    %v6546 = vunpack.c.0.s8 %v6545
    %v6547 = vlaneseq
    %v6548 = vshrl.u32 %v6547, 7
    %v6549 = vsub.s32 %v6546, %v6548
    %v6550 = vrot.slane %v6540, %v6549
    %v6552 = vunpack.c.l.s4 1983009808
    %v6553 = vunpack.c.0.s8 %v6552
    %v6554 = vlaneseq
    %v6555 = vshrl.u32 %v6554, 7
    %v6556 = vsub.s32 %v6553, %v6555
    %v6557 = vrot.slane %v6541, %v6556
    %v6559 = vunpack.c.l.s4 1983009808
    %v6560 = vunpack.c.0.s8 %v6559
    %v6561 = vlaneseq
    %v6562 = vshrl.u32 %v6561, 7
    %v6563 = vsub.s32 %v6560, %v6562
    %v6564 = vrot.slane %v6542, %v6563
    %v6566 = vunpack.c.l.s4 1983009808
    %v6567 = vunpack.c.0.s8 %v6566
    %v6568 = vlaneseq
    %v6569 = vshrl.u32 %v6568, 7
    %v6570 = vsub.s32 %v6567, %v6569
    %v6571 = vrot.slane %v6543, %v6570
    %v6572 = vcombine.low %v6550, %v6564
    %v6573 = vcombine.high %v6550, %v6564
    %v6574 = vcombine.low %v6557, %v6571
    %v6575 = vcombine.high %v6557, %v6571
    %v6576 = vcombine.low %v4679, %v4683
    %v6577 = vcombine.high %v4679, %v4683
    %v6578 = vcombine.low %v4687, %v4691
    %v6579 = vcombine.high %v4687, %v4691
    %v6581 = vunpack.c.l.s4 1983009808
    %v6582 = vunpack.c.0.s8 %v6581
    %v6583 = vlaneseq
    %v6584 = vshrl.u32 %v6583, 7
    %v6585 = vsub.s32 %v6582, %v6584
    %v6586 = vrot.slane %v6576, %v6585
    %v6588 = vunpack.c.l.s4 1983009808
    %v6589 = vunpack.c.0.s8 %v6588
    %v6590 = vlaneseq
    %v6591 = vshrl.u32 %v6590, 7
    %v6592 = vsub.s32 %v6589, %v6591
    %v6593 = vrot.slane %v6577, %v6592
    %v6595 = vunpack.c.l.s4 1983009808
    %v6596 = vunpack.c.0.s8 %v6595
    %v6597 = vlaneseq
    %v6598 = vshrl.u32 %v6597, 7
    %v6599 = vsub.s32 %v6596, %v6598
    %v6600 = vrot.slane %v6578, %v6599
    %v6602 = vunpack.c.l.s4 1983009808
    %v6603 = vunpack.c.0.s8 %v6602
    %v6604 = vlaneseq
    %v6605 = vshrl.u32 %v6604, 7
    %v6606 = vsub.s32 %v6603, %v6605
    %v6607 = vrot.slane %v6579, %v6606
    %v6608 = vcombine.low %v6586, %v6600
    %v6609 = vcombine.high %v6586, %v6600
    %v6610 = vcombine.low %v6593, %v6607
    %v6611 = vcombine.high %v6593, %v6607
    %v6612 = vcombine.low %v4692, %v4696
    %v6613 = vcombine.high %v4692, %v4696
    %v6614 = vcombine.low %v4700, %v4704
    %v6615 = vcombine.high %v4700, %v4704
    %v6617 = vunpack.c.l.s4 1983009808
    %v6618 = vunpack.c.0.s8 %v6617
    %v6619 = vlaneseq
    %v6620 = vshrl.u32 %v6619, 7
    %v6621 = vsub.s32 %v6618, %v6620
    %v6622 = vrot.slane %v6612, %v6621
    %v6624 = vunpack.c.l.s4 1983009808
    %v6625 = vunpack.c.0.s8 %v6624
    %v6626 = vlaneseq
    %v6627 = vshrl.u32 %v6626, 7
    %v6628 = vsub.s32 %v6625, %v6627
    %v6629 = vrot.slane %v6613, %v6628
    %v6631 = vunpack.c.l.s4 1983009808
    %v6632 = vunpack.c.0.s8 %v6631
    %v6633 = vlaneseq
    %v6634 = vshrl.u32 %v6633, 7
    %v6635 = vsub.s32 %v6632, %v6634
    %v6636 = vrot.slane %v6614, %v6635
    %v6638 = vunpack.c.l.s4 1983009808
    %v6639 = vunpack.c.0.s8 %v6638
    %v6640 = vlaneseq
    %v6641 = vshrl.u32 %v6640, 7
    %v6642 = vsub.s32 %v6639, %v6641
    %v6643 = vrot.slane %v6615, %v6642
    %v6644 = vcombine.low %v6622, %v6636
    %v6645 = vcombine.high %v6622, %v6636
    %v6646 = vcombine.low %v6629, %v6643
    %v6647 = vcombine.high %v6629, %v6643
    %v6648 = vcombine.low %v4693, %v4697
    %v6649 = vcombine.high %v4693, %v4697
    %v6650 = vcombine.low %v4701, %v4705
    %v6651 = vcombine.high %v4701, %v4705
    %v6653 = vunpack.c.l.s4 1983009808
    %v6654 = vunpack.c.0.s8 %v6653
    %v6655 = vlaneseq
    %v6656 = vshrl.u32 %v6655, 7
    %v6657 = vsub.s32 %v6654, %v6656
    %v6658 = vrot.slane %v6648, %v6657
    %v6660 = vunpack.c.l.s4 1983009808
    %v6661 = vunpack.c.0.s8 %v6660
    %v6662 = vlaneseq
    %v6663 = vshrl.u32 %v6662, 7
    %v6664 = vsub.s32 %v6661, %v6663
    %v6665 = vrot.slane %v6649, %v6664
    %v6667 = vunpack.c.l.s4 1983009808
    %v6668 = vunpack.c.0.s8 %v6667
    %v6669 = vlaneseq
    %v6670 = vshrl.u32 %v6669, 7
    %v6671 = vsub.s32 %v6668, %v6670
    %v6672 = vrot.slane %v6650, %v6671
    %v6674 = vunpack.c.l.s4 1983009808
    %v6675 = vunpack.c.0.s8 %v6674
    %v6676 = vlaneseq
    %v6677 = vshrl.u32 %v6676, 7
    %v6678 = vsub.s32 %v6675, %v6677
    %v6679 = vrot.slane %v6651, %v6678
    %v6680 = vcombine.low %v6658, %v6672
    %v6681 = vcombine.high %v6658, %v6672
    %v6682 = vcombine.low %v6665, %v6679
    %v6683 = vcombine.high %v6665, %v6679
    %v6684 = vcombine.low %v4694, %v4698
    %v6685 = vcombine.high %v4694, %v4698
    %v6686 = vcombine.low %v4702, %v4706
    %v6687 = vcombine.high %v4702, %v4706
    %v6689 = vunpack.c.l.s4 1983009808
    %v6690 = vunpack.c.0.s8 %v6689
    %v6691 = vlaneseq
    %v6692 = vshrl.u32 %v6691, 7
    %v6693 = vsub.s32 %v6690, %v6692
    %v6694 = vrot.slane %v6684, %v6693
    %v6696 = vunpack.c.l.s4 1983009808
    %v6697 = vunpack.c.0.s8 %v6696
    %v6698 = vlaneseq
    %v6699 = vshrl.u32 %v6698, 7
    %v6700 = vsub.s32 %v6697, %v6699
    %v6701 = vrot.slane %v6685, %v6700
    %v6703 = vunpack.c.l.s4 1983009808
    %v6704 = vunpack.c.0.s8 %v6703
    %v6705 = vlaneseq
    %v6706 = vshrl.u32 %v6705, 7
    %v6707 = vsub.s32 %v6704, %v6706
    %v6708 = vrot.slane %v6686, %v6707
    %v6710 = vunpack.c.l.s4 1983009808
    %v6711 = vunpack.c.0.s8 %v6710
    %v6712 = vlaneseq
    %v6713 = vshrl.u32 %v6712, 7
    %v6714 = vsub.s32 %v6711, %v6713
    %v6715 = vrot.slane %v6687, %v6714
    %v6716 = vcombine.low %v6694, %v6708
    %v6717 = vcombine.high %v6694, %v6708
    %v6718 = vcombine.low %v6701, %v6715
    %v6719 = vcombine.high %v6701, %v6715
    %v6720 = vcombine.low %v4695, %v4699
    %v6721 = vcombine.high %v4695, %v4699
    %v6722 = vcombine.low %v4703, %v4707
    %v6723 = vcombine.high %v4703, %v4707
    %v6725 = vunpack.c.l.s4 1983009808
    %v6726 = vunpack.c.0.s8 %v6725
    %v6727 = vlaneseq
    %v6728 = vshrl.u32 %v6727, 7
    %v6729 = vsub.s32 %v6726, %v6728
    %v6730 = vrot.slane %v6720, %v6729
    %v6732 = vunpack.c.l.s4 1983009808
    %v6733 = vunpack.c.0.s8 %v6732
    %v6734 = vlaneseq
    %v6735 = vshrl.u32 %v6734, 7
    %v6736 = vsub.s32 %v6733, %v6735
    %v6737 = vrot.slane %v6721, %v6736
    %v6739 = vunpack.c.l.s4 1983009808
    %v6740 = vunpack.c.0.s8 %v6739
    %v6741 = vlaneseq
    %v6742 = vshrl.u32 %v6741, 7
    %v6743 = vsub.s32 %v6740, %v6742
    %v6744 = vrot.slane %v6722, %v6743
    %v6746 = vunpack.c.l.s4 1983009808
    %v6747 = vunpack.c.0.s8 %v6746
    %v6748 = vlaneseq
    %v6749 = vshrl.u32 %v6748, 7
    %v6750 = vsub.s32 %v6747, %v6749
    %v6751 = vrot.slane %v6723, %v6750
    %v6752 = vcombine.low %v6730, %v6744
    %v6753 = vcombine.high %v6730, %v6744
    %v6754 = vcombine.low %v6737, %v6751
    %v6755 = vcombine.high %v6737, %v6751
    %v6756 = vcombine.low %v4708, %v4712
    %v6757 = vcombine.high %v4708, %v4712
    %v6758 = vcombine.low %v4716, %v4720
    %v6759 = vcombine.high %v4716, %v4720
    %v6761 = vunpack.c.l.s4 1983009808
    %v6762 = vunpack.c.0.s8 %v6761
    %v6763 = vlaneseq
    %v6764 = vshrl.u32 %v6763, 7
    %v6765 = vsub.s32 %v6762, %v6764
    %v6766 = vrot.slane %v6756, %v6765
    %v6768 = vunpack.c.l.s4 1983009808
    %v6769 = vunpack.c.0.s8 %v6768
    %v6770 = vlaneseq
    %v6771 = vshrl.u32 %v6770, 7
    %v6772 = vsub.s32 %v6769, %v6771
    %v6773 = vrot.slane %v6757, %v6772
    %v6775 = vunpack.c.l.s4 1983009808
    %v6776 = vunpack.c.0.s8 %v6775
    %v6777 = vlaneseq
    %v6778 = vshrl.u32 %v6777, 7
    %v6779 = vsub.s32 %v6776, %v6778
    %v6780 = vrot.slane %v6758, %v6779
    %v6782 = vunpack.c.l.s4 1983009808
    %v6783 = vunpack.c.0.s8 %v6782
    %v6784 = vlaneseq
    %v6785 = vshrl.u32 %v6784, 7
    %v6786 = vsub.s32 %v6783, %v6785
    %v6787 = vrot.slane %v6759, %v6786
    %v6788 = vcombine.low %v6766, %v6780
    %v6789 = vcombine.high %v6766, %v6780
    %v6790 = vcombine.low %v6773, %v6787
    %v6791 = vcombine.high %v6773, %v6787
    %v6792 = vcombine.low %v4709, %v4713
    %v6793 = vcombine.high %v4709, %v4713
    %v6794 = vcombine.low %v4717, %v4721
    %v6795 = vcombine.high %v4717, %v4721
    %v6797 = vunpack.c.l.s4 1983009808
    %v6798 = vunpack.c.0.s8 %v6797
    %v6799 = vlaneseq
    %v6800 = vshrl.u32 %v6799, 7
    %v6801 = vsub.s32 %v6798, %v6800
    %v6802 = vrot.slane %v6792, %v6801
    %v6804 = vunpack.c.l.s4 1983009808
    %v6805 = vunpack.c.0.s8 %v6804
    %v6806 = vlaneseq
    %v6807 = vshrl.u32 %v6806, 7
    %v6808 = vsub.s32 %v6805, %v6807
    %v6809 = vrot.slane %v6793, %v6808
    %v6811 = vunpack.c.l.s4 1983009808
    %v6812 = vunpack.c.0.s8 %v6811
    %v6813 = vlaneseq
    %v6814 = vshrl.u32 %v6813, 7
    %v6815 = vsub.s32 %v6812, %v6814
    %v6816 = vrot.slane %v6794, %v6815
    %v6818 = vunpack.c.l.s4 1983009808
    %v6819 = vunpack.c.0.s8 %v6818
    %v6820 = vlaneseq
    %v6821 = vshrl.u32 %v6820, 7
    %v6822 = vsub.s32 %v6819, %v6821
    %v6823 = vrot.slane %v6795, %v6822
    %v6824 = vcombine.low %v6802, %v6816
    %v6825 = vcombine.high %v6802, %v6816
    %v6826 = vcombine.low %v6809, %v6823
    %v6827 = vcombine.high %v6809, %v6823
    %v6828 = vcombine.low %v4710, %v4714
    %v6829 = vcombine.high %v4710, %v4714
    %v6830 = vcombine.low %v4718, %v4722
    %v6831 = vcombine.high %v4718, %v4722
    %v6833 = vunpack.c.l.s4 1983009808
    %v6834 = vunpack.c.0.s8 %v6833
    %v6835 = vlaneseq
    %v6836 = vshrl.u32 %v6835, 7
    %v6837 = vsub.s32 %v6834, %v6836
    %v6838 = vrot.slane %v6828, %v6837
    %v6840 = vunpack.c.l.s4 1983009808
    %v6841 = vunpack.c.0.s8 %v6840
    %v6842 = vlaneseq
    %v6843 = vshrl.u32 %v6842, 7
    %v6844 = vsub.s32 %v6841, %v6843
    %v6845 = vrot.slane %v6829, %v6844
    %v6847 = vunpack.c.l.s4 1983009808
    %v6848 = vunpack.c.0.s8 %v6847
    %v6849 = vlaneseq
    %v6850 = vshrl.u32 %v6849, 7
    %v6851 = vsub.s32 %v6848, %v6850
    %v6852 = vrot.slane %v6830, %v6851
    %v6854 = vunpack.c.l.s4 1983009808
    %v6855 = vunpack.c.0.s8 %v6854
    %v6856 = vlaneseq
    %v6857 = vshrl.u32 %v6856, 7
    %v6858 = vsub.s32 %v6855, %v6857
    %v6859 = vrot.slane %v6831, %v6858
    %v6860 = vcombine.low %v6838, %v6852
    %v6861 = vcombine.high %v6838, %v6852
    %v6862 = vcombine.low %v6845, %v6859
    %v6863 = vcombine.high %v6845, %v6859
    %v6864 = vcombine.low %v4711, %v4715
    %v6865 = vcombine.high %v4711, %v4715
    %v6866 = vcombine.low %v4719, %v4723
    %v6867 = vcombine.high %v4719, %v4723
    %v6869 = vunpack.c.l.s4 1983009808
    %v6870 = vunpack.c.0.s8 %v6869
    %v6871 = vlaneseq
    %v6872 = vshrl.u32 %v6871, 7
    %v6873 = vsub.s32 %v6870, %v6872
    %v6874 = vrot.slane %v6864, %v6873
    %v6876 = vunpack.c.l.s4 1983009808
    %v6877 = vunpack.c.0.s8 %v6876
    %v6878 = vlaneseq
    %v6879 = vshrl.u32 %v6878, 7
    %v6880 = vsub.s32 %v6877, %v6879
    %v6881 = vrot.slane %v6865, %v6880
    %v6883 = vunpack.c.l.s4 1983009808
    %v6884 = vunpack.c.0.s8 %v6883
    %v6885 = vlaneseq
    %v6886 = vshrl.u32 %v6885, 7
    %v6887 = vsub.s32 %v6884, %v6886
    %v6888 = vrot.slane %v6866, %v6887
    %v6890 = vunpack.c.l.s4 1983009808
    %v6891 = vunpack.c.0.s8 %v6890
    %v6892 = vlaneseq
    %v6893 = vshrl.u32 %v6892, 7
    %v6894 = vsub.s32 %v6891, %v6893
    %v6895 = vrot.slane %v6867, %v6894
    %v6896 = vcombine.low %v6874, %v6888
    %v6897 = vcombine.high %v6874, %v6888
    %v6898 = vcombine.low %v6881, %v6895
    %v6899 = vcombine.high %v6881, %v6895
    %v6900 = vcombine.low %v4724, %v4728
    %v6901 = vcombine.high %v4724, %v4728
    %v6902 = vcombine.low %v4732, %v4736
    %v6903 = vcombine.high %v4732, %v4736
    %v6905 = vunpack.c.l.s4 1983009808
    %v6906 = vunpack.c.0.s8 %v6905
    %v6907 = vlaneseq
    %v6908 = vshrl.u32 %v6907, 7
    %v6909 = vsub.s32 %v6906, %v6908
    %v6910 = vrot.slane %v6900, %v6909
    %v6912 = vunpack.c.l.s4 1983009808
    %v6913 = vunpack.c.0.s8 %v6912
    %v6914 = vlaneseq
    %v6915 = vshrl.u32 %v6914, 7
    %v6916 = vsub.s32 %v6913, %v6915
    %v6917 = vrot.slane %v6901, %v6916
    %v6919 = vunpack.c.l.s4 1983009808
    %v6920 = vunpack.c.0.s8 %v6919
    %v6921 = vlaneseq
    %v6922 = vshrl.u32 %v6921, 7
    %v6923 = vsub.s32 %v6920, %v6922
    %v6924 = vrot.slane %v6902, %v6923
    %v6926 = vunpack.c.l.s4 1983009808
    %v6927 = vunpack.c.0.s8 %v6926
    %v6928 = vlaneseq
    %v6929 = vshrl.u32 %v6928, 7
    %v6930 = vsub.s32 %v6927, %v6929
    %v6931 = vrot.slane %v6903, %v6930
    %v6932 = vcombine.low %v6910, %v6924
    %v6933 = vcombine.high %v6910, %v6924
    %v6934 = vcombine.low %v6917, %v6931
    %v6935 = vcombine.high %v6917, %v6931
    %v6936 = vcombine.low %v4725, %v4729
    %v6937 = vcombine.high %v4725, %v4729
    %v6938 = vcombine.low %v4733, %v4737
    %v6939 = vcombine.high %v4733, %v4737
    %v6941 = vunpack.c.l.s4 1983009808
    %v6942 = vunpack.c.0.s8 %v6941
    %v6943 = vlaneseq
    %v6944 = vshrl.u32 %v6943, 7
    %v6945 = vsub.s32 %v6942, %v6944
    %v6946 = vrot.slane %v6936, %v6945
    %v6948 = vunpack.c.l.s4 1983009808
    %v6949 = vunpack.c.0.s8 %v6948
    %v6950 = vlaneseq
    %v6951 = vshrl.u32 %v6950, 7
    %v6952 = vsub.s32 %v6949, %v6951
    %v6953 = vrot.slane %v6937, %v6952
    %v6955 = vunpack.c.l.s4 1983009808
    %v6956 = vunpack.c.0.s8 %v6955
    %v6957 = vlaneseq
    %v6958 = vshrl.u32 %v6957, 7
    %v6959 = vsub.s32 %v6956, %v6958
    %v6960 = vrot.slane %v6938, %v6959
    %v6962 = vunpack.c.l.s4 1983009808
    %v6963 = vunpack.c.0.s8 %v6962
    %v6964 = vlaneseq
    %v6965 = vshrl.u32 %v6964, 7
    %v6966 = vsub.s32 %v6963, %v6965
    %v6967 = vrot.slane %v6939, %v6966
    %v6968 = vcombine.low %v6946, %v6960
    %v6969 = vcombine.high %v6946, %v6960
    %v6970 = vcombine.low %v6953, %v6967
    %v6971 = vcombine.high %v6953, %v6967
    %v6972 = vcombine.low %v4726, %v4730
    %v6973 = vcombine.high %v4726, %v4730
    %v6974 = vcombine.low %v4734, %v4738
    %v6975 = vcombine.high %v4734, %v4738
    %v6977 = vunpack.c.l.s4 1983009808
    %v6978 = vunpack.c.0.s8 %v6977
    %v6979 = vlaneseq
    %v6980 = vshrl.u32 %v6979, 7
    %v6981 = vsub.s32 %v6978, %v6980
    %v6982 = vrot.slane %v6972, %v6981
    %v6984 = vunpack.c.l.s4 1983009808
    %v6985 = vunpack.c.0.s8 %v6984
    %v6986 = vlaneseq
    %v6987 = vshrl.u32 %v6986, 7
    %v6988 = vsub.s32 %v6985, %v6987
    %v6989 = vrot.slane %v6973, %v6988
    %v6991 = vunpack.c.l.s4 1983009808
    %v6992 = vunpack.c.0.s8 %v6991
    %v6993 = vlaneseq
    %v6994 = vshrl.u32 %v6993, 7
    %v6995 = vsub.s32 %v6992, %v6994
    %v6996 = vrot.slane %v6974, %v6995
    %v6998 = vunpack.c.l.s4 1983009808
    %v6999 = vunpack.c.0.s8 %v6998
    %v7000 = vlaneseq
    %v7001 = vshrl.u32 %v7000, 7
    %v7002 = vsub.s32 %v6999, %v7001
    %v7003 = vrot.slane %v6975, %v7002
    %v7004 = vcombine.low %v6982, %v6996
    %v7005 = vcombine.high %v6982, %v6996
    %v7006 = vcombine.low %v6989, %v7003
    %v7007 = vcombine.high %v6989, %v7003
    %v7008 = vcombine.low %v4727, %v4731
    %v7009 = vcombine.high %v4727, %v4731
    %v7010 = vcombine.low %v4735, %v4739
    %v7011 = vcombine.high %v4735, %v4739
    %v7013 = vunpack.c.l.s4 1983009808
    %v7014 = vunpack.c.0.s8 %v7013
    %v7015 = vlaneseq
    %v7016 = vshrl.u32 %v7015, 7
    %v7017 = vsub.s32 %v7014, %v7016
    %v7018 = vrot.slane %v7008, %v7017
    %v7020 = vunpack.c.l.s4 1983009808
    %v7021 = vunpack.c.0.s8 %v7020
    %v7022 = vlaneseq
    %v7023 = vshrl.u32 %v7022, 7
    %v7024 = vsub.s32 %v7021, %v7023
    %v7025 = vrot.slane %v7009, %v7024
    %v7027 = vunpack.c.l.s4 1983009808
    %v7028 = vunpack.c.0.s8 %v7027
    %v7029 = vlaneseq
    %v7030 = vshrl.u32 %v7029, 7
    %v7031 = vsub.s32 %v7028, %v7030
    %v7032 = vrot.slane %v7010, %v7031
    %v7034 = vunpack.c.l.s4 1983009808
    %v7035 = vunpack.c.0.s8 %v7034
    %v7036 = vlaneseq
    %v7037 = vshrl.u32 %v7036, 7
    %v7038 = vsub.s32 %v7035, %v7037
    %v7039 = vrot.slane %v7011, %v7038
    %v7040 = vcombine.low %v7018, %v7032
    %v7041 = vcombine.high %v7018, %v7032
    %v7042 = vcombine.low %v7025, %v7039
    %v7043 = vcombine.high %v7025, %v7039
    %v7044 = vcombine.low %v4740, %v4744
    %v7045 = vcombine.high %v4740, %v4744
    %v7046 = vcombine.low %v4748, %v4752
    %v7047 = vcombine.high %v4748, %v4752
    %v7049 = vunpack.c.l.s4 1983009808
    %v7050 = vunpack.c.0.s8 %v7049
    %v7051 = vlaneseq
    %v7052 = vshrl.u32 %v7051, 7
    %v7053 = vsub.s32 %v7050, %v7052
    %v7054 = vrot.slane %v7044, %v7053
    %v7056 = vunpack.c.l.s4 1983009808
    %v7057 = vunpack.c.0.s8 %v7056
    %v7058 = vlaneseq
    %v7059 = vshrl.u32 %v7058, 7
    %v7060 = vsub.s32 %v7057, %v7059
    %v7061 = vrot.slane %v7045, %v7060
    %v7063 = vunpack.c.l.s4 1983009808
    %v7064 = vunpack.c.0.s8 %v7063
    %v7065 = vlaneseq
    %v7066 = vshrl.u32 %v7065, 7
    %v7067 = vsub.s32 %v7064, %v7066
    %v7068 = vrot.slane %v7046, %v7067
    %v7070 = vunpack.c.l.s4 1983009808
    %v7071 = vunpack.c.0.s8 %v7070
    %v7072 = vlaneseq
    %v7073 = vshrl.u32 %v7072, 7
    %v7074 = vsub.s32 %v7071, %v7073
    %v7075 = vrot.slane %v7047, %v7074
    %v7076 = vcombine.low %v7054, %v7068
    %v7077 = vcombine.high %v7054, %v7068
    %v7078 = vcombine.low %v7061, %v7075
    %v7079 = vcombine.high %v7061, %v7075
    %v7080 = vcombine.low %v4741, %v4745
    %v7081 = vcombine.high %v4741, %v4745
    %v7082 = vcombine.low %v4749, %v4753
    %v7083 = vcombine.high %v4749, %v4753
    %v7085 = vunpack.c.l.s4 1983009808
    %v7086 = vunpack.c.0.s8 %v7085
    %v7087 = vlaneseq
    %v7088 = vshrl.u32 %v7087, 7
    %v7089 = vsub.s32 %v7086, %v7088
    %v7090 = vrot.slane %v7080, %v7089
    %v7092 = vunpack.c.l.s4 1983009808
    %v7093 = vunpack.c.0.s8 %v7092
    %v7094 = vlaneseq
    %v7095 = vshrl.u32 %v7094, 7
    %v7096 = vsub.s32 %v7093, %v7095
    %v7097 = vrot.slane %v7081, %v7096
    %v7099 = vunpack.c.l.s4 1983009808
    %v7100 = vunpack.c.0.s8 %v7099
    %v7101 = vlaneseq
    %v7102 = vshrl.u32 %v7101, 7
    %v7103 = vsub.s32 %v7100, %v7102
    %v7104 = vrot.slane %v7082, %v7103
    %v7106 = vunpack.c.l.s4 1983009808
    %v7107 = vunpack.c.0.s8 %v7106
    %v7108 = vlaneseq
    %v7109 = vshrl.u32 %v7108, 7
    %v7110 = vsub.s32 %v7107, %v7109
    %v7111 = vrot.slane %v7083, %v7110
    %v7112 = vcombine.low %v7090, %v7104
    %v7113 = vcombine.high %v7090, %v7104
    %v7114 = vcombine.low %v7097, %v7111
    %v7115 = vcombine.high %v7097, %v7111
    %v7116 = vcombine.low %v4742, %v4746
    %v7117 = vcombine.high %v4742, %v4746
    %v7118 = vcombine.low %v4750, %v4754
    %v7119 = vcombine.high %v4750, %v4754
    %v7121 = vunpack.c.l.s4 1983009808
    %v7122 = vunpack.c.0.s8 %v7121
    %v7123 = vlaneseq
    %v7124 = vshrl.u32 %v7123, 7
    %v7125 = vsub.s32 %v7122, %v7124
    %v7126 = vrot.slane %v7116, %v7125
    %v7128 = vunpack.c.l.s4 1983009808
    %v7129 = vunpack.c.0.s8 %v7128
    %v7130 = vlaneseq
    %v7131 = vshrl.u32 %v7130, 7
    %v7132 = vsub.s32 %v7129, %v7131
    %v7133 = vrot.slane %v7117, %v7132
    %v7135 = vunpack.c.l.s4 1983009808
    %v7136 = vunpack.c.0.s8 %v7135
    %v7137 = vlaneseq
    %v7138 = vshrl.u32 %v7137, 7
    %v7139 = vsub.s32 %v7136, %v7138
    %v7140 = vrot.slane %v7118, %v7139
    %v7142 = vunpack.c.l.s4 1983009808
    %v7143 = vunpack.c.0.s8 %v7142
    %v7144 = vlaneseq
    %v7145 = vshrl.u32 %v7144, 7
    %v7146 = vsub.s32 %v7143, %v7145
    %v7147 = vrot.slane %v7119, %v7146
    %v7148 = vcombine.low %v7126, %v7140
    %v7149 = vcombine.high %v7126, %v7140
    %v7150 = vcombine.low %v7133, %v7147
    %v7151 = vcombine.high %v7133, %v7147
    %v7152 = vcombine.low %v4743, %v4747
    %v7153 = vcombine.high %v4743, %v4747
    %v7154 = vcombine.low %v4751, %v4755
    %v7155 = vcombine.high %v4751, %v4755
    %v7157 = vunpack.c.l.s4 1983009808
    %v7158 = vunpack.c.0.s8 %v7157
    %v7159 = vlaneseq
    %v7160 = vshrl.u32 %v7159, 7
    %v7161 = vsub.s32 %v7158, %v7160
    %v7162 = vrot.slane %v7152, %v7161
    %v7164 = vunpack.c.l.s4 1983009808
    %v7165 = vunpack.c.0.s8 %v7164
    %v7166 = vlaneseq
    %v7167 = vshrl.u32 %v7166, 7
    %v7168 = vsub.s32 %v7165, %v7167
    %v7169 = vrot.slane %v7153, %v7168
    %v7171 = vunpack.c.l.s4 1983009808
    %v7172 = vunpack.c.0.s8 %v7171
    %v7173 = vlaneseq
    %v7174 = vshrl.u32 %v7173, 7
    %v7175 = vsub.s32 %v7172, %v7174
    %v7176 = vrot.slane %v7154, %v7175
    %v7178 = vunpack.c.l.s4 1983009808
    %v7179 = vunpack.c.0.s8 %v7178
    %v7180 = vlaneseq
    %v7181 = vshrl.u32 %v7180, 7
    %v7182 = vsub.s32 %v7179, %v7181
    %v7183 = vrot.slane %v7155, %v7182
    %v7184 = vcombine.low %v7162, %v7176
    %v7185 = vcombine.high %v7162, %v7176
    %v7186 = vcombine.low %v7169, %v7183
    %v7187 = vcombine.high %v7169, %v7183
    %v7188 = vcombine.low %v4756, %v4760
    %v7189 = vcombine.high %v4756, %v4760
    %v7190 = vcombine.low %v4764, %v4768
    %v7191 = vcombine.high %v4764, %v4768
    %v7193 = vunpack.c.l.s4 1983009808
    %v7194 = vunpack.c.0.s8 %v7193
    %v7195 = vlaneseq
    %v7196 = vshrl.u32 %v7195, 7
    %v7197 = vsub.s32 %v7194, %v7196
    %v7198 = vrot.slane %v7188, %v7197
    %v7200 = vunpack.c.l.s4 1983009808
    %v7201 = vunpack.c.0.s8 %v7200
    %v7202 = vlaneseq
    %v7203 = vshrl.u32 %v7202, 7
    %v7204 = vsub.s32 %v7201, %v7203
    %v7205 = vrot.slane %v7189, %v7204
    %v7207 = vunpack.c.l.s4 1983009808
    %v7208 = vunpack.c.0.s8 %v7207
    %v7209 = vlaneseq
    %v7210 = vshrl.u32 %v7209, 7
    %v7211 = vsub.s32 %v7208, %v7210
    %v7212 = vrot.slane %v7190, %v7211
    %v7214 = vunpack.c.l.s4 1983009808
    %v7215 = vunpack.c.0.s8 %v7214
    %v7216 = vlaneseq
    %v7217 = vshrl.u32 %v7216, 7
    %v7218 = vsub.s32 %v7215, %v7217
    %v7219 = vrot.slane %v7191, %v7218
    %v7220 = vcombine.low %v7198, %v7212
    %v7221 = vcombine.high %v7198, %v7212
    %v7222 = vcombine.low %v7205, %v7219
    %v7223 = vcombine.high %v7205, %v7219
    %v7224 = vcombine.low %v4757, %v4761
    %v7225 = vcombine.high %v4757, %v4761
    %v7226 = vcombine.low %v4765, %v4769
    %v7227 = vcombine.high %v4765, %v4769
    %v7229 = vunpack.c.l.s4 1983009808
    %v7230 = vunpack.c.0.s8 %v7229
    %v7231 = vlaneseq
    %v7232 = vshrl.u32 %v7231, 7
    %v7233 = vsub.s32 %v7230, %v7232
    %v7234 = vrot.slane %v7224, %v7233
    %v7236 = vunpack.c.l.s4 1983009808
    %v7237 = vunpack.c.0.s8 %v7236
    %v7238 = vlaneseq
    %v7239 = vshrl.u32 %v7238, 7
    %v7240 = vsub.s32 %v7237, %v7239
    %v7241 = vrot.slane %v7225, %v7240
    %v7243 = vunpack.c.l.s4 1983009808
    %v7244 = vunpack.c.0.s8 %v7243
    %v7245 = vlaneseq
    %v7246 = vshrl.u32 %v7245, 7
    %v7247 = vsub.s32 %v7244, %v7246
    %v7248 = vrot.slane %v7226, %v7247
    %v7250 = vunpack.c.l.s4 1983009808
    %v7251 = vunpack.c.0.s8 %v7250
    %v7252 = vlaneseq
    %v7253 = vshrl.u32 %v7252, 7
    %v7254 = vsub.s32 %v7251, %v7253
    %v7255 = vrot.slane %v7227, %v7254
    %v7256 = vcombine.low %v7234, %v7248
    %v7257 = vcombine.high %v7234, %v7248
    %v7258 = vcombine.low %v7241, %v7255
    %v7259 = vcombine.high %v7241, %v7255
    %v7260 = vcombine.low %v4758, %v4762
    %v7261 = vcombine.high %v4758, %v4762
    %v7262 = vcombine.low %v4766, %v4770
    %v7263 = vcombine.high %v4766, %v4770
    %v7265 = vunpack.c.l.s4 1983009808
    %v7266 = vunpack.c.0.s8 %v7265
    %v7267 = vlaneseq
    %v7268 = vshrl.u32 %v7267, 7
    %v7269 = vsub.s32 %v7266, %v7268
    %v7270 = vrot.slane %v7260, %v7269
    %v7272 = vunpack.c.l.s4 1983009808
    %v7273 = vunpack.c.0.s8 %v7272
    %v7274 = vlaneseq
    %v7275 = vshrl.u32 %v7274, 7
    %v7276 = vsub.s32 %v7273, %v7275
    %v7277 = vrot.slane %v7261, %v7276
    %v7279 = vunpack.c.l.s4 1983009808
    %v7280 = vunpack.c.0.s8 %v7279
    %v7281 = vlaneseq
    %v7282 = vshrl.u32 %v7281, 7
    %v7283 = vsub.s32 %v7280, %v7282
    %v7284 = vrot.slane %v7262, %v7283
    %v7286 = vunpack.c.l.s4 1983009808
    %v7287 = vunpack.c.0.s8 %v7286
    %v7288 = vlaneseq
    %v7289 = vshrl.u32 %v7288, 7
    %v7290 = vsub.s32 %v7287, %v7289
    %v7291 = vrot.slane %v7263, %v7290
    %v7292 = vcombine.low %v7270, %v7284
    %v7293 = vcombine.high %v7270, %v7284
    %v7294 = vcombine.low %v7277, %v7291
    %v7295 = vcombine.high %v7277, %v7291
    %v7296 = vcombine.low %v4759, %v4763
    %v7297 = vcombine.high %v4759, %v4763
    %v7298 = vcombine.low %v4767, %v4771
    %v7299 = vcombine.high %v4767, %v4771
    %v7301 = vunpack.c.l.s4 1983009808
    %v7302 = vunpack.c.0.s8 %v7301
    %v7303 = vlaneseq
    %v7304 = vshrl.u32 %v7303, 7
    %v7305 = vsub.s32 %v7302, %v7304
    %v7306 = vrot.slane %v7296, %v7305
    %v7308 = vunpack.c.l.s4 1983009808
    %v7309 = vunpack.c.0.s8 %v7308
    %v7310 = vlaneseq
    %v7311 = vshrl.u32 %v7310, 7
    %v7312 = vsub.s32 %v7309, %v7311
    %v7313 = vrot.slane %v7297, %v7312
    %v7315 = vunpack.c.l.s4 1983009808
    %v7316 = vunpack.c.0.s8 %v7315
    %v7317 = vlaneseq
    %v7318 = vshrl.u32 %v7317, 7
    %v7319 = vsub.s32 %v7316, %v7318
    %v7320 = vrot.slane %v7298, %v7319
    %v7322 = vunpack.c.l.s4 1983009808
    %v7323 = vunpack.c.0.s8 %v7322
    %v7324 = vlaneseq
    %v7325 = vshrl.u32 %v7324, 7
    %v7326 = vsub.s32 %v7323, %v7325
    %v7327 = vrot.slane %v7299, %v7326
    %v7328 = vcombine.low %v7306, %v7320
    %v7329 = vcombine.high %v7306, %v7320
    %v7330 = vcombine.low %v7313, %v7327
    %v7331 = vcombine.high %v7313, %v7327
    %v7588 = vpack.c.bf16 %v5204, %v5060
    %v7589 = vpack.c.bf16 %v5205, %v5061
    %v7590 = vpack.c.bf16 %v5206, %v5062
    %v7591 = vpack.c.bf16 %v5207, %v5063
    %v7592 = vpack.c.bf16 %v5240, %v5096
    %v7593 = vpack.c.bf16 %v5241, %v5097
    %v7594 = vpack.c.bf16 %v5242, %v5098
    %v7595 = vpack.c.bf16 %v5243, %v5099
    %v7596 = vpack.c.bf16 %v5276, %v5132
    %v7597 = vpack.c.bf16 %v5277, %v5133
    %v7598 = vpack.c.bf16 %v5278, %v5134
    %v7599 = vpack.c.bf16 %v5279, %v5135
    %v7600 = vpack.c.bf16 %v5312, %v5168
    %v7601 = vpack.c.bf16 %v5313, %v5169
    %v7602 = vpack.c.bf16 %v5314, %v5170
    %v7603 = vpack.c.bf16 %v5315, %v5171
    %v7604 = vpack.c.bf16 %v5492, %v5348
    %v7605 = vpack.c.bf16 %v5493, %v5349
    %v7606 = vpack.c.bf16 %v5494, %v5350
    %v7607 = vpack.c.bf16 %v5495, %v5351
    %v7608 = vpack.c.bf16 %v5528, %v5384
    %v7609 = vpack.c.bf16 %v5529, %v5385
    %v7610 = vpack.c.bf16 %v5530, %v5386
    %v7611 = vpack.c.bf16 %v5531, %v5387
    %v7612 = vpack.c.bf16 %v5564, %v5420
    %v7613 = vpack.c.bf16 %v5565, %v5421
    %v7614 = vpack.c.bf16 %v5566, %v5422
    %v7615 = vpack.c.bf16 %v5567, %v5423
    %v7616 = vpack.c.bf16 %v5600, %v5456
    %v7617 = vpack.c.bf16 %v5601, %v5457
    %v7618 = vpack.c.bf16 %v5602, %v5458
    %v7619 = vpack.c.bf16 %v5603, %v5459
    %v7620 = vpack.c.bf16 %v5780, %v5636
    %v7621 = vpack.c.bf16 %v5781, %v5637
    %v7622 = vpack.c.bf16 %v5782, %v5638
    %v7623 = vpack.c.bf16 %v5783, %v5639
    %v7624 = vpack.c.bf16 %v5816, %v5672
    %v7625 = vpack.c.bf16 %v5817, %v5673
    %v7626 = vpack.c.bf16 %v5818, %v5674
    %v7627 = vpack.c.bf16 %v5819, %v5675
    %v7628 = vpack.c.bf16 %v5852, %v5708
    %v7629 = vpack.c.bf16 %v5853, %v5709
    %v7630 = vpack.c.bf16 %v5854, %v5710
    %v7631 = vpack.c.bf16 %v5855, %v5711
    %v7632 = vpack.c.bf16 %v5888, %v5744
    %v7633 = vpack.c.bf16 %v5889, %v5745
    %v7634 = vpack.c.bf16 %v5890, %v5746
    %v7635 = vpack.c.bf16 %v5891, %v5747
    %v7636 = vpack.c.bf16 %v6068, %v5924
    %v7637 = vpack.c.bf16 %v6069, %v5925
    %v7638 = vpack.c.bf16 %v6070, %v5926
    %v7639 = vpack.c.bf16 %v6071, %v5927
    %v7640 = vpack.c.bf16 %v6104, %v5960
    %v7641 = vpack.c.bf16 %v6105, %v5961
    %v7642 = vpack.c.bf16 %v6106, %v5962
    %v7643 = vpack.c.bf16 %v6107, %v5963
    %v7644 = vpack.c.bf16 %v6140, %v5996
    %v7645 = vpack.c.bf16 %v6141, %v5997
    %v7646 = vpack.c.bf16 %v6142, %v5998
    %v7647 = vpack.c.bf16 %v6143, %v5999
    %v7648 = vpack.c.bf16 %v6176, %v6032
    %v7649 = vpack.c.bf16 %v6177, %v6033
    %v7650 = vpack.c.bf16 %v6178, %v6034
    %v7651 = vpack.c.bf16 %v6179, %v6035
    %v7652 = vpack.c.bf16 %v6356, %v6212
    %v7653 = vpack.c.bf16 %v6357, %v6213
    %v7654 = vpack.c.bf16 %v6358, %v6214
    %v7655 = vpack.c.bf16 %v6359, %v6215
    %v7656 = vpack.c.bf16 %v6392, %v6248
    %v7657 = vpack.c.bf16 %v6393, %v6249
    %v7658 = vpack.c.bf16 %v6394, %v6250
    %v7659 = vpack.c.bf16 %v6395, %v6251
    %v7660 = vpack.c.bf16 %v6428, %v6284
    %v7661 = vpack.c.bf16 %v6429, %v6285
    %v7662 = vpack.c.bf16 %v6430, %v6286
    %v7663 = vpack.c.bf16 %v6431, %v6287
    %v7664 = vpack.c.bf16 %v6464, %v6320
    %v7665 = vpack.c.bf16 %v6465, %v6321
    %v7666 = vpack.c.bf16 %v6466, %v6322
    %v7667 = vpack.c.bf16 %v6467, %v6323
    %v7668 = vpack.c.bf16 %v6644, %v6500
    %v7669 = vpack.c.bf16 %v6645, %v6501
    %v7670 = vpack.c.bf16 %v6646, %v6502
    %v7671 = vpack.c.bf16 %v6647, %v6503
    %v7672 = vpack.c.bf16 %v6680, %v6536
    %v7673 = vpack.c.bf16 %v6681, %v6537
    %v7674 = vpack.c.bf16 %v6682, %v6538
    %v7675 = vpack.c.bf16 %v6683, %v6539
    %v7676 = vpack.c.bf16 %v6716, %v6572
    %v7677 = vpack.c.bf16 %v6717, %v6573
    %v7678 = vpack.c.bf16 %v6718, %v6574
    %v7679 = vpack.c.bf16 %v6719, %v6575
    %v7680 = vpack.c.bf16 %v6752, %v6608
    %v7681 = vpack.c.bf16 %v6753, %v6609
    %v7682 = vpack.c.bf16 %v6754, %v6610
    %v7683 = vpack.c.bf16 %v6755, %v6611
    %v7684 = vpack.c.bf16 %v6932, %v6788
    %v7685 = vpack.c.bf16 %v6933, %v6789
    %v7686 = vpack.c.bf16 %v6934, %v6790
    %v7687 = vpack.c.bf16 %v6935, %v6791
    %v7688 = vpack.c.bf16 %v6968, %v6824
    %v7689 = vpack.c.bf16 %v6969, %v6825
    %v7690 = vpack.c.bf16 %v6970, %v6826
    %v7691 = vpack.c.bf16 %v6971, %v6827
    %v7692 = vpack.c.bf16 %v7004, %v6860
    %v7693 = vpack.c.bf16 %v7005, %v6861
    %v7694 = vpack.c.bf16 %v7006, %v6862
    %v7695 = vpack.c.bf16 %v7007, %v6863
    %v7696 = vpack.c.bf16 %v7040, %v6896
    %v7697 = vpack.c.bf16 %v7041, %v6897
    %v7698 = vpack.c.bf16 %v7042, %v6898
    %v7699 = vpack.c.bf16 %v7043, %v6899
    %v7700 = vpack.c.bf16 %v7220, %v7076
    %v7701 = vpack.c.bf16 %v7221, %v7077
    %v7702 = vpack.c.bf16 %v7222, %v7078
    %v7703 = vpack.c.bf16 %v7223, %v7079
    %v7704 = vpack.c.bf16 %v7256, %v7112
    %v7705 = vpack.c.bf16 %v7257, %v7113
    %v7706 = vpack.c.bf16 %v7258, %v7114
    %v7707 = vpack.c.bf16 %v7259, %v7115
    %v7708 = vpack.c.bf16 %v7292, %v7148
    %v7709 = vpack.c.bf16 %v7293, %v7149
    %v7710 = vpack.c.bf16 %v7294, %v7150
    %v7711 = vpack.c.bf16 %v7295, %v7151
    %v7712 = vpack.c.bf16 %v7328, %v7184
    %v7713 = vpack.c.bf16 %v7329, %v7185
    %v7714 = vpack.c.bf16 %v7330, %v7186
    %v7715 = vpack.c.bf16 %v7331, %v7187
    %v7716 = vld [vmem:[#allocation8 + $0x380] sm:$0xf]
    %v7717 = vld [vmem:[#allocation8 + $0x384] sm:$0xf]
    %v7718 = vld [vmem:[#allocation8 + $0x388] sm:$0xf]
    %v7719 = vld [vmem:[#allocation8 + $0x38c] sm:$0xf]
    %v7720 = vld [vmem:[#allocation8 + $0x390] sm:$0xf]
    %v7721 = vld [vmem:[#allocation8 + $0x394] sm:$0xf]
    %v7722 = vld [vmem:[#allocation8 + $0x398] sm:$0xf]
    %v7723 = vld [vmem:[#allocation8 + $0x39c] sm:$0xf]
    %v7724 = vld [vmem:[#allocation8 + $0x3a0] sm:$0xf]
    %v7725 = vld [vmem:[#allocation8 + $0x3a4] sm:$0xf]
    %v7726 = vld [vmem:[#allocation8 + $0x3a8] sm:$0xf]
    %v7727 = vld [vmem:[#allocation8 + $0x3ac] sm:$0xf]
    %v7728 = vld [vmem:[#allocation8 + $0x3b0] sm:$0xf]
    %v7729 = vld [vmem:[#allocation8 + $0x3b4] sm:$0xf]
    %v7730 = vld [vmem:[#allocation8 + $0x3b8] sm:$0xf]
    %v7731 = vld [vmem:[#allocation8 + $0x3bc] sm:$0xf]
    %v7732 = vld [vmem:[#allocation8 + $0x3c0] sm:$0xf]
    %v7733 = vld [vmem:[#allocation8 + $0x3c4] sm:$0xf]
    %v7734 = vld [vmem:[#allocation8 + $0x3c8] sm:$0xf]
    %v7735 = vld [vmem:[#allocation8 + $0x3cc] sm:$0xf]
    %v7736 = vld [vmem:[#allocation8 + $0x3d0] sm:$0xf]
    %v7737 = vld [vmem:[#allocation8 + $0x3d4] sm:$0xf]
    %v7738 = vld [vmem:[#allocation8 + $0x3d8] sm:$0xf]
    %v7739 = vld [vmem:[#allocation8 + $0x3dc] sm:$0xf]
    %v7740 = vld [vmem:[#allocation8 + $0x3e0] sm:$0xf]
    %v7741 = vld [vmem:[#allocation8 + $0x3e4] sm:$0xf]
    %v7742 = vld [vmem:[#allocation8 + $0x3e8] sm:$0xf]
    %v7743 = vld [vmem:[#allocation8 + $0x3ec] sm:$0xf]
    %v7744 = vld [vmem:[#allocation8 + $0x3f0] sm:$0xf]
    %v7745 = vld [vmem:[#allocation8 + $0x3f4] sm:$0xf]
    %v7746 = vld [vmem:[#allocation8 + $0x3f8] sm:$0xf]
    %v7747 = vld [vmem:[#allocation8 + $0x3fc] sm:$0xf]
    %v7748 = vld [vmem:[#allocation8 + $0x400] sm:$0xf]
    %v7749 = vld [vmem:[#allocation8 + $0x404] sm:$0xf]
    %v7750 = vld [vmem:[#allocation8 + $0x408] sm:$0xf]
    %v7751 = vld [vmem:[#allocation8 + $0x40c] sm:$0xf]
    %v7752 = vld [vmem:[#allocation8 + $0x410] sm:$0xf]
    %v7753 = vld [vmem:[#allocation8 + $0x414] sm:$0xf]
    %v7754 = vld [vmem:[#allocation8 + $0x418] sm:$0xf]
    %v7755 = vld [vmem:[#allocation8 + $0x41c] sm:$0xf]
    %v7756 = vld [vmem:[#allocation8 + $0x420] sm:$0xf]
    %v7757 = vld [vmem:[#allocation8 + $0x424] sm:$0xf]
    %v7758 = vld [vmem:[#allocation8 + $0x428] sm:$0xf]
    %v7759 = vld [vmem:[#allocation8 + $0x42c] sm:$0xf]
    %v7760 = vld [vmem:[#allocation8 + $0x430] sm:$0xf]
    %v7761 = vld [vmem:[#allocation8 + $0x434] sm:$0xf]
    %v7762 = vld [vmem:[#allocation8 + $0x438] sm:$0xf]
    %v7763 = vld [vmem:[#allocation8 + $0x43c] sm:$0xf]
    %v7764 = vld [vmem:[#allocation8 + $0x440] sm:$0xf]
    %v7765 = vld [vmem:[#allocation8 + $0x444] sm:$0xf]
    %v7766 = vld [vmem:[#allocation8 + $0x448] sm:$0xf]
    %v7767 = vld [vmem:[#allocation8 + $0x44c] sm:$0xf]
    %v7768 = vld [vmem:[#allocation8 + $0x450] sm:$0xf]
    %v7769 = vld [vmem:[#allocation8 + $0x454] sm:$0xf]
    %v7770 = vld [vmem:[#allocation8 + $0x458] sm:$0xf]
    %v7771 = vld [vmem:[#allocation8 + $0x45c] sm:$0xf]
    %v7772 = vld [vmem:[#allocation8 + $0x460] sm:$0xf]
    %v7773 = vld [vmem:[#allocation8 + $0x464] sm:$0xf]
    %v7774 = vld [vmem:[#allocation8 + $0x468] sm:$0xf]
    %v7775 = vld [vmem:[#allocation8 + $0x46c] sm:$0xf]
    %v7776 = vld [vmem:[#allocation8 + $0x470] sm:$0xf]
    %v7777 = vld [vmem:[#allocation8 + $0x474] sm:$0xf]
    %v7778 = vld [vmem:[#allocation8 + $0x478] sm:$0xf]
    %v7779 = vld [vmem:[#allocation8 + $0x47c] sm:$0xf]
    %v7780 = vld [vmem:[#allocation8 + $0x480] sm:$0xf]
    %v7781 = vld [vmem:[#allocation8 + $0x484] sm:$0xf]
    %v7782 = vld [vmem:[#allocation8 + $0x488] sm:$0xf]
    %v7783 = vld [vmem:[#allocation8 + $0x48c] sm:$0xf]
    %v7784 = vld [vmem:[#allocation8 + $0x490] sm:$0xf]
    %v7785 = vld [vmem:[#allocation8 + $0x494] sm:$0xf]
    %v7786 = vld [vmem:[#allocation8 + $0x498] sm:$0xf]
    %v7787 = vld [vmem:[#allocation8 + $0x49c] sm:$0xf]
    %v7788 = vld [vmem:[#allocation8 + $0x4a0] sm:$0xf]
    %v7789 = vld [vmem:[#allocation8 + $0x4a4] sm:$0xf]
    %v7790 = vld [vmem:[#allocation8 + $0x4a8] sm:$0xf]
    %v7791 = vld [vmem:[#allocation8 + $0x4ac] sm:$0xf]
    %v7792 = vld [vmem:[#allocation8 + $0x4b0] sm:$0xf]
    %v7793 = vld [vmem:[#allocation8 + $0x4b4] sm:$0xf]
    %v7794 = vld [vmem:[#allocation8 + $0x4b8] sm:$0xf]
    %v7795 = vld [vmem:[#allocation8 + $0x4bc] sm:$0xf]
    %v7796 = vld [vmem:[#allocation8 + $0x4c0] sm:$0xf]
    %v7797 = vld [vmem:[#allocation8 + $0x4c4] sm:$0xf]
    %v7798 = vld [vmem:[#allocation8 + $0x4c8] sm:$0xf]
    %v7799 = vld [vmem:[#allocation8 + $0x4cc] sm:$0xf]
    %v7800 = vld [vmem:[#allocation8 + $0x4d0] sm:$0xf]
    %v7801 = vld [vmem:[#allocation8 + $0x4d4] sm:$0xf]
    %v7802 = vld [vmem:[#allocation8 + $0x4d8] sm:$0xf]
    %v7803 = vld [vmem:[#allocation8 + $0x4dc] sm:$0xf]
    %v7804 = vld [vmem:[#allocation8 + $0x4e0] sm:$0xf]
    %v7805 = vld [vmem:[#allocation8 + $0x4e4] sm:$0xf]
    %v7806 = vld [vmem:[#allocation8 + $0x4e8] sm:$0xf]
    %v7807 = vld [vmem:[#allocation8 + $0x4ec] sm:$0xf]
    %v7808 = vld [vmem:[#allocation8 + $0x4f0] sm:$0xf]
    %v7809 = vld [vmem:[#allocation8 + $0x4f4] sm:$0xf]
    %v7810 = vld [vmem:[#allocation8 + $0x4f8] sm:$0xf]
    %v7811 = vld [vmem:[#allocation8 + $0x4fc] sm:$0xf]
    %v7812 = vld [vmem:[#allocation8 + $0x500] sm:$0xf]
    %v7813 = vld [vmem:[#allocation8 + $0x504] sm:$0xf]
    %v7814 = vld [vmem:[#allocation8 + $0x508] sm:$0xf]
    %v7815 = vld [vmem:[#allocation8 + $0x50c] sm:$0xf]
    %v7816 = vld [vmem:[#allocation8 + $0x510] sm:$0xf]
    %v7817 = vld [vmem:[#allocation8 + $0x514] sm:$0xf]
    %v7818 = vld [vmem:[#allocation8 + $0x518] sm:$0xf]
    %v7819 = vld [vmem:[#allocation8 + $0x51c] sm:$0xf]
    %v7820 = vld [vmem:[#allocation8 + $0x520] sm:$0xf]
    %v7821 = vld [vmem:[#allocation8 + $0x524] sm:$0xf]
    %v7822 = vld [vmem:[#allocation8 + $0x528] sm:$0xf]
    %v7823 = vld [vmem:[#allocation8 + $0x52c] sm:$0xf]
    %v7824 = vld [vmem:[#allocation8 + $0x530] sm:$0xf]
    %v7825 = vld [vmem:[#allocation8 + $0x534] sm:$0xf]
    %v7826 = vld [vmem:[#allocation8 + $0x538] sm:$0xf]
    %v7827 = vld [vmem:[#allocation8 + $0x53c] sm:$0xf]
    %v7828 = vld [vmem:[#allocation8 + $0x540] sm:$0xf]
    %v7829 = vld [vmem:[#allocation8 + $0x544] sm:$0xf]
    %v7830 = vld [vmem:[#allocation8 + $0x548] sm:$0xf]
    %v7831 = vld [vmem:[#allocation8 + $0x54c] sm:$0xf]
    %v7832 = vld [vmem:[#allocation8 + $0x550] sm:$0xf]
    %v7833 = vld [vmem:[#allocation8 + $0x554] sm:$0xf]
    %v7834 = vld [vmem:[#allocation8 + $0x558] sm:$0xf]
    %v7835 = vld [vmem:[#allocation8 + $0x55c] sm:$0xf]
    %v7836 = vld [vmem:[#allocation8 + $0x560] sm:$0xf]
    %v7837 = vld [vmem:[#allocation8 + $0x564] sm:$0xf]
    %v7838 = vld [vmem:[#allocation8 + $0x568] sm:$0xf]
    %v7839 = vld [vmem:[#allocation8 + $0x56c] sm:$0xf]
    %v7840 = vld [vmem:[#allocation8 + $0x570] sm:$0xf]
    %v7841 = vld [vmem:[#allocation8 + $0x574] sm:$0xf]
    %v7842 = vld [vmem:[#allocation8 + $0x578] sm:$0xf]
    %v7843 = vld [vmem:[#allocation8 + $0x57c] sm:$0xf]
    %v7844 = vld [vmem:[#allocation8 + $0x580] sm:$0xf]
    %v7845 = vld [vmem:[#allocation8 + $0x584] sm:$0xf]
    %v7846 = vld [vmem:[#allocation8 + $0x588] sm:$0xf]
    %v7847 = vld [vmem:[#allocation8 + $0x58c] sm:$0xf]
    %v7848 = vld [vmem:[#allocation8 + $0x590] sm:$0xf]
    %v7849 = vld [vmem:[#allocation8 + $0x594] sm:$0xf]
    %v7850 = vld [vmem:[#allocation8 + $0x598] sm:$0xf]
    %v7851 = vld [vmem:[#allocation8 + $0x59c] sm:$0xf]
    %v7852 = vld [vmem:[#allocation8 + $0x5a0] sm:$0xf]
    %v7853 = vld [vmem:[#allocation8 + $0x5a4] sm:$0xf]
    %v7854 = vld [vmem:[#allocation8 + $0x5a8] sm:$0xf]
    %v7855 = vld [vmem:[#allocation8 + $0x5ac] sm:$0xf]
    %v7856 = vld [vmem:[#allocation8 + $0x5b0] sm:$0xf]
    %v7857 = vld [vmem:[#allocation8 + $0x5b4] sm:$0xf]
    %v7858 = vld [vmem:[#allocation8 + $0x5b8] sm:$0xf]
    %v7859 = vld [vmem:[#allocation8 + $0x5bc] sm:$0xf]
    %v7860 = vld [vmem:[#allocation8 + $0x5c0] sm:$0xf]
    %v7861 = vld [vmem:[#allocation8 + $0x5c4] sm:$0xf]
    %v7862 = vld [vmem:[#allocation8 + $0x5c8] sm:$0xf]
    %v7863 = vld [vmem:[#allocation8 + $0x5cc] sm:$0xf]
    %v7864 = vld [vmem:[#allocation8 + $0x5d0] sm:$0xf]
    %v7865 = vld [vmem:[#allocation8 + $0x5d4] sm:$0xf]
    %v7866 = vld [vmem:[#allocation8 + $0x5d8] sm:$0xf]
    %v7867 = vld [vmem:[#allocation8 + $0x5dc] sm:$0xf]
    %v7868 = vld [vmem:[#allocation8 + $0x5e0] sm:$0xf]
    %v7869 = vld [vmem:[#allocation8 + $0x5e4] sm:$0xf]
    %v7870 = vld [vmem:[#allocation8 + $0x5e8] sm:$0xf]
    %v7871 = vld [vmem:[#allocation8 + $0x5ec] sm:$0xf]
    %v7872 = vld [vmem:[#allocation8 + $0x5f0] sm:$0xf]
    %v7873 = vld [vmem:[#allocation8 + $0x5f4] sm:$0xf]
    %v7874 = vld [vmem:[#allocation8 + $0x5f8] sm:$0xf]
    %v7875 = vld [vmem:[#allocation8 + $0x5fc] sm:$0xf]
    %v7876 = vld [vmem:[#allocation8 + $0x600] sm:$0xf]
    %v7877 = vld [vmem:[#allocation8 + $0x604] sm:$0xf]
    %v7878 = vld [vmem:[#allocation8 + $0x608] sm:$0xf]
    %v7879 = vld [vmem:[#allocation8 + $0x60c] sm:$0xf]
    %v7880 = vld [vmem:[#allocation8 + $0x610] sm:$0xf]
    %v7881 = vld [vmem:[#allocation8 + $0x614] sm:$0xf]
    %v7882 = vld [vmem:[#allocation8 + $0x618] sm:$0xf]
    %v7883 = vld [vmem:[#allocation8 + $0x61c] sm:$0xf]
    %v7884 = vld [vmem:[#allocation8 + $0x620] sm:$0xf]
    %v7885 = vld [vmem:[#allocation8 + $0x624] sm:$0xf]
    %v7886 = vld [vmem:[#allocation8 + $0x628] sm:$0xf]
    %v7887 = vld [vmem:[#allocation8 + $0x62c] sm:$0xf]
    %v7888 = vld [vmem:[#allocation8 + $0x630] sm:$0xf]
    %v7889 = vld [vmem:[#allocation8 + $0x634] sm:$0xf]
    %v7890 = vld [vmem:[#allocation8 + $0x638] sm:$0xf]
    %v7891 = vld [vmem:[#allocation8 + $0x63c] sm:$0xf]
    %v7892 = vld [vmem:[#allocation8 + $0x640] sm:$0xf]
    %v7893 = vld [vmem:[#allocation8 + $0x644] sm:$0xf]
    %v7894 = vld [vmem:[#allocation8 + $0x648] sm:$0xf]
    %v7895 = vld [vmem:[#allocation8 + $0x64c] sm:$0xf]
    %v7896 = vld [vmem:[#allocation8 + $0x650] sm:$0xf]
    %v7897 = vld [vmem:[#allocation8 + $0x654] sm:$0xf]
    %v7898 = vld [vmem:[#allocation8 + $0x658] sm:$0xf]
    %v7899 = vld [vmem:[#allocation8 + $0x65c] sm:$0xf]
    %v7900 = vld [vmem:[#allocation8 + $0x660] sm:$0xf]
    %v7901 = vld [vmem:[#allocation8 + $0x664] sm:$0xf]
    %v7902 = vld [vmem:[#allocation8 + $0x668] sm:$0xf]
    %v7903 = vld [vmem:[#allocation8 + $0x66c] sm:$0xf]
    %v7904 = vld [vmem:[#allocation8 + $0x670] sm:$0xf]
    %v7905 = vld [vmem:[#allocation8 + $0x674] sm:$0xf]
    %v7906 = vld [vmem:[#allocation8 + $0x678] sm:$0xf]
    %v7907 = vld [vmem:[#allocation8 + $0x67c] sm:$0xf]
    %v7908 = vld [vmem:[#allocation8 + $0x680] sm:$0xf]
    %v7909 = vld [vmem:[#allocation8 + $0x684] sm:$0xf]
    %v7910 = vld [vmem:[#allocation8 + $0x688] sm:$0xf]
    %v7911 = vld [vmem:[#allocation8 + $0x68c] sm:$0xf]
    %v7912 = vld [vmem:[#allocation8 + $0x690] sm:$0xf]
    %v7913 = vld [vmem:[#allocation8 + $0x694] sm:$0xf]
    %v7914 = vld [vmem:[#allocation8 + $0x698] sm:$0xf]
    %v7915 = vld [vmem:[#allocation8 + $0x69c] sm:$0xf]
    %v7916 = vld [vmem:[#allocation8 + $0x6a0] sm:$0xf]
    %v7917 = vld [vmem:[#allocation8 + $0x6a4] sm:$0xf]
    %v7918 = vld [vmem:[#allocation8 + $0x6a8] sm:$0xf]
    %v7919 = vld [vmem:[#allocation8 + $0x6ac] sm:$0xf]
    %v7920 = vld [vmem:[#allocation8 + $0x6b0] sm:$0xf]
    %v7921 = vld [vmem:[#allocation8 + $0x6b4] sm:$0xf]
    %v7922 = vld [vmem:[#allocation8 + $0x6b8] sm:$0xf]
    %v7923 = vld [vmem:[#allocation8 + $0x6bc] sm:$0xf]
    %v7924 = vld [vmem:[#allocation8 + $0x6c0] sm:$0xf]
    %v7925 = vld [vmem:[#allocation8 + $0x6c4] sm:$0xf]
    %v7926 = vld [vmem:[#allocation8 + $0x6c8] sm:$0xf]
    %v7927 = vld [vmem:[#allocation8 + $0x6cc] sm:$0xf]
    %v7928 = vld [vmem:[#allocation8 + $0x6d0] sm:$0xf]
    %v7929 = vld [vmem:[#allocation8 + $0x6d4] sm:$0xf]
    %v7930 = vld [vmem:[#allocation8 + $0x6d8] sm:$0xf]
    %v7931 = vld [vmem:[#allocation8 + $0x6dc] sm:$0xf]
    %v7932 = vld [vmem:[#allocation8 + $0x6e0] sm:$0xf]
    %v7933 = vld [vmem:[#allocation8 + $0x6e4] sm:$0xf]
    %v7934 = vld [vmem:[#allocation8 + $0x6e8] sm:$0xf]
    %v7935 = vld [vmem:[#allocation8 + $0x6ec] sm:$0xf]
    %v7936 = vld [vmem:[#allocation8 + $0x6f0] sm:$0xf]
    %v7937 = vld [vmem:[#allocation8 + $0x6f4] sm:$0xf]
    %v7938 = vld [vmem:[#allocation8 + $0x6f8] sm:$0xf]
    %v7939 = vld [vmem:[#allocation8 + $0x6fc] sm:$0xf]
    %v7940 = vld [vmem:[#allocation8 + $0x700] sm:$0xf]
    %v7941 = vld [vmem:[#allocation8 + $0x704] sm:$0xf]
    %v7942 = vld [vmem:[#allocation8 + $0x708] sm:$0xf]
    %v7943 = vld [vmem:[#allocation8 + $0x70c] sm:$0xf]
    %v7944 = vld [vmem:[#allocation8 + $0x710] sm:$0xf]
    %v7945 = vld [vmem:[#allocation8 + $0x714] sm:$0xf]
    %v7946 = vld [vmem:[#allocation8 + $0x718] sm:$0xf]
    %v7947 = vld [vmem:[#allocation8 + $0x71c] sm:$0xf]
    %v7948 = vld [vmem:[#allocation8 + $0x720] sm:$0xf]
    %v7949 = vld [vmem:[#allocation8 + $0x724] sm:$0xf]
    %v7950 = vld [vmem:[#allocation8 + $0x728] sm:$0xf]
    %v7951 = vld [vmem:[#allocation8 + $0x72c] sm:$0xf]
    %v7952 = vld [vmem:[#allocation8 + $0x730] sm:$0xf]
    %v7953 = vld [vmem:[#allocation8 + $0x734] sm:$0xf]
    %v7954 = vld [vmem:[#allocation8 + $0x738] sm:$0xf]
    %v7955 = vld [vmem:[#allocation8 + $0x73c] sm:$0xf]
    %v7956 = vld [vmem:[#allocation8 + $0x740] sm:$0xf]
    %v7957 = vld [vmem:[#allocation8 + $0x744] sm:$0xf]
    %v7958 = vld [vmem:[#allocation8 + $0x748] sm:$0xf]
    %v7959 = vld [vmem:[#allocation8 + $0x74c] sm:$0xf]
    %v7960 = vld [vmem:[#allocation8 + $0x750] sm:$0xf]
    %v7961 = vld [vmem:[#allocation8 + $0x754] sm:$0xf]
    %v7962 = vld [vmem:[#allocation8 + $0x758] sm:$0xf]
    %v7963 = vld [vmem:[#allocation8 + $0x75c] sm:$0xf]
    %v7964 = vld [vmem:[#allocation8 + $0x760] sm:$0xf]
    %v7965 = vld [vmem:[#allocation8 + $0x764] sm:$0xf]
    %v7966 = vld [vmem:[#allocation8 + $0x768] sm:$0xf]
    %v7967 = vld [vmem:[#allocation8 + $0x76c] sm:$0xf]
    %v7968 = vld [vmem:[#allocation8 + $0x770] sm:$0xf]
    %v7969 = vld [vmem:[#allocation8 + $0x774] sm:$0xf]
    %v7970 = vld [vmem:[#allocation8 + $0x778] sm:$0xf]
    %v7971 = vld [vmem:[#allocation8 + $0x77c] sm:$0xf]
    %v8228 = vunpack.c.l.b16 %v7716
    %v8229 = vunpack.c.l.b16 %v7717
    %v8230 = vunpack.c.l.b16 %v7718
    %v8231 = vunpack.c.l.b16 %v7719
    %v8232 = vunpack.c.l.b16 %v7720
    %v8233 = vunpack.c.l.b16 %v7721
    %v8234 = vunpack.c.l.b16 %v7722
    %v8235 = vunpack.c.l.b16 %v7723
    %v8236 = vunpack.c.l.b16 %v7724
    %v8237 = vunpack.c.l.b16 %v7725
    %v8238 = vunpack.c.l.b16 %v7726
    %v8239 = vunpack.c.l.b16 %v7727
    %v8240 = vunpack.c.l.b16 %v7728
    %v8241 = vunpack.c.l.b16 %v7729
    %v8242 = vunpack.c.l.b16 %v7730
    %v8243 = vunpack.c.l.b16 %v7731
    %v8244 = vunpack.c.l.b16 %v7732
    %v8245 = vunpack.c.l.b16 %v7733
    %v8246 = vunpack.c.l.b16 %v7734
    %v8247 = vunpack.c.l.b16 %v7735
    %v8248 = vunpack.c.l.b16 %v7736
    %v8249 = vunpack.c.l.b16 %v7737
    %v8250 = vunpack.c.l.b16 %v7738
    %v8251 = vunpack.c.l.b16 %v7739
    %v8252 = vunpack.c.l.b16 %v7740
    %v8253 = vunpack.c.l.b16 %v7741
    %v8254 = vunpack.c.l.b16 %v7742
    %v8255 = vunpack.c.l.b16 %v7743
    %v8256 = vunpack.c.l.b16 %v7744
    %v8257 = vunpack.c.l.b16 %v7745
    %v8258 = vunpack.c.l.b16 %v7746
    %v8259 = vunpack.c.l.b16 %v7747
    %v8260 = vunpack.c.l.b16 %v7748
    %v8261 = vunpack.c.l.b16 %v7749
    %v8262 = vunpack.c.l.b16 %v7750
    %v8263 = vunpack.c.l.b16 %v7751
    %v8264 = vunpack.c.l.b16 %v7752
    %v8265 = vunpack.c.l.b16 %v7753
    %v8266 = vunpack.c.l.b16 %v7754
    %v8267 = vunpack.c.l.b16 %v7755
    %v8268 = vunpack.c.l.b16 %v7756
    %v8269 = vunpack.c.l.b16 %v7757
    %v8270 = vunpack.c.l.b16 %v7758
    %v8271 = vunpack.c.l.b16 %v7759
    %v8272 = vunpack.c.l.b16 %v7760
    %v8273 = vunpack.c.l.b16 %v7761
    %v8274 = vunpack.c.l.b16 %v7762
    %v8275 = vunpack.c.l.b16 %v7763
    %v8276 = vunpack.c.l.b16 %v7764
    %v8277 = vunpack.c.l.b16 %v7765
    %v8278 = vunpack.c.l.b16 %v7766
    %v8279 = vunpack.c.l.b16 %v7767
    %v8280 = vunpack.c.l.b16 %v7768
    %v8281 = vunpack.c.l.b16 %v7769
    %v8282 = vunpack.c.l.b16 %v7770
    %v8283 = vunpack.c.l.b16 %v7771
    %v8284 = vunpack.c.l.b16 %v7772
    %v8285 = vunpack.c.l.b16 %v7773
    %v8286 = vunpack.c.l.b16 %v7774
    %v8287 = vunpack.c.l.b16 %v7775
    %v8288 = vunpack.c.l.b16 %v7776
    %v8289 = vunpack.c.l.b16 %v7777
    %v8290 = vunpack.c.l.b16 %v7778
    %v8291 = vunpack.c.l.b16 %v7779
    %v8292 = vunpack.c.l.b16 %v7780
    %v8293 = vunpack.c.l.b16 %v7781
    %v8294 = vunpack.c.l.b16 %v7782
    %v8295 = vunpack.c.l.b16 %v7783
    %v8296 = vunpack.c.l.b16 %v7784
    %v8297 = vunpack.c.l.b16 %v7785
    %v8298 = vunpack.c.l.b16 %v7786
    %v8299 = vunpack.c.l.b16 %v7787
    %v8300 = vunpack.c.l.b16 %v7788
    %v8301 = vunpack.c.l.b16 %v7789
    %v8302 = vunpack.c.l.b16 %v7790
    %v8303 = vunpack.c.l.b16 %v7791
    %v8304 = vunpack.c.l.b16 %v7792
    %v8305 = vunpack.c.l.b16 %v7793
    %v8306 = vunpack.c.l.b16 %v7794
    %v8307 = vunpack.c.l.b16 %v7795
    %v8308 = vunpack.c.l.b16 %v7796
    %v8309 = vunpack.c.l.b16 %v7797
    %v8310 = vunpack.c.l.b16 %v7798
    %v8311 = vunpack.c.l.b16 %v7799
    %v8312 = vunpack.c.l.b16 %v7800
    %v8313 = vunpack.c.l.b16 %v7801
    %v8314 = vunpack.c.l.b16 %v7802
    %v8315 = vunpack.c.l.b16 %v7803
    %v8316 = vunpack.c.l.b16 %v7804
    %v8317 = vunpack.c.l.b16 %v7805
    %v8318 = vunpack.c.l.b16 %v7806
    %v8319 = vunpack.c.l.b16 %v7807
    %v8320 = vunpack.c.l.b16 %v7808
    %v8321 = vunpack.c.l.b16 %v7809
    %v8322 = vunpack.c.l.b16 %v7810
    %v8323 = vunpack.c.l.b16 %v7811
    %v8324 = vunpack.c.l.b16 %v7812
    %v8325 = vunpack.c.l.b16 %v7813
    %v8326 = vunpack.c.l.b16 %v7814
    %v8327 = vunpack.c.l.b16 %v7815
    %v8328 = vunpack.c.l.b16 %v7816
    %v8329 = vunpack.c.l.b16 %v7817
    %v8330 = vunpack.c.l.b16 %v7818
    %v8331 = vunpack.c.l.b16 %v7819
    %v8332 = vunpack.c.l.b16 %v7820
    %v8333 = vunpack.c.l.b16 %v7821
    %v8334 = vunpack.c.l.b16 %v7822
    %v8335 = vunpack.c.l.b16 %v7823
    %v8336 = vunpack.c.l.b16 %v7824
    %v8337 = vunpack.c.l.b16 %v7825
    %v8338 = vunpack.c.l.b16 %v7826
    %v8339 = vunpack.c.l.b16 %v7827
    %v8340 = vunpack.c.l.b16 %v7828
    %v8341 = vunpack.c.l.b16 %v7829
    %v8342 = vunpack.c.l.b16 %v7830
    %v8343 = vunpack.c.l.b16 %v7831
    %v8344 = vunpack.c.l.b16 %v7832
    %v8345 = vunpack.c.l.b16 %v7833
    %v8346 = vunpack.c.l.b16 %v7834
    %v8347 = vunpack.c.l.b16 %v7835
    %v8348 = vunpack.c.l.b16 %v7836
    %v8349 = vunpack.c.l.b16 %v7837
    %v8350 = vunpack.c.l.b16 %v7838
    %v8351 = vunpack.c.l.b16 %v7839
    %v8352 = vunpack.c.l.b16 %v7840
    %v8353 = vunpack.c.l.b16 %v7841
    %v8354 = vunpack.c.l.b16 %v7842
    %v8355 = vunpack.c.l.b16 %v7843
    %v8356 = vunpack.c.l.b16 %v7844
    %v8357 = vunpack.c.l.b16 %v7845
    %v8358 = vunpack.c.l.b16 %v7846
    %v8359 = vunpack.c.l.b16 %v7847
    %v8360 = vunpack.c.l.b16 %v7848
    %v8361 = vunpack.c.l.b16 %v7849
    %v8362 = vunpack.c.l.b16 %v7850
    %v8363 = vunpack.c.l.b16 %v7851
    %v8364 = vunpack.c.l.b16 %v7852
    %v8365 = vunpack.c.l.b16 %v7853
    %v8366 = vunpack.c.l.b16 %v7854
    %v8367 = vunpack.c.l.b16 %v7855
    %v8368 = vunpack.c.l.b16 %v7856
    %v8369 = vunpack.c.l.b16 %v7857
    %v8370 = vunpack.c.l.b16 %v7858
    %v8371 = vunpack.c.l.b16 %v7859
    %v8372 = vunpack.c.l.b16 %v7860
    %v8373 = vunpack.c.l.b16 %v7861
    %v8374 = vunpack.c.l.b16 %v7862
    %v8375 = vunpack.c.l.b16 %v7863
    %v8376 = vunpack.c.l.b16 %v7864
    %v8377 = vunpack.c.l.b16 %v7865
    %v8378 = vunpack.c.l.b16 %v7866
    %v8379 = vunpack.c.l.b16 %v7867
    %v8380 = vunpack.c.l.b16 %v7868
    %v8381 = vunpack.c.l.b16 %v7869
    %v8382 = vunpack.c.l.b16 %v7870
    %v8383 = vunpack.c.l.b16 %v7871
    %v8384 = vunpack.c.l.b16 %v7872
    %v8385 = vunpack.c.l.b16 %v7873
    %v8386 = vunpack.c.l.b16 %v7874
    %v8387 = vunpack.c.l.b16 %v7875
    %v8388 = vunpack.c.l.b16 %v7876
    %v8389 = vunpack.c.l.b16 %v7877
    %v8390 = vunpack.c.l.b16 %v7878
    %v8391 = vunpack.c.l.b16 %v7879
    %v8392 = vunpack.c.l.b16 %v7880
    %v8393 = vunpack.c.l.b16 %v7881
    %v8394 = vunpack.c.l.b16 %v7882
    %v8395 = vunpack.c.l.b16 %v7883
    %v8396 = vunpack.c.l.b16 %v7884
    %v8397 = vunpack.c.l.b16 %v7885
    %v8398 = vunpack.c.l.b16 %v7886
    %v8399 = vunpack.c.l.b16 %v7887
    %v8400 = vunpack.c.l.b16 %v7888
    %v8401 = vunpack.c.l.b16 %v7889
    %v8402 = vunpack.c.l.b16 %v7890
    %v8403 = vunpack.c.l.b16 %v7891
    %v8404 = vunpack.c.l.b16 %v7892
    %v8405 = vunpack.c.l.b16 %v7893
    %v8406 = vunpack.c.l.b16 %v7894
    %v8407 = vunpack.c.l.b16 %v7895
    %v8408 = vunpack.c.l.b16 %v7896
    %v8409 = vunpack.c.l.b16 %v7897
    %v8410 = vunpack.c.l.b16 %v7898
    %v8411 = vunpack.c.l.b16 %v7899
    %v8412 = vunpack.c.l.b16 %v7900
    %v8413 = vunpack.c.l.b16 %v7901
    %v8414 = vunpack.c.l.b16 %v7902
    %v8415 = vunpack.c.l.b16 %v7903
    %v8416 = vunpack.c.l.b16 %v7904
    %v8417 = vunpack.c.l.b16 %v7905
    %v8418 = vunpack.c.l.b16 %v7906
    %v8419 = vunpack.c.l.b16 %v7907
    %v8420 = vunpack.c.l.b16 %v7908
    %v8421 = vunpack.c.l.b16 %v7909
    %v8422 = vunpack.c.l.b16 %v7910
    %v8423 = vunpack.c.l.b16 %v7911
    %v8424 = vunpack.c.l.b16 %v7912
    %v8425 = vunpack.c.l.b16 %v7913
    %v8426 = vunpack.c.l.b16 %v7914
    %v8427 = vunpack.c.l.b16 %v7915
    %v8428 = vunpack.c.l.b16 %v7916
    %v8429 = vunpack.c.l.b16 %v7917
    %v8430 = vunpack.c.l.b16 %v7918
    %v8431 = vunpack.c.l.b16 %v7919
    %v8432 = vunpack.c.l.b16 %v7920
    %v8433 = vunpack.c.l.b16 %v7921
    %v8434 = vunpack.c.l.b16 %v7922
    %v8435 = vunpack.c.l.b16 %v7923
    %v8436 = vunpack.c.l.b16 %v7924
    %v8437 = vunpack.c.l.b16 %v7925
    %v8438 = vunpack.c.l.b16 %v7926
    %v8439 = vunpack.c.l.b16 %v7927
    %v8440 = vunpack.c.l.b16 %v7928
    %v8441 = vunpack.c.l.b16 %v7929
    %v8442 = vunpack.c.l.b16 %v7930
    %v8443 = vunpack.c.l.b16 %v7931
    %v8444 = vunpack.c.l.b16 %v7932
    %v8445 = vunpack.c.l.b16 %v7933
    %v8446 = vunpack.c.l.b16 %v7934
    %v8447 = vunpack.c.l.b16 %v7935
    %v8448 = vunpack.c.l.b16 %v7936
    %v8449 = vunpack.c.l.b16 %v7937
    %v8450 = vunpack.c.l.b16 %v7938
    %v8451 = vunpack.c.l.b16 %v7939
    %v8452 = vunpack.c.l.b16 %v7940
    %v8453 = vunpack.c.l.b16 %v7941
    %v8454 = vunpack.c.l.b16 %v7942
    %v8455 = vunpack.c.l.b16 %v7943
    %v8456 = vunpack.c.l.b16 %v7944
    %v8457 = vunpack.c.l.b16 %v7945
    %v8458 = vunpack.c.l.b16 %v7946
    %v8459 = vunpack.c.l.b16 %v7947
    %v8460 = vunpack.c.l.b16 %v7948
    %v8461 = vunpack.c.l.b16 %v7949
    %v8462 = vunpack.c.l.b16 %v7950
    %v8463 = vunpack.c.l.b16 %v7951
    %v8464 = vunpack.c.l.b16 %v7952
    %v8465 = vunpack.c.l.b16 %v7953
    %v8466 = vunpack.c.l.b16 %v7954
    %v8467 = vunpack.c.l.b16 %v7955
    %v8468 = vunpack.c.l.b16 %v7956
    %v8469 = vunpack.c.l.b16 %v7957
    %v8470 = vunpack.c.l.b16 %v7958
    %v8471 = vunpack.c.l.b16 %v7959
    %v8472 = vunpack.c.l.b16 %v7960
    %v8473 = vunpack.c.l.b16 %v7961
    %v8474 = vunpack.c.l.b16 %v7962
    %v8475 = vunpack.c.l.b16 %v7963
    %v8476 = vunpack.c.l.b16 %v7964
    %v8477 = vunpack.c.l.b16 %v7965
    %v8478 = vunpack.c.l.b16 %v7966
    %v8479 = vunpack.c.l.b16 %v7967
    %v8480 = vunpack.c.l.b16 %v7968
    %v8481 = vunpack.c.l.b16 %v7969
    %v8482 = vunpack.c.l.b16 %v7970
    %v8483 = vunpack.c.l.b16 %v7971
    %v8484 = vpack.c.b16 %v8229, %v8228
    %v8485 = vpack.c.b16 %v8231, %v8230
    %v8486 = vpack.c.b16 %v8233, %v8232
    %v8487 = vpack.c.b16 %v8235, %v8234
    %v8488 = vpack.c.b16 %v8237, %v8236
    %v8489 = vpack.c.b16 %v8239, %v8238
    %v8490 = vpack.c.b16 %v8241, %v8240
    %v8491 = vpack.c.b16 %v8243, %v8242
    %v8492 = vpack.c.b16 %v8245, %v8244
    %v8493 = vpack.c.b16 %v8247, %v8246
    %v8494 = vpack.c.b16 %v8249, %v8248
    %v8495 = vpack.c.b16 %v8251, %v8250
    %v8496 = vpack.c.b16 %v8253, %v8252
    %v8497 = vpack.c.b16 %v8255, %v8254
    %v8498 = vpack.c.b16 %v8257, %v8256
    %v8499 = vpack.c.b16 %v8259, %v8258
    %v8500 = vpack.c.b16 %v8261, %v8260
    %v8501 = vpack.c.b16 %v8263, %v8262
    %v8502 = vpack.c.b16 %v8265, %v8264
    %v8503 = vpack.c.b16 %v8267, %v8266
    %v8504 = vpack.c.b16 %v8269, %v8268
    %v8505 = vpack.c.b16 %v8271, %v8270
    %v8506 = vpack.c.b16 %v8273, %v8272
    %v8507 = vpack.c.b16 %v8275, %v8274
    %v8508 = vpack.c.b16 %v8277, %v8276
    %v8509 = vpack.c.b16 %v8279, %v8278
    %v8510 = vpack.c.b16 %v8281, %v8280
    %v8511 = vpack.c.b16 %v8283, %v8282
    %v8512 = vpack.c.b16 %v8285, %v8284
    %v8513 = vpack.c.b16 %v8287, %v8286
    %v8514 = vpack.c.b16 %v8289, %v8288
    %v8515 = vpack.c.b16 %v8291, %v8290
    %v8516 = vpack.c.b16 %v8293, %v8292
    %v8517 = vpack.c.b16 %v8295, %v8294
    %v8518 = vpack.c.b16 %v8297, %v8296
    %v8519 = vpack.c.b16 %v8299, %v8298
    %v8520 = vpack.c.b16 %v8301, %v8300
    %v8521 = vpack.c.b16 %v8303, %v8302
    %v8522 = vpack.c.b16 %v8305, %v8304
    %v8523 = vpack.c.b16 %v8307, %v8306
    %v8524 = vpack.c.b16 %v8309, %v8308
    %v8525 = vpack.c.b16 %v8311, %v8310
    %v8526 = vpack.c.b16 %v8313, %v8312
    %v8527 = vpack.c.b16 %v8315, %v8314
    %v8528 = vpack.c.b16 %v8317, %v8316
    %v8529 = vpack.c.b16 %v8319, %v8318
    %v8530 = vpack.c.b16 %v8321, %v8320
    %v8531 = vpack.c.b16 %v8323, %v8322
    %v8532 = vpack.c.b16 %v8325, %v8324
    %v8533 = vpack.c.b16 %v8327, %v8326
    %v8534 = vpack.c.b16 %v8329, %v8328
    %v8535 = vpack.c.b16 %v8331, %v8330
    %v8536 = vpack.c.b16 %v8333, %v8332
    %v8537 = vpack.c.b16 %v8335, %v8334
    %v8538 = vpack.c.b16 %v8337, %v8336
    %v8539 = vpack.c.b16 %v8339, %v8338
    %v8540 = vpack.c.b16 %v8341, %v8340
    %v8541 = vpack.c.b16 %v8343, %v8342
    %v8542 = vpack.c.b16 %v8345, %v8344
    %v8543 = vpack.c.b16 %v8347, %v8346
    %v8544 = vpack.c.b16 %v8349, %v8348
    %v8545 = vpack.c.b16 %v8351, %v8350
    %v8546 = vpack.c.b16 %v8353, %v8352
    %v8547 = vpack.c.b16 %v8355, %v8354
    %v8548 = vpack.c.b16 %v8357, %v8356
    %v8549 = vpack.c.b16 %v8359, %v8358
    %v8550 = vpack.c.b16 %v8361, %v8360
    %v8551 = vpack.c.b16 %v8363, %v8362
    %v8552 = vpack.c.b16 %v8365, %v8364
    %v8553 = vpack.c.b16 %v8367, %v8366
    %v8554 = vpack.c.b16 %v8369, %v8368
    %v8555 = vpack.c.b16 %v8371, %v8370
    %v8556 = vpack.c.b16 %v8373, %v8372
    %v8557 = vpack.c.b16 %v8375, %v8374
    %v8558 = vpack.c.b16 %v8377, %v8376
    %v8559 = vpack.c.b16 %v8379, %v8378
    %v8560 = vpack.c.b16 %v8381, %v8380
    %v8561 = vpack.c.b16 %v8383, %v8382
    %v8562 = vpack.c.b16 %v8385, %v8384
    %v8563 = vpack.c.b16 %v8387, %v8386
    %v8564 = vpack.c.b16 %v8389, %v8388
    %v8565 = vpack.c.b16 %v8391, %v8390
    %v8566 = vpack.c.b16 %v8393, %v8392
    %v8567 = vpack.c.b16 %v8395, %v8394
    %v8568 = vpack.c.b16 %v8397, %v8396
    %v8569 = vpack.c.b16 %v8399, %v8398
    %v8570 = vpack.c.b16 %v8401, %v8400
    %v8571 = vpack.c.b16 %v8403, %v8402
    %v8572 = vpack.c.b16 %v8405, %v8404
    %v8573 = vpack.c.b16 %v8407, %v8406
    %v8574 = vpack.c.b16 %v8409, %v8408
    %v8575 = vpack.c.b16 %v8411, %v8410
    %v8576 = vpack.c.b16 %v8413, %v8412
    %v8577 = vpack.c.b16 %v8415, %v8414
    %v8578 = vpack.c.b16 %v8417, %v8416
    %v8579 = vpack.c.b16 %v8419, %v8418
    %v8580 = vpack.c.b16 %v8421, %v8420
    %v8581 = vpack.c.b16 %v8423, %v8422
    %v8582 = vpack.c.b16 %v8425, %v8424
    %v8583 = vpack.c.b16 %v8427, %v8426
    %v8584 = vpack.c.b16 %v8429, %v8428
    %v8585 = vpack.c.b16 %v8431, %v8430
    %v8586 = vpack.c.b16 %v8433, %v8432
    %v8587 = vpack.c.b16 %v8435, %v8434
    %v8588 = vpack.c.b16 %v8437, %v8436
    %v8589 = vpack.c.b16 %v8439, %v8438
    %v8590 = vpack.c.b16 %v8441, %v8440
    %v8591 = vpack.c.b16 %v8443, %v8442
    %v8592 = vpack.c.b16 %v8445, %v8444
    %v8593 = vpack.c.b16 %v8447, %v8446
    %v8594 = vpack.c.b16 %v8449, %v8448
    %v8595 = vpack.c.b16 %v8451, %v8450
    %v8596 = vpack.c.b16 %v8453, %v8452
    %v8597 = vpack.c.b16 %v8455, %v8454
    %v8598 = vpack.c.b16 %v8457, %v8456
    %v8599 = vpack.c.b16 %v8459, %v8458
    %v8600 = vpack.c.b16 %v8461, %v8460
    %v8601 = vpack.c.b16 %v8463, %v8462
    %v8602 = vpack.c.b16 %v8465, %v8464
    %v8603 = vpack.c.b16 %v8467, %v8466
    %v8604 = vpack.c.b16 %v8469, %v8468
    %v8605 = vpack.c.b16 %v8471, %v8470
    %v8606 = vpack.c.b16 %v8473, %v8472
    %v8607 = vpack.c.b16 %v8475, %v8474
    %v8608 = vpack.c.b16 %v8477, %v8476
    %v8609 = vpack.c.b16 %v8479, %v8478
    %v8610 = vpack.c.b16 %v8481, %v8480
    %v8611 = vpack.c.b16 %v8483, %v8482
    %8740 = vmatprep.subr.bf16.mxu0 0
    %8741 = vmatpush1.bf16.msra.mxu0 %v8484
    %8742 = vmatprep.subr.bf16.mxu0 0
    %8743 = vmatpush1.bf16.msra.mxu0 %v8485
    %8744 = vmatprep.subr.bf16.mxu0 0
    %8745 = vmatpush1.bf16.msra.mxu0 %v8486
    %8746 = vmatprep.subr.bf16.mxu0 0
    %8747 = vmatpush1.bf16.msra.mxu0 %v8487
    %8748 = vmatprep.subr.bf16.mxu0 0
    %8749 = vmatpush1.bf16.msra.mxu0 %v8488
    %8750 = vmatprep.subr.bf16.mxu0 0
    %8751 = vmatpush1.bf16.msra.mxu0 %v8489
    %8752 = vmatprep.subr.bf16.mxu0 0
    %8753 = vmatpush1.bf16.msra.mxu0 %v8490
    %8754 = vmatprep.subr.bf16.mxu0 0
    %8755 = vmatpush1.bf16.msra.mxu0 %v8491
    %8756 = vmatprep.subr.bf16.mxu0 0
    %8757 = vmatpush1.bf16.msra.mxu0 %v8492
    %8758 = vmatprep.subr.bf16.mxu0 0
    %8759 = vmatpush1.bf16.msra.mxu0 %v8493
    %8760 = vmatprep.subr.bf16.mxu0 0
    %8761 = vmatpush1.bf16.msra.mxu0 %v8494
    %8762 = vmatprep.subr.bf16.mxu0 0
    %8763 = vmatpush1.bf16.msra.mxu0 %v8495
    %8764 = vmatprep.subr.bf16.mxu0 0
    %8765 = vmatpush1.bf16.msra.mxu0 %v8496
    %8766 = vmatprep.subr.bf16.mxu0 0
    %8767 = vmatpush1.bf16.msra.mxu0 %v8497
    %8768 = vmatprep.subr.bf16.mxu0 0
    %8769 = vmatpush1.bf16.msra.mxu0 %v8498
    %8770 = vmatprep.subr.bf16.mxu0 0
    %8771 = vmatpush1.bf16.msra.mxu0 %v8499
    %8772 = vmatprep.mubr.bf16.mxu0 %v7589
    %8773 = vmatmul.mubr.bf16.gmra.mrb[0].mxu0 %v7588
    %v8774 = vpop.f32.mrb[0].mxu0
    %v8775 = vadd.f32 0.0, %v8774
    %v8776 = vpop.f32.mrb[0].mxu0
    %v8777 = vpop.f32.mrb[0].mxu0
    %v8778 = vadd.f32 0.0, %v8777
    %v8779 = vpop.f32.mrb[0].mxu0
    %8780 = vmatprep.mubr.bf16.mxu0 %v7605
    %8781 = vmatmul.mubr.bf16.gmra.mrb[0].mxu0 %v7604
    %v8782 = vpop.f32.mrb[0].mxu0
    %v8783 = vadd.f32 0.0, %v8782
    %v8784 = vpop.f32.mrb[0].mxu0
    %v8785 = vpop.f32.mrb[0].mxu0
    %v8786 = vadd.f32 0.0, %v8785
    %v8787 = vpop.f32.mrb[0].mxu0
    %8788 = vmatprep.mubr.bf16.mxu0 %v7621
    %8789 = vmatmul.mubr.bf16.gmra.mrb[0].mxu0 %v7620
    %v8790 = vpop.f32.mrb[0].mxu0
    %v8791 = vadd.f32 0.0, %v8790
    %v8792 = vpop.f32.mrb[0].mxu0
    %v8793 = vpop.f32.mrb[0].mxu0
    %v8794 = vadd.f32 0.0, %v8793
    %v8795 = vpop.f32.mrb[0].mxu0
    %8796 = vmatprep.mubr.bf16.mxu0 %v7637
    %8797 = vmatmul.mubr.bf16.gmra.mrb[0].mxu0 %v7636
    %v8798 = vpop.f32.mrb[0].mxu0
    %v8799 = vadd.f32 0.0, %v8798
    %v8800 = vpop.f32.mrb[0].mxu0
    %v8801 = vpop.f32.mrb[0].mxu0
    %v8802 = vadd.f32 0.0, %v8801
    %v8803 = vpop.f32.mrb[0].mxu0
    %8804 = vmatprep.mubr.bf16.mxu0 %v7653
    %8805 = vmatmul.mubr.bf16.gmra.mrb[0].mxu0 %v7652
    %v8806 = vpop.f32.mrb[0].mxu0
    %v8807 = vadd.f32 0.0, %v8806
    %v8808 = vpop.f32.mrb[0].mxu0
    %v8809 = vpop.f32.mrb[0].mxu0
    %v8810 = vadd.f32 0.0, %v8809
    %v8811 = vpop.f32.mrb[0].mxu0
    %8812 = vmatprep.mubr.bf16.mxu0 %v7669
    %8813 = vmatmul.mubr.bf16.gmra.mrb[0].mxu0 %v7668
    %v8814 = vpop.f32.mrb[0].mxu0
    %v8815 = vadd.f32 0.0, %v8814
    %v8816 = vpop.f32.mrb[0].mxu0
    %v8817 = vpop.f32.mrb[0].mxu0
    %v8818 = vadd.f32 0.0, %v8817
    %v8819 = vpop.f32.mrb[0].mxu0
    %8820 = vmatprep.mubr.bf16.mxu0 %v7685
    %8821 = vmatmul.mubr.bf16.gmra.mrb[0].mxu0 %v7684
    %v8822 = vpop.f32.mrb[0].mxu0
    %v8823 = vadd.f32 0.0, %v8822
    %v8824 = vpop.f32.mrb[0].mxu0
    %v8825 = vpop.f32.mrb[0].mxu0
    %v8826 = vadd.f32 0.0, %v8825
    %v8827 = vpop.f32.mrb[0].mxu0
    %8828 = vmatprep.mubr.bf16.mxu0 %v7701
    %8829 = vmatmul.mubr.bf16.gmra.mrb[0].mxu0 %v7700
    %v8830 = vpop.f32.mrb[0].mxu0
    %v8831 = vadd.f32 0.0, %v8830
    %v8832 = vpop.f32.mrb[0].mxu0
    %v8833 = vpop.f32.mrb[0].mxu0
    %v8834 = vadd.f32 0.0, %v8833
    %v8835 = vpop.f32.mrb[0].mxu0
    %8836 = vdwg.mxu0
    %8837 = vmatprep.subr.bf16.mxu0 0
    %8838 = vmatpush1.bf16.msra.mxu0 %v8500
    %8839 = vmatprep.subr.bf16.mxu0 0
    %8840 = vmatpush1.bf16.msra.mxu0 %v8501
    %8841 = vmatprep.subr.bf16.mxu0 0
    %8842 = vmatpush1.bf16.msra.mxu0 %v8502
    %8843 = vmatprep.subr.bf16.mxu0 0
    %8844 = vmatpush1.bf16.msra.mxu0 %v8503
    %8845 = vmatprep.subr.bf16.mxu0 0
    %8846 = vmatpush1.bf16.msra.mxu0 %v8504
    %8847 = vmatprep.subr.bf16.mxu0 0
    %8848 = vmatpush1.bf16.msra.mxu0 %v8505
    %8849 = vmatprep.subr.bf16.mxu0 0
    %8850 = vmatpush1.bf16.msra.mxu0 %v8506
    %8851 = vmatprep.subr.bf16.mxu0 0
    %8852 = vmatpush1.bf16.msra.mxu0 %v8507
    %8853 = vmatprep.subr.bf16.mxu0 0
    %8854 = vmatpush1.bf16.msra.mxu0 %v8508
    %8855 = vmatprep.subr.bf16.mxu0 0
    %8856 = vmatpush1.bf16.msra.mxu0 %v8509
    %8857 = vmatprep.subr.bf16.mxu0 0
    %8858 = vmatpush1.bf16.msra.mxu0 %v8510
    %8859 = vmatprep.subr.bf16.mxu0 0
    %8860 = vmatpush1.bf16.msra.mxu0 %v8511
    %8861 = vmatprep.subr.bf16.mxu0 0
    %8862 = vmatpush1.bf16.msra.mxu0 %v8512
    %8863 = vmatprep.subr.bf16.mxu0 0
    %8864 = vmatpush1.bf16.msra.mxu0 %v8513
    %8865 = vmatprep.subr.bf16.mxu0 0
    %8866 = vmatpush1.bf16.msra.mxu0 %v8514
    %8867 = vmatprep.subr.bf16.mxu0 0
    %8868 = vmatpush1.bf16.msra.mxu0 %v8515
    %8869 = vmatprep.mubr.bf16.mxu0 %v7591
    %8870 = vmatmul.mubr.bf16.gmra.mrb[0].mxu0 %v7590
    %v8871 = vpop.f32.mrb[0].mxu0
    %v8872 = vadd.f32 %v8775, %v8871
    %v8873 = vpop.f32.mrb[0].mxu0
    %v8874 = vpop.f32.mrb[0].mxu0
    %v8875 = vadd.f32 %v8778, %v8874
    %v8876 = vpop.f32.mrb[0].mxu0
    %8877 = vmatprep.mubr.bf16.mxu0 %v7607
    %8878 = vmatmul.mubr.bf16.gmra.mrb[0].mxu0 %v7606
    %v8879 = vpop.f32.mrb[0].mxu0
    %v8880 = vadd.f32 %v8783, %v8879
    %v8881 = vpop.f32.mrb[0].mxu0
    %v8882 = vpop.f32.mrb[0].mxu0
    %v8883 = vadd.f32 %v8786, %v8882
    %v8884 = vpop.f32.mrb[0].mxu0
    %8885 = vmatprep.mubr.bf16.mxu0 %v7623
    %8886 = vmatmul.mubr.bf16.gmra.mrb[0].mxu0 %v7622
    %v8887 = vpop.f32.mrb[0].mxu0
    %v8888 = vadd.f32 %v8791, %v8887
    %v8889 = vpop.f32.mrb[0].mxu0
    %v8890 = vpop.f32.mrb[0].mxu0
    %v8891 = vadd.f32 %v8794, %v8890
    %v8892 = vpop.f32.mrb[0].mxu0
    %8893 = vmatprep.mubr.bf16.mxu0 %v7639
    %8894 = vmatmul.mubr.bf16.gmra.mrb[0].mxu0 %v7638
    %v8895 = vpop.f32.mrb[0].mxu0
    %v8896 = vadd.f32 %v8799, %v8895
    %v8897 = vpop.f32.mrb[0].mxu0
    %v8898 = vpop.f32.mrb[0].mxu0
    %v8899 = vadd.f32 %v8802, %v8898
    %v8900 = vpop.f32.mrb[0].mxu0
    %8901 = vmatprep.mubr.bf16.mxu0 %v7655
    %8902 = vmatmul.mubr.bf16.gmra.mrb[0].mxu0 %v7654
    %v8903 = vpop.f32.mrb[0].mxu0
    %v8904 = vadd.f32 %v8807, %v8903
    %v8905 = vpop.f32.mrb[0].mxu0
    %v8906 = vpop.f32.mrb[0].mxu0
    %v8907 = vadd.f32 %v8810, %v8906
    %v8908 = vpop.f32.mrb[0].mxu0
    %8909 = vmatprep.mubr.bf16.mxu0 %v7671
    %8910 = vmatmul.mubr.bf16.gmra.mrb[0].mxu0 %v7670
    %v8911 = vpop.f32.mrb[0].mxu0
    %v8912 = vadd.f32 %v8815, %v8911
    %v8913 = vpop.f32.mrb[0].mxu0
    %v8914 = vpop.f32.mrb[0].mxu0
    %v8915 = vadd.f32 %v8818, %v8914
    %v8916 = vpop.f32.mrb[0].mxu0
    %8917 = vmatprep.mubr.bf16.mxu0 %v7687
    %8918 = vmatmul.mubr.bf16.gmra.mrb[0].mxu0 %v7686
    %v8919 = vpop.f32.mrb[0].mxu0
    %v8920 = vadd.f32 %v8823, %v8919
    %v8921 = vpop.f32.mrb[0].mxu0
    %v8922 = vpop.f32.mrb[0].mxu0
    %v8923 = vadd.f32 %v8826, %v8922
    %v8924 = vpop.f32.mrb[0].mxu0
    %8925 = vmatprep.mubr.bf16.mxu0 %v7703
    %8926 = vmatmul.mubr.bf16.gmra.mrb[0].mxu0 %v7702
    %v8927 = vpop.f32.mrb[0].mxu0
    %v8928 = vadd.f32 %v8831, %v8927
    %v8929 = vpop.f32.mrb[0].mxu0
    %v8930 = vpop.f32.mrb[0].mxu0
    %v8931 = vadd.f32 %v8834, %v8930
    %v8932 = vpop.f32.mrb[0].mxu0
    %8933 = vdwg.mxu0
    %8934 = vmatprep.subr.bf16.mxu0 0
    %8935 = vmatpush1.bf16.msra.mxu0 %v8516
    %8936 = vmatprep.subr.bf16.mxu0 0
    %8937 = vmatpush1.bf16.msra.mxu0 %v8517
    %8938 = vmatprep.subr.bf16.mxu0 0
    %8939 = vmatpush1.bf16.msra.mxu0 %v8518
    %8940 = vmatprep.subr.bf16.mxu0 0
    %8941 = vmatpush1.bf16.msra.mxu0 %v8519
    %8942 = vmatprep.subr.bf16.mxu0 0
    %8943 = vmatpush1.bf16.msra.mxu0 %v8520
    %8944 = vmatprep.subr.bf16.mxu0 0
    %8945 = vmatpush1.bf16.msra.mxu0 %v8521
    %8946 = vmatprep.subr.bf16.mxu0 0
    %8947 = vmatpush1.bf16.msra.mxu0 %v8522
    %8948 = vmatprep.subr.bf16.mxu0 0
    %8949 = vmatpush1.bf16.msra.mxu0 %v8523
    %8950 = vmatprep.subr.bf16.mxu0 0
    %8951 = vmatpush1.bf16.msra.mxu0 %v8524
    %8952 = vmatprep.subr.bf16.mxu0 0
    %8953 = vmatpush1.bf16.msra.mxu0 %v8525
    %8954 = vmatprep.subr.bf16.mxu0 0
    %8955 = vmatpush1.bf16.msra.mxu0 %v8526
    %8956 = vmatprep.subr.bf16.mxu0 0
    %8957 = vmatpush1.bf16.msra.mxu0 %v8527
    %8958 = vmatprep.subr.bf16.mxu0 0
    %8959 = vmatpush1.bf16.msra.mxu0 %v8528
    %8960 = vmatprep.subr.bf16.mxu0 0
    %8961 = vmatpush1.bf16.msra.mxu0 %v8529
    %8962 = vmatprep.subr.bf16.mxu0 0
    %8963 = vmatpush1.bf16.msra.mxu0 %v8530
    %8964 = vmatprep.subr.bf16.mxu0 0
    %8965 = vmatpush1.bf16.msra.mxu0 %v8531
    %8966 = vmatprep.mubr.bf16.mxu0 %v7593
    %8967 = vmatmul.mubr.bf16.gmra.mrb[0].mxu0 %v7592
    %v8968 = vpop.f32.mrb[0].mxu0
    %v8969 = vadd.f32 %v8872, %v8968
    %v8970 = vpop.f32.mrb[0].mxu0
    %v8971 = vpop.f32.mrb[0].mxu0
    %v8972 = vadd.f32 %v8875, %v8971
    %v8973 = vpop.f32.mrb[0].mxu0
    %8974 = vmatprep.mubr.bf16.mxu0 %v7609
    %8975 = vmatmul.mubr.bf16.gmra.mrb[0].mxu0 %v7608
    %v8976 = vpop.f32.mrb[0].mxu0
    %v8977 = vadd.f32 %v8880, %v8976
    %v8978 = vpop.f32.mrb[0].mxu0
    %v8979 = vpop.f32.mrb[0].mxu0
    %v8980 = vadd.f32 %v8883, %v8979
    %v8981 = vpop.f32.mrb[0].mxu0
    %8982 = vmatprep.mubr.bf16.mxu0 %v7625
    %8983 = vmatmul.mubr.bf16.gmra.mrb[0].mxu0 %v7624
    %v8984 = vpop.f32.mrb[0].mxu0
    %v8985 = vadd.f32 %v8888, %v8984
    %v8986 = vpop.f32.mrb[0].mxu0
    %v8987 = vpop.f32.mrb[0].mxu0
    %v8988 = vadd.f32 %v8891, %v8987
    %v8989 = vpop.f32.mrb[0].mxu0
    %8990 = vmatprep.mubr.bf16.mxu0 %v7641
    %8991 = vmatmul.mubr.bf16.gmra.mrb[0].mxu0 %v7640
    %v8992 = vpop.f32.mrb[0].mxu0
    %v8993 = vadd.f32 %v8896, %v8992
    %v8994 = vpop.f32.mrb[0].mxu0
    %v8995 = vpop.f32.mrb[0].mxu0
    %v8996 = vadd.f32 %v8899, %v8995
    %v8997 = vpop.f32.mrb[0].mxu0
    %8998 = vmatprep.mubr.bf16.mxu0 %v7657
    %8999 = vmatmul.mubr.bf16.gmra.mrb[0].mxu0 %v7656
    %v9000 = vpop.f32.mrb[0].mxu0
    %v9001 = vadd.f32 %v8904, %v9000
    %v9002 = vpop.f32.mrb[0].mxu0
    %v9003 = vpop.f32.mrb[0].mxu0
    %v9004 = vadd.f32 %v8907, %v9003
    %v9005 = vpop.f32.mrb[0].mxu0
    %9006 = vmatprep.mubr.bf16.mxu0 %v7673
    %9007 = vmatmul.mubr.bf16.gmra.mrb[0].mxu0 %v7672
    %v9008 = vpop.f32.mrb[0].mxu0
    %v9009 = vadd.f32 %v8912, %v9008
    %v9010 = vpop.f32.mrb[0].mxu0
    %v9011 = vpop.f32.mrb[0].mxu0
    %v9012 = vadd.f32 %v8915, %v9011
    %v9013 = vpop.f32.mrb[0].mxu0
    %9014 = vmatprep.mubr.bf16.mxu0 %v7689
    %9015 = vmatmul.mubr.bf16.gmra.mrb[0].mxu0 %v7688
    %v9016 = vpop.f32.mrb[0].mxu0
    %v9017 = vadd.f32 %v8920, %v9016
    %v9018 = vpop.f32.mrb[0].mxu0
    %v9019 = vpop.f32.mrb[0].mxu0
    %v9020 = vadd.f32 %v8923, %v9019
    %v9021 = vpop.f32.mrb[0].mxu0
    %9022 = vmatprep.mubr.bf16.mxu0 %v7705
    %9023 = vmatmul.mubr.bf16.gmra.mrb[0].mxu0 %v7704
    %v9024 = vpop.f32.mrb[0].mxu0
    %v9025 = vadd.f32 %v8928, %v9024
    %v9026 = vpop.f32.mrb[0].mxu0
    %v9027 = vpop.f32.mrb[0].mxu0
    %v9028 = vadd.f32 %v8931, %v9027
    %v9029 = vpop.f32.mrb[0].mxu0
    %9030 = vdwg.mxu0
    %9031 = vmatprep.subr.bf16.mxu0 0
    %9032 = vmatpush1.bf16.msra.mxu0 %v8532
    %9033 = vmatprep.subr.bf16.mxu0 0
    %9034 = vmatpush1.bf16.msra.mxu0 %v8533
    %9035 = vmatprep.subr.bf16.mxu0 0
    %9036 = vmatpush1.bf16.msra.mxu0 %v8534
    %9037 = vmatprep.subr.bf16.mxu0 0
    %9038 = vmatpush1.bf16.msra.mxu0 %v8535
    %9039 = vmatprep.subr.bf16.mxu0 0
    %9040 = vmatpush1.bf16.msra.mxu0 %v8536
    %9041 = vmatprep.subr.bf16.mxu0 0
    %9042 = vmatpush1.bf16.msra.mxu0 %v8537
    %9043 = vmatprep.subr.bf16.mxu0 0
    %9044 = vmatpush1.bf16.msra.mxu0 %v8538
    %9045 = vmatprep.subr.bf16.mxu0 0
    %9046 = vmatpush1.bf16.msra.mxu0 %v8539
    %9047 = vmatprep.subr.bf16.mxu0 0
    %9048 = vmatpush1.bf16.msra.mxu0 %v8540
    %9049 = vmatprep.subr.bf16.mxu0 0
    %9050 = vmatpush1.bf16.msra.mxu0 %v8541
    %9051 = vmatprep.subr.bf16.mxu0 0
    %9052 = vmatpush1.bf16.msra.mxu0 %v8542
    %9053 = vmatprep.subr.bf16.mxu0 0
    %9054 = vmatpush1.bf16.msra.mxu0 %v8543
    %9055 = vmatprep.subr.bf16.mxu0 0
    %9056 = vmatpush1.bf16.msra.mxu0 %v8544
    %9057 = vmatprep.subr.bf16.mxu0 0
    %9058 = vmatpush1.bf16.msra.mxu0 %v8545
    %9059 = vmatprep.subr.bf16.mxu0 0
    %9060 = vmatpush1.bf16.msra.mxu0 %v8546
    %9061 = vmatprep.subr.bf16.mxu0 0
    %9062 = vmatpush1.bf16.msra.mxu0 %v8547
    %9063 = vmatprep.mubr.bf16.mxu0 %v7595
    %9064 = vmatmul.mubr.bf16.gmra.mrb[0].mxu0 %v7594
    %v9065 = vpop.f32.mrb[0].mxu0
    %v9066 = vadd.f32 %v8969, %v9065
    %v9067 = vpop.f32.mrb[0].mxu0
    %v9068 = vpop.f32.mrb[0].mxu0
    %v9069 = vadd.f32 %v8972, %v9068
    %v9070 = vpop.f32.mrb[0].mxu0
    %9071 = vmatprep.mubr.bf16.mxu0 %v7611
    %9072 = vmatmul.mubr.bf16.gmra.mrb[0].mxu0 %v7610
    %v9073 = vpop.f32.mrb[0].mxu0
    %v9074 = vadd.f32 %v8977, %v9073
    %v9075 = vpop.f32.mrb[0].mxu0
    %v9076 = vpop.f32.mrb[0].mxu0
    %v9077 = vadd.f32 %v8980, %v9076
    %v9078 = vpop.f32.mrb[0].mxu0
    %9079 = vmatprep.mubr.bf16.mxu0 %v7627
    %9080 = vmatmul.mubr.bf16.gmra.mrb[0].mxu0 %v7626
    %v9081 = vpop.f32.mrb[0].mxu0
    %v9082 = vadd.f32 %v8985, %v9081
    %v9083 = vpop.f32.mrb[0].mxu0
    %v9084 = vpop.f32.mrb[0].mxu0
    %v9085 = vadd.f32 %v8988, %v9084
    %v9086 = vpop.f32.mrb[0].mxu0
    %9087 = vmatprep.mubr.bf16.mxu0 %v7643
    %9088 = vmatmul.mubr.bf16.gmra.mrb[0].mxu0 %v7642
    %v9089 = vpop.f32.mrb[0].mxu0
    %v9090 = vadd.f32 %v8993, %v9089
    %v9091 = vpop.f32.mrb[0].mxu0
    %v9092 = vpop.f32.mrb[0].mxu0
    %v9093 = vadd.f32 %v8996, %v9092
    %v9094 = vpop.f32.mrb[0].mxu0
    %9095 = vmatprep.mubr.bf16.mxu0 %v7659
    %9096 = vmatmul.mubr.bf16.gmra.mrb[0].mxu0 %v7658
    %v9097 = vpop.f32.mrb[0].mxu0
    %v9098 = vadd.f32 %v9001, %v9097
    %v9099 = vpop.f32.mrb[0].mxu0
    %v9100 = vpop.f32.mrb[0].mxu0
    %v9101 = vadd.f32 %v9004, %v9100
    %v9102 = vpop.f32.mrb[0].mxu0
    %9103 = vmatprep.mubr.bf16.mxu0 %v7675
    %9104 = vmatmul.mubr.bf16.gmra.mrb[0].mxu0 %v7674
    %v9105 = vpop.f32.mrb[0].mxu0
    %v9106 = vadd.f32 %v9009, %v9105
    %v9107 = vpop.f32.mrb[0].mxu0
    %v9108 = vpop.f32.mrb[0].mxu0
    %v9109 = vadd.f32 %v9012, %v9108
    %v9110 = vpop.f32.mrb[0].mxu0
    %9111 = vmatprep.mubr.bf16.mxu0 %v7691
    %9112 = vmatmul.mubr.bf16.gmra.mrb[0].mxu0 %v7690
    %v9113 = vpop.f32.mrb[0].mxu0
    %v9114 = vadd.f32 %v9017, %v9113
    %v9115 = vpop.f32.mrb[0].mxu0
    %v9116 = vpop.f32.mrb[0].mxu0
    %v9117 = vadd.f32 %v9020, %v9116
    %v9118 = vpop.f32.mrb[0].mxu0
    %9119 = vmatprep.mubr.bf16.mxu0 %v7707
    %9120 = vmatmul.mubr.bf16.gmra.mrb[0].mxu0 %v7706
    %v9121 = vpop.f32.mrb[0].mxu0
    %v9122 = vadd.f32 %v9025, %v9121
    %v9123 = vpop.f32.mrb[0].mxu0
    %v9124 = vpop.f32.mrb[0].mxu0
    %v9125 = vadd.f32 %v9028, %v9124
    %v9126 = vpop.f32.mrb[0].mxu0
    %9127 = vdwg.mxu0
    %9128 = vmatprep.subr.bf16.mxu0 0
    %9129 = vmatpush1.bf16.msra.mxu0 %v8548
    %9130 = vmatprep.subr.bf16.mxu0 0
    %9131 = vmatpush1.bf16.msra.mxu0 %v8549
    %9132 = vmatprep.subr.bf16.mxu0 0
    %9133 = vmatpush1.bf16.msra.mxu0 %v8550
    %9134 = vmatprep.subr.bf16.mxu0 0
    %9135 = vmatpush1.bf16.msra.mxu0 %v8551
    %9136 = vmatprep.subr.bf16.mxu0 0
    %9137 = vmatpush1.bf16.msra.mxu0 %v8552
    %9138 = vmatprep.subr.bf16.mxu0 0
    %9139 = vmatpush1.bf16.msra.mxu0 %v8553
    %9140 = vmatprep.subr.bf16.mxu0 0
    %9141 = vmatpush1.bf16.msra.mxu0 %v8554
    %9142 = vmatprep.subr.bf16.mxu0 0
    %9143 = vmatpush1.bf16.msra.mxu0 %v8555
    %9144 = vmatprep.subr.bf16.mxu0 0
    %9145 = vmatpush1.bf16.msra.mxu0 %v8556
    %9146 = vmatprep.subr.bf16.mxu0 0
    %9147 = vmatpush1.bf16.msra.mxu0 %v8557
    %9148 = vmatprep.subr.bf16.mxu0 0
    %9149 = vmatpush1.bf16.msra.mxu0 %v8558
    %9150 = vmatprep.subr.bf16.mxu0 0
    %9151 = vmatpush1.bf16.msra.mxu0 %v8559
    %9152 = vmatprep.subr.bf16.mxu0 0
    %9153 = vmatpush1.bf16.msra.mxu0 %v8560
    %9154 = vmatprep.subr.bf16.mxu0 0
    %9155 = vmatpush1.bf16.msra.mxu0 %v8561
    %9156 = vmatprep.subr.bf16.mxu0 0
    %9157 = vmatpush1.bf16.msra.mxu0 %v8562
    %9158 = vmatprep.subr.bf16.mxu0 0
    %9159 = vmatpush1.bf16.msra.mxu0 %v8563
    %9160 = vmatprep.mubr.bf16.mxu0 %v7597
    %9161 = vmatmul.mubr.bf16.gmra.mrb[0].mxu0 %v7596
    %v9162 = vpop.f32.mrb[0].mxu0
    %v9163 = vadd.f32 %v9066, %v9162
    %v9164 = vpop.f32.mrb[0].mxu0
    %v9165 = vpop.f32.mrb[0].mxu0
    %v9166 = vadd.f32 %v9069, %v9165
    %v9167 = vpop.f32.mrb[0].mxu0
    %9168 = vmatprep.mubr.bf16.mxu0 %v7613
    %9169 = vmatmul.mubr.bf16.gmra.mrb[0].mxu0 %v7612
    %v9170 = vpop.f32.mrb[0].mxu0
    %v9171 = vadd.f32 %v9074, %v9170
    %v9172 = vpop.f32.mrb[0].mxu0
    %v9173 = vpop.f32.mrb[0].mxu0
    %v9174 = vadd.f32 %v9077, %v9173
    %v9175 = vpop.f32.mrb[0].mxu0
    %9176 = vmatprep.mubr.bf16.mxu0 %v7629
    %9177 = vmatmul.mubr.bf16.gmra.mrb[0].mxu0 %v7628
    %v9178 = vpop.f32.mrb[0].mxu0
    %v9179 = vadd.f32 %v9082, %v9178
    %v9180 = vpop.f32.mrb[0].mxu0
    %v9181 = vpop.f32.mrb[0].mxu0
    %v9182 = vadd.f32 %v9085, %v9181
    %v9183 = vpop.f32.mrb[0].mxu0
    %9184 = vmatprep.mubr.bf16.mxu0 %v7645
    %9185 = vmatmul.mubr.bf16.gmra.mrb[0].mxu0 %v7644
    %v9186 = vpop.f32.mrb[0].mxu0
    %v9187 = vadd.f32 %v9090, %v9186
    %v9188 = vpop.f32.mrb[0].mxu0
    %v9189 = vpop.f32.mrb[0].mxu0
    %v9190 = vadd.f32 %v9093, %v9189
    %v9191 = vpop.f32.mrb[0].mxu0
    %9192 = vmatprep.mubr.bf16.mxu0 %v7661
    %9193 = vmatmul.mubr.bf16.gmra.mrb[0].mxu0 %v7660
    %v9194 = vpop.f32.mrb[0].mxu0
    %v9195 = vadd.f32 %v9098, %v9194
    %v9196 = vpop.f32.mrb[0].mxu0
    %v9197 = vpop.f32.mrb[0].mxu0
    %v9198 = vadd.f32 %v9101, %v9197
    %v9199 = vpop.f32.mrb[0].mxu0
    %9200 = vmatprep.mubr.bf16.mxu0 %v7677
    %9201 = vmatmul.mubr.bf16.gmra.mrb[0].mxu0 %v7676
    %v9202 = vpop.f32.mrb[0].mxu0
    %v9203 = vadd.f32 %v9106, %v9202
    %v9204 = vpop.f32.mrb[0].mxu0
    %v9205 = vpop.f32.mrb[0].mxu0
    %v9206 = vadd.f32 %v9109, %v9205
    %v9207 = vpop.f32.mrb[0].mxu0
    %9208 = vmatprep.mubr.bf16.mxu0 %v7693
    %9209 = vmatmul.mubr.bf16.gmra.mrb[0].mxu0 %v7692
    %v9210 = vpop.f32.mrb[0].mxu0
    %v9211 = vadd.f32 %v9114, %v9210
    %v9212 = vpop.f32.mrb[0].mxu0
    %v9213 = vpop.f32.mrb[0].mxu0
    %v9214 = vadd.f32 %v9117, %v9213
    %v9215 = vpop.f32.mrb[0].mxu0
    %9216 = vmatprep.mubr.bf16.mxu0 %v7709
    %9217 = vmatmul.mubr.bf16.gmra.mrb[0].mxu0 %v7708
    %v9218 = vpop.f32.mrb[0].mxu0
    %v9219 = vadd.f32 %v9122, %v9218
    %v9220 = vpop.f32.mrb[0].mxu0
    %v9221 = vpop.f32.mrb[0].mxu0
    %v9222 = vadd.f32 %v9125, %v9221
    %v9223 = vpop.f32.mrb[0].mxu0
    %9224 = vdwg.mxu0
    %9225 = vmatprep.subr.bf16.mxu0 0
    %9226 = vmatpush1.bf16.msra.mxu0 %v8564
    %9227 = vmatprep.subr.bf16.mxu0 0
    %9228 = vmatpush1.bf16.msra.mxu0 %v8565
    %9229 = vmatprep.subr.bf16.mxu0 0
    %9230 = vmatpush1.bf16.msra.mxu0 %v8566
    %9231 = vmatprep.subr.bf16.mxu0 0
    %9232 = vmatpush1.bf16.msra.mxu0 %v8567
    %9233 = vmatprep.subr.bf16.mxu0 0
    %9234 = vmatpush1.bf16.msra.mxu0 %v8568
    %9235 = vmatprep.subr.bf16.mxu0 0
    %9236 = vmatpush1.bf16.msra.mxu0 %v8569
    %9237 = vmatprep.subr.bf16.mxu0 0
    %9238 = vmatpush1.bf16.msra.mxu0 %v8570
    %9239 = vmatprep.subr.bf16.mxu0 0
    %9240 = vmatpush1.bf16.msra.mxu0 %v8571
    %9241 = vmatprep.subr.bf16.mxu0 0
    %9242 = vmatpush1.bf16.msra.mxu0 %v8572
    %9243 = vmatprep.subr.bf16.mxu0 0
    %9244 = vmatpush1.bf16.msra.mxu0 %v8573
    %9245 = vmatprep.subr.bf16.mxu0 0
    %9246 = vmatpush1.bf16.msra.mxu0 %v8574
    %9247 = vmatprep.subr.bf16.mxu0 0
    %9248 = vmatpush1.bf16.msra.mxu0 %v8575
    %9249 = vmatprep.subr.bf16.mxu0 0
    %9250 = vmatpush1.bf16.msra.mxu0 %v8576
    %9251 = vmatprep.subr.bf16.mxu0 0
    %9252 = vmatpush1.bf16.msra.mxu0 %v8577
    %9253 = vmatprep.subr.bf16.mxu0 0
    %9254 = vmatpush1.bf16.msra.mxu0 %v8578
    %9255 = vmatprep.subr.bf16.mxu0 0
    %9256 = vmatpush1.bf16.msra.mxu0 %v8579
    %9257 = vmatprep.mubr.bf16.mxu0 %v7599
    %9258 = vmatmul.mubr.bf16.gmra.mrb[0].mxu0 %v7598
    %v9259 = vpop.f32.mrb[0].mxu0
    %v9260 = vadd.f32 %v9163, %v9259
    %v9261 = vpop.f32.mrb[0].mxu0
    %v9262 = vpop.f32.mrb[0].mxu0
    %v9263 = vadd.f32 %v9166, %v9262
    %v9264 = vpop.f32.mrb[0].mxu0
    %9265 = vmatprep.mubr.bf16.mxu0 %v7615
    %9266 = vmatmul.mubr.bf16.gmra.mrb[0].mxu0 %v7614
    %v9267 = vpop.f32.mrb[0].mxu0
    %v9268 = vadd.f32 %v9171, %v9267
    %v9269 = vpop.f32.mrb[0].mxu0
    %v9270 = vpop.f32.mrb[0].mxu0
    %v9271 = vadd.f32 %v9174, %v9270
    %v9272 = vpop.f32.mrb[0].mxu0
    %9273 = vmatprep.mubr.bf16.mxu0 %v7631
    %9274 = vmatmul.mubr.bf16.gmra.mrb[0].mxu0 %v7630
    %v9275 = vpop.f32.mrb[0].mxu0
    %v9276 = vadd.f32 %v9179, %v9275
    %v9277 = vpop.f32.mrb[0].mxu0
    %v9278 = vpop.f32.mrb[0].mxu0
    %v9279 = vadd.f32 %v9182, %v9278
    %v9280 = vpop.f32.mrb[0].mxu0
    %9281 = vmatprep.mubr.bf16.mxu0 %v7647
    %9282 = vmatmul.mubr.bf16.gmra.mrb[0].mxu0 %v7646
    %v9283 = vpop.f32.mrb[0].mxu0
    %v9284 = vadd.f32 %v9187, %v9283
    %v9285 = vpop.f32.mrb[0].mxu0
    %v9286 = vpop.f32.mrb[0].mxu0
    %v9287 = vadd.f32 %v9190, %v9286
    %v9288 = vpop.f32.mrb[0].mxu0
    %9289 = vmatprep.mubr.bf16.mxu0 %v7663
    %9290 = vmatmul.mubr.bf16.gmra.mrb[0].mxu0 %v7662
    %v9291 = vpop.f32.mrb[0].mxu0
    %v9292 = vadd.f32 %v9195, %v9291
    %v9293 = vpop.f32.mrb[0].mxu0
    %v9294 = vpop.f32.mrb[0].mxu0
    %v9295 = vadd.f32 %v9198, %v9294
    %v9296 = vpop.f32.mrb[0].mxu0
    %9297 = vmatprep.mubr.bf16.mxu0 %v7679
    %9298 = vmatmul.mubr.bf16.gmra.mrb[0].mxu0 %v7678
    %v9299 = vpop.f32.mrb[0].mxu0
    %v9300 = vadd.f32 %v9203, %v9299
    %v9301 = vpop.f32.mrb[0].mxu0
    %v9302 = vpop.f32.mrb[0].mxu0
    %v9303 = vadd.f32 %v9206, %v9302
    %v9304 = vpop.f32.mrb[0].mxu0
    %9305 = vmatprep.mubr.bf16.mxu0 %v7695
    %9306 = vmatmul.mubr.bf16.gmra.mrb[0].mxu0 %v7694
    %v9307 = vpop.f32.mrb[0].mxu0
    %v9308 = vadd.f32 %v9211, %v9307
    %v9309 = vpop.f32.mrb[0].mxu0
    %v9310 = vpop.f32.mrb[0].mxu0
    %v9311 = vadd.f32 %v9214, %v9310
    %v9312 = vpop.f32.mrb[0].mxu0
    %9313 = vmatprep.mubr.bf16.mxu0 %v7711
    %9314 = vmatmul.mubr.bf16.gmra.mrb[0].mxu0 %v7710
    %v9315 = vpop.f32.mrb[0].mxu0
    %v9316 = vadd.f32 %v9219, %v9315
    %v9317 = vpop.f32.mrb[0].mxu0
    %v9318 = vpop.f32.mrb[0].mxu0
    %v9319 = vadd.f32 %v9222, %v9318
    %v9320 = vpop.f32.mrb[0].mxu0
    %9321 = vdwg.mxu0
    %9322 = vmatprep.subr.bf16.mxu0 0
    %9323 = vmatpush1.bf16.msra.mxu0 %v8580
    %9324 = vmatprep.subr.bf16.mxu0 0
    %9325 = vmatpush1.bf16.msra.mxu0 %v8581
    %9326 = vmatprep.subr.bf16.mxu0 0
    %9327 = vmatpush1.bf16.msra.mxu0 %v8582
    %9328 = vmatprep.subr.bf16.mxu0 0
    %9329 = vmatpush1.bf16.msra.mxu0 %v8583
    %9330 = vmatprep.subr.bf16.mxu0 0
    %9331 = vmatpush1.bf16.msra.mxu0 %v8584
    %9332 = vmatprep.subr.bf16.mxu0 0
    %9333 = vmatpush1.bf16.msra.mxu0 %v8585
    %9334 = vmatprep.subr.bf16.mxu0 0
    %9335 = vmatpush1.bf16.msra.mxu0 %v8586
    %9336 = vmatprep.subr.bf16.mxu0 0
    %9337 = vmatpush1.bf16.msra.mxu0 %v8587
    %9338 = vmatprep.subr.bf16.mxu0 0
    %9339 = vmatpush1.bf16.msra.mxu0 %v8588
    %9340 = vmatprep.subr.bf16.mxu0 0
    %9341 = vmatpush1.bf16.msra.mxu0 %v8589
    %9342 = vmatprep.subr.bf16.mxu0 0
    %9343 = vmatpush1.bf16.msra.mxu0 %v8590
    %9344 = vmatprep.subr.bf16.mxu0 0
    %9345 = vmatpush1.bf16.msra.mxu0 %v8591
    %9346 = vmatprep.subr.bf16.mxu0 0
    %9347 = vmatpush1.bf16.msra.mxu0 %v8592
    %9348 = vmatprep.subr.bf16.mxu0 0
    %9349 = vmatpush1.bf16.msra.mxu0 %v8593
    %9350 = vmatprep.subr.bf16.mxu0 0
    %9351 = vmatpush1.bf16.msra.mxu0 %v8594
    %9352 = vmatprep.subr.bf16.mxu0 0
    %9353 = vmatpush1.bf16.msra.mxu0 %v8595
    %9354 = vmatprep.mubr.bf16.mxu0 %v7601
    %9355 = vmatmul.mubr.bf16.gmra.mrb[0].mxu0 %v7600
    %v9356 = vpop.f32.mrb[0].mxu0
    %v9357 = vadd.f32 %v9260, %v9356
    %v9358 = vpop.f32.mrb[0].mxu0
    %v9359 = vpop.f32.mrb[0].mxu0
    %v9360 = vadd.f32 %v9263, %v9359
    %v9361 = vpop.f32.mrb[0].mxu0
    %9362 = vmatprep.mubr.bf16.mxu0 %v7617
    %9363 = vmatmul.mubr.bf16.gmra.mrb[0].mxu0 %v7616
    %v9364 = vpop.f32.mrb[0].mxu0
    %v9365 = vadd.f32 %v9268, %v9364
    %v9366 = vpop.f32.mrb[0].mxu0
    %v9367 = vpop.f32.mrb[0].mxu0
    %v9368 = vadd.f32 %v9271, %v9367
    %v9369 = vpop.f32.mrb[0].mxu0
    %9370 = vmatprep.mubr.bf16.mxu0 %v7633
    %9371 = vmatmul.mubr.bf16.gmra.mrb[0].mxu0 %v7632
    %v9372 = vpop.f32.mrb[0].mxu0
    %v9373 = vadd.f32 %v9276, %v9372
    %v9374 = vpop.f32.mrb[0].mxu0
    %v9375 = vpop.f32.mrb[0].mxu0
    %v9376 = vadd.f32 %v9279, %v9375
    %v9377 = vpop.f32.mrb[0].mxu0
    %9378 = vmatprep.mubr.bf16.mxu0 %v7649
    %9379 = vmatmul.mubr.bf16.gmra.mrb[0].mxu0 %v7648
    %v9380 = vpop.f32.mrb[0].mxu0
    %v9381 = vadd.f32 %v9284, %v9380
    %v9382 = vpop.f32.mrb[0].mxu0
    %v9383 = vpop.f32.mrb[0].mxu0
    %v9384 = vadd.f32 %v9287, %v9383
    %v9385 = vpop.f32.mrb[0].mxu0
    %9386 = vmatprep.mubr.bf16.mxu0 %v7665
    %9387 = vmatmul.mubr.bf16.gmra.mrb[0].mxu0 %v7664
    %v9388 = vpop.f32.mrb[0].mxu0
    %v9389 = vadd.f32 %v9292, %v9388
    %v9390 = vpop.f32.mrb[0].mxu0
    %v9391 = vpop.f32.mrb[0].mxu0
    %v9392 = vadd.f32 %v9295, %v9391
    %v9393 = vpop.f32.mrb[0].mxu0
    %9394 = vmatprep.mubr.bf16.mxu0 %v7681
    %9395 = vmatmul.mubr.bf16.gmra.mrb[0].mxu0 %v7680
    %v9396 = vpop.f32.mrb[0].mxu0
    %v9397 = vadd.f32 %v9300, %v9396
    %v9398 = vpop.f32.mrb[0].mxu0
    %v9399 = vpop.f32.mrb[0].mxu0
    %v9400 = vadd.f32 %v9303, %v9399
    %v9401 = vpop.f32.mrb[0].mxu0
    %9402 = vmatprep.mubr.bf16.mxu0 %v7697
    %9403 = vmatmul.mubr.bf16.gmra.mrb[0].mxu0 %v7696
    %v9404 = vpop.f32.mrb[0].mxu0
    %v9405 = vadd.f32 %v9308, %v9404
    %v9406 = vpop.f32.mrb[0].mxu0
    %v9407 = vpop.f32.mrb[0].mxu0
    %v9408 = vadd.f32 %v9311, %v9407
    %v9409 = vpop.f32.mrb[0].mxu0
    %9410 = vmatprep.mubr.bf16.mxu0 %v7713
    %9411 = vmatmul.mubr.bf16.gmra.mrb[0].mxu0 %v7712
    %v9412 = vpop.f32.mrb[0].mxu0
    %v9413 = vadd.f32 %v9316, %v9412
    %v9414 = vpop.f32.mrb[0].mxu0
    %v9415 = vpop.f32.mrb[0].mxu0
    %v9416 = vadd.f32 %v9319, %v9415
    %v9417 = vpop.f32.mrb[0].mxu0
    %9418 = vdwg.mxu0
    %9419 = vmatprep.subr.bf16.mxu0 0
    %9420 = vmatpush1.bf16.msra.mxu0 %v8596
    %9421 = vmatprep.subr.bf16.mxu0 0
    %9422 = vmatpush1.bf16.msra.mxu0 %v8597
    %9423 = vmatprep.subr.bf16.mxu0 0
    %9424 = vmatpush1.bf16.msra.mxu0 %v8598
    %9425 = vmatprep.subr.bf16.mxu0 0
    %9426 = vmatpush1.bf16.msra.mxu0 %v8599
    %9427 = vmatprep.subr.bf16.mxu0 0
    %9428 = vmatpush1.bf16.msra.mxu0 %v8600
    %9429 = vmatprep.subr.bf16.mxu0 0
    %9430 = vmatpush1.bf16.msra.mxu0 %v8601
    %9431 = vmatprep.subr.bf16.mxu0 0
    %9432 = vmatpush1.bf16.msra.mxu0 %v8602
    %9433 = vmatprep.subr.bf16.mxu0 0
    %9434 = vmatpush1.bf16.msra.mxu0 %v8603
    %9435 = vmatprep.subr.bf16.mxu0 0
    %9436 = vmatpush1.bf16.msra.mxu0 %v8604
    %9437 = vmatprep.subr.bf16.mxu0 0
    %9438 = vmatpush1.bf16.msra.mxu0 %v8605
    %9439 = vmatprep.subr.bf16.mxu0 0
    %9440 = vmatpush1.bf16.msra.mxu0 %v8606
    %9441 = vmatprep.subr.bf16.mxu0 0
    %9442 = vmatpush1.bf16.msra.mxu0 %v8607
    %9443 = vmatprep.subr.bf16.mxu0 0
    %9444 = vmatpush1.bf16.msra.mxu0 %v8608
    %9445 = vmatprep.subr.bf16.mxu0 0
    %9446 = vmatpush1.bf16.msra.mxu0 %v8609
    %9447 = vmatprep.subr.bf16.mxu0 0
    %9448 = vmatpush1.bf16.msra.mxu0 %v8610
    %9449 = vmatprep.subr.bf16.mxu0 0
    %9450 = vmatpush1.bf16.msra.mxu0 %v8611
    %9451 = vmatprep.mubr.bf16.mxu0 %v7603
    %9452 = vmatmul.mubr.bf16.gmra.mrb[0].mxu0 %v7602
    %v9453 = vpop.f32.mrb[0].mxu0
    %v9454 = vadd.f32 %v9357, %v9453
    %v9455 = vpop.f32.mrb[0].mxu0
    %v9456 = vpop.f32.mrb[0].mxu0
    %v9457 = vadd.f32 %v9360, %v9456
    %v9458 = vpop.f32.mrb[0].mxu0
    %9459 = vmatprep.mubr.bf16.mxu0 %v7619
    %9460 = vmatmul.mubr.bf16.gmra.mrb[0].mxu0 %v7618
    %v9461 = vpop.f32.mrb[0].mxu0
    %v9462 = vadd.f32 %v9365, %v9461
    %v9463 = vpop.f32.mrb[0].mxu0
    %v9464 = vpop.f32.mrb[0].mxu0
    %v9465 = vadd.f32 %v9368, %v9464
    %v9466 = vpop.f32.mrb[0].mxu0
    %9467 = vmatprep.mubr.bf16.mxu0 %v7635
    %9468 = vmatmul.mubr.bf16.gmra.mrb[0].mxu0 %v7634
    %v9469 = vpop.f32.mrb[0].mxu0
    %v9470 = vadd.f32 %v9373, %v9469
    %v9471 = vpop.f32.mrb[0].mxu0
    %v9472 = vpop.f32.mrb[0].mxu0
    %v9473 = vadd.f32 %v9376, %v9472
    %v9474 = vpop.f32.mrb[0].mxu0
    %9475 = vmatprep.mubr.bf16.mxu0 %v7651
    %9476 = vmatmul.mubr.bf16.gmra.mrb[0].mxu0 %v7650
    %v9477 = vpop.f32.mrb[0].mxu0
    %v9478 = vadd.f32 %v9381, %v9477
    %v9479 = vpop.f32.mrb[0].mxu0
    %v9480 = vpop.f32.mrb[0].mxu0
    %v9481 = vadd.f32 %v9384, %v9480
    %v9482 = vpop.f32.mrb[0].mxu0
    %9483 = vmatprep.mubr.bf16.mxu0 %v7667
    %9484 = vmatmul.mubr.bf16.gmra.mrb[0].mxu0 %v7666
    %v9485 = vpop.f32.mrb[0].mxu0
    %v9486 = vadd.f32 %v9389, %v9485
    %v9487 = vpop.f32.mrb[0].mxu0
    %v9488 = vpop.f32.mrb[0].mxu0
    %v9489 = vadd.f32 %v9392, %v9488
    %v9490 = vpop.f32.mrb[0].mxu0
    %9491 = vmatprep.mubr.bf16.mxu0 %v7683
    %9492 = vmatmul.mubr.bf16.gmra.mrb[0].mxu0 %v7682
    %v9493 = vpop.f32.mrb[0].mxu0
    %v9494 = vadd.f32 %v9397, %v9493
    %v9495 = vpop.f32.mrb[0].mxu0
    %v9496 = vpop.f32.mrb[0].mxu0
    %v9497 = vadd.f32 %v9400, %v9496
    %v9498 = vpop.f32.mrb[0].mxu0
    %9499 = vmatprep.mubr.bf16.mxu0 %v7699
    %9500 = vmatmul.mubr.bf16.gmra.mrb[0].mxu0 %v7698
    %v9501 = vpop.f32.mrb[0].mxu0
    %v9502 = vadd.f32 %v9405, %v9501
    %v9503 = vpop.f32.mrb[0].mxu0
    %v9504 = vpop.f32.mrb[0].mxu0
    %v9505 = vadd.f32 %v9408, %v9504
    %v9506 = vpop.f32.mrb[0].mxu0
    %9507 = vmatprep.mubr.bf16.mxu0 %v7715
    %9508 = vmatmul.mubr.bf16.gmra.mrb[0].mxu0 %v7714
    %v9509 = vpop.f32.mrb[0].mxu0
    %v9510 = vadd.f32 %v9413, %v9509
    %v9511 = vpop.f32.mrb[0].mxu0
    %v9512 = vpop.f32.mrb[0].mxu0
    %v9513 = vadd.f32 %v9416, %v9512
    %v9514 = vpop.f32.mrb[0].mxu0
    %9515 = vdwg.mxu0
    %v9516 = vadd.f32 %v4454, %v9454
    %v9517 = vadd.f32 %v4457, %v9457
    %v9518 = vadd.f32 %v4462, %v9462
    %v9519 = vadd.f32 %v4465, %v9465
    %v9520 = vadd.f32 %v4470, %v9470
    %v9521 = vadd.f32 %v4473, %v9473
    %v9522 = vadd.f32 %v4478, %v9478
    %v9523 = vadd.f32 %v4481, %v9481
    %v9524 = vadd.f32 %v4486, %v9486
    %v9525 = vadd.f32 %v4489, %v9489
    %v9526 = vadd.f32 %v4494, %v9494
    %v9527 = vadd.f32 %v4497, %v9497
    %v9528 = vadd.f32 %v4502, %v9502
    %v9529 = vadd.f32 %v4505, %v9505
    %v9530 = vadd.f32 %v4510, %v9510
    %v9531 = vadd.f32 %v4513, %v9513
    %v9532 = vld [vmem:[%s4] sm:$0x1]
    %v9534 = vlaneseq
    %v9535 = vshrl.u32 %v9534, 7
    %v9536 = vsub.s32 0, %v9535
    %v9537 = vrot.slane %v9532, %v9536
    %v9539 = vadd.f32 %v9516, %v9537
    %v9540 = vadd.f32 %v9517, %v9537
    %v9541 = vadd.f32 %v9518, %v9537
    %v9542 = vadd.f32 %v9519, %v9537
    %v9543 = vadd.f32 %v9520, %v9537
    %v9544 = vadd.f32 %v9521, %v9537
    %v9545 = vadd.f32 %v9522, %v9537
    %v9546 = vadd.f32 %v9523, %v9537
    %v9547 = vadd.f32 %v9524, %v9537
    %v9548 = vadd.f32 %v9525, %v9537
    %v9549 = vadd.f32 %v9526, %v9537
    %v9550 = vadd.f32 %v9527, %v9537
    %v9551 = vadd.f32 %v9528, %v9537
    %v9552 = vadd.f32 %v9529, %v9537
    %v9553 = vadd.f32 %v9530, %v9537
    %v9554 = vadd.f32 %v9531, %v9537
    %9555 = vst [vmem:[#allocation10] sm:$0xff] %v9539
    %9556 = vst [vmem:[#allocation10 + $0x8] sm:$0xff] %v9540
    %9557 = vst [vmem:[#allocation10 + $0x10] sm:$0xff] %v9541
    %9558 = vst [vmem:[#allocation10 + $0x18] sm:$0xff] %v9542
    %9559 = vst [vmem:[#allocation10 + $0x20] sm:$0xff] %v9543
    %9560 = vst [vmem:[#allocation10 + $0x28] sm:$0xff] %v9544
    %9561 = vst [vmem:[#allocation10 + $0x30] sm:$0xff] %v9545
    %9562 = vst [vmem:[#allocation10 + $0x38] sm:$0xff] %v9546
    %9563 = vst [vmem:[#allocation10 + $0x40] sm:$0xff] %v9547
    %9564 = vst [vmem:[#allocation10 + $0x48] sm:$0xff] %v9548
    %9565 = vst [vmem:[#allocation10 + $0x50] sm:$0xff] %v9549
    %9566 = vst [vmem:[#allocation10 + $0x58] sm:$0xff] %v9550
    %9567 = vst [vmem:[#allocation10 + $0x60] sm:$0xff] %v9551
    %9568 = vst [vmem:[#allocation10 + $0x68] sm:$0xff] %v9552
    %9569 = vst [vmem:[#allocation10 + $0x70] sm:$0xff] %v9553
    %9570 = vst [vmem:[#allocation10 + $0x78] sm:$0xff] %v9554
    // Predicated region
    $region38: #{tpu_custom_call.1} parent=1 // pred_check
      _
    $region39: #{tpu_custom_call.1} parent=1 // pred_check_branch
      %9572 = sbr.rel (0) target = $region41
    $region40: #{tpu_custom_call.1} parent=1 // pred_region
      %s9574 = ssub.s32 2048, 32
      %9575 = vsyncadd [#allocation4], %s9574
      %s9576 = sshll.u32 [#allocation10], 4
      %s9577 = int_to_ptr.vmem [resolvable:$true] %s9576
      %9582 = dma.vmem_to_hbm [thread:$0]  %s9577, 32, %s5, [#allocation4], 32, 32, 2
    $region41: #{tpu_custom_call.1} parent=1 // pred_fallthru
      _
    // Predicated region
    $region42: #{tpu_custom_call.1} parent=1 // pred_check
      _
    $region43: #{tpu_custom_call.1} parent=1 // pred_check_branch
      %9584 = sbr.rel (0) target = $region45
    $region44: #{tpu_custom_call.1} parent=1 // pred_region
      %9585 = dma.done [#allocation4], 2048
    $region45: #{tpu_custom_call.1} parent=1 // pred_fallthru
      _
    %9586 = vsyncpa [#allocation3], 1
    %9587 = vsyncpa [#allocation6], 1
    %9588 = vsyncpa [#allocation9], 1
    %9589 = vsyncpa [#allocation4], 1

</llo_original>
